<compile_context>
chip_gen: v7x
topology: tpu7x:2x2x1
jax: 0.10.0
libtpu: 0.0.40
codegen_flags: <defaults>
</compile_context>

<pallas_src>
from types import SimpleNamespace

import numpy as np

import jax
import jax.numpy as jnp
from jax.experimental import pallas as pl
from jax.experimental.pallas import tpu as pltpu


# ----------------------------------------------------------------------------
# Small helpers
# ----------------------------------------------------------------------------
def _round_up(n, m):
    return ((n + m - 1) // m) * m


def _tree_sum(xs):
    """Balanced pairwise sum (breaks long serial f32 add chains)."""
    xs = list(xs)
    while len(xs) > 1:
        nxt = [xs[i] + xs[i + 1] for i in range(0, len(xs) - 1, 2)]
        if len(xs) % 2:
            nxt.append(xs[-1])
        xs = nxt
    return xs[0]


def _full_spec(shape):
    # Full-array block under grid=(1,): block == array dims, so it is exempt
    # from the (8,128) divisibility rule.
    zeros = (0,) * len(shape)
    return pl.BlockSpec(shape, lambda i: zeros)


def _conv_selection_stack(b, ih, iw, oh, ow, stride=2, pad=1):
    """[9*b*oh*ow, b*ih*iw] 0/1 matrix: rows t*b*oh*ow.. gather tap t's input
    pixel for every output position (zero rows encode the zero padding)."""
    m_out, m_in = b * oh * ow, b * ih * iw
    s = np.zeros((9 * m_out, m_in), np.float32)
    for ki in range(3):
        for kj in range(3):
            t = ki * 3 + kj
            for bb in range(b):
                for oy in range(oh):
                    for ox in range(ow):
                        iy = stride * oy + ki - pad
                        ix = stride * ox + kj - pad
                        if 0 <= iy < ih and 0 <= ix < iw:
                            s[t * m_out + bb * oh * ow + oy * ow + ox,
                              bb * ih * iw + iy * iw + ix] = 1.0
    return s


# ----------------------------------------------------------------------------
# One-time model-load packing (review #1, #3): nothing here runs per call.
# ----------------------------------------------------------------------------
def pack_params(params, *, batch, cin, height, width):
    p = {k: np.asarray(v, np.float32) for k, v in params.items()}

    # conv geometry: two 3x3 / stride-2 / pad-1 convs.
    oh1 = (height + 2 - 3) // 2 + 1
    ow1 = (width + 2 - 3) // 2 + 1
    oh2 = (oh1 + 2 - 3) // 2 + 1
    ow2 = (ow1 + 2 - 3) // 2 + 1
    npix = batch * height * width
    m1 = batch * oh1 * ow1
    m2 = batch * oh2 * ow2
    cinp = _round_up(cin, 8)
    c1 = p["conv1_w"].shape[-1]
    c2 = p["conv2_w"].shape[-1]
    h0 = p["fc1_w"].shape[1]
    h1d = p["fc2_w"].shape[1]
    hd = p["fc3_w"].shape[1]
    nc = p["cls_w"].shape[1]
    ncp = _round_up(nc, 128)
    bp = _round_up(batch, 8)

    # --- selection slab: both convs' im2col as stacked 0/1 gather matrices ---
    s1 = _conv_selection_stack(batch, height, width, oh1, ow1)   # [9*m1, npix]
    s2 = _conv_selection_stack(batch, oh1, ow1, oh2, ow2)        # [9*m2, m1]
    sel_w = _round_up(max(npix, m1), 128)
    sel = np.zeros((9 * m1 + 9 * m2, sel_w), np.float32)
    sel[:9 * m1, :npix] = s1
    sel[9 * m1:, :m1] = s2
    if sel.size * 2 > (8 << 20):   # bf16 bytes
        # TODO(synk): sel grows quadratically with spatial size; fall back to a
        # blocked conv before it blows VMEM (v7x 64 MiB is hit first).
        raise NotImplementedError("selection-matrix conv only for toy sizes")

    # --- weight / pool slab (one bf16 matrix stack, lane width >= 128) -------
    ww = _round_up(max(c1, c2, m2, h0, h1d, hd, ncp), 128)
    blocks, row_of = [], {}

    def add(name, mat):
        row_of[name] = sum(blk.shape[0] for blk in blocks)
        blk = np.zeros((_round_up(mat.shape[0], 8), ww), np.float32)
        blk[:mat.shape[0], :mat.shape[1]] = mat
        blocks.append(blk)

    w1_taps = np.zeros((9 * cinp, c1), np.float32)
    w2_taps = np.zeros((9 * c1, c2), np.float32)
    for ki in range(3):
        for kj in range(3):
            t = ki * 3 + kj
            w1_taps[t * cinp:t * cinp + cin] = p["conv1_w"][ki, kj]   # [cin,c1]
            w2_taps[t * c1:(t + 1) * c1] = p["conv2_w"][ki, kj]       # [c1, c2]
    add("w1", w1_taps)
    add("w2", w2_taps)
    # Global-average-pool matrix with the 1/(OH*OW) scale folded in (review #9:
    # no separate pool input / DMA -- it lives in the weight slab).
    pool = np.zeros((bp, m2), np.float32)
    for bb in range(batch):
        pool[bb, bb * oh2 * ow2:(bb + 1) * oh2 * ow2] = 1.0 / (oh2 * ow2)
    add("pool", pool)
    add("fc1", p["fc1_w"])
    add("fc2", p["fc2_w"])
    add("fc3", p["fc3_w"])
    add("cls", np.pad(p["cls_w"], ((0, 0), (0, ncp - nc))))
    wslab = np.concatenate(blocks, axis=0)

    # --- bias slab: one f32 row per bias, single (8, ww) tile ----------------
    bias = np.zeros((8, ww), np.float32)
    bias[0, :c1] = p["conv1_b"]
    bias[1, :c2] = p["conv2_b"]
    bias[2, :h0] = p["fc1_b"]
    bias[3, :h1d] = p["fc2_b"]
    bias[4, :hd] = p["fc3_b"]
    bias[5, :nc] = p["cls_b"]

    bufs = dict(sel=jnp.asarray(sel, jnp.bfloat16),
                w=jnp.asarray(wslab, jnp.bfloat16),
                bias=jnp.asarray(bias, jnp.float32))
    layout = SimpleNamespace(
        batch=batch, cin=cin, cinp=cinp, npix=npix, m1=m1, m2=m2,
        c1=c1, c2=c2, h0=h0, h1d=h1d, hd=hd, nc=nc, ncp=ncp, bp=bp,
        sel_rows=sel.shape[0], sel_w=sel_w, ww=ww,
        w1_r=row_of["w1"], w2_r=row_of["w2"], pool_r=row_of["pool"],
        fc1_r=row_of["fc1"], fc2_r=row_of["fc2"], fc3_r=row_of["fc3"],
        cls_r=row_of["cls"])
    return bufs, layout


# ----------------------------------------------------------------------------
# Fused kernel: conv1 -> conv2 -> GAP -> XRayNet MLP tail -> classifier
# ----------------------------------------------------------------------------
def _make_kernel(L):
    f32 = jnp.float32

    def dot(a, b):
        return jnp.dot(a, b, preferred_element_type=f32)

    def kernel(img_ref, sel_ref, w_ref, bias_ref, o_ref):
        bias = bias_ref[...]                                  # one (8,ww) load

        # ---- conv1: all 9 taps gathered by ONE selection matmul (bf16) -----
        g1 = dot(sel_ref[0:9 * L.m1, 0:L.npix], img_ref[...])   # [9*m1, cinp] f32
        taps = []
        for t in range(9):                                    # independent, K=8
            wt = w_ref[L.w1_r + t * L.cinp:L.w1_r + (t + 1) * L.cinp,
                       0:L.c1].astype(f32)
            taps.append(dot(g1[t * L.m1:(t + 1) * L.m1, :], wt))
        h1 = jnp.maximum(_tree_sum(taps) + bias[0:1, 0:L.c1], 0.0)
        # Cast only h1 (small) so the K=m1 gather matmul below stays pure bf16
        # instead of promoting the large selection slice to f32.
        h1 = h1.astype(jnp.bfloat16)                          # [m1, c1]

        # ---- conv2: same gather-once structure ------------------------------
        g2 = dot(sel_ref[9 * L.m1:L.sel_rows, 0:L.m1], h1)    # [9*m2, c1] f32
        taps = []
        for t in range(9):
            wt = w_ref[L.w2_r + t * L.c1:L.w2_r + (t + 1) * L.c1,
                       0:L.c2].astype(f32)
            taps.append(dot(g2[t * L.m2:(t + 1) * L.m2, :], wt))
        h2 = jnp.maximum(_tree_sum(taps) + bias[1:2, 0:L.c2], 0.0)   # [m2, c2]

        # ---- global average pool as a matmul (1/HW folded into the matrix) -
        pool = w_ref[L.pool_r:L.pool_r + L.bp, 0:L.m2].astype(f32)
        feat = dot(pool, h2)                                  # [bp, c2] f32

        # ---- XRayNet MLP tail + classifier (f32 activations, tiny K;
        #      dropout = identity in eval mode) -------------------------------
        def wslab(r0, k, n):
            return w_ref[r0:r0 + k, 0:n].astype(f32)

        h = jnp.maximum(dot(feat, wslab(L.fc1_r, L.c2, L.h0))
                        + bias[2:3, 0:L.h0], 0.0)
        h = jnp.maximum(dot(h, wslab(L.fc2_r, L.h0, L.h1d))
                        + bias[3:4, 0:L.h1d], 0.0)
        enc = dot(h, wslab(L.fc3_r, L.h1d, L.hd)) + bias[4:5, 0:L.hd]
        logits = dot(enc, wslab(L.cls_r, L.hd, L.ncp)) + bias[5:6, 0:L.ncp]
        o_ref[...] = logits.astype(o_ref.dtype)               # (8,128) lane-dense

    return kernel


# ----------------------------------------------------------------------------
# Forward builder (mirrors EyegazeModel.forward for model_type='static')
# ----------------------------------------------------------------------------
def make_eyegaze_forward(params, *, model_type="static", batch, cin, height,
                         width):
    if model_type != "static":
        # TODO(synk): temporal branch needs EncoderRNN; its source is not given.
        raise NotImplementedError("only model_type='static' is implemented")

    bufs, L = pack_params(params, batch=batch, cin=cin, height=height,
                          width=width)
    kernel = _make_kernel(L)

    flops = 2 * (9 * L.m1 * L.npix * L.cinp + 9 * L.m1 * L.cinp * L.c1
                 + 9 * L.m2 * L.m1 * L.c1 + 9 * L.m2 * L.c1 * L.c2
                 + L.bp * L.m2 * L.c2
                 + L.bp * (L.c2 * L.h0 + L.h0 * L.h1d
                           + L.h1d * L.hd + L.hd * L.ncp))
    bytes_accessed = (L.npix * L.cinp * 2 + int(bufs["sel"].size) * 2
                      + int(bufs["w"].size) * 2 + int(bufs["bias"].size) * 4
                      + L.bp * L.ncp * 4)
    cost = pl.CostEstimate(flops=int(flops), transcendentals=0,
                           bytes_accessed=int(bytes_accessed))

    def forward(bufs, image):
        # Only per-call XLA-side input work: NCHW->NHWC transpose of the ~3 KB
        # image, flatten, channel pad and bf16 cast (fuses into one tiny op).
        img = jnp.transpose(image, (0, 2, 3, 1)).reshape(L.npix, L.cin)
        img = jnp.pad(img, ((0, 0), (0, L.cinp - L.cin))).astype(jnp.bfloat16)

        out = pl.pallas_call(
            kernel,
            out_shape=jax.ShapeDtypeStruct((L.bp, L.ncp), jnp.float32),
            grid=(1,),
            in_specs=[_full_spec((L.npix, L.cinp)),
                      _full_spec(bufs["sel"].shape),
                      _full_spec(bufs["w"].shape),
                      _full_spec(bufs["bias"].shape)],
            out_specs=_full_spec((L.bp, L.ncp)),
            compiler_params=pltpu.CompilerParams(
                dimension_semantics=("arbitrary",)),
            cost_estimate=cost,
        )(img, bufs["sel"], bufs["w"], bufs["bias"])
        return out[:L.batch, :L.nc]                          # [B, num_classes]

    fwd = jax.jit(forward)

    def apply(x):
        image, _x_hm = x                 # x_hm unused on the static path
        return fwd(bufs, image)

    return apply


# ----------------------------------------------------------------------------
# Pure-JAX reference (bf16-rounded image/weights, f32 math) for a sanity check
# ----------------------------------------------------------------------------
def _reference_forward(params, image):
    r = lambda a: a.astype(jnp.bfloat16).astype(jnp.float32)
    x = r(jnp.transpose(image, (0, 2, 3, 1)))
    h = jax.lax.conv_general_dilated(
        x, r(params["conv1_w"]), (2, 2), ((1, 1), (1, 1)),
        dimension_numbers=("NHWC", "HWIO", "NHWC"))
    h = jnp.maximum(h + params["conv1_b"], 0.0)
    h = jax.lax.conv_general_dilated(
        r(h), r(params["conv2_w"]), (2, 2), ((1, 1), (1, 1)),
        dimension_numbers=("NHWC", "HWIO", "NHWC"))
    h = jnp.maximum(h + params["conv2_b"], 0.0)
    feat = jnp.mean(h, axis=(1, 2))
    z = jnp.maximum(feat @ r(params["fc1_w"]) + params["fc1_b"], 0.0)
    z = jnp.maximum(z @ r(params["fc2_w"]) + params["fc2_b"], 0.0)
    enc = z @ r(params["fc3_w"]) + params["fc3_b"]
    return enc @ r(params["cls_w"]) + params["cls_b"]


# ----------------------------------------------------------------------------
# Deterministic parameter init (representative XRayNet + Classifier weights)
# ----------------------------------------------------------------------------
def init_params(key, *, cin=3, c1=8, c2=16, hidden_hm=(64, 32),
                hidden_dim=32, num_classes=4):
    ks = jax.random.split(key, 12)

    def w(k, fan_in, shape):
        return (jax.random.normal(k, shape, jnp.float32) /
                jnp.sqrt(jnp.float32(fan_in)))

    hm0, hm1 = hidden_hm
    return {
        "conv1_w": w(ks[0], 3 * 3 * cin, (3, 3, cin, c1)),
        "conv1_b": 0.01 * jax.random.normal(ks[1], (c1,), jnp.float32),
        "conv2_w": w(ks[2], 3 * 3 * c1, (3, 3, c1, c2)),
        "conv2_b": 0.01 * jax.random.normal(ks[3], (c2,), jnp.float32),
        "fc1_w": w(ks[4], c2, (c2, hm0)),
        "fc1_b": 0.01 * jax.random.normal(ks[5], (hm0,), jnp.float32),
        "fc2_w": w(ks[6], hm0, (hm0, hm1)),
        "fc2_b": 0.01 * jax.random.normal(ks[7], (hm1,), jnp.float32),
        "fc3_w": w(ks[8], hm1, (hm1, hidden_dim)),
        "fc3_b": 0.01 * jax.random.normal(ks[9], (hidden_dim,), jnp.float32),
        "cls_w": w(ks[10], hidden_dim, (hidden_dim, num_classes)),
        "cls_b": 0.01 * jax.random.normal(ks[11], (num_classes,), jnp.float32),
    }


# ----------------------------------------------------------------------------
if __name__ == "__main__":
    B, CIN, H, W, T = 2, 3, 16, 16, 4
    NUM_CLASSES = 4

    key = jax.random.PRNGKey(0)
    k_img, k_hm = jax.random.split(key)
    image = jax.random.normal(k_img, (B, CIN, H, W), jnp.float32)       # NCHW
    x_hm = jax.random.normal(k_hm, (B, T, CIN, H, W), jnp.float32)      # unused (static)

    params = init_params(jax.random.PRNGKey(42), cin=CIN,
                         hidden_hm=(64, 32), hidden_dim=32,
                         num_classes=NUM_CLASSES)

    model = make_eyegaze_forward(params, model_type="static",
                                 batch=B, cin=CIN, height=H, width=W)
    logits = jax.block_until_ready(model((image, x_hm)))

    assert logits.shape == (B, NUM_CLASSES), logits.shape
    assert bool(jnp.all(jnp.isfinite(logits)))

    ref = _reference_forward(params, image)
    assert jnp.allclose(logits, ref, atol=5e-2, rtol=5e-2), (logits, ref)

    print("KERNEL_OK")
</pallas_src>

<mosaic_0001>
module attributes {stable_mosaic.version = 11 : i64} {
  func.func @kernel(%arg0: i32, %arg1: memref<512x8xbf16, #tpu.memory_space<vmem>>, %arg2: memref<1440x512xbf16, #tpu.memory_space<vmem>>, %arg3: memref<296x128xbf16, #tpu.memory_space<vmem>>, %arg4: memref<8x128xf32, #tpu.memory_space<vmem>>, %arg5: memref<8x128xf32, #tpu.memory_space<vmem>>) attributes {dimension_semantics = [#tpu.dimension_semantics<arbitrary>], iteration_bounds = array<i64: 1>, scalar_prefetch = 0 : i64, scratch_operands = 0 : i64, tpu.core_type = #tpu.core_type<tc>, window_params = [{pipeline_mode = #tpu.pipeline_mode<synchronous>, transform_indices = @transform_0, window_bounds = array<i64: 512, 8>}, {pipeline_mode = #tpu.pipeline_mode<synchronous>, transform_indices = @transform_1, window_bounds = array<i64: 1440, 512>}, {pipeline_mode = #tpu.pipeline_mode<synchronous>, transform_indices = @transform_2, window_bounds = array<i64: 296, 128>}, {pipeline_mode = #tpu.pipeline_mode<synchronous>, transform_indices = @transform_3, window_bounds = array<i64: 8, 128>}, {pipeline_mode = #tpu.pipeline_mode<synchronous>, transform_indices = @transform_4, window_bounds = array<i64: 8, 128>}]} {
    %c0 = arith.constant 0 : index
    %c0_0 = arith.constant 0 : index
    %0 = vector.load %arg4[%c0, %c0_0] : memref<8x128xf32, #tpu.memory_space<vmem>>, vector<8x128xf32>
    %c0_1 = arith.constant 0 : index
    %c0_2 = arith.constant 0 : index
    %1 = vector.load %arg2[%c0_1, %c0_2] : memref<1440x512xbf16, #tpu.memory_space<vmem>>, vector<1152x512xbf16>
    %c0_3 = arith.constant 0 : index
    %c0_4 = arith.constant 0 : index
    %2 = vector.load %arg1[%c0_3, %c0_4] : memref<512x8xbf16, #tpu.memory_space<vmem>>, vector<512x8xbf16>
    %cst = arith.constant dense<0.000000e+00> : vector<1152x8xf32>
    %3 = tpu.matmul %1, %2, %cst {dimension_numbers = #tpu.dot_dimension_numbers<[1], [0], [0], [1], [0, 0, 1, 1], [], []>} : vector<1152x512xbf16>, vector<512x8xbf16>, vector<1152x8xf32> -> vector<1152x8xf32>
    %c0_5 = arith.constant 0 : index
    %c0_6 = arith.constant 0 : index
    %4 = vector.load %arg3[%c0_5, %c0_6] : memref<296x128xbf16, #tpu.memory_space<vmem>>, vector<8x8xbf16>
    %5 = arith.extf %4 : vector<8x8xbf16> to vector<8x8xf32>
    %6 = vector.extract_strided_slice %3 {offsets = [0, 0], sizes = [128, 8], strides = [1, 1]} : vector<1152x8xf32> to vector<128x8xf32>
    %cst_7 = arith.constant dense<0.000000e+00> : vector<128x8xf32>
    %7 = tpu.matmul %6, %5, %cst_7 {dimension_numbers = #tpu.dot_dimension_numbers<[1], [0], [0], [1], [0, 0, 1, 1], [], []>} : vector<128x8xf32>, vector<8x8xf32>, vector<128x8xf32> -> vector<128x8xf32>
    %c8 = arith.constant 8 : index
    %c0_8 = arith.constant 0 : index
    %8 = vector.load %arg3[%c8, %c0_8] : memref<296x128xbf16, #tpu.memory_space<vmem>>, vector<8x8xbf16>
    %9 = arith.extf %8 : vector<8x8xbf16> to vector<8x8xf32>
    %10 = vector.extract_strided_slice %3 {offsets = [128, 0], sizes = [128, 8], strides = [1, 1]} : vector<1152x8xf32> to vector<128x8xf32>
    %cst_9 = arith.constant dense<0.000000e+00> : vector<128x8xf32>
    %11 = tpu.matmul %10, %9, %cst_9 {dimension_numbers = #tpu.dot_dimension_numbers<[1], [0], [0], [1], [0, 0, 1, 1], [], []>} : vector<128x8xf32>, vector<8x8xf32>, vector<128x8xf32> -> vector<128x8xf32>
    %c16 = arith.constant 16 : index
    %c0_10 = arith.constant 0 : index
    %12 = vector.load %arg3[%c16, %c0_10] : memref<296x128xbf16, #tpu.memory_space<vmem>>, vector<8x8xbf16>
    %13 = arith.extf %12 : vector<8x8xbf16> to vector<8x8xf32>
    %14 = vector.extract_strided_slice %3 {offsets = [256, 0], sizes = [128, 8], strides = [1, 1]} : vector<1152x8xf32> to vector<128x8xf32>
    %cst_11 = arith.constant dense<0.000000e+00> : vector<128x8xf32>
    %15 = tpu.matmul %14, %13, %cst_11 {dimension_numbers = #tpu.dot_dimension_numbers<[1], [0], [0], [1], [0, 0, 1, 1], [], []>} : vector<128x8xf32>, vector<8x8xf32>, vector<128x8xf32> -> vector<128x8xf32>
    %c24 = arith.constant 24 : index
    %c0_12 = arith.constant 0 : index
    %16 = vector.load %arg3[%c24, %c0_12] : memref<296x128xbf16, #tpu.memory_space<vmem>>, vector<8x8xbf16>
    %17 = arith.extf %16 : vector<8x8xbf16> to vector<8x8xf32>
    %18 = vector.extract_strided_slice %3 {offsets = [384, 0], sizes = [128, 8], strides = [1, 1]} : vector<1152x8xf32> to vector<128x8xf32>
    %cst_13 = arith.constant dense<0.000000e+00> : vector<128x8xf32>
    %19 = tpu.matmul %18, %17, %cst_13 {dimension_numbers = #tpu.dot_dimension_numbers<[1], [0], [0], [1], [0, 0, 1, 1], [], []>} : vector<128x8xf32>, vector<8x8xf32>, vector<128x8xf32> -> vector<128x8xf32>
    %c32 = arith.constant 32 : index
    %c0_14 = arith.constant 0 : index
    %20 = vector.load %arg3[%c32, %c0_14] : memref<296x128xbf16, #tpu.memory_space<vmem>>, vector<8x8xbf16>
    %21 = arith.extf %20 : vector<8x8xbf16> to vector<8x8xf32>
    %22 = vector.extract_strided_slice %3 {offsets = [512, 0], sizes = [128, 8], strides = [1, 1]} : vector<1152x8xf32> to vector<128x8xf32>
    %cst_15 = arith.constant dense<0.000000e+00> : vector<128x8xf32>
    %23 = tpu.matmul %22, %21, %cst_15 {dimension_numbers = #tpu.dot_dimension_numbers<[1], [0], [0], [1], [0, 0, 1, 1], [], []>} : vector<128x8xf32>, vector<8x8xf32>, vector<128x8xf32> -> vector<128x8xf32>
    %c40 = arith.constant 40 : index
    %c0_16 = arith.constant 0 : index
    %24 = vector.load %arg3[%c40, %c0_16] : memref<296x128xbf16, #tpu.memory_space<vmem>>, vector<8x8xbf16>
    %25 = arith.extf %24 : vector<8x8xbf16> to vector<8x8xf32>
    %26 = vector.extract_strided_slice %3 {offsets = [640, 0], sizes = [128, 8], strides = [1, 1]} : vector<1152x8xf32> to vector<128x8xf32>
    %cst_17 = arith.constant dense<0.000000e+00> : vector<128x8xf32>
    %27 = tpu.matmul %26, %25, %cst_17 {dimension_numbers = #tpu.dot_dimension_numbers<[1], [0], [0], [1], [0, 0, 1, 1], [], []>} : vector<128x8xf32>, vector<8x8xf32>, vector<128x8xf32> -> vector<128x8xf32>
    %c48 = arith.constant 48 : index
    %c0_18 = arith.constant 0 : index
    %28 = vector.load %arg3[%c48, %c0_18] : memref<296x128xbf16, #tpu.memory_space<vmem>>, vector<8x8xbf16>
    %29 = arith.extf %28 : vector<8x8xbf16> to vector<8x8xf32>
    %30 = vector.extract_strided_slice %3 {offsets = [768, 0], sizes = [128, 8], strides = [1, 1]} : vector<1152x8xf32> to vector<128x8xf32>
    %cst_19 = arith.constant dense<0.000000e+00> : vector<128x8xf32>
    %31 = tpu.matmul %30, %29, %cst_19 {dimension_numbers = #tpu.dot_dimension_numbers<[1], [0], [0], [1], [0, 0, 1, 1], [], []>} : vector<128x8xf32>, vector<8x8xf32>, vector<128x8xf32> -> vector<128x8xf32>
    %c56 = arith.constant 56 : index
    %c0_20 = arith.constant 0 : index
    %32 = vector.load %arg3[%c56, %c0_20] : memref<296x128xbf16, #tpu.memory_space<vmem>>, vector<8x8xbf16>
    %33 = arith.extf %32 : vector<8x8xbf16> to vector<8x8xf32>
    %34 = vector.extract_strided_slice %3 {offsets = [896, 0], sizes = [128, 8], strides = [1, 1]} : vector<1152x8xf32> to vector<128x8xf32>
    %cst_21 = arith.constant dense<0.000000e+00> : vector<128x8xf32>
    %35 = tpu.matmul %34, %33, %cst_21 {dimension_numbers = #tpu.dot_dimension_numbers<[1], [0], [0], [1], [0, 0, 1, 1], [], []>} : vector<128x8xf32>, vector<8x8xf32>, vector<128x8xf32> -> vector<128x8xf32>
    %c64 = arith.constant 64 : index
    %c0_22 = arith.constant 0 : index
    %36 = vector.load %arg3[%c64, %c0_22] : memref<296x128xbf16, #tpu.memory_space<vmem>>, vector<8x8xbf16>
    %37 = arith.extf %36 : vector<8x8xbf16> to vector<8x8xf32>
    %38 = vector.extract_strided_slice %3 {offsets = [1024, 0], sizes = [128, 8], strides = [1, 1]} : vector<1152x8xf32> to vector<128x8xf32>
    %cst_23 = arith.constant dense<0.000000e+00> : vector<128x8xf32>
    %39 = tpu.matmul %38, %37, %cst_23 {dimension_numbers = #tpu.dot_dimension_numbers<[1], [0], [0], [1], [0, 0, 1, 1], [], []>} : vector<128x8xf32>, vector<8x8xf32>, vector<128x8xf32> -> vector<128x8xf32>
    %40 = arith.addf %7, %11 : vector<128x8xf32>
    %41 = arith.addf %15, %19 : vector<128x8xf32>
    %42 = arith.addf %23, %27 : vector<128x8xf32>
    %43 = arith.addf %31, %35 : vector<128x8xf32>
    %44 = arith.addf %40, %41 : vector<128x8xf32>
    %45 = arith.addf %42, %43 : vector<128x8xf32>
    %46 = arith.addf %44, %45 : vector<128x8xf32>
    %47 = arith.addf %46, %39 : vector<128x8xf32>
    %48 = vector.extract_strided_slice %0 {offsets = [0, 0], sizes = [1, 8], strides = [1, 1]} : vector<8x128xf32> to vector<1x8xf32>
    %49 = vector.broadcast %48 : vector<1x8xf32> to vector<128x8xf32>
    %50 = arith.addf %47, %49 : vector<128x8xf32>
    %cst_24 = arith.constant 0.000000e+00 : f32
    %51 = vector.broadcast %cst_24 : f32 to vector<128x8xf32>
    %52 = arith.maximumf %50, %51 : vector<128x8xf32>
    %53 = arith.truncf %52 : vector<128x8xf32> to vector<128x8xbf16>
    %c1152 = arith.constant 1152 : index
    %c0_25 = arith.constant 0 : index
    %54 = vector.load %arg2[%c1152, %c0_25] : memref<1440x512xbf16, #tpu.memory_space<vmem>>, vector<288x128xbf16>
    %cst_26 = arith.constant dense<0.000000e+00> : vector<288x8xf32>
    %55 = tpu.matmul %54, %53, %cst_26 {dimension_numbers = #tpu.dot_dimension_numbers<[1], [0], [0], [1], [0, 0, 1, 1], [], []>} : vector<288x128xbf16>, vector<128x8xbf16>, vector<288x8xf32> -> vector<288x8xf32>
    %c72 = arith.constant 72 : index
    %c0_27 = arith.constant 0 : index
    %56 = vector.load %arg3[%c72, %c0_27] : memref<296x128xbf16, #tpu.memory_space<vmem>>, vector<8x16xbf16>
    %57 = arith.extf %56 : vector<8x16xbf16> to vector<8x16xf32>
    %58 = vector.extract_strided_slice %55 {offsets = [0, 0], sizes = [32, 8], strides = [1, 1]} : vector<288x8xf32> to vector<32x8xf32>
    %cst_28 = arith.constant dense<0.000000e+00> : vector<32x16xf32>
    %59 = tpu.matmul %58, %57, %cst_28 {dimension_numbers = #tpu.dot_dimension_numbers<[1], [0], [0], [1], [0, 0, 1, 1], [], []>} : vector<32x8xf32>, vector<8x16xf32>, vector<32x16xf32> -> vector<32x16xf32>
    %c80 = arith.constant 80 : index
    %c0_29 = arith.constant 0 : index
    %60 = vector.load %arg3[%c80, %c0_29] : memref<296x128xbf16, #tpu.memory_space<vmem>>, vector<8x16xbf16>
    %61 = arith.extf %60 : vector<8x16xbf16> to vector<8x16xf32>
    %62 = vector.extract_strided_slice %55 {offsets = [32, 0], sizes = [32, 8], strides = [1, 1]} : vector<288x8xf32> to vector<32x8xf32>
    %cst_30 = arith.constant dense<0.000000e+00> : vector<32x16xf32>
    %63 = tpu.matmul %62, %61, %cst_30 {dimension_numbers = #tpu.dot_dimension_numbers<[1], [0], [0], [1], [0, 0, 1, 1], [], []>} : vector<32x8xf32>, vector<8x16xf32>, vector<32x16xf32> -> vector<32x16xf32>
    %c88 = arith.constant 88 : index
    %c0_31 = arith.constant 0 : index
    %64 = vector.load %arg3[%c88, %c0_31] : memref<296x128xbf16, #tpu.memory_space<vmem>>, vector<8x16xbf16>
    %65 = arith.extf %64 : vector<8x16xbf16> to vector<8x16xf32>
    %66 = vector.extract_strided_slice %55 {offsets = [64, 0], sizes = [32, 8], strides = [1, 1]} : vector<288x8xf32> to vector<32x8xf32>
    %cst_32 = arith.constant dense<0.000000e+00> : vector<32x16xf32>
    %67 = tpu.matmul %66, %65, %cst_32 {dimension_numbers = #tpu.dot_dimension_numbers<[1], [0], [0], [1], [0, 0, 1, 1], [], []>} : vector<32x8xf32>, vector<8x16xf32>, vector<32x16xf32> -> vector<32x16xf32>
    %c96 = arith.constant 96 : index
    %c0_33 = arith.constant 0 : index
    %68 = vector.load %arg3[%c96, %c0_33] : memref<296x128xbf16, #tpu.memory_space<vmem>>, vector<8x16xbf16>
    %69 = arith.extf %68 : vector<8x16xbf16> to vector<8x16xf32>
    %70 = vector.extract_strided_slice %55 {offsets = [96, 0], sizes = [32, 8], strides = [1, 1]} : vector<288x8xf32> to vector<32x8xf32>
    %cst_34 = arith.constant dense<0.000000e+00> : vector<32x16xf32>
    %71 = tpu.matmul %70, %69, %cst_34 {dimension_numbers = #tpu.dot_dimension_numbers<[1], [0], [0], [1], [0, 0, 1, 1], [], []>} : vector<32x8xf32>, vector<8x16xf32>, vector<32x16xf32> -> vector<32x16xf32>
    %c104 = arith.constant 104 : index
    %c0_35 = arith.constant 0 : index
    %72 = vector.load %arg3[%c104, %c0_35] : memref<296x128xbf16, #tpu.memory_space<vmem>>, vector<8x16xbf16>
    %73 = arith.extf %72 : vector<8x16xbf16> to vector<8x16xf32>
    %74 = vector.extract_strided_slice %55 {offsets = [128, 0], sizes = [32, 8], strides = [1, 1]} : vector<288x8xf32> to vector<32x8xf32>
    %cst_36 = arith.constant dense<0.000000e+00> : vector<32x16xf32>
    %75 = tpu.matmul %74, %73, %cst_36 {dimension_numbers = #tpu.dot_dimension_numbers<[1], [0], [0], [1], [0, 0, 1, 1], [], []>} : vector<32x8xf32>, vector<8x16xf32>, vector<32x16xf32> -> vector<32x16xf32>
    %c112 = arith.constant 112 : index
    %c0_37 = arith.constant 0 : index
    %76 = vector.load %arg3[%c112, %c0_37] : memref<296x128xbf16, #tpu.memory_space<vmem>>, vector<8x16xbf16>
    %77 = arith.extf %76 : vector<8x16xbf16> to vector<8x16xf32>
    %78 = vector.extract_strided_slice %55 {offsets = [160, 0], sizes = [32, 8], strides = [1, 1]} : vector<288x8xf32> to vector<32x8xf32>
    %cst_38 = arith.constant dense<0.000000e+00> : vector<32x16xf32>
    %79 = tpu.matmul %78, %77, %cst_38 {dimension_numbers = #tpu.dot_dimension_numbers<[1], [0], [0], [1], [0, 0, 1, 1], [], []>} : vector<32x8xf32>, vector<8x16xf32>, vector<32x16xf32> -> vector<32x16xf32>
    %c120 = arith.constant 120 : index
    %c0_39 = arith.constant 0 : index
    %80 = vector.load %arg3[%c120, %c0_39] : memref<296x128xbf16, #tpu.memory_space<vmem>>, vector<8x16xbf16>
    %81 = arith.extf %80 : vector<8x16xbf16> to vector<8x16xf32>
    %82 = vector.extract_strided_slice %55 {offsets = [192, 0], sizes = [32, 8], strides = [1, 1]} : vector<288x8xf32> to vector<32x8xf32>
    %cst_40 = arith.constant dense<0.000000e+00> : vector<32x16xf32>
    %83 = tpu.matmul %82, %81, %cst_40 {dimension_numbers = #tpu.dot_dimension_numbers<[1], [0], [0], [1], [0, 0, 1, 1], [], []>} : vector<32x8xf32>, vector<8x16xf32>, vector<32x16xf32> -> vector<32x16xf32>
    %c128 = arith.constant 128 : index
    %c0_41 = arith.constant 0 : index
    %84 = vector.load %arg3[%c128, %c0_41] : memref<296x128xbf16, #tpu.memory_space<vmem>>, vector<8x16xbf16>
    %85 = arith.extf %84 : vector<8x16xbf16> to vector<8x16xf32>
    %86 = vector.extract_strided_slice %55 {offsets = [224, 0], sizes = [32, 8], strides = [1, 1]} : vector<288x8xf32> to vector<32x8xf32>
    %cst_42 = arith.constant dense<0.000000e+00> : vector<32x16xf32>
    %87 = tpu.matmul %86, %85, %cst_42 {dimension_numbers = #tpu.dot_dimension_numbers<[1], [0], [0], [1], [0, 0, 1, 1], [], []>} : vector<32x8xf32>, vector<8x16xf32>, vector<32x16xf32> -> vector<32x16xf32>
    %c136 = arith.constant 136 : index
    %c0_43 = arith.constant 0 : index
    %88 = vector.load %arg3[%c136, %c0_43] : memref<296x128xbf16, #tpu.memory_space<vmem>>, vector<8x16xbf16>
    %89 = arith.extf %88 : vector<8x16xbf16> to vector<8x16xf32>
    %90 = vector.extract_strided_slice %55 {offsets = [256, 0], sizes = [32, 8], strides = [1, 1]} : vector<288x8xf32> to vector<32x8xf32>
    %cst_44 = arith.constant dense<0.000000e+00> : vector<32x16xf32>
    %91 = tpu.matmul %90, %89, %cst_44 {dimension_numbers = #tpu.dot_dimension_numbers<[1], [0], [0], [1], [0, 0, 1, 1], [], []>} : vector<32x8xf32>, vector<8x16xf32>, vector<32x16xf32> -> vector<32x16xf32>
    %92 = arith.addf %59, %63 : vector<32x16xf32>
    %93 = arith.addf %67, %71 : vector<32x16xf32>
    %94 = arith.addf %75, %79 : vector<32x16xf32>
    %95 = arith.addf %83, %87 : vector<32x16xf32>
    %96 = arith.addf %92, %93 : vector<32x16xf32>
    %97 = arith.addf %94, %95 : vector<32x16xf32>
    %98 = arith.addf %96, %97 : vector<32x16xf32>
    %99 = arith.addf %98, %91 : vector<32x16xf32>
    %100 = vector.extract_strided_slice %0 {offsets = [1, 0], sizes = [1, 16], strides = [1, 1]} : vector<8x128xf32> to vector<1x16xf32>
    %101 = vector.broadcast %100 : vector<1x16xf32> to vector<32x16xf32>
    %102 = arith.addf %99, %101 : vector<32x16xf32>
    %cst_45 = arith.constant 0.000000e+00 : f32
    %103 = vector.broadcast %cst_45 : f32 to vector<32x16xf32>
    %104 = arith.maximumf %102, %103 : vector<32x16xf32>
    %c144 = arith.constant 144 : index
    %c0_46 = arith.constant 0 : index
    %105 = vector.load %arg3[%c144, %c0_46] : memref<296x128xbf16, #tpu.memory_space<vmem>>, vector<8x32xbf16>
    %106 = arith.extf %105 : vector<8x32xbf16> to vector<8x32xf32>
    %cst_47 = arith.constant dense<0.000000e+00> : vector<8x16xf32>
    %107 = tpu.matmul %106, %104, %cst_47 {dimension_numbers = #tpu.dot_dimension_numbers<[1], [0], [0], [1], [0, 0, 1, 1], [], []>} : vector<8x32xf32>, vector<32x16xf32>, vector<8x16xf32> -> vector<8x16xf32>
    %c152 = arith.constant 152 : index
    %c0_48 = arith.constant 0 : index
    %108 = vector.load %arg3[%c152, %c0_48] : memref<296x128xbf16, #tpu.memory_space<vmem>>, vector<16x64xbf16>
    %109 = arith.extf %108 : vector<16x64xbf16> to vector<16x64xf32>
    %cst_49 = arith.constant dense<0.000000e+00> : vector<8x64xf32>
    %110 = tpu.matmul %107, %109, %cst_49 {dimension_numbers = #tpu.dot_dimension_numbers<[1], [0], [0], [1], [0, 0, 1, 1], [], []>} : vector<8x16xf32>, vector<16x64xf32>, vector<8x64xf32> -> vector<8x64xf32>
    %111 = vector.extract_strided_slice %0 {offsets = [2, 0], sizes = [1, 64], strides = [1, 1]} : vector<8x128xf32> to vector<1x64xf32>
    %112 = vector.broadcast %111 : vector<1x64xf32> to vector<8x64xf32>
    %113 = arith.addf %110, %112 : vector<8x64xf32>
    %cst_50 = arith.constant 0.000000e+00 : f32
    %114 = vector.broadcast %cst_50 : f32 to vector<8x64xf32>
    %115 = arith.maximumf %113, %114 : vector<8x64xf32>
    %c168 = arith.constant 168 : index
    %c0_51 = arith.constant 0 : index
    %116 = vector.load %arg3[%c168, %c0_51] : memref<296x128xbf16, #tpu.memory_space<vmem>>, vector<64x32xbf16>
    %117 = arith.extf %116 : vector<64x32xbf16> to vector<64x32xf32>
    %cst_52 = arith.constant dense<0.000000e+00> : vector<8x32xf32>
    %118 = tpu.matmul %115, %117, %cst_52 {dimension_numbers = #tpu.dot_dimension_numbers<[1], [0], [0], [1], [0, 0, 1, 1], [], []>} : vector<8x64xf32>, vector<64x32xf32>, vector<8x32xf32> -> vector<8x32xf32>
    %119 = vector.extract_strided_slice %0 {offsets = [3, 0], sizes = [1, 32], strides = [1, 1]} : vector<8x128xf32> to vector<1x32xf32>
    %120 = vector.broadcast %119 : vector<1x32xf32> to vector<8x32xf32>
    %121 = arith.addf %118, %120 : vector<8x32xf32>
    %cst_53 = arith.constant 0.000000e+00 : f32
    %122 = vector.broadcast %cst_53 : f32 to vector<8x32xf32>
    %123 = arith.maximumf %121, %122 : vector<8x32xf32>
    %c232 = arith.constant 232 : index
    %c0_54 = arith.constant 0 : index
    %124 = vector.load %arg3[%c232, %c0_54] : memref<296x128xbf16, #tpu.memory_space<vmem>>, vector<32x32xbf16>
    %125 = arith.extf %124 : vector<32x32xbf16> to vector<32x32xf32>
    %cst_55 = arith.constant dense<0.000000e+00> : vector<8x32xf32>
    %126 = tpu.matmul %123, %125, %cst_55 {dimension_numbers = #tpu.dot_dimension_numbers<[1], [0], [0], [1], [0, 0, 1, 1], [], []>} : vector<8x32xf32>, vector<32x32xf32>, vector<8x32xf32> -> vector<8x32xf32>
    %127 = vector.extract_strided_slice %0 {offsets = [4, 0], sizes = [1, 32], strides = [1, 1]} : vector<8x128xf32> to vector<1x32xf32>
    %128 = vector.broadcast %127 : vector<1x32xf32> to vector<8x32xf32>
    %129 = arith.addf %126, %128 : vector<8x32xf32>
    %c264 = arith.constant 264 : index
    %c0_56 = arith.constant 0 : index
    %130 = vector.load %arg3[%c264, %c0_56] : memref<296x128xbf16, #tpu.memory_space<vmem>>, vector<32x128xbf16>
    %131 = arith.extf %130 : vector<32x128xbf16> to vector<32x128xf32>
    %cst_57 = arith.constant dense<0.000000e+00> : vector<8x128xf32>
    %132 = tpu.matmul %129, %131, %cst_57 {dimension_numbers = #tpu.dot_dimension_numbers<[1], [0], [0], [1], [0, 0, 1, 1], [], []>} : vector<8x32xf32>, vector<32x128xf32>, vector<8x128xf32> -> vector<8x128xf32>
    %133 = vector.extract_strided_slice %0 {offsets = [5, 0], sizes = [1, 128], strides = [1, 1]} : vector<8x128xf32> to vector<1x128xf32>
    %134 = vector.broadcast %133 : vector<1x128xf32> to vector<8x128xf32>
    %135 = arith.addf %132, %134 : vector<8x128xf32>
    %c0_58 = arith.constant 0 : index
    %c0_59 = arith.constant 0 : index
    %136 = vector.load %arg5[%c0_58, %c0_59] : memref<8x128xf32, #tpu.memory_space<vmem>>, vector<8x128xf32>
    tpu.vector_store %arg5[%c0_58, %c0_59], %135 {strides = array<i32>} : memref<8x128xf32, #tpu.memory_space<vmem>>, vector<8x128xf32>,
    return
  }
  func.func @transform_0(%arg0: i32) -> (i32, i32) {
    %c0_i32 = arith.constant 0 : i32
    %c0_i32_0 = arith.constant 0 : i32
    %c0_i32_1 = arith.constant 0 : i32
    return %c0_i32, %c0_i32_0 : i32, i32
  }
  func.func @transform_1(%arg0: i32) -> (i32, i32) {
    %c0_i32 = arith.constant 0 : i32
    %c0_i32_0 = arith.constant 0 : i32
    %c0_i32_1 = arith.constant 0 : i32
    return %c0_i32, %c0_i32_0 : i32, i32
  }
  func.func @transform_2(%arg0: i32) -> (i32, i32) {
    %c0_i32 = arith.constant 0 : i32
    %c0_i32_0 = arith.constant 0 : i32
    %c0_i32_1 = arith.constant 0 : i32
    return %c0_i32, %c0_i32_0 : i32, i32
  }
  func.func @transform_3(%arg0: i32) -> (i32, i32) {
    %c0_i32 = arith.constant 0 : i32
    %c0_i32_0 = arith.constant 0 : i32
    %c0_i32_1 = arith.constant 0 : i32
    return %c0_i32, %c0_i32_0 : i32, i32
  }
  func.func @transform_4(%arg0: i32) -> (i32, i32) {
    %c0_i32 = arith.constant 0 : i32
    %c0_i32_0 = arith.constant 0 : i32
    %c0_i32_1 = arith.constant 0 : i32
    return %c0_i32, %c0_i32_0 : i32, i32
  }
}

</mosaic_0001>

<llo_original>
// kernel: forward.1
$region0: #{forward.1}
  #allocation0 [shape = 'u32[]', space=smem, size = 0x4, offset = 0x4, fixed_abs, tag = 'smem constant byte address 0x4 - core index']
  #allocation1 [shape = 'u32[144,128]{1,0:T(1,128)}', space=vmem, size = 0x12000, scoped, tag = 'internal scratch']
  %s0 = inlined_call_operand.vmem [shape: bf16[512,8], index: 0, kind: input, shape index: {}]
  %s1 = inlined_call_operand.hbm [shape: bf16[1440,512], index: 1, kind: input, shape index: {}]
  %s2 = inlined_call_operand.hbm [shape: bf16[296,128], index: 2, kind: input, shape index: {}]
  %s3 = inlined_call_operand.hbm [shape: f32[8,128], index: 3, kind: input, shape index: {}]
  %s4 = inlined_call_operand.vmem [shape: f32[8,128], index: 4, kind: output, shape index: {}]
  %s5 = sld [smem:[#allocation0]]
  $region38: #{forward.1} parent=0
    _
  %s7 = ssub.s32 1, %s5
  %s8 = scalar_select 0, %s7, %s5
  $region1: #{forward.1} parent=0
    #allocation2 [shape = 'u8[1474560]{0}', space=vmem, size = 0x168000, scoped, tag = 'input window, operand 1, single buffered']
    #allocation3 [shape = 's32[1]{0}', space=sflag, size = 0x4, scoped, tag = 'scoped memory for forward.1']
    #allocation4 [shape = 'u8[75776]{0}', space=vmem, size = 0x12800, scoped, tag = 'input window, operand 2, single buffered']
    #allocation5 [shape = 's32[1]{0}', space=sflag, size = 0x4, scoped, tag = 'scoped memory for forward.1']
    #allocation6 [shape = 'u8[4096]{0}', space=vmem, size = 0x1000, scoped, tag = 'input window, operand 3, single buffered']
    %9 = vsyncpa [#allocation3], 0
    %10 = vsyncpa [#allocation5], 0
    // Predicated region
    $region2: #{forward.1} parent=1 // pred_check
      _
    $region3: #{forward.1} parent=1 // pred_check_branch
      %12 = sbr.rel (0) target = $region5
    $region4: #{forward.1} parent=1 // pred_region
      _
    $region5: #{forward.1} parent=1 // pred_fallthru
      _
    // Predicated region
    $region6: #{forward.1} parent=1 // pred_check
      _
    $region7: #{forward.1} parent=1 // pred_check_branch
      %14 = sbr.rel (0) target = $region9
    $region8: #{forward.1} parent=1 // pred_region
      %s16 = ssub.s32 46080, 46080
      %17 = vsyncadd [#allocation3], %s16
      %s18 = sshll.u32 [#allocation2], 4
      %s19 = int_to_ptr.vmem [resolvable:$true] %s18
      %24 = dma.hbm_to_vmem [thread:$0]  %s1, 46080, %s19, [#allocation3], 256, 256, 16
    $region9: #{forward.1} parent=1 // pred_fallthru
      _
    // Predicated region
    $region10: #{forward.1} parent=1 // pred_check
      _
    $region11: #{forward.1} parent=1 // pred_check_branch
      %26 = sbr.rel (0) target = $region13
    $region12: #{forward.1} parent=1 // pred_region
      %s28 = ssub.s32 2368, 2368
      %29 = vsyncadd [#allocation5], %s28
      %s30 = sshll.u32 [#allocation4], 4
      %s31 = int_to_ptr.vmem [resolvable:$true] %s30
      %36 = dma.hbm_to_vmem [thread:$0]  %s2, 2368, %s31, [#allocation5], 64, 64, 4
    $region13: #{forward.1} parent=1 // pred_fallthru
      _
    // Predicated region
    $region14: #{forward.1} parent=1 // pred_check
      _
    $region15: #{forward.1} parent=1 // pred_check_branch
      %38 = sbr.rel (0) target = $region17
    $region16: #{forward.1} parent=1 // pred_region
      %s40 = ssub.s32 128, 128
      %41 = vsyncadd [#allocation5], %s40
      %s43 = sshll.u32 [#allocation6], 4
      %s44 = int_to_ptr.vmem [resolvable:$true] %s43
      %46 = dma.hbm_to_vmem [thread:$0]  %s3, 128, %s44, [#allocation5]
    $region17: #{forward.1} parent=1 // pred_fallthru
      _
    // Predicated region
    $region18: #{forward.1} parent=1 // pred_check
      _
    $region19: #{forward.1} parent=1 // pred_check_branch
      %48 = sbr.rel (0) target = $region21
    $region20: #{forward.1} parent=1 // pred_region
      %49 = dma.done [#allocation3], 46080
    $region21: #{forward.1} parent=1 // pred_fallthru
      _
    // Predicated region
    $region22: #{forward.1} parent=1 // pred_check
      _
    $region23: #{forward.1} parent=1 // pred_check_branch
      %51 = sbr.rel (0) target = $region25
    $region24: #{forward.1} parent=1 // pred_region
      %52 = dma.done [#allocation5], 2368
    $region25: #{forward.1} parent=1 // pred_fallthru
      _
    // Predicated region
    $region26: #{forward.1} parent=1 // pred_check
      _
    $region27: #{forward.1} parent=1 // pred_check_branch
      %54 = sbr.rel (0) target = $region29
    $region28: #{forward.1} parent=1 // pred_region
      %55 = dma.done [#allocation5], 128
    $region29: #{forward.1} parent=1 // pred_fallthru
      _
    %v57 = vld [vmem:[#allocation6] sm:$0xff]
    %v58 = vld [vmem:[#allocation2] sm:$0xff]
    %v59 = vld [vmem:[#allocation2 + $0x8] sm:$0xff]
    %v60 = vld [vmem:[#allocation2 + $0x10] sm:$0xff]
    %v61 = vld [vmem:[#allocation2 + $0x18] sm:$0xff]
    %v62 = vld [vmem:[#allocation2 + $0x20] sm:$0xff]
    %v63 = vld [vmem:[#allocation2 + $0x28] sm:$0xff]
    %v64 = vld [vmem:[#allocation2 + $0x30] sm:$0xff]
    %v65 = vld [vmem:[#allocation2 + $0x38] sm:$0xff]
    %v66 = vld [vmem:[#allocation2 + $0x40] sm:$0xff]
    %v67 = vld [vmem:[#allocation2 + $0x48] sm:$0xff]
    %v68 = vld [vmem:[#allocation2 + $0x50] sm:$0xff]
    %v69 = vld [vmem:[#allocation2 + $0x58] sm:$0xff]
    %v70 = vld [vmem:[#allocation2 + $0x60] sm:$0xff]
    %v71 = vld [vmem:[#allocation2 + $0x68] sm:$0xff]
    %v72 = vld [vmem:[#allocation2 + $0x70] sm:$0xff]
    %v73 = vld [vmem:[#allocation2 + $0x78] sm:$0xff]
    %v74 = vld [vmem:[#allocation2 + $0x80] sm:$0xff]
    %v75 = vld [vmem:[#allocation2 + $0x88] sm:$0xff]
    %v76 = vld [vmem:[#allocation2 + $0x90] sm:$0xff]
    %v77 = vld [vmem:[#allocation2 + $0x98] sm:$0xff]
    %v78 = vld [vmem:[#allocation2 + $0xa0] sm:$0xff]
    %v79 = vld [vmem:[#allocation2 + $0xa8] sm:$0xff]
    %v80 = vld [vmem:[#allocation2 + $0xb0] sm:$0xff]
    %v81 = vld [vmem:[#allocation2 + $0xb8] sm:$0xff]
    %v82 = vld [vmem:[#allocation2 + $0xc0] sm:$0xff]
    %v83 = vld [vmem:[#allocation2 + $0xc8] sm:$0xff]
    %v84 = vld [vmem:[#allocation2 + $0xd0] sm:$0xff]
    %v85 = vld [vmem:[#allocation2 + $0xd8] sm:$0xff]
    %v86 = vld [vmem:[#allocation2 + $0xe0] sm:$0xff]
    %v87 = vld [vmem:[#allocation2 + $0xe8] sm:$0xff]
    %v88 = vld [vmem:[#allocation2 + $0xf0] sm:$0xff]
    %v89 = vld [vmem:[#allocation2 + $0xf8] sm:$0xff]
    %v90 = vld [vmem:[#allocation2 + $0x100] sm:$0xff]
    %v91 = vld [vmem:[#allocation2 + $0x108] sm:$0xff]
    %v92 = vld [vmem:[#allocation2 + $0x110] sm:$0xff]
    %v93 = vld [vmem:[#allocation2 + $0x118] sm:$0xff]
    %v94 = vld [vmem:[#allocation2 + $0x120] sm:$0xff]
    %v95 = vld [vmem:[#allocation2 + $0x128] sm:$0xff]
    %v96 = vld [vmem:[#allocation2 + $0x130] sm:$0xff]
    %v97 = vld [vmem:[#allocation2 + $0x138] sm:$0xff]
    %v98 = vld [vmem:[#allocation2 + $0x140] sm:$0xff]
    %v99 = vld [vmem:[#allocation2 + $0x148] sm:$0xff]
    %v100 = vld [vmem:[#allocation2 + $0x150] sm:$0xff]
    %v101 = vld [vmem:[#allocation2 + $0x158] sm:$0xff]
    %v102 = vld [vmem:[#allocation2 + $0x160] sm:$0xff]
    %v103 = vld [vmem:[#allocation2 + $0x168] sm:$0xff]
    %v104 = vld [vmem:[#allocation2 + $0x170] sm:$0xff]
    %v105 = vld [vmem:[#allocation2 + $0x178] sm:$0xff]
    %v106 = vld [vmem:[#allocation2 + $0x180] sm:$0xff]
    %v107 = vld [vmem:[#allocation2 + $0x188] sm:$0xff]
    %v108 = vld [vmem:[#allocation2 + $0x190] sm:$0xff]
    %v109 = vld [vmem:[#allocation2 + $0x198] sm:$0xff]
    %v110 = vld [vmem:[#allocation2 + $0x1a0] sm:$0xff]
    %v111 = vld [vmem:[#allocation2 + $0x1a8] sm:$0xff]
    %v112 = vld [vmem:[#allocation2 + $0x1b0] sm:$0xff]
    %v113 = vld [vmem:[#allocation2 + $0x1b8] sm:$0xff]
    %v114 = vld [vmem:[#allocation2 + $0x1c0] sm:$0xff]
    %v115 = vld [vmem:[#allocation2 + $0x1c8] sm:$0xff]
    %v116 = vld [vmem:[#allocation2 + $0x1d0] sm:$0xff]
    %v117 = vld [vmem:[#allocation2 + $0x1d8] sm:$0xff]
    %v118 = vld [vmem:[#allocation2 + $0x1e0] sm:$0xff]
    %v119 = vld [vmem:[#allocation2 + $0x1e8] sm:$0xff]
    %v120 = vld [vmem:[#allocation2 + $0x1f0] sm:$0xff]
    %v121 = vld [vmem:[#allocation2 + $0x1f8] sm:$0xff]
    %v122 = vld [vmem:[#allocation2 + $0x200] sm:$0xff]
    %v123 = vld [vmem:[#allocation2 + $0x208] sm:$0xff]
    %v124 = vld [vmem:[#allocation2 + $0x210] sm:$0xff]
    %v125 = vld [vmem:[#allocation2 + $0x218] sm:$0xff]
    %v126 = vld [vmem:[#allocation2 + $0x220] sm:$0xff]
    %v127 = vld [vmem:[#allocation2 + $0x228] sm:$0xff]
    %v128 = vld [vmem:[#allocation2 + $0x230] sm:$0xff]
    %v129 = vld [vmem:[#allocation2 + $0x238] sm:$0xff]
    %v130 = vld [vmem:[#allocation2 + $0x240] sm:$0xff]
    %v131 = vld [vmem:[#allocation2 + $0x248] sm:$0xff]
    %v132 = vld [vmem:[#allocation2 + $0x250] sm:$0xff]
    %v133 = vld [vmem:[#allocation2 + $0x258] sm:$0xff]
    %v134 = vld [vmem:[#allocation2 + $0x260] sm:$0xff]
    %v135 = vld [vmem:[#allocation2 + $0x268] sm:$0xff]
    %v136 = vld [vmem:[#allocation2 + $0x270] sm:$0xff]
    %v137 = vld [vmem:[#allocation2 + $0x278] sm:$0xff]
    %v138 = vld [vmem:[#allocation2 + $0x280] sm:$0xff]
    %v139 = vld [vmem:[#allocation2 + $0x288] sm:$0xff]
    %v140 = vld [vmem:[#allocation2 + $0x290] sm:$0xff]
    %v141 = vld [vmem:[#allocation2 + $0x298] sm:$0xff]
    %v142 = vld [vmem:[#allocation2 + $0x2a0] sm:$0xff]
    %v143 = vld [vmem:[#allocation2 + $0x2a8] sm:$0xff]
    %v144 = vld [vmem:[#allocation2 + $0x2b0] sm:$0xff]
    %v145 = vld [vmem:[#allocation2 + $0x2b8] sm:$0xff]
    %v146 = vld [vmem:[#allocation2 + $0x2c0] sm:$0xff]
    %v147 = vld [vmem:[#allocation2 + $0x2c8] sm:$0xff]
    %v148 = vld [vmem:[#allocation2 + $0x2d0] sm:$0xff]
    %v149 = vld [vmem:[#allocation2 + $0x2d8] sm:$0xff]
    %v150 = vld [vmem:[#allocation2 + $0x2e0] sm:$0xff]
    %v151 = vld [vmem:[#allocation2 + $0x2e8] sm:$0xff]
    %v152 = vld [vmem:[#allocation2 + $0x2f0] sm:$0xff]
    %v153 = vld [vmem:[#allocation2 + $0x2f8] sm:$0xff]
    %v154 = vld [vmem:[#allocation2 + $0x300] sm:$0xff]
    %v155 = vld [vmem:[#allocation2 + $0x308] sm:$0xff]
    %v156 = vld [vmem:[#allocation2 + $0x310] sm:$0xff]
    %v157 = vld [vmem:[#allocation2 + $0x318] sm:$0xff]
    %v158 = vld [vmem:[#allocation2 + $0x320] sm:$0xff]
    %v159 = vld [vmem:[#allocation2 + $0x328] sm:$0xff]
    %v160 = vld [vmem:[#allocation2 + $0x330] sm:$0xff]
    %v161 = vld [vmem:[#allocation2 + $0x338] sm:$0xff]
    %v162 = vld [vmem:[#allocation2 + $0x340] sm:$0xff]
    %v163 = vld [vmem:[#allocation2 + $0x348] sm:$0xff]
    %v164 = vld [vmem:[#allocation2 + $0x350] sm:$0xff]
    %v165 = vld [vmem:[#allocation2 + $0x358] sm:$0xff]
    %v166 = vld [vmem:[#allocation2 + $0x360] sm:$0xff]
    %v167 = vld [vmem:[#allocation2 + $0x368] sm:$0xff]
    %v168 = vld [vmem:[#allocation2 + $0x370] sm:$0xff]
    %v169 = vld [vmem:[#allocation2 + $0x378] sm:$0xff]
    %v170 = vld [vmem:[#allocation2 + $0x380] sm:$0xff]
    %v171 = vld [vmem:[#allocation2 + $0x388] sm:$0xff]
    %v172 = vld [vmem:[#allocation2 + $0x390] sm:$0xff]
    %v173 = vld [vmem:[#allocation2 + $0x398] sm:$0xff]
    %v174 = vld [vmem:[#allocation2 + $0x3a0] sm:$0xff]
    %v175 = vld [vmem:[#allocation2 + $0x3a8] sm:$0xff]
    %v176 = vld [vmem:[#allocation2 + $0x3b0] sm:$0xff]
    %v177 = vld [vmem:[#allocation2 + $0x3b8] sm:$0xff]
    %v178 = vld [vmem:[#allocation2 + $0x3c0] sm:$0xff]
    %v179 = vld [vmem:[#allocation2 + $0x3c8] sm:$0xff]
    %v180 = vld [vmem:[#allocation2 + $0x3d0] sm:$0xff]
    %v181 = vld [vmem:[#allocation2 + $0x3d8] sm:$0xff]
    %v182 = vld [vmem:[#allocation2 + $0x3e0] sm:$0xff]
    %v183 = vld [vmem:[#allocation2 + $0x3e8] sm:$0xff]
    %v184 = vld [vmem:[#allocation2 + $0x3f0] sm:$0xff]
    %v185 = vld [vmem:[#allocation2 + $0x3f8] sm:$0xff]
    %v186 = vld [vmem:[#allocation2 + $0x400] sm:$0xff]
    %v187 = vld [vmem:[#allocation2 + $0x408] sm:$0xff]
    %v188 = vld [vmem:[#allocation2 + $0x410] sm:$0xff]
    %v189 = vld [vmem:[#allocation2 + $0x418] sm:$0xff]
    %v190 = vld [vmem:[#allocation2 + $0x420] sm:$0xff]
    %v191 = vld [vmem:[#allocation2 + $0x428] sm:$0xff]
    %v192 = vld [vmem:[#allocation2 + $0x430] sm:$0xff]
    %v193 = vld [vmem:[#allocation2 + $0x438] sm:$0xff]
    %v194 = vld [vmem:[#allocation2 + $0x440] sm:$0xff]
    %v195 = vld [vmem:[#allocation2 + $0x448] sm:$0xff]
    %v196 = vld [vmem:[#allocation2 + $0x450] sm:$0xff]
    %v197 = vld [vmem:[#allocation2 + $0x458] sm:$0xff]
    %v198 = vld [vmem:[#allocation2 + $0x460] sm:$0xff]
    %v199 = vld [vmem:[#allocation2 + $0x468] sm:$0xff]
    %v200 = vld [vmem:[#allocation2 + $0x470] sm:$0xff]
    %v201 = vld [vmem:[#allocation2 + $0x478] sm:$0xff]
    %v202 = vld [vmem:[#allocation2 + $0x480] sm:$0xff]
    %v203 = vld [vmem:[#allocation2 + $0x488] sm:$0xff]
    %v204 = vld [vmem:[#allocation2 + $0x490] sm:$0xff]
    %v205 = vld [vmem:[#allocation2 + $0x498] sm:$0xff]
    %v206 = vld [vmem:[#allocation2 + $0x4a0] sm:$0xff]
    %v207 = vld [vmem:[#allocation2 + $0x4a8] sm:$0xff]
    %v208 = vld [vmem:[#allocation2 + $0x4b0] sm:$0xff]
    %v209 = vld [vmem:[#allocation2 + $0x4b8] sm:$0xff]
    %v210 = vld [vmem:[#allocation2 + $0x4c0] sm:$0xff]
    %v211 = vld [vmem:[#allocation2 + $0x4c8] sm:$0xff]
    %v212 = vld [vmem:[#allocation2 + $0x4d0] sm:$0xff]
    %v213 = vld [vmem:[#allocation2 + $0x4d8] sm:$0xff]
    %v214 = vld [vmem:[#allocation2 + $0x4e0] sm:$0xff]
    %v215 = vld [vmem:[#allocation2 + $0x4e8] sm:$0xff]
    %v216 = vld [vmem:[#allocation2 + $0x4f0] sm:$0xff]
    %v217 = vld [vmem:[#allocation2 + $0x4f8] sm:$0xff]
    %v218 = vld [vmem:[#allocation2 + $0x500] sm:$0xff]
    %v219 = vld [vmem:[#allocation2 + $0x508] sm:$0xff]
    %v220 = vld [vmem:[#allocation2 + $0x510] sm:$0xff]
    %v221 = vld [vmem:[#allocation2 + $0x518] sm:$0xff]
    %v222 = vld [vmem:[#allocation2 + $0x520] sm:$0xff]
    %v223 = vld [vmem:[#allocation2 + $0x528] sm:$0xff]
    %v224 = vld [vmem:[#allocation2 + $0x530] sm:$0xff]
    %v225 = vld [vmem:[#allocation2 + $0x538] sm:$0xff]
    %v226 = vld [vmem:[#allocation2 + $0x540] sm:$0xff]
    %v227 = vld [vmem:[#allocation2 + $0x548] sm:$0xff]
    %v228 = vld [vmem:[#allocation2 + $0x550] sm:$0xff]
    %v229 = vld [vmem:[#allocation2 + $0x558] sm:$0xff]
    %v230 = vld [vmem:[#allocation2 + $0x560] sm:$0xff]
    %v231 = vld [vmem:[#allocation2 + $0x568] sm:$0xff]
    %v232 = vld [vmem:[#allocation2 + $0x570] sm:$0xff]
    %v233 = vld [vmem:[#allocation2 + $0x578] sm:$0xff]
    %v234 = vld [vmem:[#allocation2 + $0x580] sm:$0xff]
    %v235 = vld [vmem:[#allocation2 + $0x588] sm:$0xff]
    %v236 = vld [vmem:[#allocation2 + $0x590] sm:$0xff]
    %v237 = vld [vmem:[#allocation2 + $0x598] sm:$0xff]
    %v238 = vld [vmem:[#allocation2 + $0x5a0] sm:$0xff]
    %v239 = vld [vmem:[#allocation2 + $0x5a8] sm:$0xff]
    %v240 = vld [vmem:[#allocation2 + $0x5b0] sm:$0xff]
    %v241 = vld [vmem:[#allocation2 + $0x5b8] sm:$0xff]
    %v242 = vld [vmem:[#allocation2 + $0x5c0] sm:$0xff]
    %v243 = vld [vmem:[#allocation2 + $0x5c8] sm:$0xff]
    %v244 = vld [vmem:[#allocation2 + $0x5d0] sm:$0xff]
    %v245 = vld [vmem:[#allocation2 + $0x5d8] sm:$0xff]
    %v246 = vld [vmem:[#allocation2 + $0x5e0] sm:$0xff]
    %v247 = vld [vmem:[#allocation2 + $0x5e8] sm:$0xff]
    %v248 = vld [vmem:[#allocation2 + $0x5f0] sm:$0xff]
    %v249 = vld [vmem:[#allocation2 + $0x5f8] sm:$0xff]
    %v250 = vld [vmem:[#allocation2 + $0x600] sm:$0xff]
    %v251 = vld [vmem:[#allocation2 + $0x608] sm:$0xff]
    %v252 = vld [vmem:[#allocation2 + $0x610] sm:$0xff]
    %v253 = vld [vmem:[#allocation2 + $0x618] sm:$0xff]
    %v254 = vld [vmem:[#allocation2 + $0x620] sm:$0xff]
    %v255 = vld [vmem:[#allocation2 + $0x628] sm:$0xff]
    %v256 = vld [vmem:[#allocation2 + $0x630] sm:$0xff]
    %v257 = vld [vmem:[#allocation2 + $0x638] sm:$0xff]
    %v258 = vld [vmem:[#allocation2 + $0x640] sm:$0xff]
    %v259 = vld [vmem:[#allocation2 + $0x648] sm:$0xff]
    %v260 = vld [vmem:[#allocation2 + $0x650] sm:$0xff]
    %v261 = vld [vmem:[#allocation2 + $0x658] sm:$0xff]
    %v262 = vld [vmem:[#allocation2 + $0x660] sm:$0xff]
    %v263 = vld [vmem:[#allocation2 + $0x668] sm:$0xff]
    %v264 = vld [vmem:[#allocation2 + $0x670] sm:$0xff]
    %v265 = vld [vmem:[#allocation2 + $0x678] sm:$0xff]
    %v266 = vld [vmem:[#allocation2 + $0x680] sm:$0xff]
    %v267 = vld [vmem:[#allocation2 + $0x688] sm:$0xff]
    %v268 = vld [vmem:[#allocation2 + $0x690] sm:$0xff]
    %v269 = vld [vmem:[#allocation2 + $0x698] sm:$0xff]
    %v270 = vld [vmem:[#allocation2 + $0x6a0] sm:$0xff]
    %v271 = vld [vmem:[#allocation2 + $0x6a8] sm:$0xff]
    %v272 = vld [vmem:[#allocation2 + $0x6b0] sm:$0xff]
    %v273 = vld [vmem:[#allocation2 + $0x6b8] sm:$0xff]
    %v274 = vld [vmem:[#allocation2 + $0x6c0] sm:$0xff]
    %v275 = vld [vmem:[#allocation2 + $0x6c8] sm:$0xff]
    %v276 = vld [vmem:[#allocation2 + $0x6d0] sm:$0xff]
    %v277 = vld [vmem:[#allocation2 + $0x6d8] sm:$0xff]
    %v278 = vld [vmem:[#allocation2 + $0x6e0] sm:$0xff]
    %v279 = vld [vmem:[#allocation2 + $0x6e8] sm:$0xff]
    %v280 = vld [vmem:[#allocation2 + $0x6f0] sm:$0xff]
    %v281 = vld [vmem:[#allocation2 + $0x6f8] sm:$0xff]
    %v282 = vld [vmem:[#allocation2 + $0x700] sm:$0xff]
    %v283 = vld [vmem:[#allocation2 + $0x708] sm:$0xff]
    %v284 = vld [vmem:[#allocation2 + $0x710] sm:$0xff]
    %v285 = vld [vmem:[#allocation2 + $0x718] sm:$0xff]
    %v286 = vld [vmem:[#allocation2 + $0x720] sm:$0xff]
    %v287 = vld [vmem:[#allocation2 + $0x728] sm:$0xff]
    %v288 = vld [vmem:[#allocation2 + $0x730] sm:$0xff]
    %v289 = vld [vmem:[#allocation2 + $0x738] sm:$0xff]
    %v290 = vld [vmem:[#allocation2 + $0x740] sm:$0xff]
    %v291 = vld [vmem:[#allocation2 + $0x748] sm:$0xff]
    %v292 = vld [vmem:[#allocation2 + $0x750] sm:$0xff]
    %v293 = vld [vmem:[#allocation2 + $0x758] sm:$0xff]
    %v294 = vld [vmem:[#allocation2 + $0x760] sm:$0xff]
    %v295 = vld [vmem:[#allocation2 + $0x768] sm:$0xff]
    %v296 = vld [vmem:[#allocation2 + $0x770] sm:$0xff]
    %v297 = vld [vmem:[#allocation2 + $0x778] sm:$0xff]
    %v298 = vld [vmem:[#allocation2 + $0x780] sm:$0xff]
    %v299 = vld [vmem:[#allocation2 + $0x788] sm:$0xff]
    %v300 = vld [vmem:[#allocation2 + $0x790] sm:$0xff]
    %v301 = vld [vmem:[#allocation2 + $0x798] sm:$0xff]
    %v302 = vld [vmem:[#allocation2 + $0x7a0] sm:$0xff]
    %v303 = vld [vmem:[#allocation2 + $0x7a8] sm:$0xff]
    %v304 = vld [vmem:[#allocation2 + $0x7b0] sm:$0xff]
    %v305 = vld [vmem:[#allocation2 + $0x7b8] sm:$0xff]
    %v306 = vld [vmem:[#allocation2 + $0x7c0] sm:$0xff]
    %v307 = vld [vmem:[#allocation2 + $0x7c8] sm:$0xff]
    %v308 = vld [vmem:[#allocation2 + $0x7d0] sm:$0xff]
    %v309 = vld [vmem:[#allocation2 + $0x7d8] sm:$0xff]
    %v310 = vld [vmem:[#allocation2 + $0x7e0] sm:$0xff]
    %v311 = vld [vmem:[#allocation2 + $0x7e8] sm:$0xff]
    %v312 = vld [vmem:[#allocation2 + $0x7f0] sm:$0xff]
    %v313 = vld [vmem:[#allocation2 + $0x7f8] sm:$0xff]
    %v314 = vld [vmem:[#allocation2 + $0x800] sm:$0xff]
    %v315 = vld [vmem:[#allocation2 + $0x808] sm:$0xff]
    %v316 = vld [vmem:[#allocation2 + $0x810] sm:$0xff]
    %v317 = vld [vmem:[#allocation2 + $0x818] sm:$0xff]
    %v318 = vld [vmem:[#allocation2 + $0x820] sm:$0xff]
    %v319 = vld [vmem:[#allocation2 + $0x828] sm:$0xff]
    %v320 = vld [vmem:[#allocation2 + $0x830] sm:$0xff]
    %v321 = vld [vmem:[#allocation2 + $0x838] sm:$0xff]
    %v322 = vld [vmem:[#allocation2 + $0x840] sm:$0xff]
    %v323 = vld [vmem:[#allocation2 + $0x848] sm:$0xff]
    %v324 = vld [vmem:[#allocation2 + $0x850] sm:$0xff]
    %v325 = vld [vmem:[#allocation2 + $0x858] sm:$0xff]
    %v326 = vld [vmem:[#allocation2 + $0x860] sm:$0xff]
    %v327 = vld [vmem:[#allocation2 + $0x868] sm:$0xff]
    %v328 = vld [vmem:[#allocation2 + $0x870] sm:$0xff]
    %v329 = vld [vmem:[#allocation2 + $0x878] sm:$0xff]
    %v330 = vld [vmem:[#allocation2 + $0x880] sm:$0xff]
    %v331 = vld [vmem:[#allocation2 + $0x888] sm:$0xff]
    %v332 = vld [vmem:[#allocation2 + $0x890] sm:$0xff]
    %v333 = vld [vmem:[#allocation2 + $0x898] sm:$0xff]
    %v334 = vld [vmem:[#allocation2 + $0x8a0] sm:$0xff]
    %v335 = vld [vmem:[#allocation2 + $0x8a8] sm:$0xff]
    %v336 = vld [vmem:[#allocation2 + $0x8b0] sm:$0xff]
    %v337 = vld [vmem:[#allocation2 + $0x8b8] sm:$0xff]
    %v338 = vld [vmem:[#allocation2 + $0x8c0] sm:$0xff]
    %v339 = vld [vmem:[#allocation2 + $0x8c8] sm:$0xff]
    %v340 = vld [vmem:[#allocation2 + $0x8d0] sm:$0xff]
    %v341 = vld [vmem:[#allocation2 + $0x8d8] sm:$0xff]
    %v342 = vld [vmem:[#allocation2 + $0x8e0] sm:$0xff]
    %v343 = vld [vmem:[#allocation2 + $0x8e8] sm:$0xff]
    %v344 = vld [vmem:[#allocation2 + $0x8f0] sm:$0xff]
    %v345 = vld [vmem:[#allocation2 + $0x8f8] sm:$0xff]
    %v346 = vld [vmem:[%s0] sm:$0xf]
    %v347 = vld [vmem:[%s0 + $0x4] sm:$0xf]
    %v348 = vld [vmem:[%s0 + $0x8] sm:$0xf]
    %v349 = vld [vmem:[%s0 + $0xc] sm:$0xf]
    %v350 = vld [vmem:[%s0 + $0x10] sm:$0xf]
    %v351 = vld [vmem:[%s0 + $0x14] sm:$0xf]
    %v352 = vld [vmem:[%s0 + $0x18] sm:$0xf]
    %v353 = vld [vmem:[%s0 + $0x1c] sm:$0xf]
    %v354 = vld [vmem:[%s0 + $0x20] sm:$0xf]
    %v355 = vld [vmem:[%s0 + $0x24] sm:$0xf]
    %v356 = vld [vmem:[%s0 + $0x28] sm:$0xf]
    %v357 = vld [vmem:[%s0 + $0x2c] sm:$0xf]
    %v358 = vld [vmem:[%s0 + $0x30] sm:$0xf]
    %v359 = vld [vmem:[%s0 + $0x34] sm:$0xf]
    %v360 = vld [vmem:[%s0 + $0x38] sm:$0xf]
    %v361 = vld [vmem:[%s0 + $0x3c] sm:$0xf]
    %v362 = vld [vmem:[%s0 + $0x40] sm:$0xf]
    %v363 = vld [vmem:[%s0 + $0x44] sm:$0xf]
    %v364 = vld [vmem:[%s0 + $0x48] sm:$0xf]
    %v365 = vld [vmem:[%s0 + $0x4c] sm:$0xf]
    %v366 = vld [vmem:[%s0 + $0x50] sm:$0xf]
    %v367 = vld [vmem:[%s0 + $0x54] sm:$0xf]
    %v368 = vld [vmem:[%s0 + $0x58] sm:$0xf]
    %v369 = vld [vmem:[%s0 + $0x5c] sm:$0xf]
    %v370 = vld [vmem:[%s0 + $0x60] sm:$0xf]
    %v371 = vld [vmem:[%s0 + $0x64] sm:$0xf]
    %v372 = vld [vmem:[%s0 + $0x68] sm:$0xf]
    %v373 = vld [vmem:[%s0 + $0x6c] sm:$0xf]
    %v374 = vld [vmem:[%s0 + $0x70] sm:$0xf]
    %v375 = vld [vmem:[%s0 + $0x74] sm:$0xf]
    %v376 = vld [vmem:[%s0 + $0x78] sm:$0xf]
    %v377 = vld [vmem:[%s0 + $0x7c] sm:$0xf]
    %v378 = vld [vmem:[%s0 + $0x80] sm:$0xf]
    %v379 = vld [vmem:[%s0 + $0x84] sm:$0xf]
    %v380 = vld [vmem:[%s0 + $0x88] sm:$0xf]
    %v381 = vld [vmem:[%s0 + $0x8c] sm:$0xf]
    %v382 = vld [vmem:[%s0 + $0x90] sm:$0xf]
    %v383 = vld [vmem:[%s0 + $0x94] sm:$0xf]
    %v384 = vld [vmem:[%s0 + $0x98] sm:$0xf]
    %v385 = vld [vmem:[%s0 + $0x9c] sm:$0xf]
    %v386 = vld [vmem:[%s0 + $0xa0] sm:$0xf]
    %v387 = vld [vmem:[%s0 + $0xa4] sm:$0xf]
    %v388 = vld [vmem:[%s0 + $0xa8] sm:$0xf]
    %v389 = vld [vmem:[%s0 + $0xac] sm:$0xf]
    %v390 = vld [vmem:[%s0 + $0xb0] sm:$0xf]
    %v391 = vld [vmem:[%s0 + $0xb4] sm:$0xf]
    %v392 = vld [vmem:[%s0 + $0xb8] sm:$0xf]
    %v393 = vld [vmem:[%s0 + $0xbc] sm:$0xf]
    %v394 = vld [vmem:[%s0 + $0xc0] sm:$0xf]
    %v395 = vld [vmem:[%s0 + $0xc4] sm:$0xf]
    %v396 = vld [vmem:[%s0 + $0xc8] sm:$0xf]
    %v397 = vld [vmem:[%s0 + $0xcc] sm:$0xf]
    %v398 = vld [vmem:[%s0 + $0xd0] sm:$0xf]
    %v399 = vld [vmem:[%s0 + $0xd4] sm:$0xf]
    %v400 = vld [vmem:[%s0 + $0xd8] sm:$0xf]
    %v401 = vld [vmem:[%s0 + $0xdc] sm:$0xf]
    %v402 = vld [vmem:[%s0 + $0xe0] sm:$0xf]
    %v403 = vld [vmem:[%s0 + $0xe4] sm:$0xf]
    %v404 = vld [vmem:[%s0 + $0xe8] sm:$0xf]
    %v405 = vld [vmem:[%s0 + $0xec] sm:$0xf]
    %v406 = vld [vmem:[%s0 + $0xf0] sm:$0xf]
    %v407 = vld [vmem:[%s0 + $0xf4] sm:$0xf]
    %v408 = vld [vmem:[%s0 + $0xf8] sm:$0xf]
    %v409 = vld [vmem:[%s0 + $0xfc] sm:$0xf]
    %v698 = vunpack.c.l.b16 %v58
    %v699 = vunpack.c.h.b16 %v58
    %v700 = vunpack.c.l.b16 %v59
    %v701 = vunpack.c.h.b16 %v59
    %v702 = vunpack.c.l.b16 %v60
    %v703 = vunpack.c.h.b16 %v60
    %v704 = vunpack.c.l.b16 %v61
    %v705 = vunpack.c.h.b16 %v61
    %v706 = vunpack.c.l.b16 %v62
    %v707 = vunpack.c.h.b16 %v62
    %v708 = vunpack.c.l.b16 %v63
    %v709 = vunpack.c.h.b16 %v63
    %v710 = vunpack.c.l.b16 %v64
    %v711 = vunpack.c.h.b16 %v64
    %v712 = vunpack.c.l.b16 %v65
    %v713 = vunpack.c.h.b16 %v65
    %v714 = vunpack.c.l.b16 %v66
    %v715 = vunpack.c.h.b16 %v66
    %v716 = vunpack.c.l.b16 %v67
    %v717 = vunpack.c.h.b16 %v67
    %v718 = vunpack.c.l.b16 %v68
    %v719 = vunpack.c.h.b16 %v68
    %v720 = vunpack.c.l.b16 %v69
    %v721 = vunpack.c.h.b16 %v69
    %v722 = vunpack.c.l.b16 %v70
    %v723 = vunpack.c.h.b16 %v70
    %v724 = vunpack.c.l.b16 %v71
    %v725 = vunpack.c.h.b16 %v71
    %v726 = vunpack.c.l.b16 %v72
    %v727 = vunpack.c.h.b16 %v72
    %v728 = vunpack.c.l.b16 %v73
    %v729 = vunpack.c.h.b16 %v73
    %v730 = vunpack.c.l.b16 %v74
    %v731 = vunpack.c.h.b16 %v74
    %v732 = vunpack.c.l.b16 %v75
    %v733 = vunpack.c.h.b16 %v75
    %v734 = vunpack.c.l.b16 %v76
    %v735 = vunpack.c.h.b16 %v76
    %v736 = vunpack.c.l.b16 %v77
    %v737 = vunpack.c.h.b16 %v77
    %v738 = vunpack.c.l.b16 %v78
    %v739 = vunpack.c.h.b16 %v78
    %v740 = vunpack.c.l.b16 %v79
    %v741 = vunpack.c.h.b16 %v79
    %v742 = vunpack.c.l.b16 %v80
    %v743 = vunpack.c.h.b16 %v80
    %v744 = vunpack.c.l.b16 %v81
    %v745 = vunpack.c.h.b16 %v81
    %v746 = vunpack.c.l.b16 %v82
    %v747 = vunpack.c.h.b16 %v82
    %v748 = vunpack.c.l.b16 %v83
    %v749 = vunpack.c.h.b16 %v83
    %v750 = vunpack.c.l.b16 %v84
    %v751 = vunpack.c.h.b16 %v84
    %v752 = vunpack.c.l.b16 %v85
    %v753 = vunpack.c.h.b16 %v85
    %v754 = vunpack.c.l.b16 %v86
    %v755 = vunpack.c.h.b16 %v86
    %v756 = vunpack.c.l.b16 %v87
    %v757 = vunpack.c.h.b16 %v87
    %v758 = vunpack.c.l.b16 %v88
    %v759 = vunpack.c.h.b16 %v88
    %v760 = vunpack.c.l.b16 %v89
    %v761 = vunpack.c.h.b16 %v89
    %v762 = vunpack.c.l.b16 %v90
    %v763 = vunpack.c.h.b16 %v90
    %v764 = vunpack.c.l.b16 %v91
    %v765 = vunpack.c.h.b16 %v91
    %v766 = vunpack.c.l.b16 %v92
    %v767 = vunpack.c.h.b16 %v92
    %v768 = vunpack.c.l.b16 %v93
    %v769 = vunpack.c.h.b16 %v93
    %v770 = vunpack.c.l.b16 %v94
    %v771 = vunpack.c.h.b16 %v94
    %v772 = vunpack.c.l.b16 %v95
    %v773 = vunpack.c.h.b16 %v95
    %v774 = vunpack.c.l.b16 %v96
    %v775 = vunpack.c.h.b16 %v96
    %v776 = vunpack.c.l.b16 %v97
    %v777 = vunpack.c.h.b16 %v97
    %v778 = vunpack.c.l.b16 %v98
    %v779 = vunpack.c.h.b16 %v98
    %v780 = vunpack.c.l.b16 %v99
    %v781 = vunpack.c.h.b16 %v99
    %v782 = vunpack.c.l.b16 %v100
    %v783 = vunpack.c.h.b16 %v100
    %v784 = vunpack.c.l.b16 %v101
    %v785 = vunpack.c.h.b16 %v101
    %v786 = vunpack.c.l.b16 %v102
    %v787 = vunpack.c.h.b16 %v102
    %v788 = vunpack.c.l.b16 %v103
    %v789 = vunpack.c.h.b16 %v103
    %v790 = vunpack.c.l.b16 %v104
    %v791 = vunpack.c.h.b16 %v104
    %v792 = vunpack.c.l.b16 %v105
    %v793 = vunpack.c.h.b16 %v105
    %v794 = vunpack.c.l.b16 %v106
    %v795 = vunpack.c.h.b16 %v106
    %v796 = vunpack.c.l.b16 %v107
    %v797 = vunpack.c.h.b16 %v107
    %v798 = vunpack.c.l.b16 %v108
    %v799 = vunpack.c.h.b16 %v108
    %v800 = vunpack.c.l.b16 %v109
    %v801 = vunpack.c.h.b16 %v109
    %v802 = vunpack.c.l.b16 %v110
    %v803 = vunpack.c.h.b16 %v110
    %v804 = vunpack.c.l.b16 %v111
    %v805 = vunpack.c.h.b16 %v111
    %v806 = vunpack.c.l.b16 %v112
    %v807 = vunpack.c.h.b16 %v112
    %v808 = vunpack.c.l.b16 %v113
    %v809 = vunpack.c.h.b16 %v113
    %v810 = vunpack.c.l.b16 %v114
    %v811 = vunpack.c.h.b16 %v114
    %v812 = vunpack.c.l.b16 %v115
    %v813 = vunpack.c.h.b16 %v115
    %v814 = vunpack.c.l.b16 %v116
    %v815 = vunpack.c.h.b16 %v116
    %v816 = vunpack.c.l.b16 %v117
    %v817 = vunpack.c.h.b16 %v117
    %v818 = vunpack.c.l.b16 %v118
    %v819 = vunpack.c.h.b16 %v118
    %v820 = vunpack.c.l.b16 %v119
    %v821 = vunpack.c.h.b16 %v119
    %v822 = vunpack.c.l.b16 %v120
    %v823 = vunpack.c.h.b16 %v120
    %v824 = vunpack.c.l.b16 %v121
    %v825 = vunpack.c.h.b16 %v121
    %v826 = vunpack.c.l.b16 %v122
    %v827 = vunpack.c.h.b16 %v122
    %v828 = vunpack.c.l.b16 %v123
    %v829 = vunpack.c.h.b16 %v123
    %v830 = vunpack.c.l.b16 %v124
    %v831 = vunpack.c.h.b16 %v124
    %v832 = vunpack.c.l.b16 %v125
    %v833 = vunpack.c.h.b16 %v125
    %v834 = vunpack.c.l.b16 %v126
    %v835 = vunpack.c.h.b16 %v126
    %v836 = vunpack.c.l.b16 %v127
    %v837 = vunpack.c.h.b16 %v127
    %v838 = vunpack.c.l.b16 %v128
    %v839 = vunpack.c.h.b16 %v128
    %v840 = vunpack.c.l.b16 %v129
    %v841 = vunpack.c.h.b16 %v129
    %v842 = vunpack.c.l.b16 %v130
    %v843 = vunpack.c.h.b16 %v130
    %v844 = vunpack.c.l.b16 %v131
    %v845 = vunpack.c.h.b16 %v131
    %v846 = vunpack.c.l.b16 %v132
    %v847 = vunpack.c.h.b16 %v132
    %v848 = vunpack.c.l.b16 %v133
    %v849 = vunpack.c.h.b16 %v133
    %v850 = vunpack.c.l.b16 %v134
    %v851 = vunpack.c.h.b16 %v134
    %v852 = vunpack.c.l.b16 %v135
    %v853 = vunpack.c.h.b16 %v135
    %v854 = vunpack.c.l.b16 %v136
    %v855 = vunpack.c.h.b16 %v136
    %v856 = vunpack.c.l.b16 %v137
    %v857 = vunpack.c.h.b16 %v137
    %v858 = vunpack.c.l.b16 %v138
    %v859 = vunpack.c.h.b16 %v138
    %v860 = vunpack.c.l.b16 %v139
    %v861 = vunpack.c.h.b16 %v139
    %v862 = vunpack.c.l.b16 %v140
    %v863 = vunpack.c.h.b16 %v140
    %v864 = vunpack.c.l.b16 %v141
    %v865 = vunpack.c.h.b16 %v141
    %v866 = vunpack.c.l.b16 %v142
    %v867 = vunpack.c.h.b16 %v142
    %v868 = vunpack.c.l.b16 %v143
    %v869 = vunpack.c.h.b16 %v143
    %v870 = vunpack.c.l.b16 %v144
    %v871 = vunpack.c.h.b16 %v144
    %v872 = vunpack.c.l.b16 %v145
    %v873 = vunpack.c.h.b16 %v145
    %v874 = vunpack.c.l.b16 %v146
    %v875 = vunpack.c.h.b16 %v146
    %v876 = vunpack.c.l.b16 %v147
    %v877 = vunpack.c.h.b16 %v147
    %v878 = vunpack.c.l.b16 %v148
    %v879 = vunpack.c.h.b16 %v148
    %v880 = vunpack.c.l.b16 %v149
    %v881 = vunpack.c.h.b16 %v149
    %v882 = vunpack.c.l.b16 %v150
    %v883 = vunpack.c.h.b16 %v150
    %v884 = vunpack.c.l.b16 %v151
    %v885 = vunpack.c.h.b16 %v151
    %v886 = vunpack.c.l.b16 %v152
    %v887 = vunpack.c.h.b16 %v152
    %v888 = vunpack.c.l.b16 %v153
    %v889 = vunpack.c.h.b16 %v153
    %v890 = vunpack.c.l.b16 %v154
    %v891 = vunpack.c.h.b16 %v154
    %v892 = vunpack.c.l.b16 %v155
    %v893 = vunpack.c.h.b16 %v155
    %v894 = vunpack.c.l.b16 %v156
    %v895 = vunpack.c.h.b16 %v156
    %v896 = vunpack.c.l.b16 %v157
    %v897 = vunpack.c.h.b16 %v157
    %v898 = vunpack.c.l.b16 %v158
    %v899 = vunpack.c.h.b16 %v158
    %v900 = vunpack.c.l.b16 %v159
    %v901 = vunpack.c.h.b16 %v159
    %v902 = vunpack.c.l.b16 %v160
    %v903 = vunpack.c.h.b16 %v160
    %v904 = vunpack.c.l.b16 %v161
    %v905 = vunpack.c.h.b16 %v161
    %v906 = vunpack.c.l.b16 %v162
    %v907 = vunpack.c.h.b16 %v162
    %v908 = vunpack.c.l.b16 %v163
    %v909 = vunpack.c.h.b16 %v163
    %v910 = vunpack.c.l.b16 %v164
    %v911 = vunpack.c.h.b16 %v164
    %v912 = vunpack.c.l.b16 %v165
    %v913 = vunpack.c.h.b16 %v165
    %v914 = vunpack.c.l.b16 %v166
    %v915 = vunpack.c.h.b16 %v166
    %v916 = vunpack.c.l.b16 %v167
    %v917 = vunpack.c.h.b16 %v167
    %v918 = vunpack.c.l.b16 %v168
    %v919 = vunpack.c.h.b16 %v168
    %v920 = vunpack.c.l.b16 %v169
    %v921 = vunpack.c.h.b16 %v169
    %v922 = vunpack.c.l.b16 %v170
    %v923 = vunpack.c.h.b16 %v170
    %v924 = vunpack.c.l.b16 %v171
    %v925 = vunpack.c.h.b16 %v171
    %v926 = vunpack.c.l.b16 %v172
    %v927 = vunpack.c.h.b16 %v172
    %v928 = vunpack.c.l.b16 %v173
    %v929 = vunpack.c.h.b16 %v173
    %v930 = vunpack.c.l.b16 %v174
    %v931 = vunpack.c.h.b16 %v174
    %v932 = vunpack.c.l.b16 %v175
    %v933 = vunpack.c.h.b16 %v175
    %v934 = vunpack.c.l.b16 %v176
    %v935 = vunpack.c.h.b16 %v176
    %v936 = vunpack.c.l.b16 %v177
    %v937 = vunpack.c.h.b16 %v177
    %v938 = vunpack.c.l.b16 %v178
    %v939 = vunpack.c.h.b16 %v178
    %v940 = vunpack.c.l.b16 %v179
    %v941 = vunpack.c.h.b16 %v179
    %v942 = vunpack.c.l.b16 %v180
    %v943 = vunpack.c.h.b16 %v180
    %v944 = vunpack.c.l.b16 %v181
    %v945 = vunpack.c.h.b16 %v181
    %v946 = vunpack.c.l.b16 %v182
    %v947 = vunpack.c.h.b16 %v182
    %v948 = vunpack.c.l.b16 %v183
    %v949 = vunpack.c.h.b16 %v183
    %v950 = vunpack.c.l.b16 %v184
    %v951 = vunpack.c.h.b16 %v184
    %v952 = vunpack.c.l.b16 %v185
    %v953 = vunpack.c.h.b16 %v185
    %v954 = vunpack.c.l.b16 %v186
    %v955 = vunpack.c.h.b16 %v186
    %v956 = vunpack.c.l.b16 %v187
    %v957 = vunpack.c.h.b16 %v187
    %v958 = vunpack.c.l.b16 %v188
    %v959 = vunpack.c.h.b16 %v188
    %v960 = vunpack.c.l.b16 %v189
    %v961 = vunpack.c.h.b16 %v189
    %v962 = vunpack.c.l.b16 %v190
    %v963 = vunpack.c.h.b16 %v190
    %v964 = vunpack.c.l.b16 %v191
    %v965 = vunpack.c.h.b16 %v191
    %v966 = vunpack.c.l.b16 %v192
    %v967 = vunpack.c.h.b16 %v192
    %v968 = vunpack.c.l.b16 %v193
    %v969 = vunpack.c.h.b16 %v193
    %v970 = vunpack.c.l.b16 %v194
    %v971 = vunpack.c.h.b16 %v194
    %v972 = vunpack.c.l.b16 %v195
    %v973 = vunpack.c.h.b16 %v195
    %v974 = vunpack.c.l.b16 %v196
    %v975 = vunpack.c.h.b16 %v196
    %v976 = vunpack.c.l.b16 %v197
    %v977 = vunpack.c.h.b16 %v197
    %v978 = vunpack.c.l.b16 %v198
    %v979 = vunpack.c.h.b16 %v198
    %v980 = vunpack.c.l.b16 %v199
    %v981 = vunpack.c.h.b16 %v199
    %v982 = vunpack.c.l.b16 %v200
    %v983 = vunpack.c.h.b16 %v200
    %v984 = vunpack.c.l.b16 %v201
    %v985 = vunpack.c.h.b16 %v201
    %v986 = vunpack.c.l.b16 %v202
    %v987 = vunpack.c.h.b16 %v202
    %v988 = vunpack.c.l.b16 %v203
    %v989 = vunpack.c.h.b16 %v203
    %v990 = vunpack.c.l.b16 %v204
    %v991 = vunpack.c.h.b16 %v204
    %v992 = vunpack.c.l.b16 %v205
    %v993 = vunpack.c.h.b16 %v205
    %v994 = vunpack.c.l.b16 %v206
    %v995 = vunpack.c.h.b16 %v206
    %v996 = vunpack.c.l.b16 %v207
    %v997 = vunpack.c.h.b16 %v207
    %v998 = vunpack.c.l.b16 %v208
    %v999 = vunpack.c.h.b16 %v208
    %v1000 = vunpack.c.l.b16 %v209
    %v1001 = vunpack.c.h.b16 %v209
    %v1002 = vunpack.c.l.b16 %v210
    %v1003 = vunpack.c.h.b16 %v210
    %v1004 = vunpack.c.l.b16 %v211
    %v1005 = vunpack.c.h.b16 %v211
    %v1006 = vunpack.c.l.b16 %v212
    %v1007 = vunpack.c.h.b16 %v212
    %v1008 = vunpack.c.l.b16 %v213
    %v1009 = vunpack.c.h.b16 %v213
    %v1010 = vunpack.c.l.b16 %v214
    %v1011 = vunpack.c.h.b16 %v214
    %v1012 = vunpack.c.l.b16 %v215
    %v1013 = vunpack.c.h.b16 %v215
    %v1014 = vunpack.c.l.b16 %v216
    %v1015 = vunpack.c.h.b16 %v216
    %v1016 = vunpack.c.l.b16 %v217
    %v1017 = vunpack.c.h.b16 %v217
    %v1018 = vunpack.c.l.b16 %v218
    %v1019 = vunpack.c.h.b16 %v218
    %v1020 = vunpack.c.l.b16 %v219
    %v1021 = vunpack.c.h.b16 %v219
    %v1022 = vunpack.c.l.b16 %v220
    %v1023 = vunpack.c.h.b16 %v220
    %v1024 = vunpack.c.l.b16 %v221
    %v1025 = vunpack.c.h.b16 %v221
    %v1026 = vunpack.c.l.b16 %v222
    %v1027 = vunpack.c.h.b16 %v222
    %v1028 = vunpack.c.l.b16 %v223
    %v1029 = vunpack.c.h.b16 %v223
    %v1030 = vunpack.c.l.b16 %v224
    %v1031 = vunpack.c.h.b16 %v224
    %v1032 = vunpack.c.l.b16 %v225
    %v1033 = vunpack.c.h.b16 %v225
    %v1034 = vunpack.c.l.b16 %v226
    %v1035 = vunpack.c.h.b16 %v226
    %v1036 = vunpack.c.l.b16 %v227
    %v1037 = vunpack.c.h.b16 %v227
    %v1038 = vunpack.c.l.b16 %v228
    %v1039 = vunpack.c.h.b16 %v228
    %v1040 = vunpack.c.l.b16 %v229
    %v1041 = vunpack.c.h.b16 %v229
    %v1042 = vunpack.c.l.b16 %v230
    %v1043 = vunpack.c.h.b16 %v230
    %v1044 = vunpack.c.l.b16 %v231
    %v1045 = vunpack.c.h.b16 %v231
    %v1046 = vunpack.c.l.b16 %v232
    %v1047 = vunpack.c.h.b16 %v232
    %v1048 = vunpack.c.l.b16 %v233
    %v1049 = vunpack.c.h.b16 %v233
    %v1050 = vunpack.c.l.b16 %v234
    %v1051 = vunpack.c.h.b16 %v234
    %v1052 = vunpack.c.l.b16 %v235
    %v1053 = vunpack.c.h.b16 %v235
    %v1054 = vunpack.c.l.b16 %v236
    %v1055 = vunpack.c.h.b16 %v236
    %v1056 = vunpack.c.l.b16 %v237
    %v1057 = vunpack.c.h.b16 %v237
    %v1058 = vunpack.c.l.b16 %v238
    %v1059 = vunpack.c.h.b16 %v238
    %v1060 = vunpack.c.l.b16 %v239
    %v1061 = vunpack.c.h.b16 %v239
    %v1062 = vunpack.c.l.b16 %v240
    %v1063 = vunpack.c.h.b16 %v240
    %v1064 = vunpack.c.l.b16 %v241
    %v1065 = vunpack.c.h.b16 %v241
    %v1066 = vunpack.c.l.b16 %v242
    %v1067 = vunpack.c.h.b16 %v242
    %v1068 = vunpack.c.l.b16 %v243
    %v1069 = vunpack.c.h.b16 %v243
    %v1070 = vunpack.c.l.b16 %v244
    %v1071 = vunpack.c.h.b16 %v244
    %v1072 = vunpack.c.l.b16 %v245
    %v1073 = vunpack.c.h.b16 %v245
    %v1074 = vunpack.c.l.b16 %v246
    %v1075 = vunpack.c.h.b16 %v246
    %v1076 = vunpack.c.l.b16 %v247
    %v1077 = vunpack.c.h.b16 %v247
    %v1078 = vunpack.c.l.b16 %v248
    %v1079 = vunpack.c.h.b16 %v248
    %v1080 = vunpack.c.l.b16 %v249
    %v1081 = vunpack.c.h.b16 %v249
    %v1082 = vunpack.c.l.b16 %v250
    %v1083 = vunpack.c.h.b16 %v250
    %v1084 = vunpack.c.l.b16 %v251
    %v1085 = vunpack.c.h.b16 %v251
    %v1086 = vunpack.c.l.b16 %v252
    %v1087 = vunpack.c.h.b16 %v252
    %v1088 = vunpack.c.l.b16 %v253
    %v1089 = vunpack.c.h.b16 %v253
    %v1090 = vunpack.c.l.b16 %v254
    %v1091 = vunpack.c.h.b16 %v254
    %v1092 = vunpack.c.l.b16 %v255
    %v1093 = vunpack.c.h.b16 %v255
    %v1094 = vunpack.c.l.b16 %v256
    %v1095 = vunpack.c.h.b16 %v256
    %v1096 = vunpack.c.l.b16 %v257
    %v1097 = vunpack.c.h.b16 %v257
    %v1098 = vunpack.c.l.b16 %v258
    %v1099 = vunpack.c.h.b16 %v258
    %v1100 = vunpack.c.l.b16 %v259
    %v1101 = vunpack.c.h.b16 %v259
    %v1102 = vunpack.c.l.b16 %v260
    %v1103 = vunpack.c.h.b16 %v260
    %v1104 = vunpack.c.l.b16 %v261
    %v1105 = vunpack.c.h.b16 %v261
    %v1106 = vunpack.c.l.b16 %v262
    %v1107 = vunpack.c.h.b16 %v262
    %v1108 = vunpack.c.l.b16 %v263
    %v1109 = vunpack.c.h.b16 %v263
    %v1110 = vunpack.c.l.b16 %v264
    %v1111 = vunpack.c.h.b16 %v264
    %v1112 = vunpack.c.l.b16 %v265
    %v1113 = vunpack.c.h.b16 %v265
    %v1114 = vunpack.c.l.b16 %v266
    %v1115 = vunpack.c.h.b16 %v266
    %v1116 = vunpack.c.l.b16 %v267
    %v1117 = vunpack.c.h.b16 %v267
    %v1118 = vunpack.c.l.b16 %v268
    %v1119 = vunpack.c.h.b16 %v268
    %v1120 = vunpack.c.l.b16 %v269
    %v1121 = vunpack.c.h.b16 %v269
    %v1122 = vunpack.c.l.b16 %v270
    %v1123 = vunpack.c.h.b16 %v270
    %v1124 = vunpack.c.l.b16 %v271
    %v1125 = vunpack.c.h.b16 %v271
    %v1126 = vunpack.c.l.b16 %v272
    %v1127 = vunpack.c.h.b16 %v272
    %v1128 = vunpack.c.l.b16 %v273
    %v1129 = vunpack.c.h.b16 %v273
    %v1130 = vunpack.c.l.b16 %v274
    %v1131 = vunpack.c.h.b16 %v274
    %v1132 = vunpack.c.l.b16 %v275
    %v1133 = vunpack.c.h.b16 %v275
    %v1134 = vunpack.c.l.b16 %v276
    %v1135 = vunpack.c.h.b16 %v276
    %v1136 = vunpack.c.l.b16 %v277
    %v1137 = vunpack.c.h.b16 %v277
    %v1138 = vunpack.c.l.b16 %v278
    %v1139 = vunpack.c.h.b16 %v278
    %v1140 = vunpack.c.l.b16 %v279
    %v1141 = vunpack.c.h.b16 %v279
    %v1142 = vunpack.c.l.b16 %v280
    %v1143 = vunpack.c.h.b16 %v280
    %v1144 = vunpack.c.l.b16 %v281
    %v1145 = vunpack.c.h.b16 %v281
    %v1146 = vunpack.c.l.b16 %v282
    %v1147 = vunpack.c.h.b16 %v282
    %v1148 = vunpack.c.l.b16 %v283
    %v1149 = vunpack.c.h.b16 %v283
    %v1150 = vunpack.c.l.b16 %v284
    %v1151 = vunpack.c.h.b16 %v284
    %v1152 = vunpack.c.l.b16 %v285
    %v1153 = vunpack.c.h.b16 %v285
    %v1154 = vunpack.c.l.b16 %v286
    %v1155 = vunpack.c.h.b16 %v286
    %v1156 = vunpack.c.l.b16 %v287
    %v1157 = vunpack.c.h.b16 %v287
    %v1158 = vunpack.c.l.b16 %v288
    %v1159 = vunpack.c.h.b16 %v288
    %v1160 = vunpack.c.l.b16 %v289
    %v1161 = vunpack.c.h.b16 %v289
    %v1162 = vunpack.c.l.b16 %v290
    %v1163 = vunpack.c.h.b16 %v290
    %v1164 = vunpack.c.l.b16 %v291
    %v1165 = vunpack.c.h.b16 %v291
    %v1166 = vunpack.c.l.b16 %v292
    %v1167 = vunpack.c.h.b16 %v292
    %v1168 = vunpack.c.l.b16 %v293
    %v1169 = vunpack.c.h.b16 %v293
    %v1170 = vunpack.c.l.b16 %v294
    %v1171 = vunpack.c.h.b16 %v294
    %v1172 = vunpack.c.l.b16 %v295
    %v1173 = vunpack.c.h.b16 %v295
    %v1174 = vunpack.c.l.b16 %v296
    %v1175 = vunpack.c.h.b16 %v296
    %v1176 = vunpack.c.l.b16 %v297
    %v1177 = vunpack.c.h.b16 %v297
    %v1178 = vunpack.c.l.b16 %v298
    %v1179 = vunpack.c.h.b16 %v298
    %v1180 = vunpack.c.l.b16 %v299
    %v1181 = vunpack.c.h.b16 %v299
    %v1182 = vunpack.c.l.b16 %v300
    %v1183 = vunpack.c.h.b16 %v300
    %v1184 = vunpack.c.l.b16 %v301
    %v1185 = vunpack.c.h.b16 %v301
    %v1186 = vunpack.c.l.b16 %v302
    %v1187 = vunpack.c.h.b16 %v302
    %v1188 = vunpack.c.l.b16 %v303
    %v1189 = vunpack.c.h.b16 %v303
    %v1190 = vunpack.c.l.b16 %v304
    %v1191 = vunpack.c.h.b16 %v304
    %v1192 = vunpack.c.l.b16 %v305
    %v1193 = vunpack.c.h.b16 %v305
    %v1194 = vunpack.c.l.b16 %v306
    %v1195 = vunpack.c.h.b16 %v306
    %v1196 = vunpack.c.l.b16 %v307
    %v1197 = vunpack.c.h.b16 %v307
    %v1198 = vunpack.c.l.b16 %v308
    %v1199 = vunpack.c.h.b16 %v308
    %v1200 = vunpack.c.l.b16 %v309
    %v1201 = vunpack.c.h.b16 %v309
    %v1202 = vunpack.c.l.b16 %v310
    %v1203 = vunpack.c.h.b16 %v310
    %v1204 = vunpack.c.l.b16 %v311
    %v1205 = vunpack.c.h.b16 %v311
    %v1206 = vunpack.c.l.b16 %v312
    %v1207 = vunpack.c.h.b16 %v312
    %v1208 = vunpack.c.l.b16 %v313
    %v1209 = vunpack.c.h.b16 %v313
    %v1210 = vunpack.c.l.b16 %v314
    %v1211 = vunpack.c.h.b16 %v314
    %v1212 = vunpack.c.l.b16 %v315
    %v1213 = vunpack.c.h.b16 %v315
    %v1214 = vunpack.c.l.b16 %v316
    %v1215 = vunpack.c.h.b16 %v316
    %v1216 = vunpack.c.l.b16 %v317
    %v1217 = vunpack.c.h.b16 %v317
    %v1218 = vunpack.c.l.b16 %v318
    %v1219 = vunpack.c.h.b16 %v318
    %v1220 = vunpack.c.l.b16 %v319
    %v1221 = vunpack.c.h.b16 %v319
    %v1222 = vunpack.c.l.b16 %v320
    %v1223 = vunpack.c.h.b16 %v320
    %v1224 = vunpack.c.l.b16 %v321
    %v1225 = vunpack.c.h.b16 %v321
    %v1226 = vunpack.c.l.b16 %v322
    %v1227 = vunpack.c.h.b16 %v322
    %v1228 = vunpack.c.l.b16 %v323
    %v1229 = vunpack.c.h.b16 %v323
    %v1230 = vunpack.c.l.b16 %v324
    %v1231 = vunpack.c.h.b16 %v324
    %v1232 = vunpack.c.l.b16 %v325
    %v1233 = vunpack.c.h.b16 %v325
    %v1234 = vunpack.c.l.b16 %v326
    %v1235 = vunpack.c.h.b16 %v326
    %v1236 = vunpack.c.l.b16 %v327
    %v1237 = vunpack.c.h.b16 %v327
    %v1238 = vunpack.c.l.b16 %v328
    %v1239 = vunpack.c.h.b16 %v328
    %v1240 = vunpack.c.l.b16 %v329
    %v1241 = vunpack.c.h.b16 %v329
    %v1242 = vunpack.c.l.b16 %v330
    %v1243 = vunpack.c.h.b16 %v330
    %v1244 = vunpack.c.l.b16 %v331
    %v1245 = vunpack.c.h.b16 %v331
    %v1246 = vunpack.c.l.b16 %v332
    %v1247 = vunpack.c.h.b16 %v332
    %v1248 = vunpack.c.l.b16 %v333
    %v1249 = vunpack.c.h.b16 %v333
    %v1250 = vunpack.c.l.b16 %v334
    %v1251 = vunpack.c.h.b16 %v334
    %v1252 = vunpack.c.l.b16 %v335
    %v1253 = vunpack.c.h.b16 %v335
    %v1254 = vunpack.c.l.b16 %v336
    %v1255 = vunpack.c.h.b16 %v336
    %v1256 = vunpack.c.l.b16 %v337
    %v1257 = vunpack.c.h.b16 %v337
    %v1258 = vunpack.c.l.b16 %v338
    %v1259 = vunpack.c.h.b16 %v338
    %v1260 = vunpack.c.l.b16 %v339
    %v1261 = vunpack.c.h.b16 %v339
    %v1262 = vunpack.c.l.b16 %v340
    %v1263 = vunpack.c.h.b16 %v340
    %v1264 = vunpack.c.l.b16 %v341
    %v1265 = vunpack.c.h.b16 %v341
    %v1266 = vunpack.c.l.b16 %v342
    %v1267 = vunpack.c.h.b16 %v342
    %v1268 = vunpack.c.l.b16 %v343
    %v1269 = vunpack.c.h.b16 %v343
    %v1270 = vunpack.c.l.b16 %v344
    %v1271 = vunpack.c.h.b16 %v344
    %v1272 = vunpack.c.l.b16 %v345
    %v1273 = vunpack.c.h.b16 %v345
    %v1274 = vpack.c.b16 %v702, %v698
    %v1275 = vpack.c.b16 %v703, %v699
    %v1276 = vpack.c.b16 %v704, %v700
    %v1277 = vpack.c.b16 %v705, %v701
    %v1278 = vpack.c.b16 %v710, %v706
    %v1279 = vpack.c.b16 %v711, %v707
    %v1280 = vpack.c.b16 %v712, %v708
    %v1281 = vpack.c.b16 %v713, %v709
    %v1282 = vpack.c.b16 %v718, %v714
    %v1283 = vpack.c.b16 %v719, %v715
    %v1284 = vpack.c.b16 %v720, %v716
    %v1285 = vpack.c.b16 %v721, %v717
    %v1286 = vpack.c.b16 %v726, %v722
    %v1287 = vpack.c.b16 %v727, %v723
    %v1288 = vpack.c.b16 %v728, %v724
    %v1289 = vpack.c.b16 %v729, %v725
    %v1290 = vpack.c.b16 %v734, %v730
    %v1291 = vpack.c.b16 %v735, %v731
    %v1292 = vpack.c.b16 %v736, %v732
    %v1293 = vpack.c.b16 %v737, %v733
    %v1294 = vpack.c.b16 %v742, %v738
    %v1295 = vpack.c.b16 %v743, %v739
    %v1296 = vpack.c.b16 %v744, %v740
    %v1297 = vpack.c.b16 %v745, %v741
    %v1298 = vpack.c.b16 %v750, %v746
    %v1299 = vpack.c.b16 %v751, %v747
    %v1300 = vpack.c.b16 %v752, %v748
    %v1301 = vpack.c.b16 %v753, %v749
    %v1302 = vpack.c.b16 %v758, %v754
    %v1303 = vpack.c.b16 %v759, %v755
    %v1304 = vpack.c.b16 %v760, %v756
    %v1305 = vpack.c.b16 %v761, %v757
    %v1306 = vpack.c.b16 %v766, %v762
    %v1307 = vpack.c.b16 %v767, %v763
    %v1308 = vpack.c.b16 %v768, %v764
    %v1309 = vpack.c.b16 %v769, %v765
    %v1310 = vpack.c.b16 %v774, %v770
    %v1311 = vpack.c.b16 %v775, %v771
    %v1312 = vpack.c.b16 %v776, %v772
    %v1313 = vpack.c.b16 %v777, %v773
    %v1314 = vpack.c.b16 %v782, %v778
    %v1315 = vpack.c.b16 %v783, %v779
    %v1316 = vpack.c.b16 %v784, %v780
    %v1317 = vpack.c.b16 %v785, %v781
    %v1318 = vpack.c.b16 %v790, %v786
    %v1319 = vpack.c.b16 %v791, %v787
    %v1320 = vpack.c.b16 %v792, %v788
    %v1321 = vpack.c.b16 %v793, %v789
    %v1322 = vpack.c.b16 %v798, %v794
    %v1323 = vpack.c.b16 %v799, %v795
    %v1324 = vpack.c.b16 %v800, %v796
    %v1325 = vpack.c.b16 %v801, %v797
    %v1326 = vpack.c.b16 %v806, %v802
    %v1327 = vpack.c.b16 %v807, %v803
    %v1328 = vpack.c.b16 %v808, %v804
    %v1329 = vpack.c.b16 %v809, %v805
    %v1330 = vpack.c.b16 %v814, %v810
    %v1331 = vpack.c.b16 %v815, %v811
    %v1332 = vpack.c.b16 %v816, %v812
    %v1333 = vpack.c.b16 %v817, %v813
    %v1334 = vpack.c.b16 %v822, %v818
    %v1335 = vpack.c.b16 %v823, %v819
    %v1336 = vpack.c.b16 %v824, %v820
    %v1337 = vpack.c.b16 %v825, %v821
    %v1338 = vpack.c.b16 %v830, %v826
    %v1339 = vpack.c.b16 %v831, %v827
    %v1340 = vpack.c.b16 %v832, %v828
    %v1341 = vpack.c.b16 %v833, %v829
    %v1342 = vpack.c.b16 %v838, %v834
    %v1343 = vpack.c.b16 %v839, %v835
    %v1344 = vpack.c.b16 %v840, %v836
    %v1345 = vpack.c.b16 %v841, %v837
    %v1346 = vpack.c.b16 %v846, %v842
    %v1347 = vpack.c.b16 %v847, %v843
    %v1348 = vpack.c.b16 %v848, %v844
    %v1349 = vpack.c.b16 %v849, %v845
    %v1350 = vpack.c.b16 %v854, %v850
    %v1351 = vpack.c.b16 %v855, %v851
    %v1352 = vpack.c.b16 %v856, %v852
    %v1353 = vpack.c.b16 %v857, %v853
    %v1354 = vpack.c.b16 %v862, %v858
    %v1355 = vpack.c.b16 %v863, %v859
    %v1356 = vpack.c.b16 %v864, %v860
    %v1357 = vpack.c.b16 %v865, %v861
    %v1358 = vpack.c.b16 %v870, %v866
    %v1359 = vpack.c.b16 %v871, %v867
    %v1360 = vpack.c.b16 %v872, %v868
    %v1361 = vpack.c.b16 %v873, %v869
    %v1362 = vpack.c.b16 %v878, %v874
    %v1363 = vpack.c.b16 %v879, %v875
    %v1364 = vpack.c.b16 %v880, %v876
    %v1365 = vpack.c.b16 %v881, %v877
    %v1366 = vpack.c.b16 %v886, %v882
    %v1367 = vpack.c.b16 %v887, %v883
    %v1368 = vpack.c.b16 %v888, %v884
    %v1369 = vpack.c.b16 %v889, %v885
    %v1370 = vpack.c.b16 %v894, %v890
    %v1371 = vpack.c.b16 %v895, %v891
    %v1372 = vpack.c.b16 %v896, %v892
    %v1373 = vpack.c.b16 %v897, %v893
    %v1374 = vpack.c.b16 %v902, %v898
    %v1375 = vpack.c.b16 %v903, %v899
    %v1376 = vpack.c.b16 %v904, %v900
    %v1377 = vpack.c.b16 %v905, %v901
    %v1378 = vpack.c.b16 %v910, %v906
    %v1379 = vpack.c.b16 %v911, %v907
    %v1380 = vpack.c.b16 %v912, %v908
    %v1381 = vpack.c.b16 %v913, %v909
    %v1382 = vpack.c.b16 %v918, %v914
    %v1383 = vpack.c.b16 %v919, %v915
    %v1384 = vpack.c.b16 %v920, %v916
    %v1385 = vpack.c.b16 %v921, %v917
    %v1386 = vpack.c.b16 %v926, %v922
    %v1387 = vpack.c.b16 %v927, %v923
    %v1388 = vpack.c.b16 %v928, %v924
    %v1389 = vpack.c.b16 %v929, %v925
    %v1390 = vpack.c.b16 %v934, %v930
    %v1391 = vpack.c.b16 %v935, %v931
    %v1392 = vpack.c.b16 %v936, %v932
    %v1393 = vpack.c.b16 %v937, %v933
    %v1394 = vpack.c.b16 %v942, %v938
    %v1395 = vpack.c.b16 %v943, %v939
    %v1396 = vpack.c.b16 %v944, %v940
    %v1397 = vpack.c.b16 %v945, %v941
    %v1398 = vpack.c.b16 %v950, %v946
    %v1399 = vpack.c.b16 %v951, %v947
    %v1400 = vpack.c.b16 %v952, %v948
    %v1401 = vpack.c.b16 %v953, %v949
    %v1402 = vpack.c.b16 %v958, %v954
    %v1403 = vpack.c.b16 %v959, %v955
    %v1404 = vpack.c.b16 %v960, %v956
    %v1405 = vpack.c.b16 %v961, %v957
    %v1406 = vpack.c.b16 %v966, %v962
    %v1407 = vpack.c.b16 %v967, %v963
    %v1408 = vpack.c.b16 %v968, %v964
    %v1409 = vpack.c.b16 %v969, %v965
    %v1410 = vpack.c.b16 %v974, %v970
    %v1411 = vpack.c.b16 %v975, %v971
    %v1412 = vpack.c.b16 %v976, %v972
    %v1413 = vpack.c.b16 %v977, %v973
    %v1414 = vpack.c.b16 %v982, %v978
    %v1415 = vpack.c.b16 %v983, %v979
    %v1416 = vpack.c.b16 %v984, %v980
    %v1417 = vpack.c.b16 %v985, %v981
    %v1418 = vpack.c.b16 %v990, %v986
    %v1419 = vpack.c.b16 %v991, %v987
    %v1420 = vpack.c.b16 %v992, %v988
    %v1421 = vpack.c.b16 %v993, %v989
    %v1422 = vpack.c.b16 %v998, %v994
    %v1423 = vpack.c.b16 %v999, %v995
    %v1424 = vpack.c.b16 %v1000, %v996
    %v1425 = vpack.c.b16 %v1001, %v997
    %v1426 = vpack.c.b16 %v1006, %v1002
    %v1427 = vpack.c.b16 %v1007, %v1003
    %v1428 = vpack.c.b16 %v1008, %v1004
    %v1429 = vpack.c.b16 %v1009, %v1005
    %v1430 = vpack.c.b16 %v1014, %v1010
    %v1431 = vpack.c.b16 %v1015, %v1011
    %v1432 = vpack.c.b16 %v1016, %v1012
    %v1433 = vpack.c.b16 %v1017, %v1013
    %v1434 = vpack.c.b16 %v1022, %v1018
    %v1435 = vpack.c.b16 %v1023, %v1019
    %v1436 = vpack.c.b16 %v1024, %v1020
    %v1437 = vpack.c.b16 %v1025, %v1021
    %v1438 = vpack.c.b16 %v1030, %v1026
    %v1439 = vpack.c.b16 %v1031, %v1027
    %v1440 = vpack.c.b16 %v1032, %v1028
    %v1441 = vpack.c.b16 %v1033, %v1029
    %v1442 = vpack.c.b16 %v1038, %v1034
    %v1443 = vpack.c.b16 %v1039, %v1035
    %v1444 = vpack.c.b16 %v1040, %v1036
    %v1445 = vpack.c.b16 %v1041, %v1037
    %v1446 = vpack.c.b16 %v1046, %v1042
    %v1447 = vpack.c.b16 %v1047, %v1043
    %v1448 = vpack.c.b16 %v1048, %v1044
    %v1449 = vpack.c.b16 %v1049, %v1045
    %v1450 = vpack.c.b16 %v1054, %v1050
    %v1451 = vpack.c.b16 %v1055, %v1051
    %v1452 = vpack.c.b16 %v1056, %v1052
    %v1453 = vpack.c.b16 %v1057, %v1053
    %v1454 = vpack.c.b16 %v1062, %v1058
    %v1455 = vpack.c.b16 %v1063, %v1059
    %v1456 = vpack.c.b16 %v1064, %v1060
    %v1457 = vpack.c.b16 %v1065, %v1061
    %v1458 = vpack.c.b16 %v1070, %v1066
    %v1459 = vpack.c.b16 %v1071, %v1067
    %v1460 = vpack.c.b16 %v1072, %v1068
    %v1461 = vpack.c.b16 %v1073, %v1069
    %v1462 = vpack.c.b16 %v1078, %v1074
    %v1463 = vpack.c.b16 %v1079, %v1075
    %v1464 = vpack.c.b16 %v1080, %v1076
    %v1465 = vpack.c.b16 %v1081, %v1077
    %v1466 = vpack.c.b16 %v1086, %v1082
    %v1467 = vpack.c.b16 %v1087, %v1083
    %v1468 = vpack.c.b16 %v1088, %v1084
    %v1469 = vpack.c.b16 %v1089, %v1085
    %v1470 = vpack.c.b16 %v1094, %v1090
    %v1471 = vpack.c.b16 %v1095, %v1091
    %v1472 = vpack.c.b16 %v1096, %v1092
    %v1473 = vpack.c.b16 %v1097, %v1093
    %v1474 = vpack.c.b16 %v1102, %v1098
    %v1475 = vpack.c.b16 %v1103, %v1099
    %v1476 = vpack.c.b16 %v1104, %v1100
    %v1477 = vpack.c.b16 %v1105, %v1101
    %v1478 = vpack.c.b16 %v1110, %v1106
    %v1479 = vpack.c.b16 %v1111, %v1107
    %v1480 = vpack.c.b16 %v1112, %v1108
    %v1481 = vpack.c.b16 %v1113, %v1109
    %v1482 = vpack.c.b16 %v1118, %v1114
    %v1483 = vpack.c.b16 %v1119, %v1115
    %v1484 = vpack.c.b16 %v1120, %v1116
    %v1485 = vpack.c.b16 %v1121, %v1117
    %v1486 = vpack.c.b16 %v1126, %v1122
    %v1487 = vpack.c.b16 %v1127, %v1123
    %v1488 = vpack.c.b16 %v1128, %v1124
    %v1489 = vpack.c.b16 %v1129, %v1125
    %v1490 = vpack.c.b16 %v1134, %v1130
    %v1491 = vpack.c.b16 %v1135, %v1131
    %v1492 = vpack.c.b16 %v1136, %v1132
    %v1493 = vpack.c.b16 %v1137, %v1133
    %v1494 = vpack.c.b16 %v1142, %v1138
    %v1495 = vpack.c.b16 %v1143, %v1139
    %v1496 = vpack.c.b16 %v1144, %v1140
    %v1497 = vpack.c.b16 %v1145, %v1141
    %v1498 = vpack.c.b16 %v1150, %v1146
    %v1499 = vpack.c.b16 %v1151, %v1147
    %v1500 = vpack.c.b16 %v1152, %v1148
    %v1501 = vpack.c.b16 %v1153, %v1149
    %v1502 = vpack.c.b16 %v1158, %v1154
    %v1503 = vpack.c.b16 %v1159, %v1155
    %v1504 = vpack.c.b16 %v1160, %v1156
    %v1505 = vpack.c.b16 %v1161, %v1157
    %v1506 = vpack.c.b16 %v1166, %v1162
    %v1507 = vpack.c.b16 %v1167, %v1163
    %v1508 = vpack.c.b16 %v1168, %v1164
    %v1509 = vpack.c.b16 %v1169, %v1165
    %v1510 = vpack.c.b16 %v1174, %v1170
    %v1511 = vpack.c.b16 %v1175, %v1171
    %v1512 = vpack.c.b16 %v1176, %v1172
    %v1513 = vpack.c.b16 %v1177, %v1173
    %v1514 = vpack.c.b16 %v1182, %v1178
    %v1515 = vpack.c.b16 %v1183, %v1179
    %v1516 = vpack.c.b16 %v1184, %v1180
    %v1517 = vpack.c.b16 %v1185, %v1181
    %v1518 = vpack.c.b16 %v1190, %v1186
    %v1519 = vpack.c.b16 %v1191, %v1187
    %v1520 = vpack.c.b16 %v1192, %v1188
    %v1521 = vpack.c.b16 %v1193, %v1189
    %v1522 = vpack.c.b16 %v1198, %v1194
    %v1523 = vpack.c.b16 %v1199, %v1195
    %v1524 = vpack.c.b16 %v1200, %v1196
    %v1525 = vpack.c.b16 %v1201, %v1197
    %v1526 = vpack.c.b16 %v1206, %v1202
    %v1527 = vpack.c.b16 %v1207, %v1203
    %v1528 = vpack.c.b16 %v1208, %v1204
    %v1529 = vpack.c.b16 %v1209, %v1205
    %v1530 = vpack.c.b16 %v1214, %v1210
    %v1531 = vpack.c.b16 %v1215, %v1211
    %v1532 = vpack.c.b16 %v1216, %v1212
    %v1533 = vpack.c.b16 %v1217, %v1213
    %v1534 = vpack.c.b16 %v1222, %v1218
    %v1535 = vpack.c.b16 %v1223, %v1219
    %v1536 = vpack.c.b16 %v1224, %v1220
    %v1537 = vpack.c.b16 %v1225, %v1221
    %v1538 = vpack.c.b16 %v1230, %v1226
    %v1539 = vpack.c.b16 %v1231, %v1227
    %v1540 = vpack.c.b16 %v1232, %v1228
    %v1541 = vpack.c.b16 %v1233, %v1229
    %v1542 = vpack.c.b16 %v1238, %v1234
    %v1543 = vpack.c.b16 %v1239, %v1235
    %v1544 = vpack.c.b16 %v1240, %v1236
    %v1545 = vpack.c.b16 %v1241, %v1237
    %v1546 = vpack.c.b16 %v1246, %v1242
    %v1547 = vpack.c.b16 %v1247, %v1243
    %v1548 = vpack.c.b16 %v1248, %v1244
    %v1549 = vpack.c.b16 %v1249, %v1245
    %v1550 = vpack.c.b16 %v1254, %v1250
    %v1551 = vpack.c.b16 %v1255, %v1251
    %v1552 = vpack.c.b16 %v1256, %v1252
    %v1553 = vpack.c.b16 %v1257, %v1253
    %v1554 = vpack.c.b16 %v1262, %v1258
    %v1555 = vpack.c.b16 %v1263, %v1259
    %v1556 = vpack.c.b16 %v1264, %v1260
    %v1557 = vpack.c.b16 %v1265, %v1261
    %v1558 = vpack.c.b16 %v1270, %v1266
    %v1559 = vpack.c.b16 %v1271, %v1267
    %v1560 = vpack.c.b16 %v1272, %v1268
    %v1561 = vpack.c.b16 %v1273, %v1269
    %v1914 = vunpack.c.l.b16 %v346
    %v1915 = vunpack.c.l.b16 %v347
    %v1916 = vunpack.c.l.b16 %v348
    %v1917 = vunpack.c.l.b16 %v349
    %v1918 = vunpack.c.l.b16 %v350
    %v1919 = vunpack.c.l.b16 %v351
    %v1920 = vunpack.c.l.b16 %v352
    %v1921 = vunpack.c.l.b16 %v353
    %v1922 = vunpack.c.l.b16 %v354
    %v1923 = vunpack.c.l.b16 %v355
    %v1924 = vunpack.c.l.b16 %v356
    %v1925 = vunpack.c.l.b16 %v357
    %v1926 = vunpack.c.l.b16 %v358
    %v1927 = vunpack.c.l.b16 %v359
    %v1928 = vunpack.c.l.b16 %v360
    %v1929 = vunpack.c.l.b16 %v361
    %v1930 = vunpack.c.l.b16 %v362
    %v1931 = vunpack.c.l.b16 %v363
    %v1932 = vunpack.c.l.b16 %v364
    %v1933 = vunpack.c.l.b16 %v365
    %v1934 = vunpack.c.l.b16 %v366
    %v1935 = vunpack.c.l.b16 %v367
    %v1936 = vunpack.c.l.b16 %v368
    %v1937 = vunpack.c.l.b16 %v369
    %v1938 = vunpack.c.l.b16 %v370
    %v1939 = vunpack.c.l.b16 %v371
    %v1940 = vunpack.c.l.b16 %v372
    %v1941 = vunpack.c.l.b16 %v373
    %v1942 = vunpack.c.l.b16 %v374
    %v1943 = vunpack.c.l.b16 %v375
    %v1944 = vunpack.c.l.b16 %v376
    %v1945 = vunpack.c.l.b16 %v377
    %v1946 = vunpack.c.l.b16 %v378
    %v1947 = vunpack.c.l.b16 %v379
    %v1948 = vunpack.c.l.b16 %v380
    %v1949 = vunpack.c.l.b16 %v381
    %v1950 = vunpack.c.l.b16 %v382
    %v1951 = vunpack.c.l.b16 %v383
    %v1952 = vunpack.c.l.b16 %v384
    %v1953 = vunpack.c.l.b16 %v385
    %v1954 = vunpack.c.l.b16 %v386
    %v1955 = vunpack.c.l.b16 %v387
    %v1956 = vunpack.c.l.b16 %v388
    %v1957 = vunpack.c.l.b16 %v389
    %v1958 = vunpack.c.l.b16 %v390
    %v1959 = vunpack.c.l.b16 %v391
    %v1960 = vunpack.c.l.b16 %v392
    %v1961 = vunpack.c.l.b16 %v393
    %v1962 = vunpack.c.l.b16 %v394
    %v1963 = vunpack.c.l.b16 %v395
    %v1964 = vunpack.c.l.b16 %v396
    %v1965 = vunpack.c.l.b16 %v397
    %v1966 = vunpack.c.l.b16 %v398
    %v1967 = vunpack.c.l.b16 %v399
    %v1968 = vunpack.c.l.b16 %v400
    %v1969 = vunpack.c.l.b16 %v401
    %v1970 = vunpack.c.l.b16 %v402
    %v1971 = vunpack.c.l.b16 %v403
    %v1972 = vunpack.c.l.b16 %v404
    %v1973 = vunpack.c.l.b16 %v405
    %v1974 = vunpack.c.l.b16 %v406
    %v1975 = vunpack.c.l.b16 %v407
    %v1976 = vunpack.c.l.b16 %v408
    %v1977 = vunpack.c.l.b16 %v409
    %v1978 = vpack.c.b16 %v1915, %v1914
    %v1979 = vpack.c.b16 %v1917, %v1916
    %v1980 = vpack.c.b16 %v1919, %v1918
    %v1981 = vpack.c.b16 %v1921, %v1920
    %v1982 = vpack.c.b16 %v1923, %v1922
    %v1983 = vpack.c.b16 %v1925, %v1924
    %v1984 = vpack.c.b16 %v1927, %v1926
    %v1985 = vpack.c.b16 %v1929, %v1928
    %v1986 = vpack.c.b16 %v1931, %v1930
    %v1987 = vpack.c.b16 %v1933, %v1932
    %v1988 = vpack.c.b16 %v1935, %v1934
    %v1989 = vpack.c.b16 %v1937, %v1936
    %v1990 = vpack.c.b16 %v1939, %v1938
    %v1991 = vpack.c.b16 %v1941, %v1940
    %v1992 = vpack.c.b16 %v1943, %v1942
    %v1993 = vpack.c.b16 %v1945, %v1944
    %v1994 = vpack.c.b16 %v1947, %v1946
    %v1995 = vpack.c.b16 %v1949, %v1948
    %v1996 = vpack.c.b16 %v1951, %v1950
    %v1997 = vpack.c.b16 %v1953, %v1952
    %v1998 = vpack.c.b16 %v1955, %v1954
    %v1999 = vpack.c.b16 %v1957, %v1956
    %v2000 = vpack.c.b16 %v1959, %v1958
    %v2001 = vpack.c.b16 %v1961, %v1960
    %v2002 = vpack.c.b16 %v1963, %v1962
    %v2003 = vpack.c.b16 %v1965, %v1964
    %v2004 = vpack.c.b16 %v1967, %v1966
    %v2005 = vpack.c.b16 %v1969, %v1968
    %v2006 = vpack.c.b16 %v1971, %v1970
    %v2007 = vpack.c.b16 %v1973, %v1972
    %v2008 = vpack.c.b16 %v1975, %v1974
    %v2009 = vpack.c.b16 %v1977, %v1976
    %2042 = vmatprep.subr.bf16.mxu0 0
    %2043 = vmatpush1.bf16.msra.mxu0 %v1978
    %2044 = vmatprep.subr.bf16.mxu0 0
    %2045 = vmatpush1.bf16.msra.mxu0 %v1979
    %2046 = vmatprep.subr.bf16.mxu0 0
    %2047 = vmatpush1.bf16.msra.mxu0 %v1980
    %2048 = vmatprep.subr.bf16.mxu0 0
    %2049 = vmatpush1.bf16.msra.mxu0 %v1981
    %2050 = vmatprep.subr.bf16.mxu0 0
    %2051 = vmatpush1.bf16.msra.mxu0 %v1982
    %2052 = vmatprep.subr.bf16.mxu0 0
    %2053 = vmatpush1.bf16.msra.mxu0 %v1983
    %2054 = vmatprep.subr.bf16.mxu0 0
    %2055 = vmatpush1.bf16.msra.mxu0 %v1984
    %2056 = vmatprep.subr.bf16.mxu0 0
    %2057 = vmatpush1.bf16.msra.mxu0 %v1985
    %2058 = vmatprep.subr.bf16.mxu0 0
    %2059 = vmatpush1.bf16.msra.mxu0 %v1986
    %2060 = vmatprep.subr.bf16.mxu0 0
    %2061 = vmatpush1.bf16.msra.mxu0 %v1987
    %2062 = vmatprep.subr.bf16.mxu0 0
    %2063 = vmatpush1.bf16.msra.mxu0 %v1988
    %2064 = vmatprep.subr.bf16.mxu0 0
    %2065 = vmatpush1.bf16.msra.mxu0 %v1989
    %2066 = vmatprep.subr.bf16.mxu0 0
    %2067 = vmatpush1.bf16.msra.mxu0 %v1990
    %2068 = vmatprep.subr.bf16.mxu0 0
    %2069 = vmatpush1.bf16.msra.mxu0 %v1991
    %2070 = vmatprep.subr.bf16.mxu0 0
    %2071 = vmatpush1.bf16.msra.mxu0 %v1992
    %2072 = vmatprep.subr.bf16.mxu0 0
    %2073 = vmatpush1.bf16.msra.mxu0 %v1993
    %2074 = vmatprep.mubr.bf16.mxu0 %v1275
    %2075 = vmatmul.mubr.bf16.gmra.mrb[0].mxu0 %v1274
    %v2076 = vpop.f32.mrb[0].mxu0
    %v2077 = vadd.f32 0.0, %v2076
    %v2078 = vpop.f32.mrb[0].mxu0
    %v2079 = vpop.f32.mrb[0].mxu0
    %v2080 = vadd.f32 0.0, %v2079
    %v2081 = vpop.f32.mrb[0].mxu0
    %2082 = vmatprep.mubr.bf16.mxu0 %v1279
    %2083 = vmatmul.mubr.bf16.gmra.mrb[0].mxu0 %v1278
    %v2084 = vpop.f32.mrb[0].mxu0
    %v2085 = vadd.f32 0.0, %v2084
    %v2086 = vpop.f32.mrb[0].mxu0
    %v2087 = vpop.f32.mrb[0].mxu0
    %v2088 = vadd.f32 0.0, %v2087
    %v2089 = vpop.f32.mrb[0].mxu0
    %2090 = vmatprep.mubr.bf16.mxu0 %v1283
    %2091 = vmatmul.mubr.bf16.gmra.mrb[0].mxu0 %v1282
    %v2092 = vpop.f32.mrb[0].mxu0
    %v2093 = vadd.f32 0.0, %v2092
    %v2094 = vpop.f32.mrb[0].mxu0
    %v2095 = vpop.f32.mrb[0].mxu0
    %v2096 = vadd.f32 0.0, %v2095
    %v2097 = vpop.f32.mrb[0].mxu0
    %2098 = vmatprep.mubr.bf16.mxu0 %v1287
    %2099 = vmatmul.mubr.bf16.gmra.mrb[0].mxu0 %v1286
    %v2100 = vpop.f32.mrb[0].mxu0
    %v2101 = vadd.f32 0.0, %v2100
    %v2102 = vpop.f32.mrb[0].mxu0
    %v2103 = vpop.f32.mrb[0].mxu0
    %v2104 = vadd.f32 0.0, %v2103
    %v2105 = vpop.f32.mrb[0].mxu0
    %2106 = vmatprep.mubr.bf16.mxu0 %v1291
    %2107 = vmatmul.mubr.bf16.gmra.mrb[0].mxu0 %v1290
    %v2108 = vpop.f32.mrb[0].mxu0
    %v2109 = vadd.f32 0.0, %v2108
    %v2110 = vpop.f32.mrb[0].mxu0
    %v2111 = vpop.f32.mrb[0].mxu0
    %v2112 = vadd.f32 0.0, %v2111
    %v2113 = vpop.f32.mrb[0].mxu0
    %2114 = vmatprep.mubr.bf16.mxu0 %v1295
    %2115 = vmatmul.mubr.bf16.gmra.mrb[0].mxu0 %v1294
    %v2116 = vpop.f32.mrb[0].mxu0
    %v2117 = vadd.f32 0.0, %v2116
    %v2118 = vpop.f32.mrb[0].mxu0
    %v2119 = vpop.f32.mrb[0].mxu0
    %v2120 = vadd.f32 0.0, %v2119
    %v2121 = vpop.f32.mrb[0].mxu0
    %2122 = vmatprep.mubr.bf16.mxu0 %v1299
    %2123 = vmatmul.mubr.bf16.gmra.mrb[0].mxu0 %v1298
    %v2124 = vpop.f32.mrb[0].mxu0
    %v2125 = vadd.f32 0.0, %v2124
    %v2126 = vpop.f32.mrb[0].mxu0
    %v2127 = vpop.f32.mrb[0].mxu0
    %v2128 = vadd.f32 0.0, %v2127
    %v2129 = vpop.f32.mrb[0].mxu0
    %2130 = vmatprep.mubr.bf16.mxu0 %v1303
    %2131 = vmatmul.mubr.bf16.gmra.mrb[0].mxu0 %v1302
    %v2132 = vpop.f32.mrb[0].mxu0
    %v2133 = vadd.f32 0.0, %v2132
    %v2134 = vpop.f32.mrb[0].mxu0
    %v2135 = vpop.f32.mrb[0].mxu0
    %v2136 = vadd.f32 0.0, %v2135
    %v2137 = vpop.f32.mrb[0].mxu0
    %2138 = vmatprep.mubr.bf16.mxu0 %v1307
    %2139 = vmatmul.mubr.bf16.gmra.mrb[0].mxu0 %v1306
    %v2140 = vpop.f32.mrb[0].mxu0
    %v2141 = vadd.f32 0.0, %v2140
    %v2142 = vpop.f32.mrb[0].mxu0
    %v2143 = vpop.f32.mrb[0].mxu0
    %v2144 = vadd.f32 0.0, %v2143
    %v2145 = vpop.f32.mrb[0].mxu0
    %2146 = vmatprep.mubr.bf16.mxu0 %v1311
    %2147 = vmatmul.mubr.bf16.gmra.mrb[0].mxu0 %v1310
    %v2148 = vpop.f32.mrb[0].mxu0
    %v2149 = vadd.f32 0.0, %v2148
    %v2150 = vpop.f32.mrb[0].mxu0
    %v2151 = vpop.f32.mrb[0].mxu0
    %v2152 = vadd.f32 0.0, %v2151
    %v2153 = vpop.f32.mrb[0].mxu0
    %2154 = vmatprep.mubr.bf16.mxu0 %v1315
    %2155 = vmatmul.mubr.bf16.gmra.mrb[0].mxu0 %v1314
    %v2156 = vpop.f32.mrb[0].mxu0
    %v2157 = vadd.f32 0.0, %v2156
    %v2158 = vpop.f32.mrb[0].mxu0
    %v2159 = vpop.f32.mrb[0].mxu0
    %v2160 = vadd.f32 0.0, %v2159
    %v2161 = vpop.f32.mrb[0].mxu0
    %2162 = vmatprep.mubr.bf16.mxu0 %v1319
    %2163 = vmatmul.mubr.bf16.gmra.mrb[0].mxu0 %v1318
    %v2164 = vpop.f32.mrb[0].mxu0
    %v2165 = vadd.f32 0.0, %v2164
    %v2166 = vpop.f32.mrb[0].mxu0
    %v2167 = vpop.f32.mrb[0].mxu0
    %v2168 = vadd.f32 0.0, %v2167
    %v2169 = vpop.f32.mrb[0].mxu0
    %2170 = vmatprep.mubr.bf16.mxu0 %v1323
    %2171 = vmatmul.mubr.bf16.gmra.mrb[0].mxu0 %v1322
    %v2172 = vpop.f32.mrb[0].mxu0
    %v2173 = vadd.f32 0.0, %v2172
    %v2174 = vpop.f32.mrb[0].mxu0
    %v2175 = vpop.f32.mrb[0].mxu0
    %v2176 = vadd.f32 0.0, %v2175
    %v2177 = vpop.f32.mrb[0].mxu0
    %2178 = vmatprep.mubr.bf16.mxu0 %v1327
    %2179 = vmatmul.mubr.bf16.gmra.mrb[0].mxu0 %v1326
    %v2180 = vpop.f32.mrb[0].mxu0
    %v2181 = vadd.f32 0.0, %v2180
    %v2182 = vpop.f32.mrb[0].mxu0
    %v2183 = vpop.f32.mrb[0].mxu0
    %v2184 = vadd.f32 0.0, %v2183
    %v2185 = vpop.f32.mrb[0].mxu0
    %2186 = vmatprep.mubr.bf16.mxu0 %v1331
    %2187 = vmatmul.mubr.bf16.gmra.mrb[0].mxu0 %v1330
    %v2188 = vpop.f32.mrb[0].mxu0
    %v2189 = vadd.f32 0.0, %v2188
    %v2190 = vpop.f32.mrb[0].mxu0
    %v2191 = vpop.f32.mrb[0].mxu0
    %v2192 = vadd.f32 0.0, %v2191
    %v2193 = vpop.f32.mrb[0].mxu0
    %2194 = vmatprep.mubr.bf16.mxu0 %v1335
    %2195 = vmatmul.mubr.bf16.gmra.mrb[0].mxu0 %v1334
    %v2196 = vpop.f32.mrb[0].mxu0
    %v2197 = vadd.f32 0.0, %v2196
    %v2198 = vpop.f32.mrb[0].mxu0
    %v2199 = vpop.f32.mrb[0].mxu0
    %v2200 = vadd.f32 0.0, %v2199
    %v2201 = vpop.f32.mrb[0].mxu0
    %2202 = vmatprep.mubr.bf16.mxu0 %v1339
    %2203 = vmatmul.mubr.bf16.gmra.mrb[0].mxu0 %v1338
    %v2204 = vpop.f32.mrb[0].mxu0
    %v2205 = vadd.f32 0.0, %v2204
    %v2206 = vpop.f32.mrb[0].mxu0
    %v2207 = vpop.f32.mrb[0].mxu0
    %v2208 = vadd.f32 0.0, %v2207
    %v2209 = vpop.f32.mrb[0].mxu0
    %2210 = vmatprep.mubr.bf16.mxu0 %v1343
    %2211 = vmatmul.mubr.bf16.gmra.mrb[0].mxu0 %v1342
    %v2212 = vpop.f32.mrb[0].mxu0
    %v2213 = vadd.f32 0.0, %v2212
    %v2214 = vpop.f32.mrb[0].mxu0
    %v2215 = vpop.f32.mrb[0].mxu0
    %v2216 = vadd.f32 0.0, %v2215
    %v2217 = vpop.f32.mrb[0].mxu0
    %2218 = vmatprep.mubr.bf16.mxu0 %v1347
    %2219 = vmatmul.mubr.bf16.gmra.mrb[0].mxu0 %v1346
    %v2220 = vpop.f32.mrb[0].mxu0
    %v2221 = vadd.f32 0.0, %v2220
    %v2222 = vpop.f32.mrb[0].mxu0
    %v2223 = vpop.f32.mrb[0].mxu0
    %v2224 = vadd.f32 0.0, %v2223
    %v2225 = vpop.f32.mrb[0].mxu0
    %2226 = vmatprep.mubr.bf16.mxu0 %v1351
    %2227 = vmatmul.mubr.bf16.gmra.mrb[0].mxu0 %v1350
    %v2228 = vpop.f32.mrb[0].mxu0
    %v2229 = vadd.f32 0.0, %v2228
    %v2230 = vpop.f32.mrb[0].mxu0
    %v2231 = vpop.f32.mrb[0].mxu0
    %v2232 = vadd.f32 0.0, %v2231
    %v2233 = vpop.f32.mrb[0].mxu0
    %2234 = vmatprep.mubr.bf16.mxu0 %v1355
    %2235 = vmatmul.mubr.bf16.gmra.mrb[0].mxu0 %v1354
    %v2236 = vpop.f32.mrb[0].mxu0
    %v2237 = vadd.f32 0.0, %v2236
    %v2238 = vpop.f32.mrb[0].mxu0
    %v2239 = vpop.f32.mrb[0].mxu0
    %v2240 = vadd.f32 0.0, %v2239
    %v2241 = vpop.f32.mrb[0].mxu0
    %2242 = vmatprep.mubr.bf16.mxu0 %v1359
    %2243 = vmatmul.mubr.bf16.gmra.mrb[0].mxu0 %v1358
    %v2244 = vpop.f32.mrb[0].mxu0
    %v2245 = vadd.f32 0.0, %v2244
    %v2246 = vpop.f32.mrb[0].mxu0
    %v2247 = vpop.f32.mrb[0].mxu0
    %v2248 = vadd.f32 0.0, %v2247
    %v2249 = vpop.f32.mrb[0].mxu0
    %2250 = vmatprep.mubr.bf16.mxu0 %v1363
    %2251 = vmatmul.mubr.bf16.gmra.mrb[0].mxu0 %v1362
    %v2252 = vpop.f32.mrb[0].mxu0
    %v2253 = vadd.f32 0.0, %v2252
    %v2254 = vpop.f32.mrb[0].mxu0
    %v2255 = vpop.f32.mrb[0].mxu0
    %v2256 = vadd.f32 0.0, %v2255
    %v2257 = vpop.f32.mrb[0].mxu0
    %2258 = vmatprep.mubr.bf16.mxu0 %v1367
    %2259 = vmatmul.mubr.bf16.gmra.mrb[0].mxu0 %v1366
    %v2260 = vpop.f32.mrb[0].mxu0
    %v2261 = vadd.f32 0.0, %v2260
    %v2262 = vpop.f32.mrb[0].mxu0
    %v2263 = vpop.f32.mrb[0].mxu0
    %v2264 = vadd.f32 0.0, %v2263
    %v2265 = vpop.f32.mrb[0].mxu0
    %2266 = vmatprep.mubr.bf16.mxu0 %v1371
    %2267 = vmatmul.mubr.bf16.gmra.mrb[0].mxu0 %v1370
    %v2268 = vpop.f32.mrb[0].mxu0
    %v2269 = vadd.f32 0.0, %v2268
    %v2270 = vpop.f32.mrb[0].mxu0
    %v2271 = vpop.f32.mrb[0].mxu0
    %v2272 = vadd.f32 0.0, %v2271
    %v2273 = vpop.f32.mrb[0].mxu0
    %2274 = vmatprep.mubr.bf16.mxu0 %v1375
    %2275 = vmatmul.mubr.bf16.gmra.mrb[0].mxu0 %v1374
    %v2276 = vpop.f32.mrb[0].mxu0
    %v2277 = vadd.f32 0.0, %v2276
    %v2278 = vpop.f32.mrb[0].mxu0
    %v2279 = vpop.f32.mrb[0].mxu0
    %v2280 = vadd.f32 0.0, %v2279
    %v2281 = vpop.f32.mrb[0].mxu0
    %2282 = vmatprep.mubr.bf16.mxu0 %v1379
    %2283 = vmatmul.mubr.bf16.gmra.mrb[0].mxu0 %v1378
    %v2284 = vpop.f32.mrb[0].mxu0
    %v2285 = vadd.f32 0.0, %v2284
    %v2286 = vpop.f32.mrb[0].mxu0
    %v2287 = vpop.f32.mrb[0].mxu0
    %v2288 = vadd.f32 0.0, %v2287
    %v2289 = vpop.f32.mrb[0].mxu0
    %2290 = vmatprep.mubr.bf16.mxu0 %v1383
    %2291 = vmatmul.mubr.bf16.gmra.mrb[0].mxu0 %v1382
    %v2292 = vpop.f32.mrb[0].mxu0
    %v2293 = vadd.f32 0.0, %v2292
    %v2294 = vpop.f32.mrb[0].mxu0
    %v2295 = vpop.f32.mrb[0].mxu0
    %v2296 = vadd.f32 0.0, %v2295
    %v2297 = vpop.f32.mrb[0].mxu0
    %2298 = vmatprep.mubr.bf16.mxu0 %v1387
    %2299 = vmatmul.mubr.bf16.gmra.mrb[0].mxu0 %v1386
    %v2300 = vpop.f32.mrb[0].mxu0
    %v2301 = vadd.f32 0.0, %v2300
    %v2302 = vpop.f32.mrb[0].mxu0
    %v2303 = vpop.f32.mrb[0].mxu0
    %v2304 = vadd.f32 0.0, %v2303
    %v2305 = vpop.f32.mrb[0].mxu0
    %2306 = vmatprep.mubr.bf16.mxu0 %v1391
    %2307 = vmatmul.mubr.bf16.gmra.mrb[0].mxu0 %v1390
    %v2308 = vpop.f32.mrb[0].mxu0
    %v2309 = vadd.f32 0.0, %v2308
    %v2310 = vpop.f32.mrb[0].mxu0
    %v2311 = vpop.f32.mrb[0].mxu0
    %v2312 = vadd.f32 0.0, %v2311
    %v2313 = vpop.f32.mrb[0].mxu0
    %2314 = vmatprep.mubr.bf16.mxu0 %v1395
    %2315 = vmatmul.mubr.bf16.gmra.mrb[0].mxu0 %v1394
    %v2316 = vpop.f32.mrb[0].mxu0
    %v2317 = vadd.f32 0.0, %v2316
    %v2318 = vpop.f32.mrb[0].mxu0
    %v2319 = vpop.f32.mrb[0].mxu0
    %v2320 = vadd.f32 0.0, %v2319
    %v2321 = vpop.f32.mrb[0].mxu0
    %2322 = vmatprep.mubr.bf16.mxu0 %v1399
    %2323 = vmatmul.mubr.bf16.gmra.mrb[0].mxu0 %v1398
    %v2324 = vpop.f32.mrb[0].mxu0
    %v2325 = vadd.f32 0.0, %v2324
    %v2326 = vpop.f32.mrb[0].mxu0
    %v2327 = vpop.f32.mrb[0].mxu0
    %v2328 = vadd.f32 0.0, %v2327
    %v2329 = vpop.f32.mrb[0].mxu0
    %2330 = vmatprep.mubr.bf16.mxu0 %v1403
    %2331 = vmatmul.mubr.bf16.gmra.mrb[0].mxu0 %v1402
    %v2332 = vpop.f32.mrb[0].mxu0
    %v2333 = vadd.f32 0.0, %v2332
    %v2334 = vpop.f32.mrb[0].mxu0
    %v2335 = vpop.f32.mrb[0].mxu0
    %v2336 = vadd.f32 0.0, %v2335
    %v2337 = vpop.f32.mrb[0].mxu0
    %2338 = vmatprep.mubr.bf16.mxu0 %v1407
    %2339 = vmatmul.mubr.bf16.gmra.mrb[0].mxu0 %v1406
    %v2340 = vpop.f32.mrb[0].mxu0
    %v2341 = vadd.f32 0.0, %v2340
    %v2342 = vpop.f32.mrb[0].mxu0
    %v2343 = vpop.f32.mrb[0].mxu0
    %v2344 = vadd.f32 0.0, %v2343
    %v2345 = vpop.f32.mrb[0].mxu0
    %2346 = vmatprep.mubr.bf16.mxu0 %v1411
    %2347 = vmatmul.mubr.bf16.gmra.mrb[0].mxu0 %v1410
    %v2348 = vpop.f32.mrb[0].mxu0
    %v2349 = vadd.f32 0.0, %v2348
    %v2350 = vpop.f32.mrb[0].mxu0
    %v2351 = vpop.f32.mrb[0].mxu0
    %v2352 = vadd.f32 0.0, %v2351
    %v2353 = vpop.f32.mrb[0].mxu0
    %2354 = vmatprep.mubr.bf16.mxu0 %v1415
    %2355 = vmatmul.mubr.bf16.gmra.mrb[0].mxu0 %v1414
    %v2356 = vpop.f32.mrb[0].mxu0
    %v2357 = vadd.f32 0.0, %v2356
    %v2358 = vpop.f32.mrb[0].mxu0
    %v2359 = vpop.f32.mrb[0].mxu0
    %v2360 = vadd.f32 0.0, %v2359
    %v2361 = vpop.f32.mrb[0].mxu0
    %2362 = vmatprep.mubr.bf16.mxu0 %v1419
    %2363 = vmatmul.mubr.bf16.gmra.mrb[0].mxu0 %v1418
    %v2364 = vpop.f32.mrb[0].mxu0
    %v2365 = vadd.f32 0.0, %v2364
    %v2366 = vpop.f32.mrb[0].mxu0
    %v2367 = vpop.f32.mrb[0].mxu0
    %v2368 = vadd.f32 0.0, %v2367
    %v2369 = vpop.f32.mrb[0].mxu0
    %2370 = vmatprep.mubr.bf16.mxu0 %v1423
    %2371 = vmatmul.mubr.bf16.gmra.mrb[0].mxu0 %v1422
    %v2372 = vpop.f32.mrb[0].mxu0
    %v2373 = vadd.f32 0.0, %v2372
    %v2374 = vpop.f32.mrb[0].mxu0
    %v2375 = vpop.f32.mrb[0].mxu0
    %v2376 = vadd.f32 0.0, %v2375
    %v2377 = vpop.f32.mrb[0].mxu0
    %2378 = vmatprep.mubr.bf16.mxu0 %v1427
    %2379 = vmatmul.mubr.bf16.gmra.mrb[0].mxu0 %v1426
    %v2380 = vpop.f32.mrb[0].mxu0
    %v2381 = vadd.f32 0.0, %v2380
    %v2382 = vpop.f32.mrb[0].mxu0
    %v2383 = vpop.f32.mrb[0].mxu0
    %v2384 = vadd.f32 0.0, %v2383
    %v2385 = vpop.f32.mrb[0].mxu0
    %2386 = vmatprep.mubr.bf16.mxu0 %v1431
    %2387 = vmatmul.mubr.bf16.gmra.mrb[0].mxu0 %v1430
    %v2388 = vpop.f32.mrb[0].mxu0
    %v2389 = vadd.f32 0.0, %v2388
    %v2390 = vpop.f32.mrb[0].mxu0
    %v2391 = vpop.f32.mrb[0].mxu0
    %v2392 = vadd.f32 0.0, %v2391
    %v2393 = vpop.f32.mrb[0].mxu0
    %2394 = vmatprep.mubr.bf16.mxu0 %v1435
    %2395 = vmatmul.mubr.bf16.gmra.mrb[0].mxu0 %v1434
    %v2396 = vpop.f32.mrb[0].mxu0
    %v2397 = vadd.f32 0.0, %v2396
    %v2398 = vpop.f32.mrb[0].mxu0
    %v2399 = vpop.f32.mrb[0].mxu0
    %v2400 = vadd.f32 0.0, %v2399
    %v2401 = vpop.f32.mrb[0].mxu0
    %2402 = vmatprep.mubr.bf16.mxu0 %v1439
    %2403 = vmatmul.mubr.bf16.gmra.mrb[0].mxu0 %v1438
    %v2404 = vpop.f32.mrb[0].mxu0
    %v2405 = vadd.f32 0.0, %v2404
    %v2406 = vpop.f32.mrb[0].mxu0
    %v2407 = vpop.f32.mrb[0].mxu0
    %v2408 = vadd.f32 0.0, %v2407
    %v2409 = vpop.f32.mrb[0].mxu0
    %2410 = vmatprep.mubr.bf16.mxu0 %v1443
    %2411 = vmatmul.mubr.bf16.gmra.mrb[0].mxu0 %v1442
    %v2412 = vpop.f32.mrb[0].mxu0
    %v2413 = vadd.f32 0.0, %v2412
    %v2414 = vpop.f32.mrb[0].mxu0
    %v2415 = vpop.f32.mrb[0].mxu0
    %v2416 = vadd.f32 0.0, %v2415
    %v2417 = vpop.f32.mrb[0].mxu0
    %2418 = vmatprep.mubr.bf16.mxu0 %v1447
    %2419 = vmatmul.mubr.bf16.gmra.mrb[0].mxu0 %v1446
    %v2420 = vpop.f32.mrb[0].mxu0
    %v2421 = vadd.f32 0.0, %v2420
    %v2422 = vpop.f32.mrb[0].mxu0
    %v2423 = vpop.f32.mrb[0].mxu0
    %v2424 = vadd.f32 0.0, %v2423
    %v2425 = vpop.f32.mrb[0].mxu0
    %2426 = vmatprep.mubr.bf16.mxu0 %v1451
    %2427 = vmatmul.mubr.bf16.gmra.mrb[0].mxu0 %v1450
    %v2428 = vpop.f32.mrb[0].mxu0
    %v2429 = vadd.f32 0.0, %v2428
    %v2430 = vpop.f32.mrb[0].mxu0
    %v2431 = vpop.f32.mrb[0].mxu0
    %v2432 = vadd.f32 0.0, %v2431
    %v2433 = vpop.f32.mrb[0].mxu0
    %2434 = vmatprep.mubr.bf16.mxu0 %v1455
    %2435 = vmatmul.mubr.bf16.gmra.mrb[0].mxu0 %v1454
    %v2436 = vpop.f32.mrb[0].mxu0
    %v2437 = vadd.f32 0.0, %v2436
    %v2438 = vpop.f32.mrb[0].mxu0
    %v2439 = vpop.f32.mrb[0].mxu0
    %v2440 = vadd.f32 0.0, %v2439
    %v2441 = vpop.f32.mrb[0].mxu0
    %2442 = vmatprep.mubr.bf16.mxu0 %v1459
    %2443 = vmatmul.mubr.bf16.gmra.mrb[0].mxu0 %v1458
    %v2444 = vpop.f32.mrb[0].mxu0
    %v2445 = vadd.f32 0.0, %v2444
    %v2446 = vpop.f32.mrb[0].mxu0
    %v2447 = vpop.f32.mrb[0].mxu0
    %v2448 = vadd.f32 0.0, %v2447
    %v2449 = vpop.f32.mrb[0].mxu0
    %2450 = vmatprep.mubr.bf16.mxu0 %v1463
    %2451 = vmatmul.mubr.bf16.gmra.mrb[0].mxu0 %v1462
    %v2452 = vpop.f32.mrb[0].mxu0
    %v2453 = vadd.f32 0.0, %v2452
    %v2454 = vpop.f32.mrb[0].mxu0
    %v2455 = vpop.f32.mrb[0].mxu0
    %v2456 = vadd.f32 0.0, %v2455
    %v2457 = vpop.f32.mrb[0].mxu0
    %2458 = vmatprep.mubr.bf16.mxu0 %v1467
    %2459 = vmatmul.mubr.bf16.gmra.mrb[0].mxu0 %v1466
    %v2460 = vpop.f32.mrb[0].mxu0
    %v2461 = vadd.f32 0.0, %v2460
    %v2462 = vpop.f32.mrb[0].mxu0
    %v2463 = vpop.f32.mrb[0].mxu0
    %v2464 = vadd.f32 0.0, %v2463
    %v2465 = vpop.f32.mrb[0].mxu0
    %2466 = vmatprep.mubr.bf16.mxu0 %v1471
    %2467 = vmatmul.mubr.bf16.gmra.mrb[0].mxu0 %v1470
    %v2468 = vpop.f32.mrb[0].mxu0
    %v2469 = vadd.f32 0.0, %v2468
    %v2470 = vpop.f32.mrb[0].mxu0
    %v2471 = vpop.f32.mrb[0].mxu0
    %v2472 = vadd.f32 0.0, %v2471
    %v2473 = vpop.f32.mrb[0].mxu0
    %2474 = vmatprep.mubr.bf16.mxu0 %v1475
    %2475 = vmatmul.mubr.bf16.gmra.mrb[0].mxu0 %v1474
    %v2476 = vpop.f32.mrb[0].mxu0
    %v2477 = vadd.f32 0.0, %v2476
    %v2478 = vpop.f32.mrb[0].mxu0
    %v2479 = vpop.f32.mrb[0].mxu0
    %v2480 = vadd.f32 0.0, %v2479
    %v2481 = vpop.f32.mrb[0].mxu0
    %2482 = vmatprep.mubr.bf16.mxu0 %v1479
    %2483 = vmatmul.mubr.bf16.gmra.mrb[0].mxu0 %v1478
    %v2484 = vpop.f32.mrb[0].mxu0
    %v2485 = vadd.f32 0.0, %v2484
    %v2486 = vpop.f32.mrb[0].mxu0
    %v2487 = vpop.f32.mrb[0].mxu0
    %v2488 = vadd.f32 0.0, %v2487
    %v2489 = vpop.f32.mrb[0].mxu0
    %2490 = vmatprep.mubr.bf16.mxu0 %v1483
    %2491 = vmatmul.mubr.bf16.gmra.mrb[0].mxu0 %v1482
    %v2492 = vpop.f32.mrb[0].mxu0
    %v2493 = vadd.f32 0.0, %v2492
    %v2494 = vpop.f32.mrb[0].mxu0
    %v2495 = vpop.f32.mrb[0].mxu0
    %v2496 = vadd.f32 0.0, %v2495
    %v2497 = vpop.f32.mrb[0].mxu0
    %2498 = vmatprep.mubr.bf16.mxu0 %v1487
    %2499 = vmatmul.mubr.bf16.gmra.mrb[0].mxu0 %v1486
    %v2500 = vpop.f32.mrb[0].mxu0
    %v2501 = vadd.f32 0.0, %v2500
    %v2502 = vpop.f32.mrb[0].mxu0
    %v2503 = vpop.f32.mrb[0].mxu0
    %v2504 = vadd.f32 0.0, %v2503
    %v2505 = vpop.f32.mrb[0].mxu0
    %2506 = vmatprep.mubr.bf16.mxu0 %v1491
    %2507 = vmatmul.mubr.bf16.gmra.mrb[0].mxu0 %v1490
    %v2508 = vpop.f32.mrb[0].mxu0
    %v2509 = vadd.f32 0.0, %v2508
    %v2510 = vpop.f32.mrb[0].mxu0
    %v2511 = vpop.f32.mrb[0].mxu0
    %v2512 = vadd.f32 0.0, %v2511
    %v2513 = vpop.f32.mrb[0].mxu0
    %2514 = vmatprep.mubr.bf16.mxu0 %v1495
    %2515 = vmatmul.mubr.bf16.gmra.mrb[0].mxu0 %v1494
    %v2516 = vpop.f32.mrb[0].mxu0
    %v2517 = vadd.f32 0.0, %v2516
    %v2518 = vpop.f32.mrb[0].mxu0
    %v2519 = vpop.f32.mrb[0].mxu0
    %v2520 = vadd.f32 0.0, %v2519
    %v2521 = vpop.f32.mrb[0].mxu0
    %2522 = vmatprep.mubr.bf16.mxu0 %v1499
    %2523 = vmatmul.mubr.bf16.gmra.mrb[0].mxu0 %v1498
    %v2524 = vpop.f32.mrb[0].mxu0
    %v2525 = vadd.f32 0.0, %v2524
    %v2526 = vpop.f32.mrb[0].mxu0
    %v2527 = vpop.f32.mrb[0].mxu0
    %v2528 = vadd.f32 0.0, %v2527
    %v2529 = vpop.f32.mrb[0].mxu0
    %2530 = vmatprep.mubr.bf16.mxu0 %v1503
    %2531 = vmatmul.mubr.bf16.gmra.mrb[0].mxu0 %v1502
    %v2532 = vpop.f32.mrb[0].mxu0
    %v2533 = vadd.f32 0.0, %v2532
    %v2534 = vpop.f32.mrb[0].mxu0
    %v2535 = vpop.f32.mrb[0].mxu0
    %v2536 = vadd.f32 0.0, %v2535
    %v2537 = vpop.f32.mrb[0].mxu0
    %2538 = vmatprep.mubr.bf16.mxu0 %v1507
    %2539 = vmatmul.mubr.bf16.gmra.mrb[0].mxu0 %v1506
    %v2540 = vpop.f32.mrb[0].mxu0
    %v2541 = vadd.f32 0.0, %v2540
    %v2542 = vpop.f32.mrb[0].mxu0
    %v2543 = vpop.f32.mrb[0].mxu0
    %v2544 = vadd.f32 0.0, %v2543
    %v2545 = vpop.f32.mrb[0].mxu0
    %2546 = vmatprep.mubr.bf16.mxu0 %v1511
    %2547 = vmatmul.mubr.bf16.gmra.mrb[0].mxu0 %v1510
    %v2548 = vpop.f32.mrb[0].mxu0
    %v2549 = vadd.f32 0.0, %v2548
    %v2550 = vpop.f32.mrb[0].mxu0
    %v2551 = vpop.f32.mrb[0].mxu0
    %v2552 = vadd.f32 0.0, %v2551
    %v2553 = vpop.f32.mrb[0].mxu0
    %2554 = vmatprep.mubr.bf16.mxu0 %v1515
    %2555 = vmatmul.mubr.bf16.gmra.mrb[0].mxu0 %v1514
    %v2556 = vpop.f32.mrb[0].mxu0
    %v2557 = vadd.f32 0.0, %v2556
    %v2558 = vpop.f32.mrb[0].mxu0
    %v2559 = vpop.f32.mrb[0].mxu0
    %v2560 = vadd.f32 0.0, %v2559
    %v2561 = vpop.f32.mrb[0].mxu0
    %2562 = vmatprep.mubr.bf16.mxu0 %v1519
    %2563 = vmatmul.mubr.bf16.gmra.mrb[0].mxu0 %v1518
    %v2564 = vpop.f32.mrb[0].mxu0
    %v2565 = vadd.f32 0.0, %v2564
    %v2566 = vpop.f32.mrb[0].mxu0
    %v2567 = vpop.f32.mrb[0].mxu0
    %v2568 = vadd.f32 0.0, %v2567
    %v2569 = vpop.f32.mrb[0].mxu0
    %2570 = vmatprep.mubr.bf16.mxu0 %v1523
    %2571 = vmatmul.mubr.bf16.gmra.mrb[0].mxu0 %v1522
    %v2572 = vpop.f32.mrb[0].mxu0
    %v2573 = vadd.f32 0.0, %v2572
    %v2574 = vpop.f32.mrb[0].mxu0
    %v2575 = vpop.f32.mrb[0].mxu0
    %v2576 = vadd.f32 0.0, %v2575
    %v2577 = vpop.f32.mrb[0].mxu0
    %2578 = vmatprep.mubr.bf16.mxu0 %v1527
    %2579 = vmatmul.mubr.bf16.gmra.mrb[0].mxu0 %v1526
    %v2580 = vpop.f32.mrb[0].mxu0
    %v2581 = vadd.f32 0.0, %v2580
    %v2582 = vpop.f32.mrb[0].mxu0
    %v2583 = vpop.f32.mrb[0].mxu0
    %v2584 = vadd.f32 0.0, %v2583
    %v2585 = vpop.f32.mrb[0].mxu0
    %2586 = vmatprep.mubr.bf16.mxu0 %v1531
    %2587 = vmatmul.mubr.bf16.gmra.mrb[0].mxu0 %v1530
    %v2588 = vpop.f32.mrb[0].mxu0
    %v2589 = vadd.f32 0.0, %v2588
    %v2590 = vpop.f32.mrb[0].mxu0
    %v2591 = vpop.f32.mrb[0].mxu0
    %v2592 = vadd.f32 0.0, %v2591
    %v2593 = vpop.f32.mrb[0].mxu0
    %2594 = vmatprep.mubr.bf16.mxu0 %v1535
    %2595 = vmatmul.mubr.bf16.gmra.mrb[0].mxu0 %v1534
    %v2596 = vpop.f32.mrb[0].mxu0
    %v2597 = vadd.f32 0.0, %v2596
    %v2598 = vpop.f32.mrb[0].mxu0
    %v2599 = vpop.f32.mrb[0].mxu0
    %v2600 = vadd.f32 0.0, %v2599
    %v2601 = vpop.f32.mrb[0].mxu0
    %2602 = vmatprep.mubr.bf16.mxu0 %v1539
    %2603 = vmatmul.mubr.bf16.gmra.mrb[0].mxu0 %v1538
    %v2604 = vpop.f32.mrb[0].mxu0
    %v2605 = vadd.f32 0.0, %v2604
    %v2606 = vpop.f32.mrb[0].mxu0
    %v2607 = vpop.f32.mrb[0].mxu0
    %v2608 = vadd.f32 0.0, %v2607
    %v2609 = vpop.f32.mrb[0].mxu0
    %2610 = vmatprep.mubr.bf16.mxu0 %v1543
    %2611 = vmatmul.mubr.bf16.gmra.mrb[0].mxu0 %v1542
    %v2612 = vpop.f32.mrb[0].mxu0
    %v2613 = vadd.f32 0.0, %v2612
    %v2614 = vpop.f32.mrb[0].mxu0
    %v2615 = vpop.f32.mrb[0].mxu0
    %v2616 = vadd.f32 0.0, %v2615
    %v2617 = vpop.f32.mrb[0].mxu0
    %2618 = vmatprep.mubr.bf16.mxu0 %v1547
    %2619 = vmatmul.mubr.bf16.gmra.mrb[0].mxu0 %v1546
    %v2620 = vpop.f32.mrb[0].mxu0
    %v2621 = vadd.f32 0.0, %v2620
    %v2622 = vpop.f32.mrb[0].mxu0
    %v2623 = vpop.f32.mrb[0].mxu0
    %v2624 = vadd.f32 0.0, %v2623
    %v2625 = vpop.f32.mrb[0].mxu0
    %2626 = vmatprep.mubr.bf16.mxu0 %v1551
    %2627 = vmatmul.mubr.bf16.gmra.mrb[0].mxu0 %v1550
    %v2628 = vpop.f32.mrb[0].mxu0
    %v2629 = vadd.f32 0.0, %v2628
    %v2630 = vpop.f32.mrb[0].mxu0
    %v2631 = vpop.f32.mrb[0].mxu0
    %v2632 = vadd.f32 0.0, %v2631
    %v2633 = vpop.f32.mrb[0].mxu0
    %2634 = vmatprep.mubr.bf16.mxu0 %v1555
    %2635 = vmatmul.mubr.bf16.gmra.mrb[0].mxu0 %v1554
    %v2636 = vpop.f32.mrb[0].mxu0
    %v2637 = vadd.f32 0.0, %v2636
    %v2638 = vpop.f32.mrb[0].mxu0
    %v2639 = vpop.f32.mrb[0].mxu0
    %v2640 = vadd.f32 0.0, %v2639
    %v2641 = vpop.f32.mrb[0].mxu0
    %2642 = vmatprep.mubr.bf16.mxu0 %v1559
    %2643 = vmatmul.mubr.bf16.gmra.mrb[0].mxu0 %v1558
    %v2644 = vpop.f32.mrb[0].mxu0
    %v2645 = vadd.f32 0.0, %v2644
    %v2646 = vpop.f32.mrb[0].mxu0
    %v2647 = vpop.f32.mrb[0].mxu0
    %v2648 = vadd.f32 0.0, %v2647
    %v2649 = vpop.f32.mrb[0].mxu0
    %2650 = vdwg.mxu0
    %2651 = vmatprep.subr.bf16.mxu0 0
    %2652 = vmatpush1.bf16.msra.mxu0 %v1994
    %2653 = vmatprep.subr.bf16.mxu0 0
    %2654 = vmatpush1.bf16.msra.mxu0 %v1995
    %2655 = vmatprep.subr.bf16.mxu0 0
    %2656 = vmatpush1.bf16.msra.mxu0 %v1996
    %2657 = vmatprep.subr.bf16.mxu0 0
    %2658 = vmatpush1.bf16.msra.mxu0 %v1997
    %2659 = vmatprep.subr.bf16.mxu0 0
    %2660 = vmatpush1.bf16.msra.mxu0 %v1998
    %2661 = vmatprep.subr.bf16.mxu0 0
    %2662 = vmatpush1.bf16.msra.mxu0 %v1999
    %2663 = vmatprep.subr.bf16.mxu0 0
    %2664 = vmatpush1.bf16.msra.mxu0 %v2000
    %2665 = vmatprep.subr.bf16.mxu0 0
    %2666 = vmatpush1.bf16.msra.mxu0 %v2001
    %2667 = vmatprep.subr.bf16.mxu0 0
    %2668 = vmatpush1.bf16.msra.mxu0 %v2002
    %2669 = vmatprep.subr.bf16.mxu0 0
    %2670 = vmatpush1.bf16.msra.mxu0 %v2003
    %2671 = vmatprep.subr.bf16.mxu0 0
    %2672 = vmatpush1.bf16.msra.mxu0 %v2004
    %2673 = vmatprep.subr.bf16.mxu0 0
    %2674 = vmatpush1.bf16.msra.mxu0 %v2005
    %2675 = vmatprep.subr.bf16.mxu0 0
    %2676 = vmatpush1.bf16.msra.mxu0 %v2006
    %2677 = vmatprep.subr.bf16.mxu0 0
    %2678 = vmatpush1.bf16.msra.mxu0 %v2007
    %2679 = vmatprep.subr.bf16.mxu0 0
    %2680 = vmatpush1.bf16.msra.mxu0 %v2008
    %2681 = vmatprep.subr.bf16.mxu0 0
    %2682 = vmatpush1.bf16.msra.mxu0 %v2009
    %2683 = vmatprep.mubr.bf16.mxu0 %v1277
    %2684 = vmatmul.mubr.bf16.gmra.mrb[0].mxu0 %v1276
    %v2685 = vpop.f32.mrb[0].mxu0
    %v2686 = vadd.f32 %v2077, %v2685
    %v2687 = vpop.f32.mrb[0].mxu0
    %v2688 = vpop.f32.mrb[0].mxu0
    %v2689 = vadd.f32 %v2080, %v2688
    %v2690 = vpop.f32.mrb[0].mxu0
    %2691 = vmatprep.mubr.bf16.mxu0 %v1281
    %2692 = vmatmul.mubr.bf16.gmra.mrb[0].mxu0 %v1280
    %v2693 = vpop.f32.mrb[0].mxu0
    %v2694 = vadd.f32 %v2085, %v2693
    %v2695 = vpop.f32.mrb[0].mxu0
    %v2696 = vpop.f32.mrb[0].mxu0
    %v2697 = vadd.f32 %v2088, %v2696
    %v2698 = vpop.f32.mrb[0].mxu0
    %2699 = vmatprep.mubr.bf16.mxu0 %v1285
    %2700 = vmatmul.mubr.bf16.gmra.mrb[0].mxu0 %v1284
    %v2701 = vpop.f32.mrb[0].mxu0
    %v2702 = vadd.f32 %v2093, %v2701
    %v2703 = vpop.f32.mrb[0].mxu0
    %v2704 = vpop.f32.mrb[0].mxu0
    %v2705 = vadd.f32 %v2096, %v2704
    %v2706 = vpop.f32.mrb[0].mxu0
    %2707 = vmatprep.mubr.bf16.mxu0 %v1289
    %2708 = vmatmul.mubr.bf16.gmra.mrb[0].mxu0 %v1288
    %v2709 = vpop.f32.mrb[0].mxu0
    %v2710 = vadd.f32 %v2101, %v2709
    %v2711 = vpop.f32.mrb[0].mxu0
    %v2712 = vpop.f32.mrb[0].mxu0
    %v2713 = vadd.f32 %v2104, %v2712
    %v2714 = vpop.f32.mrb[0].mxu0
    %2715 = vmatprep.mubr.bf16.mxu0 %v1293
    %2716 = vmatmul.mubr.bf16.gmra.mrb[0].mxu0 %v1292
    %v2717 = vpop.f32.mrb[0].mxu0
    %v2718 = vadd.f32 %v2109, %v2717
    %v2719 = vpop.f32.mrb[0].mxu0
    %v2720 = vpop.f32.mrb[0].mxu0
    %v2721 = vadd.f32 %v2112, %v2720
    %v2722 = vpop.f32.mrb[0].mxu0
    %2723 = vmatprep.mubr.bf16.mxu0 %v1297
    %2724 = vmatmul.mubr.bf16.gmra.mrb[0].mxu0 %v1296
    %v2725 = vpop.f32.mrb[0].mxu0
    %v2726 = vadd.f32 %v2117, %v2725
    %v2727 = vpop.f32.mrb[0].mxu0
    %v2728 = vpop.f32.mrb[0].mxu0
    %v2729 = vadd.f32 %v2120, %v2728
    %v2730 = vpop.f32.mrb[0].mxu0
    %2731 = vmatprep.mubr.bf16.mxu0 %v1301
    %2732 = vmatmul.mubr.bf16.gmra.mrb[0].mxu0 %v1300
    %v2733 = vpop.f32.mrb[0].mxu0
    %v2734 = vadd.f32 %v2125, %v2733
    %v2735 = vpop.f32.mrb[0].mxu0
    %v2736 = vpop.f32.mrb[0].mxu0
    %v2737 = vadd.f32 %v2128, %v2736
    %v2738 = vpop.f32.mrb[0].mxu0
    %2739 = vmatprep.mubr.bf16.mxu0 %v1305
    %2740 = vmatmul.mubr.bf16.gmra.mrb[0].mxu0 %v1304
    %v2741 = vpop.f32.mrb[0].mxu0
    %v2742 = vadd.f32 %v2133, %v2741
    %v2743 = vpop.f32.mrb[0].mxu0
    %v2744 = vpop.f32.mrb[0].mxu0
    %v2745 = vadd.f32 %v2136, %v2744
    %v2746 = vpop.f32.mrb[0].mxu0
    %2747 = vmatprep.mubr.bf16.mxu0 %v1309
    %2748 = vmatmul.mubr.bf16.gmra.mrb[0].mxu0 %v1308
    %v2749 = vpop.f32.mrb[0].mxu0
    %v2750 = vadd.f32 %v2141, %v2749
    %v2751 = vpop.f32.mrb[0].mxu0
    %v2752 = vpop.f32.mrb[0].mxu0
    %v2753 = vadd.f32 %v2144, %v2752
    %v2754 = vpop.f32.mrb[0].mxu0
    %2755 = vmatprep.mubr.bf16.mxu0 %v1313
    %2756 = vmatmul.mubr.bf16.gmra.mrb[0].mxu0 %v1312
    %v2757 = vpop.f32.mrb[0].mxu0
    %v2758 = vadd.f32 %v2149, %v2757
    %v2759 = vpop.f32.mrb[0].mxu0
    %v2760 = vpop.f32.mrb[0].mxu0
    %v2761 = vadd.f32 %v2152, %v2760
    %v2762 = vpop.f32.mrb[0].mxu0
    %2763 = vmatprep.mubr.bf16.mxu0 %v1317
    %2764 = vmatmul.mubr.bf16.gmra.mrb[0].mxu0 %v1316
    %v2765 = vpop.f32.mrb[0].mxu0
    %v2766 = vadd.f32 %v2157, %v2765
    %v2767 = vpop.f32.mrb[0].mxu0
    %v2768 = vpop.f32.mrb[0].mxu0
    %v2769 = vadd.f32 %v2160, %v2768
    %v2770 = vpop.f32.mrb[0].mxu0
    %2771 = vmatprep.mubr.bf16.mxu0 %v1321
    %2772 = vmatmul.mubr.bf16.gmra.mrb[0].mxu0 %v1320
    %v2773 = vpop.f32.mrb[0].mxu0
    %v2774 = vadd.f32 %v2165, %v2773
    %v2775 = vpop.f32.mrb[0].mxu0
    %v2776 = vpop.f32.mrb[0].mxu0
    %v2777 = vadd.f32 %v2168, %v2776
    %v2778 = vpop.f32.mrb[0].mxu0
    %2779 = vmatprep.mubr.bf16.mxu0 %v1325
    %2780 = vmatmul.mubr.bf16.gmra.mrb[0].mxu0 %v1324
    %v2781 = vpop.f32.mrb[0].mxu0
    %v2782 = vadd.f32 %v2173, %v2781
    %v2783 = vpop.f32.mrb[0].mxu0
    %v2784 = vpop.f32.mrb[0].mxu0
    %v2785 = vadd.f32 %v2176, %v2784
    %v2786 = vpop.f32.mrb[0].mxu0
    %2787 = vmatprep.mubr.bf16.mxu0 %v1329
    %2788 = vmatmul.mubr.bf16.gmra.mrb[0].mxu0 %v1328
    %v2789 = vpop.f32.mrb[0].mxu0
    %v2790 = vadd.f32 %v2181, %v2789
    %v2791 = vpop.f32.mrb[0].mxu0
    %v2792 = vpop.f32.mrb[0].mxu0
    %v2793 = vadd.f32 %v2184, %v2792
    %v2794 = vpop.f32.mrb[0].mxu0
    %2795 = vmatprep.mubr.bf16.mxu0 %v1333
    %2796 = vmatmul.mubr.bf16.gmra.mrb[0].mxu0 %v1332
    %v2797 = vpop.f32.mrb[0].mxu0
    %v2798 = vadd.f32 %v2189, %v2797
    %v2799 = vpop.f32.mrb[0].mxu0
    %v2800 = vpop.f32.mrb[0].mxu0
    %v2801 = vadd.f32 %v2192, %v2800
    %v2802 = vpop.f32.mrb[0].mxu0
    %2803 = vmatprep.mubr.bf16.mxu0 %v1337
    %2804 = vmatmul.mubr.bf16.gmra.mrb[0].mxu0 %v1336
    %v2805 = vpop.f32.mrb[0].mxu0
    %v2806 = vadd.f32 %v2197, %v2805
    %v2807 = vpop.f32.mrb[0].mxu0
    %v2808 = vpop.f32.mrb[0].mxu0
    %v2809 = vadd.f32 %v2200, %v2808
    %v2810 = vpop.f32.mrb[0].mxu0
    %2811 = vmatprep.mubr.bf16.mxu0 %v1341
    %2812 = vmatmul.mubr.bf16.gmra.mrb[0].mxu0 %v1340
    %v2813 = vpop.f32.mrb[0].mxu0
    %v2814 = vadd.f32 %v2205, %v2813
    %v2815 = vpop.f32.mrb[0].mxu0
    %v2816 = vpop.f32.mrb[0].mxu0
    %v2817 = vadd.f32 %v2208, %v2816
    %v2818 = vpop.f32.mrb[0].mxu0
    %2819 = vmatprep.mubr.bf16.mxu0 %v1345
    %2820 = vmatmul.mubr.bf16.gmra.mrb[0].mxu0 %v1344
    %v2821 = vpop.f32.mrb[0].mxu0
    %v2822 = vadd.f32 %v2213, %v2821
    %v2823 = vpop.f32.mrb[0].mxu0
    %v2824 = vpop.f32.mrb[0].mxu0
    %v2825 = vadd.f32 %v2216, %v2824
    %v2826 = vpop.f32.mrb[0].mxu0
    %2827 = vmatprep.mubr.bf16.mxu0 %v1349
    %2828 = vmatmul.mubr.bf16.gmra.mrb[0].mxu0 %v1348
    %v2829 = vpop.f32.mrb[0].mxu0
    %v2830 = vadd.f32 %v2221, %v2829
    %v2831 = vpop.f32.mrb[0].mxu0
    %v2832 = vpop.f32.mrb[0].mxu0
    %v2833 = vadd.f32 %v2224, %v2832
    %v2834 = vpop.f32.mrb[0].mxu0
    %2835 = vmatprep.mubr.bf16.mxu0 %v1353
    %2836 = vmatmul.mubr.bf16.gmra.mrb[0].mxu0 %v1352
    %v2837 = vpop.f32.mrb[0].mxu0
    %v2838 = vadd.f32 %v2229, %v2837
    %v2839 = vpop.f32.mrb[0].mxu0
    %v2840 = vpop.f32.mrb[0].mxu0
    %v2841 = vadd.f32 %v2232, %v2840
    %v2842 = vpop.f32.mrb[0].mxu0
    %2843 = vmatprep.mubr.bf16.mxu0 %v1357
    %2844 = vmatmul.mubr.bf16.gmra.mrb[0].mxu0 %v1356
    %v2845 = vpop.f32.mrb[0].mxu0
    %v2846 = vadd.f32 %v2237, %v2845
    %v2847 = vpop.f32.mrb[0].mxu0
    %v2848 = vpop.f32.mrb[0].mxu0
    %v2849 = vadd.f32 %v2240, %v2848
    %v2850 = vpop.f32.mrb[0].mxu0
    %2851 = vmatprep.mubr.bf16.mxu0 %v1361
    %2852 = vmatmul.mubr.bf16.gmra.mrb[0].mxu0 %v1360
    %v2853 = vpop.f32.mrb[0].mxu0
    %v2854 = vadd.f32 %v2245, %v2853
    %v2855 = vpop.f32.mrb[0].mxu0
    %v2856 = vpop.f32.mrb[0].mxu0
    %v2857 = vadd.f32 %v2248, %v2856
    %v2858 = vpop.f32.mrb[0].mxu0
    %2859 = vmatprep.mubr.bf16.mxu0 %v1365
    %2860 = vmatmul.mubr.bf16.gmra.mrb[0].mxu0 %v1364
    %v2861 = vpop.f32.mrb[0].mxu0
    %v2862 = vadd.f32 %v2253, %v2861
    %v2863 = vpop.f32.mrb[0].mxu0
    %v2864 = vpop.f32.mrb[0].mxu0
    %v2865 = vadd.f32 %v2256, %v2864
    %v2866 = vpop.f32.mrb[0].mxu0
    %2867 = vmatprep.mubr.bf16.mxu0 %v1369
    %2868 = vmatmul.mubr.bf16.gmra.mrb[0].mxu0 %v1368
    %v2869 = vpop.f32.mrb[0].mxu0
    %v2870 = vadd.f32 %v2261, %v2869
    %v2871 = vpop.f32.mrb[0].mxu0
    %v2872 = vpop.f32.mrb[0].mxu0
    %v2873 = vadd.f32 %v2264, %v2872
    %v2874 = vpop.f32.mrb[0].mxu0
    %2875 = vmatprep.mubr.bf16.mxu0 %v1373
    %2876 = vmatmul.mubr.bf16.gmra.mrb[0].mxu0 %v1372
    %v2877 = vpop.f32.mrb[0].mxu0
    %v2878 = vadd.f32 %v2269, %v2877
    %v2879 = vpop.f32.mrb[0].mxu0
    %v2880 = vpop.f32.mrb[0].mxu0
    %v2881 = vadd.f32 %v2272, %v2880
    %v2882 = vpop.f32.mrb[0].mxu0
    %2883 = vmatprep.mubr.bf16.mxu0 %v1377
    %2884 = vmatmul.mubr.bf16.gmra.mrb[0].mxu0 %v1376
    %v2885 = vpop.f32.mrb[0].mxu0
    %v2886 = vadd.f32 %v2277, %v2885
    %v2887 = vpop.f32.mrb[0].mxu0
    %v2888 = vpop.f32.mrb[0].mxu0
    %v2889 = vadd.f32 %v2280, %v2888
    %v2890 = vpop.f32.mrb[0].mxu0
    %2891 = vmatprep.mubr.bf16.mxu0 %v1381
    %2892 = vmatmul.mubr.bf16.gmra.mrb[0].mxu0 %v1380
    %v2893 = vpop.f32.mrb[0].mxu0
    %v2894 = vadd.f32 %v2285, %v2893
    %v2895 = vpop.f32.mrb[0].mxu0
    %v2896 = vpop.f32.mrb[0].mxu0
    %v2897 = vadd.f32 %v2288, %v2896
    %v2898 = vpop.f32.mrb[0].mxu0
    %2899 = vmatprep.mubr.bf16.mxu0 %v1385
    %2900 = vmatmul.mubr.bf16.gmra.mrb[0].mxu0 %v1384
    %v2901 = vpop.f32.mrb[0].mxu0
    %v2902 = vadd.f32 %v2293, %v2901
    %v2903 = vpop.f32.mrb[0].mxu0
    %v2904 = vpop.f32.mrb[0].mxu0
    %v2905 = vadd.f32 %v2296, %v2904
    %v2906 = vpop.f32.mrb[0].mxu0
    %2907 = vmatprep.mubr.bf16.mxu0 %v1389
    %2908 = vmatmul.mubr.bf16.gmra.mrb[0].mxu0 %v1388
    %v2909 = vpop.f32.mrb[0].mxu0
    %v2910 = vadd.f32 %v2301, %v2909
    %v2911 = vpop.f32.mrb[0].mxu0
    %v2912 = vpop.f32.mrb[0].mxu0
    %v2913 = vadd.f32 %v2304, %v2912
    %v2914 = vpop.f32.mrb[0].mxu0
    %2915 = vmatprep.mubr.bf16.mxu0 %v1393
    %2916 = vmatmul.mubr.bf16.gmra.mrb[0].mxu0 %v1392
    %v2917 = vpop.f32.mrb[0].mxu0
    %v2918 = vadd.f32 %v2309, %v2917
    %v2919 = vpop.f32.mrb[0].mxu0
    %v2920 = vpop.f32.mrb[0].mxu0
    %v2921 = vadd.f32 %v2312, %v2920
    %v2922 = vpop.f32.mrb[0].mxu0
    %2923 = vmatprep.mubr.bf16.mxu0 %v1397
    %2924 = vmatmul.mubr.bf16.gmra.mrb[0].mxu0 %v1396
    %v2925 = vpop.f32.mrb[0].mxu0
    %v2926 = vadd.f32 %v2317, %v2925
    %v2927 = vpop.f32.mrb[0].mxu0
    %v2928 = vpop.f32.mrb[0].mxu0
    %v2929 = vadd.f32 %v2320, %v2928
    %v2930 = vpop.f32.mrb[0].mxu0
    %2931 = vmatprep.mubr.bf16.mxu0 %v1401
    %2932 = vmatmul.mubr.bf16.gmra.mrb[0].mxu0 %v1400
    %v2933 = vpop.f32.mrb[0].mxu0
    %v2934 = vadd.f32 %v2325, %v2933
    %v2935 = vpop.f32.mrb[0].mxu0
    %v2936 = vpop.f32.mrb[0].mxu0
    %v2937 = vadd.f32 %v2328, %v2936
    %v2938 = vpop.f32.mrb[0].mxu0
    %2939 = vmatprep.mubr.bf16.mxu0 %v1405
    %2940 = vmatmul.mubr.bf16.gmra.mrb[0].mxu0 %v1404
    %v2941 = vpop.f32.mrb[0].mxu0
    %v2942 = vadd.f32 %v2333, %v2941
    %v2943 = vpop.f32.mrb[0].mxu0
    %v2944 = vpop.f32.mrb[0].mxu0
    %v2945 = vadd.f32 %v2336, %v2944
    %v2946 = vpop.f32.mrb[0].mxu0
    %2947 = vmatprep.mubr.bf16.mxu0 %v1409
    %2948 = vmatmul.mubr.bf16.gmra.mrb[0].mxu0 %v1408
    %v2949 = vpop.f32.mrb[0].mxu0
    %v2950 = vadd.f32 %v2341, %v2949
    %v2951 = vpop.f32.mrb[0].mxu0
    %v2952 = vpop.f32.mrb[0].mxu0
    %v2953 = vadd.f32 %v2344, %v2952
    %v2954 = vpop.f32.mrb[0].mxu0
    %2955 = vmatprep.mubr.bf16.mxu0 %v1413
    %2956 = vmatmul.mubr.bf16.gmra.mrb[0].mxu0 %v1412
    %v2957 = vpop.f32.mrb[0].mxu0
    %v2958 = vadd.f32 %v2349, %v2957
    %v2959 = vpop.f32.mrb[0].mxu0
    %v2960 = vpop.f32.mrb[0].mxu0
    %v2961 = vadd.f32 %v2352, %v2960
    %v2962 = vpop.f32.mrb[0].mxu0
    %2963 = vmatprep.mubr.bf16.mxu0 %v1417
    %2964 = vmatmul.mubr.bf16.gmra.mrb[0].mxu0 %v1416
    %v2965 = vpop.f32.mrb[0].mxu0
    %v2966 = vadd.f32 %v2357, %v2965
    %v2967 = vpop.f32.mrb[0].mxu0
    %v2968 = vpop.f32.mrb[0].mxu0
    %v2969 = vadd.f32 %v2360, %v2968
    %v2970 = vpop.f32.mrb[0].mxu0
    %2971 = vmatprep.mubr.bf16.mxu0 %v1421
    %2972 = vmatmul.mubr.bf16.gmra.mrb[0].mxu0 %v1420
    %v2973 = vpop.f32.mrb[0].mxu0
    %v2974 = vadd.f32 %v2365, %v2973
    %v2975 = vpop.f32.mrb[0].mxu0
    %v2976 = vpop.f32.mrb[0].mxu0
    %v2977 = vadd.f32 %v2368, %v2976
    %v2978 = vpop.f32.mrb[0].mxu0
    %2979 = vmatprep.mubr.bf16.mxu0 %v1425
    %2980 = vmatmul.mubr.bf16.gmra.mrb[0].mxu0 %v1424
    %v2981 = vpop.f32.mrb[0].mxu0
    %v2982 = vadd.f32 %v2373, %v2981
    %v2983 = vpop.f32.mrb[0].mxu0
    %v2984 = vpop.f32.mrb[0].mxu0
    %v2985 = vadd.f32 %v2376, %v2984
    %v2986 = vpop.f32.mrb[0].mxu0
    %2987 = vmatprep.mubr.bf16.mxu0 %v1429
    %2988 = vmatmul.mubr.bf16.gmra.mrb[0].mxu0 %v1428
    %v2989 = vpop.f32.mrb[0].mxu0
    %v2990 = vadd.f32 %v2381, %v2989
    %v2991 = vpop.f32.mrb[0].mxu0
    %v2992 = vpop.f32.mrb[0].mxu0
    %v2993 = vadd.f32 %v2384, %v2992
    %v2994 = vpop.f32.mrb[0].mxu0
    %2995 = vmatprep.mubr.bf16.mxu0 %v1433
    %2996 = vmatmul.mubr.bf16.gmra.mrb[0].mxu0 %v1432
    %v2997 = vpop.f32.mrb[0].mxu0
    %v2998 = vadd.f32 %v2389, %v2997
    %v2999 = vpop.f32.mrb[0].mxu0
    %v3000 = vpop.f32.mrb[0].mxu0
    %v3001 = vadd.f32 %v2392, %v3000
    %v3002 = vpop.f32.mrb[0].mxu0
    %3003 = vmatprep.mubr.bf16.mxu0 %v1437
    %3004 = vmatmul.mubr.bf16.gmra.mrb[0].mxu0 %v1436
    %v3005 = vpop.f32.mrb[0].mxu0
    %v3006 = vadd.f32 %v2397, %v3005
    %v3007 = vpop.f32.mrb[0].mxu0
    %v3008 = vpop.f32.mrb[0].mxu0
    %v3009 = vadd.f32 %v2400, %v3008
    %v3010 = vpop.f32.mrb[0].mxu0
    %3011 = vmatprep.mubr.bf16.mxu0 %v1441
    %3012 = vmatmul.mubr.bf16.gmra.mrb[0].mxu0 %v1440
    %v3013 = vpop.f32.mrb[0].mxu0
    %v3014 = vadd.f32 %v2405, %v3013
    %v3015 = vpop.f32.mrb[0].mxu0
    %v3016 = vpop.f32.mrb[0].mxu0
    %v3017 = vadd.f32 %v2408, %v3016
    %v3018 = vpop.f32.mrb[0].mxu0
    %3019 = vmatprep.mubr.bf16.mxu0 %v1445
    %3020 = vmatmul.mubr.bf16.gmra.mrb[0].mxu0 %v1444
    %v3021 = vpop.f32.mrb[0].mxu0
    %v3022 = vadd.f32 %v2413, %v3021
    %v3023 = vpop.f32.mrb[0].mxu0
    %v3024 = vpop.f32.mrb[0].mxu0
    %v3025 = vadd.f32 %v2416, %v3024
    %v3026 = vpop.f32.mrb[0].mxu0
    %3027 = vmatprep.mubr.bf16.mxu0 %v1449
    %3028 = vmatmul.mubr.bf16.gmra.mrb[0].mxu0 %v1448
    %v3029 = vpop.f32.mrb[0].mxu0
    %v3030 = vadd.f32 %v2421, %v3029
    %v3031 = vpop.f32.mrb[0].mxu0
    %v3032 = vpop.f32.mrb[0].mxu0
    %v3033 = vadd.f32 %v2424, %v3032
    %v3034 = vpop.f32.mrb[0].mxu0
    %3035 = vmatprep.mubr.bf16.mxu0 %v1453
    %3036 = vmatmul.mubr.bf16.gmra.mrb[0].mxu0 %v1452
    %v3037 = vpop.f32.mrb[0].mxu0
    %v3038 = vadd.f32 %v2429, %v3037
    %v3039 = vpop.f32.mrb[0].mxu0
    %v3040 = vpop.f32.mrb[0].mxu0
    %v3041 = vadd.f32 %v2432, %v3040
    %v3042 = vpop.f32.mrb[0].mxu0
    %3043 = vmatprep.mubr.bf16.mxu0 %v1457
    %3044 = vmatmul.mubr.bf16.gmra.mrb[0].mxu0 %v1456
    %v3045 = vpop.f32.mrb[0].mxu0
    %v3046 = vadd.f32 %v2437, %v3045
    %v3047 = vpop.f32.mrb[0].mxu0
    %v3048 = vpop.f32.mrb[0].mxu0
    %v3049 = vadd.f32 %v2440, %v3048
    %v3050 = vpop.f32.mrb[0].mxu0
    %3051 = vmatprep.mubr.bf16.mxu0 %v1461
    %3052 = vmatmul.mubr.bf16.gmra.mrb[0].mxu0 %v1460
    %v3053 = vpop.f32.mrb[0].mxu0
    %v3054 = vadd.f32 %v2445, %v3053
    %v3055 = vpop.f32.mrb[0].mxu0
    %v3056 = vpop.f32.mrb[0].mxu0
    %v3057 = vadd.f32 %v2448, %v3056
    %v3058 = vpop.f32.mrb[0].mxu0
    %3059 = vmatprep.mubr.bf16.mxu0 %v1465
    %3060 = vmatmul.mubr.bf16.gmra.mrb[0].mxu0 %v1464
    %v3061 = vpop.f32.mrb[0].mxu0
    %v3062 = vadd.f32 %v2453, %v3061
    %v3063 = vpop.f32.mrb[0].mxu0
    %v3064 = vpop.f32.mrb[0].mxu0
    %v3065 = vadd.f32 %v2456, %v3064
    %v3066 = vpop.f32.mrb[0].mxu0
    %3067 = vmatprep.mubr.bf16.mxu0 %v1469
    %3068 = vmatmul.mubr.bf16.gmra.mrb[0].mxu0 %v1468
    %v3069 = vpop.f32.mrb[0].mxu0
    %v3070 = vadd.f32 %v2461, %v3069
    %v3071 = vpop.f32.mrb[0].mxu0
    %v3072 = vpop.f32.mrb[0].mxu0
    %v3073 = vadd.f32 %v2464, %v3072
    %v3074 = vpop.f32.mrb[0].mxu0
    %3075 = vmatprep.mubr.bf16.mxu0 %v1473
    %3076 = vmatmul.mubr.bf16.gmra.mrb[0].mxu0 %v1472
    %v3077 = vpop.f32.mrb[0].mxu0
    %v3078 = vadd.f32 %v2469, %v3077
    %v3079 = vpop.f32.mrb[0].mxu0
    %v3080 = vpop.f32.mrb[0].mxu0
    %v3081 = vadd.f32 %v2472, %v3080
    %v3082 = vpop.f32.mrb[0].mxu0
    %3083 = vmatprep.mubr.bf16.mxu0 %v1477
    %3084 = vmatmul.mubr.bf16.gmra.mrb[0].mxu0 %v1476
    %v3085 = vpop.f32.mrb[0].mxu0
    %v3086 = vadd.f32 %v2477, %v3085
    %v3087 = vpop.f32.mrb[0].mxu0
    %v3088 = vpop.f32.mrb[0].mxu0
    %v3089 = vadd.f32 %v2480, %v3088
    %v3090 = vpop.f32.mrb[0].mxu0
    %3091 = vmatprep.mubr.bf16.mxu0 %v1481
    %3092 = vmatmul.mubr.bf16.gmra.mrb[0].mxu0 %v1480
    %v3093 = vpop.f32.mrb[0].mxu0
    %v3094 = vadd.f32 %v2485, %v3093
    %v3095 = vpop.f32.mrb[0].mxu0
    %v3096 = vpop.f32.mrb[0].mxu0
    %v3097 = vadd.f32 %v2488, %v3096
    %v3098 = vpop.f32.mrb[0].mxu0
    %3099 = vmatprep.mubr.bf16.mxu0 %v1485
    %3100 = vmatmul.mubr.bf16.gmra.mrb[0].mxu0 %v1484
    %v3101 = vpop.f32.mrb[0].mxu0
    %v3102 = vadd.f32 %v2493, %v3101
    %v3103 = vpop.f32.mrb[0].mxu0
    %v3104 = vpop.f32.mrb[0].mxu0
    %v3105 = vadd.f32 %v2496, %v3104
    %v3106 = vpop.f32.mrb[0].mxu0
    %3107 = vmatprep.mubr.bf16.mxu0 %v1489
    %3108 = vmatmul.mubr.bf16.gmra.mrb[0].mxu0 %v1488
    %v3109 = vpop.f32.mrb[0].mxu0
    %v3110 = vadd.f32 %v2501, %v3109
    %v3111 = vpop.f32.mrb[0].mxu0
    %v3112 = vpop.f32.mrb[0].mxu0
    %v3113 = vadd.f32 %v2504, %v3112
    %v3114 = vpop.f32.mrb[0].mxu0
    %3115 = vmatprep.mubr.bf16.mxu0 %v1493
    %3116 = vmatmul.mubr.bf16.gmra.mrb[0].mxu0 %v1492
    %v3117 = vpop.f32.mrb[0].mxu0
    %v3118 = vadd.f32 %v2509, %v3117
    %v3119 = vpop.f32.mrb[0].mxu0
    %v3120 = vpop.f32.mrb[0].mxu0
    %v3121 = vadd.f32 %v2512, %v3120
    %v3122 = vpop.f32.mrb[0].mxu0
    %3123 = vmatprep.mubr.bf16.mxu0 %v1497
    %3124 = vmatmul.mubr.bf16.gmra.mrb[0].mxu0 %v1496
    %v3125 = vpop.f32.mrb[0].mxu0
    %v3126 = vadd.f32 %v2517, %v3125
    %v3127 = vpop.f32.mrb[0].mxu0
    %v3128 = vpop.f32.mrb[0].mxu0
    %v3129 = vadd.f32 %v2520, %v3128
    %v3130 = vpop.f32.mrb[0].mxu0
    %3131 = vmatprep.mubr.bf16.mxu0 %v1501
    %3132 = vmatmul.mubr.bf16.gmra.mrb[0].mxu0 %v1500
    %v3133 = vpop.f32.mrb[0].mxu0
    %v3134 = vadd.f32 %v2525, %v3133
    %v3135 = vpop.f32.mrb[0].mxu0
    %v3136 = vpop.f32.mrb[0].mxu0
    %v3137 = vadd.f32 %v2528, %v3136
    %v3138 = vpop.f32.mrb[0].mxu0
    %3139 = vmatprep.mubr.bf16.mxu0 %v1505
    %3140 = vmatmul.mubr.bf16.gmra.mrb[0].mxu0 %v1504
    %v3141 = vpop.f32.mrb[0].mxu0
    %v3142 = vadd.f32 %v2533, %v3141
    %v3143 = vpop.f32.mrb[0].mxu0
    %v3144 = vpop.f32.mrb[0].mxu0
    %v3145 = vadd.f32 %v2536, %v3144
    %v3146 = vpop.f32.mrb[0].mxu0
    %3147 = vmatprep.mubr.bf16.mxu0 %v1509
    %3148 = vmatmul.mubr.bf16.gmra.mrb[0].mxu0 %v1508
    %v3149 = vpop.f32.mrb[0].mxu0
    %v3150 = vadd.f32 %v2541, %v3149
    %v3151 = vpop.f32.mrb[0].mxu0
    %v3152 = vpop.f32.mrb[0].mxu0
    %v3153 = vadd.f32 %v2544, %v3152
    %v3154 = vpop.f32.mrb[0].mxu0
    %3155 = vmatprep.mubr.bf16.mxu0 %v1513
    %3156 = vmatmul.mubr.bf16.gmra.mrb[0].mxu0 %v1512
    %v3157 = vpop.f32.mrb[0].mxu0
    %v3158 = vadd.f32 %v2549, %v3157
    %v3159 = vpop.f32.mrb[0].mxu0
    %v3160 = vpop.f32.mrb[0].mxu0
    %v3161 = vadd.f32 %v2552, %v3160
    %v3162 = vpop.f32.mrb[0].mxu0
    %3163 = vmatprep.mubr.bf16.mxu0 %v1517
    %3164 = vmatmul.mubr.bf16.gmra.mrb[0].mxu0 %v1516
    %v3165 = vpop.f32.mrb[0].mxu0
    %v3166 = vadd.f32 %v2557, %v3165
    %v3167 = vpop.f32.mrb[0].mxu0
    %v3168 = vpop.f32.mrb[0].mxu0
    %v3169 = vadd.f32 %v2560, %v3168
    %v3170 = vpop.f32.mrb[0].mxu0
    %3171 = vmatprep.mubr.bf16.mxu0 %v1521
    %3172 = vmatmul.mubr.bf16.gmra.mrb[0].mxu0 %v1520
    %v3173 = vpop.f32.mrb[0].mxu0
    %v3174 = vadd.f32 %v2565, %v3173
    %v3175 = vpop.f32.mrb[0].mxu0
    %v3176 = vpop.f32.mrb[0].mxu0
    %v3177 = vadd.f32 %v2568, %v3176
    %v3178 = vpop.f32.mrb[0].mxu0
    %3179 = vmatprep.mubr.bf16.mxu0 %v1525
    %3180 = vmatmul.mubr.bf16.gmra.mrb[0].mxu0 %v1524
    %v3181 = vpop.f32.mrb[0].mxu0
    %v3182 = vadd.f32 %v2573, %v3181
    %v3183 = vpop.f32.mrb[0].mxu0
    %v3184 = vpop.f32.mrb[0].mxu0
    %v3185 = vadd.f32 %v2576, %v3184
    %v3186 = vpop.f32.mrb[0].mxu0
    %3187 = vmatprep.mubr.bf16.mxu0 %v1529
    %3188 = vmatmul.mubr.bf16.gmra.mrb[0].mxu0 %v1528
    %v3189 = vpop.f32.mrb[0].mxu0
    %v3190 = vadd.f32 %v2581, %v3189
    %v3191 = vpop.f32.mrb[0].mxu0
    %v3192 = vpop.f32.mrb[0].mxu0
    %v3193 = vadd.f32 %v2584, %v3192
    %v3194 = vpop.f32.mrb[0].mxu0
    %3195 = vmatprep.mubr.bf16.mxu0 %v1533
    %3196 = vmatmul.mubr.bf16.gmra.mrb[0].mxu0 %v1532
    %v3197 = vpop.f32.mrb[0].mxu0
    %v3198 = vadd.f32 %v2589, %v3197
    %v3199 = vpop.f32.mrb[0].mxu0
    %v3200 = vpop.f32.mrb[0].mxu0
    %v3201 = vadd.f32 %v2592, %v3200
    %v3202 = vpop.f32.mrb[0].mxu0
    %3203 = vmatprep.mubr.bf16.mxu0 %v1537
    %3204 = vmatmul.mubr.bf16.gmra.mrb[0].mxu0 %v1536
    %v3205 = vpop.f32.mrb[0].mxu0
    %v3206 = vadd.f32 %v2597, %v3205
    %v3207 = vpop.f32.mrb[0].mxu0
    %v3208 = vpop.f32.mrb[0].mxu0
    %v3209 = vadd.f32 %v2600, %v3208
    %v3210 = vpop.f32.mrb[0].mxu0
    %3211 = vmatprep.mubr.bf16.mxu0 %v1541
    %3212 = vmatmul.mubr.bf16.gmra.mrb[0].mxu0 %v1540
    %v3213 = vpop.f32.mrb[0].mxu0
    %v3214 = vadd.f32 %v2605, %v3213
    %v3215 = vpop.f32.mrb[0].mxu0
    %v3216 = vpop.f32.mrb[0].mxu0
    %v3217 = vadd.f32 %v2608, %v3216
    %v3218 = vpop.f32.mrb[0].mxu0
    %3219 = vmatprep.mubr.bf16.mxu0 %v1545
    %3220 = vmatmul.mubr.bf16.gmra.mrb[0].mxu0 %v1544
    %v3221 = vpop.f32.mrb[0].mxu0
    %v3222 = vadd.f32 %v2613, %v3221
    %v3223 = vpop.f32.mrb[0].mxu0
    %v3224 = vpop.f32.mrb[0].mxu0
    %v3225 = vadd.f32 %v2616, %v3224
    %v3226 = vpop.f32.mrb[0].mxu0
    %3227 = vmatprep.mubr.bf16.mxu0 %v1549
    %3228 = vmatmul.mubr.bf16.gmra.mrb[0].mxu0 %v1548
    %v3229 = vpop.f32.mrb[0].mxu0
    %v3230 = vadd.f32 %v2621, %v3229
    %v3231 = vpop.f32.mrb[0].mxu0
    %v3232 = vpop.f32.mrb[0].mxu0
    %v3233 = vadd.f32 %v2624, %v3232
    %v3234 = vpop.f32.mrb[0].mxu0
    %3235 = vmatprep.mubr.bf16.mxu0 %v1553
    %3236 = vmatmul.mubr.bf16.gmra.mrb[0].mxu0 %v1552
    %v3237 = vpop.f32.mrb[0].mxu0
    %v3238 = vadd.f32 %v2629, %v3237
    %v3239 = vpop.f32.mrb[0].mxu0
    %v3240 = vpop.f32.mrb[0].mxu0
    %v3241 = vadd.f32 %v2632, %v3240
    %v3242 = vpop.f32.mrb[0].mxu0
    %3243 = vmatprep.mubr.bf16.mxu0 %v1557
    %3244 = vmatmul.mubr.bf16.gmra.mrb[0].mxu0 %v1556
    %v3245 = vpop.f32.mrb[0].mxu0
    %v3246 = vadd.f32 %v2637, %v3245
    %v3247 = vpop.f32.mrb[0].mxu0
    %v3248 = vpop.f32.mrb[0].mxu0
    %v3249 = vadd.f32 %v2640, %v3248
    %v3250 = vpop.f32.mrb[0].mxu0
    %3251 = vmatprep.mubr.bf16.mxu0 %v1561
    %3252 = vmatmul.mubr.bf16.gmra.mrb[0].mxu0 %v1560
    %v3253 = vpop.f32.mrb[0].mxu0
    %v3254 = vadd.f32 %v2645, %v3253
    %v3255 = vpop.f32.mrb[0].mxu0
    %v3256 = vpop.f32.mrb[0].mxu0
    %v3257 = vadd.f32 %v2648, %v3256
    %v3258 = vpop.f32.mrb[0].mxu0
    %3259 = vdwg.mxu0
    %v3260 = vld [vmem:[#allocation4] sm:$0xf]
    %v3261 = vunpack.c.l.bf16 %v3260
    %v3262 = vld [vmem:[#allocation4 + $0x4] sm:$0xf]
    %v3263 = vunpack.c.l.bf16 %v3262
    %vm3264 = vcmask 64512
    %v3266 = vsel %vm3264, %v2750, 0
    %v3269 = vsel %vm3264, %v2753, 0
    %v3272 = vsel %vm3264, %v2758, 0
    %v3275 = vsel %vm3264, %v2761, 0
    %v3278 = vsel %vm3264, %v2766, 0
    %v3281 = vsel %vm3264, %v2769, 0
    %v3284 = vsel %vm3264, %v2774, 0
    %v3287 = vsel %vm3264, %v2777, 0
    %v3290 = vsel %vm3264, %v2782, 0
    %v3293 = vsel %vm3264, %v2785, 0
    %v3296 = vsel %vm3264, %v2790, 0
    %v3299 = vsel %vm3264, %v2793, 0
    %v3302 = vsel %vm3264, %v2798, 0
    %v3305 = vsel %vm3264, %v2801, 0
    %v3308 = vsel %vm3264, %v2806, 0
    %v3311 = vsel %vm3264, %v2809, 0
    %3313 = vmatprep.subr.mxu0 0.0
    %3314 = vmatpush1.msra.mxu0 %v3263
    %3315 = vmatprep.subr.mxu0 0.0
    %3316 = vmatpush1.msra.mxu0 0.0
    %3317 = vmatprep.subr.mxu0 0.0
    %3318 = vmatpush1.msra.mxu0 0.0
    %3319 = vmatprep.subr.mxu0 0.0
    %3320 = vmatpush1.msra.mxu0 0.0
    %3321 = vmatprep.subr.mxu0 0.0
    %3322 = vmatpush1.msra.mxu0 0.0
    %3323 = vmatprep.subr.mxu0 0.0
    %3324 = vmatpush1.msra.mxu0 0.0
    %3325 = vmatprep.subr.mxu0 0.0
    %3326 = vmatpush1.msra.mxu0 0.0
    %3327 = vmatprep.subr.mxu0 0.0
    %3328 = vmatpush1.msra.mxu0 0.0
    %3329 = vmatprep.subr.mxu0 0.0
    %3330 = vmatpush1.msra.mxu0 0.0
    %3331 = vmatprep.subr.mxu0 0.0
    %3332 = vmatpush1.msra.mxu0 0.0
    %3333 = vmatprep.subr.mxu0 0.0
    %3334 = vmatpush1.msra.mxu0 0.0
    %3335 = vmatprep.subr.mxu0 0.0
    %3336 = vmatpush1.msra.mxu0 0.0
    %3337 = vmatprep.subr.mxu0 0.0
    %3338 = vmatpush1.msra.mxu0 0.0
    %3339 = vmatprep.subr.mxu0 0.0
    %3340 = vmatpush1.msra.mxu0 0.0
    %3341 = vmatprep.subr.mxu0 0.0
    %3342 = vmatpush1.msra.mxu0 0.0
    %3343 = vmatprep.subr.mxu0 0.0
    %3344 = vmatpush1.msra.mxu0 0.0
    %3345 = vmatprep.subr.mxu0 0.0
    %3346 = vmatpush1.msra.mxu0 0.0
    %3347 = vmatprep.subr.mxu0 0.0
    %3348 = vmatpush1.msra.mxu0 0.0
    %3349 = vmatprep.subr.mxu0 0.0
    %3350 = vmatpush1.msra.mxu0 0.0
    %3351 = vmatprep.subr.mxu0 0.0
    %3352 = vmatpush1.msra.mxu0 0.0
    %3353 = vmatprep.subr.mxu0 0.0
    %3354 = vmatpush1.msra.mxu0 0.0
    %3355 = vmatprep.subr.mxu0 0.0
    %3356 = vmatpush1.msra.mxu0 0.0
    %3357 = vmatprep.subr.mxu0 0.0
    %3358 = vmatpush1.msra.mxu0 0.0
    %3359 = vmatprep.subr.mxu0 0.0
    %3360 = vmatpush1.msra.mxu0 0.0
    %3361 = vmatprep.subr.mxu0 0.0
    %3362 = vmatpush1.msra.mxu0 0.0
    %3363 = vmatprep.subr.mxu0 0.0
    %3364 = vmatpush1.msra.mxu0 0.0
    %3365 = vmatprep.subr.mxu0 0.0
    %3366 = vmatpush1.msra.mxu0 0.0
    %3367 = vmatprep.subr.mxu0 0.0
    %3368 = vmatpush1.msra.mxu0 0.0
    %3369 = vmatprep.subr.mxu0 0.0
    %3370 = vmatpush1.msra.mxu0 0.0
    %3371 = vmatprep.subr.mxu0 0.0
    %3372 = vmatpush1.msra.mxu0 0.0
    %3373 = vmatprep.subr.mxu0 0.0
    %3374 = vmatpush1.msra.mxu0 0.0
    %3375 = vmatprep.subr.mxu0 0.0
    %3376 = vmatpush1.msra.mxu0 0.0
    %3377 = vmatprep.mubr.f32.mxu0 0.0
    %3378 = vmatmul.mubr.f32.gmra.mrb[0].mxu0 %v3266
    %v3379 = vpop.f32.mrb[0].mxu0
    %v3380 = vadd.f32 0.0, %v3379
    %v3381 = vpop.f32.mrb[0].mxu0
    %3382 = vmatprep.mubr.f32.mxu0 0.0
    %3383 = vmatmul.mubr.f32.gmra.mrb[0].mxu0 %v3269
    %v3384 = vpop.f32.mrb[0].mxu0
    %v3385 = vadd.f32 0.0, %v3384
    %v3386 = vpop.f32.mrb[0].mxu0
    %3387 = vmatprep.mubr.f32.mxu0 0.0
    %3388 = vmatmul.mubr.f32.gmra.mrb[0].mxu0 %v3272
    %v3389 = vpop.f32.mrb[0].mxu0
    %v3390 = vadd.f32 0.0, %v3389
    %v3391 = vpop.f32.mrb[0].mxu0
    %3392 = vmatprep.mubr.f32.mxu0 0.0
    %3393 = vmatmul.mubr.f32.gmra.mrb[0].mxu0 %v3275
    %v3394 = vpop.f32.mrb[0].mxu0
    %v3395 = vadd.f32 0.0, %v3394
    %v3396 = vpop.f32.mrb[0].mxu0
    %3397 = vmatprep.mubr.f32.mxu0 0.0
    %3398 = vmatmul.mubr.f32.gmra.mrb[0].mxu0 %v3278
    %v3399 = vpop.f32.mrb[0].mxu0
    %v3400 = vadd.f32 0.0, %v3399
    %v3401 = vpop.f32.mrb[0].mxu0
    %3402 = vmatprep.mubr.f32.mxu0 0.0
    %3403 = vmatmul.mubr.f32.gmra.mrb[0].mxu0 %v3281
    %v3404 = vpop.f32.mrb[0].mxu0
    %v3405 = vadd.f32 0.0, %v3404
    %v3406 = vpop.f32.mrb[0].mxu0
    %3407 = vmatprep.mubr.f32.mxu0 0.0
    %3408 = vmatmul.mubr.f32.gmra.mrb[0].mxu0 %v3284
    %v3409 = vpop.f32.mrb[0].mxu0
    %v3410 = vadd.f32 0.0, %v3409
    %v3411 = vpop.f32.mrb[0].mxu0
    %3412 = vmatprep.mubr.f32.mxu0 0.0
    %3413 = vmatmul.mubr.f32.gmra.mrb[0].mxu0 %v3287
    %v3414 = vpop.f32.mrb[0].mxu0
    %v3415 = vadd.f32 0.0, %v3414
    %v3416 = vpop.f32.mrb[0].mxu0
    %3417 = vmatprep.mubr.f32.mxu0 0.0
    %3418 = vmatmul.mubr.f32.gmra.mrb[0].mxu0 %v3290
    %v3419 = vpop.f32.mrb[0].mxu0
    %v3420 = vadd.f32 0.0, %v3419
    %v3421 = vpop.f32.mrb[0].mxu0
    %3422 = vmatprep.mubr.f32.mxu0 0.0
    %3423 = vmatmul.mubr.f32.gmra.mrb[0].mxu0 %v3293
    %v3424 = vpop.f32.mrb[0].mxu0
    %v3425 = vadd.f32 0.0, %v3424
    %v3426 = vpop.f32.mrb[0].mxu0
    %3427 = vmatprep.mubr.f32.mxu0 0.0
    %3428 = vmatmul.mubr.f32.gmra.mrb[0].mxu0 %v3296
    %v3429 = vpop.f32.mrb[0].mxu0
    %v3430 = vadd.f32 0.0, %v3429
    %v3431 = vpop.f32.mrb[0].mxu0
    %3432 = vmatprep.mubr.f32.mxu0 0.0
    %3433 = vmatmul.mubr.f32.gmra.mrb[0].mxu0 %v3299
    %v3434 = vpop.f32.mrb[0].mxu0
    %v3435 = vadd.f32 0.0, %v3434
    %v3436 = vpop.f32.mrb[0].mxu0
    %3437 = vmatprep.mubr.f32.mxu0 0.0
    %3438 = vmatmul.mubr.f32.gmra.mrb[0].mxu0 %v3302
    %v3439 = vpop.f32.mrb[0].mxu0
    %v3440 = vadd.f32 0.0, %v3439
    %v3441 = vpop.f32.mrb[0].mxu0
    %3442 = vmatprep.mubr.f32.mxu0 0.0
    %3443 = vmatmul.mubr.f32.gmra.mrb[0].mxu0 %v3305
    %v3444 = vpop.f32.mrb[0].mxu0
    %v3445 = vadd.f32 0.0, %v3444
    %v3446 = vpop.f32.mrb[0].mxu0
    %3447 = vmatprep.mubr.f32.mxu0 0.0
    %3448 = vmatmul.mubr.f32.gmra.mrb[0].mxu0 %v3308
    %v3449 = vpop.f32.mrb[0].mxu0
    %v3450 = vadd.f32 0.0, %v3449
    %v3451 = vpop.f32.mrb[0].mxu0
    %3452 = vmatprep.mubr.f32.mxu0 0.0
    %3453 = vmatmul.mubr.f32.gmra.mrb[0].mxu0 %v3311
    %v3454 = vpop.f32.mrb[0].mxu0
    %v3455 = vadd.f32 0.0, %v3454
    %v3456 = vpop.f32.mrb[0].mxu0
    %3457 = vdwg.mxu0
    %v3458 = vld [vmem:[#allocation4 + $0x8] sm:$0xf]
    %v3459 = vunpack.c.l.bf16 %v3458
    %v3460 = vld [vmem:[#allocation4 + $0xc] sm:$0xf]
    %v3461 = vunpack.c.l.bf16 %v3460
    %v3463 = vsel %vm3264, %v2878, 0
    %v3466 = vsel %vm3264, %v2881, 0
    %v3469 = vsel %vm3264, %v2886, 0
    %v3472 = vsel %vm3264, %v2889, 0
    %v3475 = vsel %vm3264, %v2894, 0
    %v3478 = vsel %vm3264, %v2897, 0
    %v3481 = vsel %vm3264, %v2902, 0
    %v3484 = vsel %vm3264, %v2905, 0
    %v3487 = vsel %vm3264, %v2910, 0
    %v3490 = vsel %vm3264, %v2913, 0
    %v3493 = vsel %vm3264, %v2918, 0
    %v3496 = vsel %vm3264, %v2921, 0
    %v3499 = vsel %vm3264, %v2926, 0
    %v3502 = vsel %vm3264, %v2929, 0
    %v3505 = vsel %vm3264, %v2934, 0
    %v3508 = vsel %vm3264, %v2937, 0
    %3510 = vmatprep.subr.mxu0 0.0
    %3511 = vmatpush1.msra.mxu0 %v3461
    %3512 = vmatprep.subr.mxu0 0.0
    %3513 = vmatpush1.msra.mxu0 0.0
    %3514 = vmatprep.subr.mxu0 0.0
    %3515 = vmatpush1.msra.mxu0 0.0
    %3516 = vmatprep.subr.mxu0 0.0
    %3517 = vmatpush1.msra.mxu0 0.0
    %3518 = vmatprep.subr.mxu0 0.0
    %3519 = vmatpush1.msra.mxu0 0.0
    %3520 = vmatprep.subr.mxu0 0.0
    %3521 = vmatpush1.msra.mxu0 0.0
    %3522 = vmatprep.subr.mxu0 0.0
    %3523 = vmatpush1.msra.mxu0 0.0
    %3524 = vmatprep.subr.mxu0 0.0
    %3525 = vmatpush1.msra.mxu0 0.0
    %3526 = vmatprep.subr.mxu0 0.0
    %3527 = vmatpush1.msra.mxu0 0.0
    %3528 = vmatprep.subr.mxu0 0.0
    %3529 = vmatpush1.msra.mxu0 0.0
    %3530 = vmatprep.subr.mxu0 0.0
    %3531 = vmatpush1.msra.mxu0 0.0
    %3532 = vmatprep.subr.mxu0 0.0
    %3533 = vmatpush1.msra.mxu0 0.0
    %3534 = vmatprep.subr.mxu0 0.0
    %3535 = vmatpush1.msra.mxu0 0.0
    %3536 = vmatprep.subr.mxu0 0.0
    %3537 = vmatpush1.msra.mxu0 0.0
    %3538 = vmatprep.subr.mxu0 0.0
    %3539 = vmatpush1.msra.mxu0 0.0
    %3540 = vmatprep.subr.mxu0 0.0
    %3541 = vmatpush1.msra.mxu0 0.0
    %3542 = vmatprep.subr.mxu0 0.0
    %3543 = vmatpush1.msra.mxu0 0.0
    %3544 = vmatprep.subr.mxu0 0.0
    %3545 = vmatpush1.msra.mxu0 0.0
    %3546 = vmatprep.subr.mxu0 0.0
    %3547 = vmatpush1.msra.mxu0 0.0
    %3548 = vmatprep.subr.mxu0 0.0
    %3549 = vmatpush1.msra.mxu0 0.0
    %3550 = vmatprep.subr.mxu0 0.0
    %3551 = vmatpush1.msra.mxu0 0.0
    %3552 = vmatprep.subr.mxu0 0.0
    %3553 = vmatpush1.msra.mxu0 0.0
    %3554 = vmatprep.subr.mxu0 0.0
    %3555 = vmatpush1.msra.mxu0 0.0
    %3556 = vmatprep.subr.mxu0 0.0
    %3557 = vmatpush1.msra.mxu0 0.0
    %3558 = vmatprep.subr.mxu0 0.0
    %3559 = vmatpush1.msra.mxu0 0.0
    %3560 = vmatprep.subr.mxu0 0.0
    %3561 = vmatpush1.msra.mxu0 0.0
    %3562 = vmatprep.subr.mxu0 0.0
    %3563 = vmatpush1.msra.mxu0 0.0
    %3564 = vmatprep.subr.mxu0 0.0
    %3565 = vmatpush1.msra.mxu0 0.0
    %3566 = vmatprep.subr.mxu0 0.0
    %3567 = vmatpush1.msra.mxu0 0.0
    %3568 = vmatprep.subr.mxu0 0.0
    %3569 = vmatpush1.msra.mxu0 0.0
    %3570 = vmatprep.subr.mxu0 0.0
    %3571 = vmatpush1.msra.mxu0 0.0
    %3572 = vmatprep.subr.mxu0 0.0
    %3573 = vmatpush1.msra.mxu0 0.0
    %3574 = vmatprep.mubr.f32.mxu0 0.0
    %3575 = vmatmul.mubr.f32.gmra.mrb[0].mxu0 %v3463
    %v3576 = vpop.f32.mrb[0].mxu0
    %v3577 = vadd.f32 0.0, %v3576
    %v3578 = vpop.f32.mrb[0].mxu0
    %3579 = vmatprep.mubr.f32.mxu0 0.0
    %3580 = vmatmul.mubr.f32.gmra.mrb[0].mxu0 %v3466
    %v3581 = vpop.f32.mrb[0].mxu0
    %v3582 = vadd.f32 0.0, %v3581
    %v3583 = vpop.f32.mrb[0].mxu0
    %3584 = vmatprep.mubr.f32.mxu0 0.0
    %3585 = vmatmul.mubr.f32.gmra.mrb[0].mxu0 %v3469
    %v3586 = vpop.f32.mrb[0].mxu0
    %v3587 = vadd.f32 0.0, %v3586
    %v3588 = vpop.f32.mrb[0].mxu0
    %3589 = vmatprep.mubr.f32.mxu0 0.0
    %3590 = vmatmul.mubr.f32.gmra.mrb[0].mxu0 %v3472
    %v3591 = vpop.f32.mrb[0].mxu0
    %v3592 = vadd.f32 0.0, %v3591
    %v3593 = vpop.f32.mrb[0].mxu0
    %3594 = vmatprep.mubr.f32.mxu0 0.0
    %3595 = vmatmul.mubr.f32.gmra.mrb[0].mxu0 %v3475
    %v3596 = vpop.f32.mrb[0].mxu0
    %v3597 = vadd.f32 0.0, %v3596
    %v3598 = vpop.f32.mrb[0].mxu0
    %3599 = vmatprep.mubr.f32.mxu0 0.0
    %3600 = vmatmul.mubr.f32.gmra.mrb[0].mxu0 %v3478
    %v3601 = vpop.f32.mrb[0].mxu0
    %v3602 = vadd.f32 0.0, %v3601
    %v3603 = vpop.f32.mrb[0].mxu0
    %3604 = vmatprep.mubr.f32.mxu0 0.0
    %3605 = vmatmul.mubr.f32.gmra.mrb[0].mxu0 %v3481
    %v3606 = vpop.f32.mrb[0].mxu0
    %v3607 = vadd.f32 0.0, %v3606
    %v3608 = vpop.f32.mrb[0].mxu0
    %3609 = vmatprep.mubr.f32.mxu0 0.0
    %3610 = vmatmul.mubr.f32.gmra.mrb[0].mxu0 %v3484
    %v3611 = vpop.f32.mrb[0].mxu0
    %v3612 = vadd.f32 0.0, %v3611
    %v3613 = vpop.f32.mrb[0].mxu0
    %3614 = vmatprep.mubr.f32.mxu0 0.0
    %3615 = vmatmul.mubr.f32.gmra.mrb[0].mxu0 %v3487
    %v3616 = vpop.f32.mrb[0].mxu0
    %v3617 = vadd.f32 0.0, %v3616
    %v3618 = vpop.f32.mrb[0].mxu0
    %3619 = vmatprep.mubr.f32.mxu0 0.0
    %3620 = vmatmul.mubr.f32.gmra.mrb[0].mxu0 %v3490
    %v3621 = vpop.f32.mrb[0].mxu0
    %v3622 = vadd.f32 0.0, %v3621
    %v3623 = vpop.f32.mrb[0].mxu0
    %3624 = vmatprep.mubr.f32.mxu0 0.0
    %3625 = vmatmul.mubr.f32.gmra.mrb[0].mxu0 %v3493
    %v3626 = vpop.f32.mrb[0].mxu0
    %v3627 = vadd.f32 0.0, %v3626
    %v3628 = vpop.f32.mrb[0].mxu0
    %3629 = vmatprep.mubr.f32.mxu0 0.0
    %3630 = vmatmul.mubr.f32.gmra.mrb[0].mxu0 %v3496
    %v3631 = vpop.f32.mrb[0].mxu0
    %v3632 = vadd.f32 0.0, %v3631
    %v3633 = vpop.f32.mrb[0].mxu0
    %3634 = vmatprep.mubr.f32.mxu0 0.0
    %3635 = vmatmul.mubr.f32.gmra.mrb[0].mxu0 %v3499
    %v3636 = vpop.f32.mrb[0].mxu0
    %v3637 = vadd.f32 0.0, %v3636
    %v3638 = vpop.f32.mrb[0].mxu0
    %3639 = vmatprep.mubr.f32.mxu0 0.0
    %3640 = vmatmul.mubr.f32.gmra.mrb[0].mxu0 %v3502
    %v3641 = vpop.f32.mrb[0].mxu0
    %v3642 = vadd.f32 0.0, %v3641
    %v3643 = vpop.f32.mrb[0].mxu0
    %3644 = vmatprep.mubr.f32.mxu0 0.0
    %3645 = vmatmul.mubr.f32.gmra.mrb[0].mxu0 %v3505
    %v3646 = vpop.f32.mrb[0].mxu0
    %v3647 = vadd.f32 0.0, %v3646
    %v3648 = vpop.f32.mrb[0].mxu0
    %3649 = vmatprep.mubr.f32.mxu0 0.0
    %3650 = vmatmul.mubr.f32.gmra.mrb[0].mxu0 %v3508
    %v3651 = vpop.f32.mrb[0].mxu0
    %v3652 = vadd.f32 0.0, %v3651
    %v3653 = vpop.f32.mrb[0].mxu0
    %3654 = vdwg.mxu0
    %v3655 = vld [vmem:[#allocation4 + $0x10] sm:$0xf]
    %v3656 = vunpack.c.l.bf16 %v3655
    %v3657 = vld [vmem:[#allocation4 + $0x14] sm:$0xf]
    %v3658 = vunpack.c.l.bf16 %v3657
    %v3660 = vsel %vm3264, %v3006, 0
    %v3663 = vsel %vm3264, %v3009, 0
    %v3666 = vsel %vm3264, %v3014, 0
    %v3669 = vsel %vm3264, %v3017, 0
    %v3672 = vsel %vm3264, %v3022, 0
    %v3675 = vsel %vm3264, %v3025, 0
    %v3678 = vsel %vm3264, %v3030, 0
    %v3681 = vsel %vm3264, %v3033, 0
    %v3684 = vsel %vm3264, %v3038, 0
    %v3687 = vsel %vm3264, %v3041, 0
    %v3690 = vsel %vm3264, %v3046, 0
    %v3693 = vsel %vm3264, %v3049, 0
    %v3696 = vsel %vm3264, %v3054, 0
    %v3699 = vsel %vm3264, %v3057, 0
    %v3702 = vsel %vm3264, %v3062, 0
    %v3705 = vsel %vm3264, %v3065, 0
    %3707 = vmatprep.subr.mxu0 0.0
    %3708 = vmatpush1.msra.mxu0 %v3658
    %3709 = vmatprep.subr.mxu0 0.0
    %3710 = vmatpush1.msra.mxu0 0.0
    %3711 = vmatprep.subr.mxu0 0.0
    %3712 = vmatpush1.msra.mxu0 0.0
    %3713 = vmatprep.subr.mxu0 0.0
    %3714 = vmatpush1.msra.mxu0 0.0
    %3715 = vmatprep.subr.mxu0 0.0
    %3716 = vmatpush1.msra.mxu0 0.0
    %3717 = vmatprep.subr.mxu0 0.0
    %3718 = vmatpush1.msra.mxu0 0.0
    %3719 = vmatprep.subr.mxu0 0.0
    %3720 = vmatpush1.msra.mxu0 0.0
    %3721 = vmatprep.subr.mxu0 0.0
    %3722 = vmatpush1.msra.mxu0 0.0
    %3723 = vmatprep.subr.mxu0 0.0
    %3724 = vmatpush1.msra.mxu0 0.0
    %3725 = vmatprep.subr.mxu0 0.0
    %3726 = vmatpush1.msra.mxu0 0.0
    %3727 = vmatprep.subr.mxu0 0.0
    %3728 = vmatpush1.msra.mxu0 0.0
    %3729 = vmatprep.subr.mxu0 0.0
    %3730 = vmatpush1.msra.mxu0 0.0
    %3731 = vmatprep.subr.mxu0 0.0
    %3732 = vmatpush1.msra.mxu0 0.0
    %3733 = vmatprep.subr.mxu0 0.0
    %3734 = vmatpush1.msra.mxu0 0.0
    %3735 = vmatprep.subr.mxu0 0.0
    %3736 = vmatpush1.msra.mxu0 0.0
    %3737 = vmatprep.subr.mxu0 0.0
    %3738 = vmatpush1.msra.mxu0 0.0
    %3739 = vmatprep.subr.mxu0 0.0
    %3740 = vmatpush1.msra.mxu0 0.0
    %3741 = vmatprep.subr.mxu0 0.0
    %3742 = vmatpush1.msra.mxu0 0.0
    %3743 = vmatprep.subr.mxu0 0.0
    %3744 = vmatpush1.msra.mxu0 0.0
    %3745 = vmatprep.subr.mxu0 0.0
    %3746 = vmatpush1.msra.mxu0 0.0
    %3747 = vmatprep.subr.mxu0 0.0
    %3748 = vmatpush1.msra.mxu0 0.0
    %3749 = vmatprep.subr.mxu0 0.0
    %3750 = vmatpush1.msra.mxu0 0.0
    %3751 = vmatprep.subr.mxu0 0.0
    %3752 = vmatpush1.msra.mxu0 0.0
    %3753 = vmatprep.subr.mxu0 0.0
    %3754 = vmatpush1.msra.mxu0 0.0
    %3755 = vmatprep.subr.mxu0 0.0
    %3756 = vmatpush1.msra.mxu0 0.0
    %3757 = vmatprep.subr.mxu0 0.0
    %3758 = vmatpush1.msra.mxu0 0.0
    %3759 = vmatprep.subr.mxu0 0.0
    %3760 = vmatpush1.msra.mxu0 0.0
    %3761 = vmatprep.subr.mxu0 0.0
    %3762 = vmatpush1.msra.mxu0 0.0
    %3763 = vmatprep.subr.mxu0 0.0
    %3764 = vmatpush1.msra.mxu0 0.0
    %3765 = vmatprep.subr.mxu0 0.0
    %3766 = vmatpush1.msra.mxu0 0.0
    %3767 = vmatprep.subr.mxu0 0.0
    %3768 = vmatpush1.msra.mxu0 0.0
    %3769 = vmatprep.subr.mxu0 0.0
    %3770 = vmatpush1.msra.mxu0 0.0
    %3771 = vmatprep.mubr.f32.mxu0 0.0
    %3772 = vmatmul.mubr.f32.gmra.mrb[0].mxu0 %v3660
    %v3773 = vpop.f32.mrb[0].mxu0
    %v3774 = vadd.f32 0.0, %v3773
    %v3775 = vpop.f32.mrb[0].mxu0
    %3776 = vmatprep.mubr.f32.mxu0 0.0
    %3777 = vmatmul.mubr.f32.gmra.mrb[0].mxu0 %v3663
    %v3778 = vpop.f32.mrb[0].mxu0
    %v3779 = vadd.f32 0.0, %v3778
    %v3780 = vpop.f32.mrb[0].mxu0
    %3781 = vmatprep.mubr.f32.mxu0 0.0
    %3782 = vmatmul.mubr.f32.gmra.mrb[0].mxu0 %v3666
    %v3783 = vpop.f32.mrb[0].mxu0
    %v3784 = vadd.f32 0.0, %v3783
    %v3785 = vpop.f32.mrb[0].mxu0
    %3786 = vmatprep.mubr.f32.mxu0 0.0
    %3787 = vmatmul.mubr.f32.gmra.mrb[0].mxu0 %v3669
    %v3788 = vpop.f32.mrb[0].mxu0
    %v3789 = vadd.f32 0.0, %v3788
    %v3790 = vpop.f32.mrb[0].mxu0
    %3791 = vmatprep.mubr.f32.mxu0 0.0
    %3792 = vmatmul.mubr.f32.gmra.mrb[0].mxu0 %v3672
    %v3793 = vpop.f32.mrb[0].mxu0
    %v3794 = vadd.f32 0.0, %v3793
    %v3795 = vpop.f32.mrb[0].mxu0
    %3796 = vmatprep.mubr.f32.mxu0 0.0
    %3797 = vmatmul.mubr.f32.gmra.mrb[0].mxu0 %v3675
    %v3798 = vpop.f32.mrb[0].mxu0
    %v3799 = vadd.f32 0.0, %v3798
    %v3800 = vpop.f32.mrb[0].mxu0
    %3801 = vmatprep.mubr.f32.mxu0 0.0
    %3802 = vmatmul.mubr.f32.gmra.mrb[0].mxu0 %v3678
    %v3803 = vpop.f32.mrb[0].mxu0
    %v3804 = vadd.f32 0.0, %v3803
    %v3805 = vpop.f32.mrb[0].mxu0
    %3806 = vmatprep.mubr.f32.mxu0 0.0
    %3807 = vmatmul.mubr.f32.gmra.mrb[0].mxu0 %v3681
    %v3808 = vpop.f32.mrb[0].mxu0
    %v3809 = vadd.f32 0.0, %v3808
    %v3810 = vpop.f32.mrb[0].mxu0
    %3811 = vmatprep.mubr.f32.mxu0 0.0
    %3812 = vmatmul.mubr.f32.gmra.mrb[0].mxu0 %v3684
    %v3813 = vpop.f32.mrb[0].mxu0
    %v3814 = vadd.f32 0.0, %v3813
    %v3815 = vpop.f32.mrb[0].mxu0
    %3816 = vmatprep.mubr.f32.mxu0 0.0
    %3817 = vmatmul.mubr.f32.gmra.mrb[0].mxu0 %v3687
    %v3818 = vpop.f32.mrb[0].mxu0
    %v3819 = vadd.f32 0.0, %v3818
    %v3820 = vpop.f32.mrb[0].mxu0
    %3821 = vmatprep.mubr.f32.mxu0 0.0
    %3822 = vmatmul.mubr.f32.gmra.mrb[0].mxu0 %v3690
    %v3823 = vpop.f32.mrb[0].mxu0
    %v3824 = vadd.f32 0.0, %v3823
    %v3825 = vpop.f32.mrb[0].mxu0
    %3826 = vmatprep.mubr.f32.mxu0 0.0
    %3827 = vmatmul.mubr.f32.gmra.mrb[0].mxu0 %v3693
    %v3828 = vpop.f32.mrb[0].mxu0
    %v3829 = vadd.f32 0.0, %v3828
    %v3830 = vpop.f32.mrb[0].mxu0
    %3831 = vmatprep.mubr.f32.mxu0 0.0
    %3832 = vmatmul.mubr.f32.gmra.mrb[0].mxu0 %v3696
    %v3833 = vpop.f32.mrb[0].mxu0
    %v3834 = vadd.f32 0.0, %v3833
    %v3835 = vpop.f32.mrb[0].mxu0
    %3836 = vmatprep.mubr.f32.mxu0 0.0
    %3837 = vmatmul.mubr.f32.gmra.mrb[0].mxu0 %v3699
    %v3838 = vpop.f32.mrb[0].mxu0
    %v3839 = vadd.f32 0.0, %v3838
    %v3840 = vpop.f32.mrb[0].mxu0
    %3841 = vmatprep.mubr.f32.mxu0 0.0
    %3842 = vmatmul.mubr.f32.gmra.mrb[0].mxu0 %v3702
    %v3843 = vpop.f32.mrb[0].mxu0
    %v3844 = vadd.f32 0.0, %v3843
    %v3845 = vpop.f32.mrb[0].mxu0
    %3846 = vmatprep.mubr.f32.mxu0 0.0
    %3847 = vmatmul.mubr.f32.gmra.mrb[0].mxu0 %v3705
    %v3848 = vpop.f32.mrb[0].mxu0
    %v3849 = vadd.f32 0.0, %v3848
    %v3850 = vpop.f32.mrb[0].mxu0
    %3851 = vdwg.mxu0
    %v3852 = vld [vmem:[#allocation4 + $0x18] sm:$0xf]
    %v3853 = vunpack.c.l.bf16 %v3852
    %v3854 = vld [vmem:[#allocation4 + $0x1c] sm:$0xf]
    %v3855 = vunpack.c.l.bf16 %v3854
    %v3857 = vsel %vm3264, %v3134, 0
    %v3860 = vsel %vm3264, %v3137, 0
    %v3863 = vsel %vm3264, %v3142, 0
    %v3866 = vsel %vm3264, %v3145, 0
    %v3869 = vsel %vm3264, %v3150, 0
    %v3872 = vsel %vm3264, %v3153, 0
    %v3875 = vsel %vm3264, %v3158, 0
    %v3878 = vsel %vm3264, %v3161, 0
    %v3881 = vsel %vm3264, %v3166, 0
    %v3884 = vsel %vm3264, %v3169, 0
    %v3887 = vsel %vm3264, %v3174, 0
    %v3890 = vsel %vm3264, %v3177, 0
    %v3893 = vsel %vm3264, %v3182, 0
    %v3896 = vsel %vm3264, %v3185, 0
    %v3899 = vsel %vm3264, %v3190, 0
    %v3902 = vsel %vm3264, %v3193, 0
    %3904 = vmatprep.subr.mxu0 0.0
    %3905 = vmatpush1.msra.mxu0 %v3855
    %3906 = vmatprep.subr.mxu0 0.0
    %3907 = vmatpush1.msra.mxu0 0.0
    %3908 = vmatprep.subr.mxu0 0.0
    %3909 = vmatpush1.msra.mxu0 0.0
    %3910 = vmatprep.subr.mxu0 0.0
    %3911 = vmatpush1.msra.mxu0 0.0
    %3912 = vmatprep.subr.mxu0 0.0
    %3913 = vmatpush1.msra.mxu0 0.0
    %3914 = vmatprep.subr.mxu0 0.0
    %3915 = vmatpush1.msra.mxu0 0.0
    %3916 = vmatprep.subr.mxu0 0.0
    %3917 = vmatpush1.msra.mxu0 0.0
    %3918 = vmatprep.subr.mxu0 0.0
    %3919 = vmatpush1.msra.mxu0 0.0
    %3920 = vmatprep.subr.mxu0 0.0
    %3921 = vmatpush1.msra.mxu0 0.0
    %3922 = vmatprep.subr.mxu0 0.0
    %3923 = vmatpush1.msra.mxu0 0.0
    %3924 = vmatprep.subr.mxu0 0.0
    %3925 = vmatpush1.msra.mxu0 0.0
    %3926 = vmatprep.subr.mxu0 0.0
    %3927 = vmatpush1.msra.mxu0 0.0
    %3928 = vmatprep.subr.mxu0 0.0
    %3929 = vmatpush1.msra.mxu0 0.0
    %3930 = vmatprep.subr.mxu0 0.0
    %3931 = vmatpush1.msra.mxu0 0.0
    %3932 = vmatprep.subr.mxu0 0.0
    %3933 = vmatpush1.msra.mxu0 0.0
    %3934 = vmatprep.subr.mxu0 0.0
    %3935 = vmatpush1.msra.mxu0 0.0
    %3936 = vmatprep.subr.mxu0 0.0
    %3937 = vmatpush1.msra.mxu0 0.0
    %3938 = vmatprep.subr.mxu0 0.0
    %3939 = vmatpush1.msra.mxu0 0.0
    %3940 = vmatprep.subr.mxu0 0.0
    %3941 = vmatpush1.msra.mxu0 0.0
    %3942 = vmatprep.subr.mxu0 0.0
    %3943 = vmatpush1.msra.mxu0 0.0
    %3944 = vmatprep.subr.mxu0 0.0
    %3945 = vmatpush1.msra.mxu0 0.0
    %3946 = vmatprep.subr.mxu0 0.0
    %3947 = vmatpush1.msra.mxu0 0.0
    %3948 = vmatprep.subr.mxu0 0.0
    %3949 = vmatpush1.msra.mxu0 0.0
    %3950 = vmatprep.subr.mxu0 0.0
    %3951 = vmatpush1.msra.mxu0 0.0
    %3952 = vmatprep.subr.mxu0 0.0
    %3953 = vmatpush1.msra.mxu0 0.0
    %3954 = vmatprep.subr.mxu0 0.0
    %3955 = vmatpush1.msra.mxu0 0.0
    %3956 = vmatprep.subr.mxu0 0.0
    %3957 = vmatpush1.msra.mxu0 0.0
    %3958 = vmatprep.subr.mxu0 0.0
    %3959 = vmatpush1.msra.mxu0 0.0
    %3960 = vmatprep.subr.mxu0 0.0
    %3961 = vmatpush1.msra.mxu0 0.0
    %3962 = vmatprep.subr.mxu0 0.0
    %3963 = vmatpush1.msra.mxu0 0.0
    %3964 = vmatprep.subr.mxu0 0.0
    %3965 = vmatpush1.msra.mxu0 0.0
    %3966 = vmatprep.subr.mxu0 0.0
    %3967 = vmatpush1.msra.mxu0 0.0
    %3968 = vmatprep.mubr.f32.mxu0 0.0
    %3969 = vmatmul.mubr.f32.gmra.mrb[0].mxu0 %v3857
    %v3970 = vpop.f32.mrb[0].mxu0
    %v3971 = vadd.f32 0.0, %v3970
    %v3972 = vpop.f32.mrb[0].mxu0
    %3973 = vmatprep.mubr.f32.mxu0 0.0
    %3974 = vmatmul.mubr.f32.gmra.mrb[0].mxu0 %v3860
    %v3975 = vpop.f32.mrb[0].mxu0
    %v3976 = vadd.f32 0.0, %v3975
    %v3977 = vpop.f32.mrb[0].mxu0
    %3978 = vmatprep.mubr.f32.mxu0 0.0
    %3979 = vmatmul.mubr.f32.gmra.mrb[0].mxu0 %v3863
    %v3980 = vpop.f32.mrb[0].mxu0
    %v3981 = vadd.f32 0.0, %v3980
    %v3982 = vpop.f32.mrb[0].mxu0
    %3983 = vmatprep.mubr.f32.mxu0 0.0
    %3984 = vmatmul.mubr.f32.gmra.mrb[0].mxu0 %v3866
    %v3985 = vpop.f32.mrb[0].mxu0
    %v3986 = vadd.f32 0.0, %v3985
    %v3987 = vpop.f32.mrb[0].mxu0
    %3988 = vmatprep.mubr.f32.mxu0 0.0
    %3989 = vmatmul.mubr.f32.gmra.mrb[0].mxu0 %v3869
    %v3990 = vpop.f32.mrb[0].mxu0
    %v3991 = vadd.f32 0.0, %v3990
    %v3992 = vpop.f32.mrb[0].mxu0
    %3993 = vmatprep.mubr.f32.mxu0 0.0
    %3994 = vmatmul.mubr.f32.gmra.mrb[0].mxu0 %v3872
    %v3995 = vpop.f32.mrb[0].mxu0
    %v3996 = vadd.f32 0.0, %v3995
    %v3997 = vpop.f32.mrb[0].mxu0
    %3998 = vmatprep.mubr.f32.mxu0 0.0
    %3999 = vmatmul.mubr.f32.gmra.mrb[0].mxu0 %v3875
    %v4000 = vpop.f32.mrb[0].mxu0
    %v4001 = vadd.f32 0.0, %v4000
    %v4002 = vpop.f32.mrb[0].mxu0
    %4003 = vmatprep.mubr.f32.mxu0 0.0
    %4004 = vmatmul.mubr.f32.gmra.mrb[0].mxu0 %v3878
    %v4005 = vpop.f32.mrb[0].mxu0
    %v4006 = vadd.f32 0.0, %v4005
    %v4007 = vpop.f32.mrb[0].mxu0
    %4008 = vmatprep.mubr.f32.mxu0 0.0
    %4009 = vmatmul.mubr.f32.gmra.mrb[0].mxu0 %v3881
    %v4010 = vpop.f32.mrb[0].mxu0
    %v4011 = vadd.f32 0.0, %v4010
    %v4012 = vpop.f32.mrb[0].mxu0
    %4013 = vmatprep.mubr.f32.mxu0 0.0
    %4014 = vmatmul.mubr.f32.gmra.mrb[0].mxu0 %v3884
    %v4015 = vpop.f32.mrb[0].mxu0
    %v4016 = vadd.f32 0.0, %v4015
    %v4017 = vpop.f32.mrb[0].mxu0
    %4018 = vmatprep.mubr.f32.mxu0 0.0
    %4019 = vmatmul.mubr.f32.gmra.mrb[0].mxu0 %v3887
    %v4020 = vpop.f32.mrb[0].mxu0
    %v4021 = vadd.f32 0.0, %v4020
    %v4022 = vpop.f32.mrb[0].mxu0
    %4023 = vmatprep.mubr.f32.mxu0 0.0
    %4024 = vmatmul.mubr.f32.gmra.mrb[0].mxu0 %v3890
    %v4025 = vpop.f32.mrb[0].mxu0
    %v4026 = vadd.f32 0.0, %v4025
    %v4027 = vpop.f32.mrb[0].mxu0
    %4028 = vmatprep.mubr.f32.mxu0 0.0
    %4029 = vmatmul.mubr.f32.gmra.mrb[0].mxu0 %v3893
    %v4030 = vpop.f32.mrb[0].mxu0
    %v4031 = vadd.f32 0.0, %v4030
    %v4032 = vpop.f32.mrb[0].mxu0
    %4033 = vmatprep.mubr.f32.mxu0 0.0
    %4034 = vmatmul.mubr.f32.gmra.mrb[0].mxu0 %v3896
    %v4035 = vpop.f32.mrb[0].mxu0
    %v4036 = vadd.f32 0.0, %v4035
    %v4037 = vpop.f32.mrb[0].mxu0
    %4038 = vmatprep.mubr.f32.mxu0 0.0
    %4039 = vmatmul.mubr.f32.gmra.mrb[0].mxu0 %v3899
    %v4040 = vpop.f32.mrb[0].mxu0
    %v4041 = vadd.f32 0.0, %v4040
    %v4042 = vpop.f32.mrb[0].mxu0
    %4043 = vmatprep.mubr.f32.mxu0 0.0
    %4044 = vmatmul.mubr.f32.gmra.mrb[0].mxu0 %v3902
    %v4045 = vpop.f32.mrb[0].mxu0
    %v4046 = vadd.f32 0.0, %v4045
    %v4047 = vpop.f32.mrb[0].mxu0
    %4048 = vdwg.mxu0
    %v4049 = vld [vmem:[#allocation4 + $0x20] sm:$0xf]
    %v4050 = vunpack.c.l.bf16 %v4049
    %v4052 = vsel %vm3264, %v3198, 0
    %v4055 = vsel %vm3264, %v3201, 0
    %v4058 = vsel %vm3264, %v3206, 0
    %v4061 = vsel %vm3264, %v3209, 0
    %v4064 = vsel %vm3264, %v3214, 0
    %v4067 = vsel %vm3264, %v3217, 0
    %v4070 = vsel %vm3264, %v3222, 0
    %v4073 = vsel %vm3264, %v3225, 0
    %v4076 = vsel %vm3264, %v3230, 0
    %v4079 = vsel %vm3264, %v3233, 0
    %v4082 = vsel %vm3264, %v3238, 0
    %v4085 = vsel %vm3264, %v3241, 0
    %v4088 = vsel %vm3264, %v3246, 0
    %v4091 = vsel %vm3264, %v3249, 0
    %v4094 = vsel %vm3264, %v3254, 0
    %v4097 = vsel %vm3264, %v3257, 0
    %4099 = vmatprep.subr.mxu0 0.0
    %4100 = vmatpush1.msra.mxu0 %v4050
    %4101 = vmatprep.subr.mxu0 0.0
    %4102 = vmatpush1.msra.mxu0 0.0
    %4103 = vmatprep.subr.mxu0 0.0
    %4104 = vmatpush1.msra.mxu0 0.0
    %4105 = vmatprep.subr.mxu0 0.0
    %4106 = vmatpush1.msra.mxu0 0.0
    %4107 = vmatprep.subr.mxu0 0.0
    %4108 = vmatpush1.msra.mxu0 0.0
    %4109 = vmatprep.subr.mxu0 0.0
    %4110 = vmatpush1.msra.mxu0 0.0
    %4111 = vmatprep.subr.mxu0 0.0
    %4112 = vmatpush1.msra.mxu0 0.0
    %4113 = vmatprep.subr.mxu0 0.0
    %4114 = vmatpush1.msra.mxu0 0.0
    %4115 = vmatprep.subr.mxu0 0.0
    %4116 = vmatpush1.msra.mxu0 0.0
    %4117 = vmatprep.subr.mxu0 0.0
    %4118 = vmatpush1.msra.mxu0 0.0
    %4119 = vmatprep.subr.mxu0 0.0
    %4120 = vmatpush1.msra.mxu0 0.0
    %4121 = vmatprep.subr.mxu0 0.0
    %4122 = vmatpush1.msra.mxu0 0.0
    %4123 = vmatprep.subr.mxu0 0.0
    %4124 = vmatpush1.msra.mxu0 0.0
    %4125 = vmatprep.subr.mxu0 0.0
    %4126 = vmatpush1.msra.mxu0 0.0
    %4127 = vmatprep.subr.mxu0 0.0
    %4128 = vmatpush1.msra.mxu0 0.0
    %4129 = vmatprep.subr.mxu0 0.0
    %4130 = vmatpush1.msra.mxu0 0.0
    %4131 = vmatprep.subr.mxu0 0.0
    %4132 = vmatpush1.msra.mxu0 0.0
    %4133 = vmatprep.subr.mxu0 0.0
    %4134 = vmatpush1.msra.mxu0 0.0
    %4135 = vmatprep.subr.mxu0 0.0
    %4136 = vmatpush1.msra.mxu0 0.0
    %4137 = vmatprep.subr.mxu0 0.0
    %4138 = vmatpush1.msra.mxu0 0.0
    %4139 = vmatprep.subr.mxu0 0.0
    %4140 = vmatpush1.msra.mxu0 0.0
    %4141 = vmatprep.subr.mxu0 0.0
    %4142 = vmatpush1.msra.mxu0 0.0
    %4143 = vmatprep.subr.mxu0 0.0
    %4144 = vmatpush1.msra.mxu0 0.0
    %4145 = vmatprep.subr.mxu0 0.0
    %4146 = vmatpush1.msra.mxu0 0.0
    %4147 = vmatprep.subr.mxu0 0.0
    %4148 = vmatpush1.msra.mxu0 0.0
    %4149 = vmatprep.subr.mxu0 0.0
    %4150 = vmatpush1.msra.mxu0 0.0
    %4151 = vmatprep.subr.mxu0 0.0
    %4152 = vmatpush1.msra.mxu0 0.0
    %4153 = vmatprep.subr.mxu0 0.0
    %4154 = vmatpush1.msra.mxu0 0.0
    %4155 = vmatprep.subr.mxu0 0.0
    %4156 = vmatpush1.msra.mxu0 0.0
    %4157 = vmatprep.subr.mxu0 0.0
    %4158 = vmatpush1.msra.mxu0 0.0
    %4159 = vmatprep.subr.mxu0 0.0
    %4160 = vmatpush1.msra.mxu0 0.0
    %4161 = vmatprep.subr.mxu0 0.0
    %4162 = vmatpush1.msra.mxu0 0.0
    %4163 = vmatprep.mubr.f32.mxu0 0.0
    %4164 = vmatmul.mubr.f32.gmra.mrb[0].mxu0 %v4052
    %v4165 = vpop.f32.mrb[0].mxu0
    %v4166 = vadd.f32 0.0, %v4165
    %v4167 = vpop.f32.mrb[0].mxu0
    %4168 = vmatprep.mubr.f32.mxu0 0.0
    %4169 = vmatmul.mubr.f32.gmra.mrb[0].mxu0 %v4055
    %v4170 = vpop.f32.mrb[0].mxu0
    %v4171 = vadd.f32 0.0, %v4170
    %v4172 = vpop.f32.mrb[0].mxu0
    %4173 = vmatprep.mubr.f32.mxu0 0.0
    %4174 = vmatmul.mubr.f32.gmra.mrb[0].mxu0 %v4058
    %v4175 = vpop.f32.mrb[0].mxu0
    %v4176 = vadd.f32 0.0, %v4175
    %v4177 = vpop.f32.mrb[0].mxu0
    %4178 = vmatprep.mubr.f32.mxu0 0.0
    %4179 = vmatmul.mubr.f32.gmra.mrb[0].mxu0 %v4061
    %v4180 = vpop.f32.mrb[0].mxu0
    %v4181 = vadd.f32 0.0, %v4180
    %v4182 = vpop.f32.mrb[0].mxu0
    %4183 = vmatprep.mubr.f32.mxu0 0.0
    %4184 = vmatmul.mubr.f32.gmra.mrb[0].mxu0 %v4064
    %v4185 = vpop.f32.mrb[0].mxu0
    %v4186 = vadd.f32 0.0, %v4185
    %v4187 = vpop.f32.mrb[0].mxu0
    %4188 = vmatprep.mubr.f32.mxu0 0.0
    %4189 = vmatmul.mubr.f32.gmra.mrb[0].mxu0 %v4067
    %v4190 = vpop.f32.mrb[0].mxu0
    %v4191 = vadd.f32 0.0, %v4190
    %v4192 = vpop.f32.mrb[0].mxu0
    %4193 = vmatprep.mubr.f32.mxu0 0.0
    %4194 = vmatmul.mubr.f32.gmra.mrb[0].mxu0 %v4070
    %v4195 = vpop.f32.mrb[0].mxu0
    %v4196 = vadd.f32 0.0, %v4195
    %v4197 = vpop.f32.mrb[0].mxu0
    %4198 = vmatprep.mubr.f32.mxu0 0.0
    %4199 = vmatmul.mubr.f32.gmra.mrb[0].mxu0 %v4073
    %v4200 = vpop.f32.mrb[0].mxu0
    %v4201 = vadd.f32 0.0, %v4200
    %v4202 = vpop.f32.mrb[0].mxu0
    %4203 = vmatprep.mubr.f32.mxu0 0.0
    %4204 = vmatmul.mubr.f32.gmra.mrb[0].mxu0 %v4076
    %v4205 = vpop.f32.mrb[0].mxu0
    %v4206 = vadd.f32 0.0, %v4205
    %v4207 = vpop.f32.mrb[0].mxu0
    %4208 = vmatprep.mubr.f32.mxu0 0.0
    %4209 = vmatmul.mubr.f32.gmra.mrb[0].mxu0 %v4079
    %v4210 = vpop.f32.mrb[0].mxu0
    %v4211 = vadd.f32 0.0, %v4210
    %v4212 = vpop.f32.mrb[0].mxu0
    %4213 = vmatprep.mubr.f32.mxu0 0.0
    %4214 = vmatmul.mubr.f32.gmra.mrb[0].mxu0 %v4082
    %v4215 = vpop.f32.mrb[0].mxu0
    %v4216 = vadd.f32 0.0, %v4215
    %v4217 = vpop.f32.mrb[0].mxu0
    %4218 = vmatprep.mubr.f32.mxu0 0.0
    %4219 = vmatmul.mubr.f32.gmra.mrb[0].mxu0 %v4085
    %v4220 = vpop.f32.mrb[0].mxu0
    %v4221 = vadd.f32 0.0, %v4220
    %v4222 = vpop.f32.mrb[0].mxu0
    %4223 = vmatprep.mubr.f32.mxu0 0.0
    %4224 = vmatmul.mubr.f32.gmra.mrb[0].mxu0 %v4088
    %v4225 = vpop.f32.mrb[0].mxu0
    %v4226 = vadd.f32 0.0, %v4225
    %v4227 = vpop.f32.mrb[0].mxu0
    %4228 = vmatprep.mubr.f32.mxu0 0.0
    %4229 = vmatmul.mubr.f32.gmra.mrb[0].mxu0 %v4091
    %v4230 = vpop.f32.mrb[0].mxu0
    %v4231 = vadd.f32 0.0, %v4230
    %v4232 = vpop.f32.mrb[0].mxu0
    %4233 = vmatprep.mubr.f32.mxu0 0.0
    %4234 = vmatmul.mubr.f32.gmra.mrb[0].mxu0 %v4094
    %v4235 = vpop.f32.mrb[0].mxu0
    %v4236 = vadd.f32 0.0, %v4235
    %v4237 = vpop.f32.mrb[0].mxu0
    %4238 = vmatprep.mubr.f32.mxu0 0.0
    %4239 = vmatmul.mubr.f32.gmra.mrb[0].mxu0 %v4097
    %v4240 = vpop.f32.mrb[0].mxu0
    %v4241 = vadd.f32 0.0, %v4240
    %v4242 = vpop.f32.mrb[0].mxu0
    %4243 = vdwg.mxu0
    %v4245 = vsel %vm3264, %v2686, 0
    %v4248 = vsel %vm3264, %v2689, 0
    %v4251 = vsel %vm3264, %v2694, 0
    %v4254 = vsel %vm3264, %v2697, 0
    %v4257 = vsel %vm3264, %v2702, 0
    %v4260 = vsel %vm3264, %v2705, 0
    %v4263 = vsel %vm3264, %v2710, 0
    %v4266 = vsel %vm3264, %v2713, 0
    %v4269 = vsel %vm3264, %v2718, 0
    %v4272 = vsel %vm3264, %v2721, 0
    %v4275 = vsel %vm3264, %v2726, 0
    %v4278 = vsel %vm3264, %v2729, 0
    %v4281 = vsel %vm3264, %v2734, 0
    %v4284 = vsel %vm3264, %v2737, 0
    %v4287 = vsel %vm3264, %v2742, 0
    %v4290 = vsel %vm3264, %v2745, 0
    %4292 = vmatprep.subr.mxu0 0.0
    %4293 = vmatpush1.msra.mxu0 %v3261
    %4294 = vmatprep.subr.mxu0 0.0
    %4295 = vmatpush1.msra.mxu0 0.0
    %4296 = vmatprep.subr.mxu0 0.0
    %4297 = vmatpush1.msra.mxu0 0.0
    %4298 = vmatprep.subr.mxu0 0.0
    %4299 = vmatpush1.msra.mxu0 0.0
    %4300 = vmatprep.subr.mxu0 0.0
    %4301 = vmatpush1.msra.mxu0 0.0
    %4302 = vmatprep.subr.mxu0 0.0
    %4303 = vmatpush1.msra.mxu0 0.0
    %4304 = vmatprep.subr.mxu0 0.0
    %4305 = vmatpush1.msra.mxu0 0.0
    %4306 = vmatprep.subr.mxu0 0.0
    %4307 = vmatpush1.msra.mxu0 0.0
    %4308 = vmatprep.subr.mxu0 0.0
    %4309 = vmatpush1.msra.mxu0 0.0
    %4310 = vmatprep.subr.mxu0 0.0
    %4311 = vmatpush1.msra.mxu0 0.0
    %4312 = vmatprep.subr.mxu0 0.0
    %4313 = vmatpush1.msra.mxu0 0.0
    %4314 = vmatprep.subr.mxu0 0.0
    %4315 = vmatpush1.msra.mxu0 0.0
    %4316 = vmatprep.subr.mxu0 0.0
    %4317 = vmatpush1.msra.mxu0 0.0
    %4318 = vmatprep.subr.mxu0 0.0
    %4319 = vmatpush1.msra.mxu0 0.0
    %4320 = vmatprep.subr.mxu0 0.0
    %4321 = vmatpush1.msra.mxu0 0.0
    %4322 = vmatprep.subr.mxu0 0.0
    %4323 = vmatpush1.msra.mxu0 0.0
    %4324 = vmatprep.subr.mxu0 0.0
    %4325 = vmatpush1.msra.mxu0 0.0
    %4326 = vmatprep.subr.mxu0 0.0
    %4327 = vmatpush1.msra.mxu0 0.0
    %4328 = vmatprep.subr.mxu0 0.0
    %4329 = vmatpush1.msra.mxu0 0.0
    %4330 = vmatprep.subr.mxu0 0.0
    %4331 = vmatpush1.msra.mxu0 0.0
    %4332 = vmatprep.subr.mxu0 0.0
    %4333 = vmatpush1.msra.mxu0 0.0
    %4334 = vmatprep.subr.mxu0 0.0
    %4335 = vmatpush1.msra.mxu0 0.0
    %4336 = vmatprep.subr.mxu0 0.0
    %4337 = vmatpush1.msra.mxu0 0.0
    %4338 = vmatprep.subr.mxu0 0.0
    %4339 = vmatpush1.msra.mxu0 0.0
    %4340 = vmatprep.subr.mxu0 0.0
    %4341 = vmatpush1.msra.mxu0 0.0
    %4342 = vmatprep.subr.mxu0 0.0
    %4343 = vmatpush1.msra.mxu0 0.0
    %4344 = vmatprep.subr.mxu0 0.0
    %4345 = vmatpush1.msra.mxu0 0.0
    %4346 = vmatprep.subr.mxu0 0.0
    %4347 = vmatpush1.msra.mxu0 0.0
    %4348 = vmatprep.subr.mxu0 0.0
    %4349 = vmatpush1.msra.mxu0 0.0
    %4350 = vmatprep.subr.mxu0 0.0
    %4351 = vmatpush1.msra.mxu0 0.0
    %4352 = vmatprep.subr.mxu0 0.0
    %4353 = vmatpush1.msra.mxu0 0.0
    %4354 = vmatprep.subr.mxu0 0.0
    %4355 = vmatpush1.msra.mxu0 0.0
    %4356 = vmatprep.mubr.f32.mxu0 0.0
    %4357 = vmatmul.mubr.f32.gmra.mrb[0].mxu0 %v4245
    %v4358 = vpop.f32.mrb[0].mxu0
    %v4359 = vadd.f32 %v3380, %v4358
    %v4360 = vpop.f32.mrb[0].mxu0
    %4361 = vmatprep.mubr.f32.mxu0 0.0
    %4362 = vmatmul.mubr.f32.gmra.mrb[0].mxu0 %v4248
    %v4363 = vpop.f32.mrb[0].mxu0
    %v4364 = vadd.f32 %v3385, %v4363
    %v4365 = vpop.f32.mrb[0].mxu0
    %4366 = vmatprep.mubr.f32.mxu0 0.0
    %4367 = vmatmul.mubr.f32.gmra.mrb[0].mxu0 %v4251
    %v4368 = vpop.f32.mrb[0].mxu0
    %v4369 = vadd.f32 %v3390, %v4368
    %v4370 = vpop.f32.mrb[0].mxu0
    %4371 = vmatprep.mubr.f32.mxu0 0.0
    %4372 = vmatmul.mubr.f32.gmra.mrb[0].mxu0 %v4254
    %v4373 = vpop.f32.mrb[0].mxu0
    %v4374 = vadd.f32 %v3395, %v4373
    %v4375 = vpop.f32.mrb[0].mxu0
    %4376 = vmatprep.mubr.f32.mxu0 0.0
    %4377 = vmatmul.mubr.f32.gmra.mrb[0].mxu0 %v4257
    %v4378 = vpop.f32.mrb[0].mxu0
    %v4379 = vadd.f32 %v3400, %v4378
    %v4380 = vpop.f32.mrb[0].mxu0
    %4381 = vmatprep.mubr.f32.mxu0 0.0
    %4382 = vmatmul.mubr.f32.gmra.mrb[0].mxu0 %v4260
    %v4383 = vpop.f32.mrb[0].mxu0
    %v4384 = vadd.f32 %v3405, %v4383
    %v4385 = vpop.f32.mrb[0].mxu0
    %4386 = vmatprep.mubr.f32.mxu0 0.0
    %4387 = vmatmul.mubr.f32.gmra.mrb[0].mxu0 %v4263
    %v4388 = vpop.f32.mrb[0].mxu0
    %v4389 = vadd.f32 %v3410, %v4388
    %v4390 = vpop.f32.mrb[0].mxu0
    %4391 = vmatprep.mubr.f32.mxu0 0.0
    %4392 = vmatmul.mubr.f32.gmra.mrb[0].mxu0 %v4266
    %v4393 = vpop.f32.mrb[0].mxu0
    %v4394 = vadd.f32 %v3415, %v4393
    %v4395 = vpop.f32.mrb[0].mxu0
    %4396 = vmatprep.mubr.f32.mxu0 0.0
    %4397 = vmatmul.mubr.f32.gmra.mrb[0].mxu0 %v4269
    %v4398 = vpop.f32.mrb[0].mxu0
    %v4399 = vadd.f32 %v3420, %v4398
    %v4400 = vpop.f32.mrb[0].mxu0
    %4401 = vmatprep.mubr.f32.mxu0 0.0
    %4402 = vmatmul.mubr.f32.gmra.mrb[0].mxu0 %v4272
    %v4403 = vpop.f32.mrb[0].mxu0
    %v4404 = vadd.f32 %v3425, %v4403
    %v4405 = vpop.f32.mrb[0].mxu0
    %4406 = vmatprep.mubr.f32.mxu0 0.0
    %4407 = vmatmul.mubr.f32.gmra.mrb[0].mxu0 %v4275
    %v4408 = vpop.f32.mrb[0].mxu0
    %v4409 = vadd.f32 %v3430, %v4408
    %v4410 = vpop.f32.mrb[0].mxu0
    %4411 = vmatprep.mubr.f32.mxu0 0.0
    %4412 = vmatmul.mubr.f32.gmra.mrb[0].mxu0 %v4278
    %v4413 = vpop.f32.mrb[0].mxu0
    %v4414 = vadd.f32 %v3435, %v4413
    %v4415 = vpop.f32.mrb[0].mxu0
    %4416 = vmatprep.mubr.f32.mxu0 0.0
    %4417 = vmatmul.mubr.f32.gmra.mrb[0].mxu0 %v4281
    %v4418 = vpop.f32.mrb[0].mxu0
    %v4419 = vadd.f32 %v3440, %v4418
    %v4420 = vpop.f32.mrb[0].mxu0
    %4421 = vmatprep.mubr.f32.mxu0 0.0
    %4422 = vmatmul.mubr.f32.gmra.mrb[0].mxu0 %v4284
    %v4423 = vpop.f32.mrb[0].mxu0
    %v4424 = vadd.f32 %v3445, %v4423
    %v4425 = vpop.f32.mrb[0].mxu0
    %4426 = vmatprep.mubr.f32.mxu0 0.0
    %4427 = vmatmul.mubr.f32.gmra.mrb[0].mxu0 %v4287
    %v4428 = vpop.f32.mrb[0].mxu0
    %v4429 = vadd.f32 %v3450, %v4428
    %v4430 = vpop.f32.mrb[0].mxu0
    %4431 = vmatprep.mubr.f32.mxu0 0.0
    %4432 = vmatmul.mubr.f32.gmra.mrb[0].mxu0 %v4290
    %v4433 = vpop.f32.mrb[0].mxu0
    %v4434 = vadd.f32 %v3455, %v4433
    %v4435 = vpop.f32.mrb[0].mxu0
    %4436 = vdwg.mxu0
    %v4438 = vsel %vm3264, %v2814, 0
    %v4441 = vsel %vm3264, %v2817, 0
    %v4444 = vsel %vm3264, %v2822, 0
    %v4447 = vsel %vm3264, %v2825, 0
    %v4450 = vsel %vm3264, %v2830, 0
    %v4453 = vsel %vm3264, %v2833, 0
    %v4456 = vsel %vm3264, %v2838, 0
    %v4459 = vsel %vm3264, %v2841, 0
    %v4462 = vsel %vm3264, %v2846, 0
    %v4465 = vsel %vm3264, %v2849, 0
    %v4468 = vsel %vm3264, %v2854, 0
    %v4471 = vsel %vm3264, %v2857, 0
    %v4474 = vsel %vm3264, %v2862, 0
    %v4477 = vsel %vm3264, %v2865, 0
    %v4480 = vsel %vm3264, %v2870, 0
    %v4483 = vsel %vm3264, %v2873, 0
    %4485 = vmatprep.subr.mxu0 0.0
    %4486 = vmatpush1.msra.mxu0 %v3459
    %4487 = vmatprep.subr.mxu0 0.0
    %4488 = vmatpush1.msra.mxu0 0.0
    %4489 = vmatprep.subr.mxu0 0.0
    %4490 = vmatpush1.msra.mxu0 0.0
    %4491 = vmatprep.subr.mxu0 0.0
    %4492 = vmatpush1.msra.mxu0 0.0
    %4493 = vmatprep.subr.mxu0 0.0
    %4494 = vmatpush1.msra.mxu0 0.0
    %4495 = vmatprep.subr.mxu0 0.0
    %4496 = vmatpush1.msra.mxu0 0.0
    %4497 = vmatprep.subr.mxu0 0.0
    %4498 = vmatpush1.msra.mxu0 0.0
    %4499 = vmatprep.subr.mxu0 0.0
    %4500 = vmatpush1.msra.mxu0 0.0
    %4501 = vmatprep.subr.mxu0 0.0
    %4502 = vmatpush1.msra.mxu0 0.0
    %4503 = vmatprep.subr.mxu0 0.0
    %4504 = vmatpush1.msra.mxu0 0.0
    %4505 = vmatprep.subr.mxu0 0.0
    %4506 = vmatpush1.msra.mxu0 0.0
    %4507 = vmatprep.subr.mxu0 0.0
    %4508 = vmatpush1.msra.mxu0 0.0
    %4509 = vmatprep.subr.mxu0 0.0
    %4510 = vmatpush1.msra.mxu0 0.0
    %4511 = vmatprep.subr.mxu0 0.0
    %4512 = vmatpush1.msra.mxu0 0.0
    %4513 = vmatprep.subr.mxu0 0.0
    %4514 = vmatpush1.msra.mxu0 0.0
    %4515 = vmatprep.subr.mxu0 0.0
    %4516 = vmatpush1.msra.mxu0 0.0
    %4517 = vmatprep.subr.mxu0 0.0
    %4518 = vmatpush1.msra.mxu0 0.0
    %4519 = vmatprep.subr.mxu0 0.0
    %4520 = vmatpush1.msra.mxu0 0.0
    %4521 = vmatprep.subr.mxu0 0.0
    %4522 = vmatpush1.msra.mxu0 0.0
    %4523 = vmatprep.subr.mxu0 0.0
    %4524 = vmatpush1.msra.mxu0 0.0
    %4525 = vmatprep.subr.mxu0 0.0
    %4526 = vmatpush1.msra.mxu0 0.0
    %4527 = vmatprep.subr.mxu0 0.0
    %4528 = vmatpush1.msra.mxu0 0.0
    %4529 = vmatprep.subr.mxu0 0.0
    %4530 = vmatpush1.msra.mxu0 0.0
    %4531 = vmatprep.subr.mxu0 0.0
    %4532 = vmatpush1.msra.mxu0 0.0
    %4533 = vmatprep.subr.mxu0 0.0
    %4534 = vmatpush1.msra.mxu0 0.0
    %4535 = vmatprep.subr.mxu0 0.0
    %4536 = vmatpush1.msra.mxu0 0.0
    %4537 = vmatprep.subr.mxu0 0.0
    %4538 = vmatpush1.msra.mxu0 0.0
    %4539 = vmatprep.subr.mxu0 0.0
    %4540 = vmatpush1.msra.mxu0 0.0
    %4541 = vmatprep.subr.mxu0 0.0
    %4542 = vmatpush1.msra.mxu0 0.0
    %4543 = vmatprep.subr.mxu0 0.0
    %4544 = vmatpush1.msra.mxu0 0.0
    %4545 = vmatprep.subr.mxu0 0.0
    %4546 = vmatpush1.msra.mxu0 0.0
    %4547 = vmatprep.subr.mxu0 0.0
    %4548 = vmatpush1.msra.mxu0 0.0
    %4549 = vmatprep.mubr.f32.mxu0 0.0
    %4550 = vmatmul.mubr.f32.gmra.mrb[0].mxu0 %v4438
    %v4551 = vpop.f32.mrb[0].mxu0
    %v4552 = vadd.f32 %v3577, %v4551
    %v4553 = vpop.f32.mrb[0].mxu0
    %4554 = vmatprep.mubr.f32.mxu0 0.0
    %4555 = vmatmul.mubr.f32.gmra.mrb[0].mxu0 %v4441
    %v4556 = vpop.f32.mrb[0].mxu0
    %v4557 = vadd.f32 %v3582, %v4556
    %v4558 = vpop.f32.mrb[0].mxu0
    %4559 = vmatprep.mubr.f32.mxu0 0.0
    %4560 = vmatmul.mubr.f32.gmra.mrb[0].mxu0 %v4444
    %v4561 = vpop.f32.mrb[0].mxu0
    %v4562 = vadd.f32 %v3587, %v4561
    %v4563 = vpop.f32.mrb[0].mxu0
    %4564 = vmatprep.mubr.f32.mxu0 0.0
    %4565 = vmatmul.mubr.f32.gmra.mrb[0].mxu0 %v4447
    %v4566 = vpop.f32.mrb[0].mxu0
    %v4567 = vadd.f32 %v3592, %v4566
    %v4568 = vpop.f32.mrb[0].mxu0
    %4569 = vmatprep.mubr.f32.mxu0 0.0
    %4570 = vmatmul.mubr.f32.gmra.mrb[0].mxu0 %v4450
    %v4571 = vpop.f32.mrb[0].mxu0
    %v4572 = vadd.f32 %v3597, %v4571
    %v4573 = vpop.f32.mrb[0].mxu0
    %4574 = vmatprep.mubr.f32.mxu0 0.0
    %4575 = vmatmul.mubr.f32.gmra.mrb[0].mxu0 %v4453
    %v4576 = vpop.f32.mrb[0].mxu0
    %v4577 = vadd.f32 %v3602, %v4576
    %v4578 = vpop.f32.mrb[0].mxu0
    %4579 = vmatprep.mubr.f32.mxu0 0.0
    %4580 = vmatmul.mubr.f32.gmra.mrb[0].mxu0 %v4456
    %v4581 = vpop.f32.mrb[0].mxu0
    %v4582 = vadd.f32 %v3607, %v4581
    %v4583 = vpop.f32.mrb[0].mxu0
    %4584 = vmatprep.mubr.f32.mxu0 0.0
    %4585 = vmatmul.mubr.f32.gmra.mrb[0].mxu0 %v4459
    %v4586 = vpop.f32.mrb[0].mxu0
    %v4587 = vadd.f32 %v3612, %v4586
    %v4588 = vpop.f32.mrb[0].mxu0
    %4589 = vmatprep.mubr.f32.mxu0 0.0
    %4590 = vmatmul.mubr.f32.gmra.mrb[0].mxu0 %v4462
    %v4591 = vpop.f32.mrb[0].mxu0
    %v4592 = vadd.f32 %v3617, %v4591
    %v4593 = vpop.f32.mrb[0].mxu0
    %4594 = vmatprep.mubr.f32.mxu0 0.0
    %4595 = vmatmul.mubr.f32.gmra.mrb[0].mxu0 %v4465
    %v4596 = vpop.f32.mrb[0].mxu0
    %v4597 = vadd.f32 %v3622, %v4596
    %v4598 = vpop.f32.mrb[0].mxu0
    %4599 = vmatprep.mubr.f32.mxu0 0.0
    %4600 = vmatmul.mubr.f32.gmra.mrb[0].mxu0 %v4468
    %v4601 = vpop.f32.mrb[0].mxu0
    %v4602 = vadd.f32 %v3627, %v4601
    %v4603 = vpop.f32.mrb[0].mxu0
    %4604 = vmatprep.mubr.f32.mxu0 0.0
    %4605 = vmatmul.mubr.f32.gmra.mrb[0].mxu0 %v4471
    %v4606 = vpop.f32.mrb[0].mxu0
    %v4607 = vadd.f32 %v3632, %v4606
    %v4608 = vpop.f32.mrb[0].mxu0
    %4609 = vmatprep.mubr.f32.mxu0 0.0
    %4610 = vmatmul.mubr.f32.gmra.mrb[0].mxu0 %v4474
    %v4611 = vpop.f32.mrb[0].mxu0
    %v4612 = vadd.f32 %v3637, %v4611
    %v4613 = vpop.f32.mrb[0].mxu0
    %4614 = vmatprep.mubr.f32.mxu0 0.0
    %4615 = vmatmul.mubr.f32.gmra.mrb[0].mxu0 %v4477
    %v4616 = vpop.f32.mrb[0].mxu0
    %v4617 = vadd.f32 %v3642, %v4616
    %v4618 = vpop.f32.mrb[0].mxu0
    %4619 = vmatprep.mubr.f32.mxu0 0.0
    %4620 = vmatmul.mubr.f32.gmra.mrb[0].mxu0 %v4480
    %v4621 = vpop.f32.mrb[0].mxu0
    %v4622 = vadd.f32 %v3647, %v4621
    %v4623 = vpop.f32.mrb[0].mxu0
    %4624 = vmatprep.mubr.f32.mxu0 0.0
    %4625 = vmatmul.mubr.f32.gmra.mrb[0].mxu0 %v4483
    %v4626 = vpop.f32.mrb[0].mxu0
    %v4627 = vadd.f32 %v3652, %v4626
    %v4628 = vpop.f32.mrb[0].mxu0
    %4629 = vdwg.mxu0
    %v4631 = vsel %vm3264, %v2942, 0
    %v4634 = vsel %vm3264, %v2945, 0
    %v4637 = vsel %vm3264, %v2950, 0
    %v4640 = vsel %vm3264, %v2953, 0
    %v4643 = vsel %vm3264, %v2958, 0
    %v4646 = vsel %vm3264, %v2961, 0
    %v4649 = vsel %vm3264, %v2966, 0
    %v4652 = vsel %vm3264, %v2969, 0
    %v4655 = vsel %vm3264, %v2974, 0
    %v4658 = vsel %vm3264, %v2977, 0
    %v4661 = vsel %vm3264, %v2982, 0
    %v4664 = vsel %vm3264, %v2985, 0
    %v4667 = vsel %vm3264, %v2990, 0
    %v4670 = vsel %vm3264, %v2993, 0
    %v4673 = vsel %vm3264, %v2998, 0
    %v4676 = vsel %vm3264, %v3001, 0
    %4678 = vmatprep.subr.mxu0 0.0
    %4679 = vmatpush1.msra.mxu0 %v3656
    %4680 = vmatprep.subr.mxu0 0.0
    %4681 = vmatpush1.msra.mxu0 0.0
    %4682 = vmatprep.subr.mxu0 0.0
    %4683 = vmatpush1.msra.mxu0 0.0
    %4684 = vmatprep.subr.mxu0 0.0
    %4685 = vmatpush1.msra.mxu0 0.0
    %4686 = vmatprep.subr.mxu0 0.0
    %4687 = vmatpush1.msra.mxu0 0.0
    %4688 = vmatprep.subr.mxu0 0.0
    %4689 = vmatpush1.msra.mxu0 0.0
    %4690 = vmatprep.subr.mxu0 0.0
    %4691 = vmatpush1.msra.mxu0 0.0
    %4692 = vmatprep.subr.mxu0 0.0
    %4693 = vmatpush1.msra.mxu0 0.0
    %4694 = vmatprep.subr.mxu0 0.0
    %4695 = vmatpush1.msra.mxu0 0.0
    %4696 = vmatprep.subr.mxu0 0.0
    %4697 = vmatpush1.msra.mxu0 0.0
    %4698 = vmatprep.subr.mxu0 0.0
    %4699 = vmatpush1.msra.mxu0 0.0
    %4700 = vmatprep.subr.mxu0 0.0
    %4701 = vmatpush1.msra.mxu0 0.0
    %4702 = vmatprep.subr.mxu0 0.0
    %4703 = vmatpush1.msra.mxu0 0.0
    %4704 = vmatprep.subr.mxu0 0.0
    %4705 = vmatpush1.msra.mxu0 0.0
    %4706 = vmatprep.subr.mxu0 0.0
    %4707 = vmatpush1.msra.mxu0 0.0
    %4708 = vmatprep.subr.mxu0 0.0
    %4709 = vmatpush1.msra.mxu0 0.0
    %4710 = vmatprep.subr.mxu0 0.0
    %4711 = vmatpush1.msra.mxu0 0.0
    %4712 = vmatprep.subr.mxu0 0.0
    %4713 = vmatpush1.msra.mxu0 0.0
    %4714 = vmatprep.subr.mxu0 0.0
    %4715 = vmatpush1.msra.mxu0 0.0
    %4716 = vmatprep.subr.mxu0 0.0
    %4717 = vmatpush1.msra.mxu0 0.0
    %4718 = vmatprep.subr.mxu0 0.0
    %4719 = vmatpush1.msra.mxu0 0.0
    %4720 = vmatprep.subr.mxu0 0.0
    %4721 = vmatpush1.msra.mxu0 0.0
    %4722 = vmatprep.subr.mxu0 0.0
    %4723 = vmatpush1.msra.mxu0 0.0
    %4724 = vmatprep.subr.mxu0 0.0
    %4725 = vmatpush1.msra.mxu0 0.0
    %4726 = vmatprep.subr.mxu0 0.0
    %4727 = vmatpush1.msra.mxu0 0.0
    %4728 = vmatprep.subr.mxu0 0.0
    %4729 = vmatpush1.msra.mxu0 0.0
    %4730 = vmatprep.subr.mxu0 0.0
    %4731 = vmatpush1.msra.mxu0 0.0
    %4732 = vmatprep.subr.mxu0 0.0
    %4733 = vmatpush1.msra.mxu0 0.0
    %4734 = vmatprep.subr.mxu0 0.0
    %4735 = vmatpush1.msra.mxu0 0.0
    %4736 = vmatprep.subr.mxu0 0.0
    %4737 = vmatpush1.msra.mxu0 0.0
    %4738 = vmatprep.subr.mxu0 0.0
    %4739 = vmatpush1.msra.mxu0 0.0
    %4740 = vmatprep.subr.mxu0 0.0
    %4741 = vmatpush1.msra.mxu0 0.0
    %4742 = vmatprep.mubr.f32.mxu0 0.0
    %4743 = vmatmul.mubr.f32.gmra.mrb[0].mxu0 %v4631
    %v4744 = vpop.f32.mrb[0].mxu0
    %v4745 = vadd.f32 %v3774, %v4744
    %v4746 = vpop.f32.mrb[0].mxu0
    %4747 = vmatprep.mubr.f32.mxu0 0.0
    %4748 = vmatmul.mubr.f32.gmra.mrb[0].mxu0 %v4634
    %v4749 = vpop.f32.mrb[0].mxu0
    %v4750 = vadd.f32 %v3779, %v4749
    %v4751 = vpop.f32.mrb[0].mxu0
    %4752 = vmatprep.mubr.f32.mxu0 0.0
    %4753 = vmatmul.mubr.f32.gmra.mrb[0].mxu0 %v4637
    %v4754 = vpop.f32.mrb[0].mxu0
    %v4755 = vadd.f32 %v3784, %v4754
    %v4756 = vpop.f32.mrb[0].mxu0
    %4757 = vmatprep.mubr.f32.mxu0 0.0
    %4758 = vmatmul.mubr.f32.gmra.mrb[0].mxu0 %v4640
    %v4759 = vpop.f32.mrb[0].mxu0
    %v4760 = vadd.f32 %v3789, %v4759
    %v4761 = vpop.f32.mrb[0].mxu0
    %4762 = vmatprep.mubr.f32.mxu0 0.0
    %4763 = vmatmul.mubr.f32.gmra.mrb[0].mxu0 %v4643
    %v4764 = vpop.f32.mrb[0].mxu0
    %v4765 = vadd.f32 %v3794, %v4764
    %v4766 = vpop.f32.mrb[0].mxu0
    %4767 = vmatprep.mubr.f32.mxu0 0.0
    %4768 = vmatmul.mubr.f32.gmra.mrb[0].mxu0 %v4646
    %v4769 = vpop.f32.mrb[0].mxu0
    %v4770 = vadd.f32 %v3799, %v4769
    %v4771 = vpop.f32.mrb[0].mxu0
    %4772 = vmatprep.mubr.f32.mxu0 0.0
    %4773 = vmatmul.mubr.f32.gmra.mrb[0].mxu0 %v4649
    %v4774 = vpop.f32.mrb[0].mxu0
    %v4775 = vadd.f32 %v3804, %v4774
    %v4776 = vpop.f32.mrb[0].mxu0
    %4777 = vmatprep.mubr.f32.mxu0 0.0
    %4778 = vmatmul.mubr.f32.gmra.mrb[0].mxu0 %v4652
    %v4779 = vpop.f32.mrb[0].mxu0
    %v4780 = vadd.f32 %v3809, %v4779
    %v4781 = vpop.f32.mrb[0].mxu0
    %4782 = vmatprep.mubr.f32.mxu0 0.0
    %4783 = vmatmul.mubr.f32.gmra.mrb[0].mxu0 %v4655
    %v4784 = vpop.f32.mrb[0].mxu0
    %v4785 = vadd.f32 %v3814, %v4784
    %v4786 = vpop.f32.mrb[0].mxu0
    %4787 = vmatprep.mubr.f32.mxu0 0.0
    %4788 = vmatmul.mubr.f32.gmra.mrb[0].mxu0 %v4658
    %v4789 = vpop.f32.mrb[0].mxu0
    %v4790 = vadd.f32 %v3819, %v4789
    %v4791 = vpop.f32.mrb[0].mxu0
    %4792 = vmatprep.mubr.f32.mxu0 0.0
    %4793 = vmatmul.mubr.f32.gmra.mrb[0].mxu0 %v4661
    %v4794 = vpop.f32.mrb[0].mxu0
    %v4795 = vadd.f32 %v3824, %v4794
    %v4796 = vpop.f32.mrb[0].mxu0
    %4797 = vmatprep.mubr.f32.mxu0 0.0
    %4798 = vmatmul.mubr.f32.gmra.mrb[0].mxu0 %v4664
    %v4799 = vpop.f32.mrb[0].mxu0
    %v4800 = vadd.f32 %v3829, %v4799
    %v4801 = vpop.f32.mrb[0].mxu0
    %4802 = vmatprep.mubr.f32.mxu0 0.0
    %4803 = vmatmul.mubr.f32.gmra.mrb[0].mxu0 %v4667
    %v4804 = vpop.f32.mrb[0].mxu0
    %v4805 = vadd.f32 %v3834, %v4804
    %v4806 = vpop.f32.mrb[0].mxu0
    %4807 = vmatprep.mubr.f32.mxu0 0.0
    %4808 = vmatmul.mubr.f32.gmra.mrb[0].mxu0 %v4670
    %v4809 = vpop.f32.mrb[0].mxu0
    %v4810 = vadd.f32 %v3839, %v4809
    %v4811 = vpop.f32.mrb[0].mxu0
    %4812 = vmatprep.mubr.f32.mxu0 0.0
    %4813 = vmatmul.mubr.f32.gmra.mrb[0].mxu0 %v4673
    %v4814 = vpop.f32.mrb[0].mxu0
    %v4815 = vadd.f32 %v3844, %v4814
    %v4816 = vpop.f32.mrb[0].mxu0
    %4817 = vmatprep.mubr.f32.mxu0 0.0
    %4818 = vmatmul.mubr.f32.gmra.mrb[0].mxu0 %v4676
    %v4819 = vpop.f32.mrb[0].mxu0
    %v4820 = vadd.f32 %v3849, %v4819
    %v4821 = vpop.f32.mrb[0].mxu0
    %4822 = vdwg.mxu0
    %v4824 = vsel %vm3264, %v3070, 0
    %v4827 = vsel %vm3264, %v3073, 0
    %v4830 = vsel %vm3264, %v3078, 0
    %v4833 = vsel %vm3264, %v3081, 0
    %v4836 = vsel %vm3264, %v3086, 0
    %v4839 = vsel %vm3264, %v3089, 0
    %v4842 = vsel %vm3264, %v3094, 0
    %v4845 = vsel %vm3264, %v3097, 0
    %v4848 = vsel %vm3264, %v3102, 0
    %v4851 = vsel %vm3264, %v3105, 0
    %v4854 = vsel %vm3264, %v3110, 0
    %v4857 = vsel %vm3264, %v3113, 0
    %v4860 = vsel %vm3264, %v3118, 0
    %v4863 = vsel %vm3264, %v3121, 0
    %v4866 = vsel %vm3264, %v3126, 0
    %v4869 = vsel %vm3264, %v3129, 0
    %4871 = vmatprep.subr.mxu0 0.0
    %4872 = vmatpush1.msra.mxu0 %v3853
    %4873 = vmatprep.subr.mxu0 0.0
    %4874 = vmatpush1.msra.mxu0 0.0
    %4875 = vmatprep.subr.mxu0 0.0
    %4876 = vmatpush1.msra.mxu0 0.0
    %4877 = vmatprep.subr.mxu0 0.0
    %4878 = vmatpush1.msra.mxu0 0.0
    %4879 = vmatprep.subr.mxu0 0.0
    %4880 = vmatpush1.msra.mxu0 0.0
    %4881 = vmatprep.subr.mxu0 0.0
    %4882 = vmatpush1.msra.mxu0 0.0
    %4883 = vmatprep.subr.mxu0 0.0
    %4884 = vmatpush1.msra.mxu0 0.0
    %4885 = vmatprep.subr.mxu0 0.0
    %4886 = vmatpush1.msra.mxu0 0.0
    %4887 = vmatprep.subr.mxu0 0.0
    %4888 = vmatpush1.msra.mxu0 0.0
    %4889 = vmatprep.subr.mxu0 0.0
    %4890 = vmatpush1.msra.mxu0 0.0
    %4891 = vmatprep.subr.mxu0 0.0
    %4892 = vmatpush1.msra.mxu0 0.0
    %4893 = vmatprep.subr.mxu0 0.0
    %4894 = vmatpush1.msra.mxu0 0.0
    %4895 = vmatprep.subr.mxu0 0.0
    %4896 = vmatpush1.msra.mxu0 0.0
    %4897 = vmatprep.subr.mxu0 0.0
    %4898 = vmatpush1.msra.mxu0 0.0
    %4899 = vmatprep.subr.mxu0 0.0
    %4900 = vmatpush1.msra.mxu0 0.0
    %4901 = vmatprep.subr.mxu0 0.0
    %4902 = vmatpush1.msra.mxu0 0.0
    %4903 = vmatprep.subr.mxu0 0.0
    %4904 = vmatpush1.msra.mxu0 0.0
    %4905 = vmatprep.subr.mxu0 0.0
    %4906 = vmatpush1.msra.mxu0 0.0
    %4907 = vmatprep.subr.mxu0 0.0
    %4908 = vmatpush1.msra.mxu0 0.0
    %4909 = vmatprep.subr.mxu0 0.0
    %4910 = vmatpush1.msra.mxu0 0.0
    %4911 = vmatprep.subr.mxu0 0.0
    %4912 = vmatpush1.msra.mxu0 0.0
    %4913 = vmatprep.subr.mxu0 0.0
    %4914 = vmatpush1.msra.mxu0 0.0
    %4915 = vmatprep.subr.mxu0 0.0
    %4916 = vmatpush1.msra.mxu0 0.0
    %4917 = vmatprep.subr.mxu0 0.0
    %4918 = vmatpush1.msra.mxu0 0.0
    %4919 = vmatprep.subr.mxu0 0.0
    %4920 = vmatpush1.msra.mxu0 0.0
    %4921 = vmatprep.subr.mxu0 0.0
    %4922 = vmatpush1.msra.mxu0 0.0
    %4923 = vmatprep.subr.mxu0 0.0
    %4924 = vmatpush1.msra.mxu0 0.0
    %4925 = vmatprep.subr.mxu0 0.0
    %4926 = vmatpush1.msra.mxu0 0.0
    %4927 = vmatprep.subr.mxu0 0.0
    %4928 = vmatpush1.msra.mxu0 0.0
    %4929 = vmatprep.subr.mxu0 0.0
    %4930 = vmatpush1.msra.mxu0 0.0
    %4931 = vmatprep.subr.mxu0 0.0
    %4932 = vmatpush1.msra.mxu0 0.0
    %4933 = vmatprep.subr.mxu0 0.0
    %4934 = vmatpush1.msra.mxu0 0.0
    %4935 = vmatprep.mubr.f32.mxu0 0.0
    %4936 = vmatmul.mubr.f32.gmra.mrb[0].mxu0 %v4824
    %v4937 = vpop.f32.mrb[0].mxu0
    %v4938 = vadd.f32 %v3971, %v4937
    %v4939 = vpop.f32.mrb[0].mxu0
    %4940 = vmatprep.mubr.f32.mxu0 0.0
    %4941 = vmatmul.mubr.f32.gmra.mrb[0].mxu0 %v4827
    %v4942 = vpop.f32.mrb[0].mxu0
    %v4943 = vadd.f32 %v3976, %v4942
    %v4944 = vpop.f32.mrb[0].mxu0
    %4945 = vmatprep.mubr.f32.mxu0 0.0
    %4946 = vmatmul.mubr.f32.gmra.mrb[0].mxu0 %v4830
    %v4947 = vpop.f32.mrb[0].mxu0
    %v4948 = vadd.f32 %v3981, %v4947
    %v4949 = vpop.f32.mrb[0].mxu0
    %4950 = vmatprep.mubr.f32.mxu0 0.0
    %4951 = vmatmul.mubr.f32.gmra.mrb[0].mxu0 %v4833
    %v4952 = vpop.f32.mrb[0].mxu0
    %v4953 = vadd.f32 %v3986, %v4952
    %v4954 = vpop.f32.mrb[0].mxu0
    %4955 = vmatprep.mubr.f32.mxu0 0.0
    %4956 = vmatmul.mubr.f32.gmra.mrb[0].mxu0 %v4836
    %v4957 = vpop.f32.mrb[0].mxu0
    %v4958 = vadd.f32 %v3991, %v4957
    %v4959 = vpop.f32.mrb[0].mxu0
    %4960 = vmatprep.mubr.f32.mxu0 0.0
    %4961 = vmatmul.mubr.f32.gmra.mrb[0].mxu0 %v4839
    %v4962 = vpop.f32.mrb[0].mxu0
    %v4963 = vadd.f32 %v3996, %v4962
    %v4964 = vpop.f32.mrb[0].mxu0
    %4965 = vmatprep.mubr.f32.mxu0 0.0
    %4966 = vmatmul.mubr.f32.gmra.mrb[0].mxu0 %v4842
    %v4967 = vpop.f32.mrb[0].mxu0
    %v4968 = vadd.f32 %v4001, %v4967
    %v4969 = vpop.f32.mrb[0].mxu0
    %4970 = vmatprep.mubr.f32.mxu0 0.0
    %4971 = vmatmul.mubr.f32.gmra.mrb[0].mxu0 %v4845
    %v4972 = vpop.f32.mrb[0].mxu0
    %v4973 = vadd.f32 %v4006, %v4972
    %v4974 = vpop.f32.mrb[0].mxu0
    %4975 = vmatprep.mubr.f32.mxu0 0.0
    %4976 = vmatmul.mubr.f32.gmra.mrb[0].mxu0 %v4848
    %v4977 = vpop.f32.mrb[0].mxu0
    %v4978 = vadd.f32 %v4011, %v4977
    %v4979 = vpop.f32.mrb[0].mxu0
    %4980 = vmatprep.mubr.f32.mxu0 0.0
    %4981 = vmatmul.mubr.f32.gmra.mrb[0].mxu0 %v4851
    %v4982 = vpop.f32.mrb[0].mxu0
    %v4983 = vadd.f32 %v4016, %v4982
    %v4984 = vpop.f32.mrb[0].mxu0
    %4985 = vmatprep.mubr.f32.mxu0 0.0
    %4986 = vmatmul.mubr.f32.gmra.mrb[0].mxu0 %v4854
    %v4987 = vpop.f32.mrb[0].mxu0
    %v4988 = vadd.f32 %v4021, %v4987
    %v4989 = vpop.f32.mrb[0].mxu0
    %4990 = vmatprep.mubr.f32.mxu0 0.0
    %4991 = vmatmul.mubr.f32.gmra.mrb[0].mxu0 %v4857
    %v4992 = vpop.f32.mrb[0].mxu0
    %v4993 = vadd.f32 %v4026, %v4992
    %v4994 = vpop.f32.mrb[0].mxu0
    %4995 = vmatprep.mubr.f32.mxu0 0.0
    %4996 = vmatmul.mubr.f32.gmra.mrb[0].mxu0 %v4860
    %v4997 = vpop.f32.mrb[0].mxu0
    %v4998 = vadd.f32 %v4031, %v4997
    %v4999 = vpop.f32.mrb[0].mxu0
    %5000 = vmatprep.mubr.f32.mxu0 0.0
    %5001 = vmatmul.mubr.f32.gmra.mrb[0].mxu0 %v4863
    %v5002 = vpop.f32.mrb[0].mxu0
    %v5003 = vadd.f32 %v4036, %v5002
    %v5004 = vpop.f32.mrb[0].mxu0
    %5005 = vmatprep.mubr.f32.mxu0 0.0
    %5006 = vmatmul.mubr.f32.gmra.mrb[0].mxu0 %v4866
    %v5007 = vpop.f32.mrb[0].mxu0
    %v5008 = vadd.f32 %v4041, %v5007
    %v5009 = vpop.f32.mrb[0].mxu0
    %5010 = vmatprep.mubr.f32.mxu0 0.0
    %5011 = vmatmul.mubr.f32.gmra.mrb[0].mxu0 %v4869
    %v5012 = vpop.f32.mrb[0].mxu0
    %v5013 = vadd.f32 %v4046, %v5012
    %v5014 = vpop.f32.mrb[0].mxu0
    %5015 = vdwg.mxu0
    %v5016 = vadd.f32 %v4359, %v4552
    %v5017 = vadd.f32 %v4364, %v4557
    %v5018 = vadd.f32 %v4369, %v4562
    %v5019 = vadd.f32 %v4374, %v4567
    %v5020 = vadd.f32 %v4379, %v4572
    %v5021 = vadd.f32 %v4384, %v4577
    %v5022 = vadd.f32 %v4389, %v4582
    %v5023 = vadd.f32 %v4394, %v4587
    %v5024 = vadd.f32 %v4399, %v4592
    %v5025 = vadd.f32 %v4404, %v4597
    %v5026 = vadd.f32 %v4409, %v4602
    %v5027 = vadd.f32 %v4414, %v4607
    %v5028 = vadd.f32 %v4419, %v4612
    %v5029 = vadd.f32 %v4424, %v4617
    %v5030 = vadd.f32 %v4429, %v4622
    %v5031 = vadd.f32 %v4434, %v4627
    %v5032 = vadd.f32 %v4745, %v4938
    %v5033 = vadd.f32 %v4750, %v4943
    %v5034 = vadd.f32 %v4755, %v4948
    %v5035 = vadd.f32 %v4760, %v4953
    %v5036 = vadd.f32 %v4765, %v4958
    %v5037 = vadd.f32 %v4770, %v4963
    %v5038 = vadd.f32 %v4775, %v4968
    %v5039 = vadd.f32 %v4780, %v4973
    %v5040 = vadd.f32 %v4785, %v4978
    %v5041 = vadd.f32 %v4790, %v4983
    %v5042 = vadd.f32 %v4795, %v4988
    %v5043 = vadd.f32 %v4800, %v4993
    %v5044 = vadd.f32 %v4805, %v4998
    %v5045 = vadd.f32 %v4810, %v5003
    %v5046 = vadd.f32 %v4815, %v5008
    %v5047 = vadd.f32 %v4820, %v5013
    %v5048 = vadd.f32 %v5016, %v5032
    %v5049 = vadd.f32 %v5017, %v5033
    %v5050 = vadd.f32 %v5018, %v5034
    %v5051 = vadd.f32 %v5019, %v5035
    %v5052 = vadd.f32 %v5020, %v5036
    %v5053 = vadd.f32 %v5021, %v5037
    %v5054 = vadd.f32 %v5022, %v5038
    %v5055 = vadd.f32 %v5023, %v5039
    %v5056 = vadd.f32 %v5024, %v5040
    %v5057 = vadd.f32 %v5025, %v5041
    %v5058 = vadd.f32 %v5026, %v5042
    %v5059 = vadd.f32 %v5027, %v5043
    %v5060 = vadd.f32 %v5028, %v5044
    %v5061 = vadd.f32 %v5029, %v5045
    %v5062 = vadd.f32 %v5030, %v5046
    %v5063 = vadd.f32 %v5031, %v5047
    %v5064 = vadd.f32 %v5048, %v4166
    %v5065 = vadd.f32 %v5049, %v4171
    %v5066 = vadd.f32 %v5050, %v4176
    %v5067 = vadd.f32 %v5051, %v4181
    %v5068 = vadd.f32 %v5052, %v4186
    %v5069 = vadd.f32 %v5053, %v4191
    %v5070 = vadd.f32 %v5054, %v4196
    %v5071 = vadd.f32 %v5055, %v4201
    %v5072 = vadd.f32 %v5056, %v4206
    %v5073 = vadd.f32 %v5057, %v4211
    %v5074 = vadd.f32 %v5058, %v4216
    %v5075 = vadd.f32 %v5059, %v4221
    %v5076 = vadd.f32 %v5060, %v4226
    %v5077 = vadd.f32 %v5061, %v4231
    %v5078 = vadd.f32 %v5062, %v4236
    %v5079 = vadd.f32 %v5063, %v4241
    %v5080 = vlaneseq
    %v5081 = vshrl.u32 %v5080, 7
    %v5082 = vsub.s32 0, %v5081
    %v5083 = vrot.slane %v57, %v5082
    %v5084 = vadd.f32 %v5064, %v5083
    %v5085 = vadd.f32 %v5065, %v5083
    %v5086 = vadd.f32 %v5066, %v5083
    %v5087 = vadd.f32 %v5067, %v5083
    %v5088 = vadd.f32 %v5068, %v5083
    %v5089 = vadd.f32 %v5069, %v5083
    %v5090 = vadd.f32 %v5070, %v5083
    %v5091 = vadd.f32 %v5071, %v5083
    %v5092 = vadd.f32 %v5072, %v5083
    %v5093 = vadd.f32 %v5073, %v5083
    %v5094 = vadd.f32 %v5074, %v5083
    %v5095 = vadd.f32 %v5075, %v5083
    %v5096 = vadd.f32 %v5076, %v5083
    %v5097 = vadd.f32 %v5077, %v5083
    %v5098 = vadd.f32 %v5078, %v5083
    %v5099 = vadd.f32 %v5079, %v5083
    %v5100 = vmax.f32 %v5084, 0.0
    %v5101 = vmax.f32 %v5085, 0.0
    %v5102 = vmax.f32 %v5086, 0.0
    %v5103 = vmax.f32 %v5087, 0.0
    %v5104 = vmax.f32 %v5088, 0.0
    %v5105 = vmax.f32 %v5089, 0.0
    %v5106 = vmax.f32 %v5090, 0.0
    %v5107 = vmax.f32 %v5091, 0.0
    %v5108 = vmax.f32 %v5092, 0.0
    %v5109 = vmax.f32 %v5093, 0.0
    %v5110 = vmax.f32 %v5094, 0.0
    %v5111 = vmax.f32 %v5095, 0.0
    %v5112 = vmax.f32 %v5096, 0.0
    %v5113 = vmax.f32 %v5097, 0.0
    %v5114 = vmax.f32 %v5098, 0.0
    %v5115 = vmax.f32 %v5099, 0.0
    %v5116 = vpack.c.bf16 %v5101, %v5100
    %v5117 = vpack.c.bf16 %v5103, %v5102
    %v5118 = vpack.c.bf16 %v5105, %v5104
    %v5119 = vpack.c.bf16 %v5107, %v5106
    %v5120 = vpack.c.bf16 %v5109, %v5108
    %v5121 = vpack.c.bf16 %v5111, %v5110
    %v5122 = vpack.c.bf16 %v5113, %v5112
    %v5123 = vpack.c.bf16 %v5115, %v5114
    %v5124 = vld [vmem:[#allocation2 + $0x900] sm:$0xf]
    %v5125 = vld [vmem:[#allocation2 + $0x910] sm:$0xf]
    %v5126 = vld [vmem:[#allocation2 + $0x920] sm:$0xf]
    %v5127 = vld [vmem:[#allocation2 + $0x930] sm:$0xf]
    %v5128 = vld [vmem:[#allocation2 + $0x940] sm:$0xf]
    %v5129 = vld [vmem:[#allocation2 + $0x950] sm:$0xf]
    %v5130 = vld [vmem:[#allocation2 + $0x960] sm:$0xf]
    %v5131 = vld [vmem:[#allocation2 + $0x970] sm:$0xf]
    %v5132 = vld [vmem:[#allocation2 + $0x980] sm:$0xf]
    %v5133 = vld [vmem:[#allocation2 + $0x990] sm:$0xf]
    %v5134 = vld [vmem:[#allocation2 + $0x9a0] sm:$0xf]
    %v5135 = vld [vmem:[#allocation2 + $0x9b0] sm:$0xf]
    %v5136 = vld [vmem:[#allocation2 + $0x9c0] sm:$0xf]
    %v5137 = vld [vmem:[#allocation2 + $0x9d0] sm:$0xf]
    %v5138 = vld [vmem:[#allocation2 + $0x9e0] sm:$0xf]
    %v5139 = vld [vmem:[#allocation2 + $0x9f0] sm:$0xf]
    %v5140 = vld [vmem:[#allocation2 + $0xa00] sm:$0xf]
    %v5141 = vld [vmem:[#allocation2 + $0xa10] sm:$0xf]
    %v5142 = vld [vmem:[#allocation2 + $0xa20] sm:$0xf]
    %v5143 = vld [vmem:[#allocation2 + $0xa30] sm:$0xf]
    %v5144 = vld [vmem:[#allocation2 + $0xa40] sm:$0xf]
    %v5145 = vld [vmem:[#allocation2 + $0xa50] sm:$0xf]
    %v5146 = vld [vmem:[#allocation2 + $0xa60] sm:$0xf]
    %v5147 = vld [vmem:[#allocation2 + $0xa70] sm:$0xf]
    %v5148 = vld [vmem:[#allocation2 + $0xa80] sm:$0xf]
    %v5149 = vld [vmem:[#allocation2 + $0xa90] sm:$0xf]
    %v5150 = vld [vmem:[#allocation2 + $0xaa0] sm:$0xf]
    %v5151 = vld [vmem:[#allocation2 + $0xab0] sm:$0xf]
    %v5152 = vld [vmem:[#allocation2 + $0xac0] sm:$0xf]
    %v5153 = vld [vmem:[#allocation2 + $0xad0] sm:$0xf]
    %v5154 = vld [vmem:[#allocation2 + $0xae0] sm:$0xf]
    %v5155 = vld [vmem:[#allocation2 + $0xaf0] sm:$0xf]
    %v5156 = vld [vmem:[#allocation2 + $0xb00] sm:$0xf]
    %v5157 = vld [vmem:[#allocation2 + $0xb10] sm:$0xf]
    %v5158 = vld [vmem:[#allocation2 + $0xb20] sm:$0xf]
    %v5159 = vld [vmem:[#allocation2 + $0xb30] sm:$0xf]
    %v5196 = vunpack.c.l.b16 %v5124
    %v5197 = vunpack.c.l.b16 %v5125
    %v5198 = vunpack.c.l.b16 %v5126
    %v5199 = vunpack.c.l.b16 %v5127
    %v5200 = vunpack.c.l.b16 %v5128
    %v5201 = vunpack.c.l.b16 %v5129
    %v5202 = vunpack.c.l.b16 %v5130
    %v5203 = vunpack.c.l.b16 %v5131
    %v5204 = vunpack.c.l.b16 %v5132
    %v5205 = vunpack.c.l.b16 %v5133
    %v5206 = vunpack.c.l.b16 %v5134
    %v5207 = vunpack.c.l.b16 %v5135
    %v5208 = vunpack.c.l.b16 %v5136
    %v5209 = vunpack.c.l.b16 %v5137
    %v5210 = vunpack.c.l.b16 %v5138
    %v5211 = vunpack.c.l.b16 %v5139
    %v5212 = vunpack.c.l.b16 %v5140
    %v5213 = vunpack.c.l.b16 %v5141
    %v5214 = vunpack.c.l.b16 %v5142
    %v5215 = vunpack.c.l.b16 %v5143
    %v5216 = vunpack.c.l.b16 %v5144
    %v5217 = vunpack.c.l.b16 %v5145
    %v5218 = vunpack.c.l.b16 %v5146
    %v5219 = vunpack.c.l.b16 %v5147
    %v5220 = vunpack.c.l.b16 %v5148
    %v5221 = vunpack.c.l.b16 %v5149
    %v5222 = vunpack.c.l.b16 %v5150
    %v5223 = vunpack.c.l.b16 %v5151
    %v5224 = vunpack.c.l.b16 %v5152
    %v5225 = vunpack.c.l.b16 %v5153
    %v5226 = vunpack.c.l.b16 %v5154
    %v5227 = vunpack.c.l.b16 %v5155
    %v5228 = vunpack.c.l.b16 %v5156
    %v5229 = vunpack.c.l.b16 %v5157
    %v5230 = vunpack.c.l.b16 %v5158
    %v5231 = vunpack.c.l.b16 %v5159
    %v5232 = vpack.c.b16 %v5197, %v5196
    %v5233 = vpack.c.b16 %v5199, %v5198
    %v5234 = vpack.c.b16 %v5201, %v5200
    %v5235 = vpack.c.b16 %v5203, %v5202
    %v5236 = vpack.c.b16 %v5205, %v5204
    %v5237 = vpack.c.b16 %v5207, %v5206
    %v5238 = vpack.c.b16 %v5209, %v5208
    %v5239 = vpack.c.b16 %v5211, %v5210
    %v5240 = vpack.c.b16 %v5213, %v5212
    %v5241 = vpack.c.b16 %v5215, %v5214
    %v5242 = vpack.c.b16 %v5217, %v5216
    %v5243 = vpack.c.b16 %v5219, %v5218
    %v5244 = vpack.c.b16 %v5221, %v5220
    %v5245 = vpack.c.b16 %v5223, %v5222
    %v5246 = vpack.c.b16 %v5225, %v5224
    %v5247 = vpack.c.b16 %v5227, %v5226
    %v5248 = vpack.c.b16 %v5229, %v5228
    %v5249 = vpack.c.b16 %v5231, %v5230
    %5268 = vmatprep.subr.bf16.mxu0 0
    %5269 = vmatpush1.bf16.msra.mxu0 %v5116
    %5270 = vmatprep.subr.bf16.mxu0 0
    %5271 = vmatpush1.bf16.msra.mxu0 %v5117
    %5272 = vmatprep.subr.bf16.mxu0 0
    %5273 = vmatpush1.bf16.msra.mxu0 %v5118
    %5274 = vmatprep.subr.bf16.mxu0 0
    %5275 = vmatpush1.bf16.msra.mxu0 %v5119
    %5276 = vmatprep.subr.bf16.mxu0 0
    %5277 = vmatpush1.bf16.msra.mxu0 %v5120
    %5278 = vmatprep.subr.bf16.mxu0 0
    %5279 = vmatpush1.bf16.msra.mxu0 %v5121
    %5280 = vmatprep.subr.bf16.mxu0 0
    %5281 = vmatpush1.bf16.msra.mxu0 %v5122
    %5282 = vmatprep.subr.bf16.mxu0 0
    %5283 = vmatpush1.bf16.msra.mxu0 %v5123
    %5284 = vmatprep.subr.bf16.mxu0 0
    %5285 = vmatpush1.bf16.msra.mxu0 0
    %5286 = vmatprep.subr.bf16.mxu0 0
    %5287 = vmatpush1.bf16.msra.mxu0 0
    %5288 = vmatprep.subr.bf16.mxu0 0
    %5289 = vmatpush1.bf16.msra.mxu0 0
    %5290 = vmatprep.subr.bf16.mxu0 0
    %5291 = vmatpush1.bf16.msra.mxu0 0
    %5292 = vmatprep.subr.bf16.mxu0 0
    %5293 = vmatpush1.bf16.msra.mxu0 0
    %5294 = vmatprep.subr.bf16.mxu0 0
    %5295 = vmatpush1.bf16.msra.mxu0 0
    %5296 = vmatprep.subr.bf16.mxu0 0
    %5297 = vmatpush1.bf16.msra.mxu0 0
    %5298 = vmatprep.subr.bf16.mxu0 0
    %5299 = vmatpush1.bf16.msra.mxu0 0
    %5300 = vmatprep.mubr.bf16.mxu0 0
    %5301 = vmatmul.mubr.bf16.gmra.mrb[0].mxu0 %v5232
    %v5302 = vpop.f32.mrb[0].mxu0
    %v5303 = vadd.f32 0.0, %v5302
    %v5304 = vpop.f32.mrb[0].mxu0
    %v5305 = vpop.f32.mrb[0].mxu0
    %v5306 = vadd.f32 0.0, %v5305
    %v5307 = vpop.f32.mrb[0].mxu0
    %5308 = vmatprep.mubr.bf16.mxu0 0
    %5309 = vmatmul.mubr.bf16.gmra.mrb[0].mxu0 %v5233
    %v5310 = vpop.f32.mrb[0].mxu0
    %v5311 = vadd.f32 0.0, %v5310
    %v5312 = vpop.f32.mrb[0].mxu0
    %v5313 = vpop.f32.mrb[0].mxu0
    %v5314 = vadd.f32 0.0, %v5313
    %v5315 = vpop.f32.mrb[0].mxu0
    %5316 = vmatprep.mubr.bf16.mxu0 0
    %5317 = vmatmul.mubr.bf16.gmra.mrb[0].mxu0 %v5234
    %v5318 = vpop.f32.mrb[0].mxu0
    %v5319 = vadd.f32 0.0, %v5318
    %v5320 = vpop.f32.mrb[0].mxu0
    %v5321 = vpop.f32.mrb[0].mxu0
    %v5322 = vadd.f32 0.0, %v5321
    %v5323 = vpop.f32.mrb[0].mxu0
    %5324 = vmatprep.mubr.bf16.mxu0 0
    %5325 = vmatmul.mubr.bf16.gmra.mrb[0].mxu0 %v5235
    %v5326 = vpop.f32.mrb[0].mxu0
    %v5327 = vadd.f32 0.0, %v5326
    %v5328 = vpop.f32.mrb[0].mxu0
    %v5329 = vpop.f32.mrb[0].mxu0
    %v5330 = vadd.f32 0.0, %v5329
    %v5331 = vpop.f32.mrb[0].mxu0
    %5332 = vmatprep.mubr.bf16.mxu0 0
    %5333 = vmatmul.mubr.bf16.gmra.mrb[0].mxu0 %v5236
    %v5334 = vpop.f32.mrb[0].mxu0
    %v5335 = vadd.f32 0.0, %v5334
    %v5336 = vpop.f32.mrb[0].mxu0
    %v5337 = vpop.f32.mrb[0].mxu0
    %v5338 = vadd.f32 0.0, %v5337
    %v5339 = vpop.f32.mrb[0].mxu0
    %5340 = vmatprep.mubr.bf16.mxu0 0
    %5341 = vmatmul.mubr.bf16.gmra.mrb[0].mxu0 %v5237
    %v5342 = vpop.f32.mrb[0].mxu0
    %v5343 = vadd.f32 0.0, %v5342
    %v5344 = vpop.f32.mrb[0].mxu0
    %v5345 = vpop.f32.mrb[0].mxu0
    %v5346 = vadd.f32 0.0, %v5345
    %v5347 = vpop.f32.mrb[0].mxu0
    %5348 = vmatprep.mubr.bf16.mxu0 0
    %5349 = vmatmul.mubr.bf16.gmra.mrb[0].mxu0 %v5238
    %v5350 = vpop.f32.mrb[0].mxu0
    %v5351 = vadd.f32 0.0, %v5350
    %v5352 = vpop.f32.mrb[0].mxu0
    %v5353 = vpop.f32.mrb[0].mxu0
    %v5354 = vadd.f32 0.0, %v5353
    %v5355 = vpop.f32.mrb[0].mxu0
    %5356 = vmatprep.mubr.bf16.mxu0 0
    %5357 = vmatmul.mubr.bf16.gmra.mrb[0].mxu0 %v5239
    %v5358 = vpop.f32.mrb[0].mxu0
    %v5359 = vadd.f32 0.0, %v5358
    %v5360 = vpop.f32.mrb[0].mxu0
    %v5361 = vpop.f32.mrb[0].mxu0
    %v5362 = vadd.f32 0.0, %v5361
    %v5363 = vpop.f32.mrb[0].mxu0
    %5364 = vmatprep.mubr.bf16.mxu0 0
    %5365 = vmatmul.mubr.bf16.gmra.mrb[0].mxu0 %v5240
    %v5366 = vpop.f32.mrb[0].mxu0
    %v5367 = vadd.f32 0.0, %v5366
    %v5368 = vpop.f32.mrb[0].mxu0
    %v5369 = vpop.f32.mrb[0].mxu0
    %v5370 = vadd.f32 0.0, %v5369
    %v5371 = vpop.f32.mrb[0].mxu0
    %5372 = vmatprep.mubr.bf16.mxu0 0
    %5373 = vmatmul.mubr.bf16.gmra.mrb[0].mxu0 %v5241
    %v5374 = vpop.f32.mrb[0].mxu0
    %v5375 = vadd.f32 0.0, %v5374
    %v5376 = vpop.f32.mrb[0].mxu0
    %v5377 = vpop.f32.mrb[0].mxu0
    %v5378 = vadd.f32 0.0, %v5377
    %v5379 = vpop.f32.mrb[0].mxu0
    %5380 = vmatprep.mubr.bf16.mxu0 0
    %5381 = vmatmul.mubr.bf16.gmra.mrb[0].mxu0 %v5242
    %v5382 = vpop.f32.mrb[0].mxu0
    %v5383 = vadd.f32 0.0, %v5382
    %v5384 = vpop.f32.mrb[0].mxu0
    %v5385 = vpop.f32.mrb[0].mxu0
    %v5386 = vadd.f32 0.0, %v5385
    %v5387 = vpop.f32.mrb[0].mxu0
    %5388 = vmatprep.mubr.bf16.mxu0 0
    %5389 = vmatmul.mubr.bf16.gmra.mrb[0].mxu0 %v5243
    %v5390 = vpop.f32.mrb[0].mxu0
    %v5391 = vadd.f32 0.0, %v5390
    %v5392 = vpop.f32.mrb[0].mxu0
    %v5393 = vpop.f32.mrb[0].mxu0
    %v5394 = vadd.f32 0.0, %v5393
    %v5395 = vpop.f32.mrb[0].mxu0
    %5396 = vmatprep.mubr.bf16.mxu0 0
    %5397 = vmatmul.mubr.bf16.gmra.mrb[0].mxu0 %v5244
    %v5398 = vpop.f32.mrb[0].mxu0
    %v5399 = vadd.f32 0.0, %v5398
    %v5400 = vpop.f32.mrb[0].mxu0
    %v5401 = vpop.f32.mrb[0].mxu0
    %v5402 = vadd.f32 0.0, %v5401
    %v5403 = vpop.f32.mrb[0].mxu0
    %5404 = vmatprep.mubr.bf16.mxu0 0
    %5405 = vmatmul.mubr.bf16.gmra.mrb[0].mxu0 %v5245
    %v5406 = vpop.f32.mrb[0].mxu0
    %v5407 = vadd.f32 0.0, %v5406
    %v5408 = vpop.f32.mrb[0].mxu0
    %v5409 = vpop.f32.mrb[0].mxu0
    %v5410 = vadd.f32 0.0, %v5409
    %v5411 = vpop.f32.mrb[0].mxu0
    %5412 = vmatprep.mubr.bf16.mxu0 0
    %5413 = vmatmul.mubr.bf16.gmra.mrb[0].mxu0 %v5246
    %v5414 = vpop.f32.mrb[0].mxu0
    %v5415 = vadd.f32 0.0, %v5414
    %v5416 = vpop.f32.mrb[0].mxu0
    %v5417 = vpop.f32.mrb[0].mxu0
    %v5418 = vadd.f32 0.0, %v5417
    %v5419 = vpop.f32.mrb[0].mxu0
    %5420 = vmatprep.mubr.bf16.mxu0 0
    %5421 = vmatmul.mubr.bf16.gmra.mrb[0].mxu0 %v5247
    %v5422 = vpop.f32.mrb[0].mxu0
    %v5423 = vadd.f32 0.0, %v5422
    %v5424 = vpop.f32.mrb[0].mxu0
    %v5425 = vpop.f32.mrb[0].mxu0
    %v5426 = vadd.f32 0.0, %v5425
    %v5427 = vpop.f32.mrb[0].mxu0
    %5428 = vmatprep.mubr.bf16.mxu0 0
    %5429 = vmatmul.mubr.bf16.gmra.mrb[0].mxu0 %v5248
    %v5430 = vpop.f32.mrb[0].mxu0
    %v5431 = vadd.f32 0.0, %v5430
    %v5432 = vpop.f32.mrb[0].mxu0
    %v5433 = vpop.f32.mrb[0].mxu0
    %v5434 = vadd.f32 0.0, %v5433
    %v5435 = vpop.f32.mrb[0].mxu0
    %5436 = vmatprep.mubr.bf16.mxu0 0
    %5437 = vmatmul.mubr.bf16.gmra.mrb[0].mxu0 %v5249
    %v5438 = vpop.f32.mrb[0].mxu0
    %v5439 = vadd.f32 0.0, %v5438
    %v5440 = vpop.f32.mrb[0].mxu0
    %v5441 = vpop.f32.mrb[0].mxu0
    %v5442 = vadd.f32 0.0, %v5441
    %v5443 = vpop.f32.mrb[0].mxu0
    %5444 = vdwg.mxu0
    %v5445 = vld [vmem:[#allocation4 + $0x24] sm:$0xf]
    %v5446 = vunpack.c.l.bf16 %v5445
    %v5447 = vld [vmem:[#allocation4 + $0x28] sm:$0xf]
    %v5448 = vunpack.c.l.bf16 %v5447
    %v5450 = vsel %vm3264, %v5319, 0
    %v5453 = vsel %vm3264, %v5322, 0
    %v5456 = vsel %vm3264, %v5327, 0
    %v5459 = vsel %vm3264, %v5330, 0
    %5461 = vmatprep.subr.mxu0 0.0
    %5462 = vmatpush1.msra.mxu0 %v5448
    %5463 = vmatprep.subr.mxu0 0.0
    %5464 = vmatpush1.msra.mxu0 0.0
    %5465 = vmatprep.subr.mxu0 0.0
    %5466 = vmatpush1.msra.mxu0 0.0
    %5467 = vmatprep.subr.mxu0 0.0
    %5468 = vmatpush1.msra.mxu0 0.0
    %5469 = vmatprep.subr.mxu0 0.0
    %5470 = vmatpush1.msra.mxu0 0.0
    %5471 = vmatprep.subr.mxu0 0.0
    %5472 = vmatpush1.msra.mxu0 0.0
    %5473 = vmatprep.subr.mxu0 0.0
    %5474 = vmatpush1.msra.mxu0 0.0
    %5475 = vmatprep.subr.mxu0 0.0
    %5476 = vmatpush1.msra.mxu0 0.0
    %5477 = vmatprep.subr.mxu0 0.0
    %5478 = vmatpush1.msra.mxu0 0.0
    %5479 = vmatprep.subr.mxu0 0.0
    %5480 = vmatpush1.msra.mxu0 0.0
    %5481 = vmatprep.subr.mxu0 0.0
    %5482 = vmatpush1.msra.mxu0 0.0
    %5483 = vmatprep.subr.mxu0 0.0
    %5484 = vmatpush1.msra.mxu0 0.0
    %5485 = vmatprep.subr.mxu0 0.0
    %5486 = vmatpush1.msra.mxu0 0.0
    %5487 = vmatprep.subr.mxu0 0.0
    %5488 = vmatpush1.msra.mxu0 0.0
    %5489 = vmatprep.subr.mxu0 0.0
    %5490 = vmatpush1.msra.mxu0 0.0
    %5491 = vmatprep.subr.mxu0 0.0
    %5492 = vmatpush1.msra.mxu0 0.0
    %5493 = vmatprep.subr.mxu0 0.0
    %5494 = vmatpush1.msra.mxu0 0.0
    %5495 = vmatprep.subr.mxu0 0.0
    %5496 = vmatpush1.msra.mxu0 0.0
    %5497 = vmatprep.subr.mxu0 0.0
    %5498 = vmatpush1.msra.mxu0 0.0
    %5499 = vmatprep.subr.mxu0 0.0
    %5500 = vmatpush1.msra.mxu0 0.0
    %5501 = vmatprep.subr.mxu0 0.0
    %5502 = vmatpush1.msra.mxu0 0.0
    %5503 = vmatprep.subr.mxu0 0.0
    %5504 = vmatpush1.msra.mxu0 0.0
    %5505 = vmatprep.subr.mxu0 0.0
    %5506 = vmatpush1.msra.mxu0 0.0
    %5507 = vmatprep.subr.mxu0 0.0
    %5508 = vmatpush1.msra.mxu0 0.0
    %5509 = vmatprep.subr.mxu0 0.0
    %5510 = vmatpush1.msra.mxu0 0.0
    %5511 = vmatprep.subr.mxu0 0.0
    %5512 = vmatpush1.msra.mxu0 0.0
    %5513 = vmatprep.subr.mxu0 0.0
    %5514 = vmatpush1.msra.mxu0 0.0
    %5515 = vmatprep.subr.mxu0 0.0
    %5516 = vmatpush1.msra.mxu0 0.0
    %5517 = vmatprep.subr.mxu0 0.0
    %5518 = vmatpush1.msra.mxu0 0.0
    %5519 = vmatprep.subr.mxu0 0.0
    %5520 = vmatpush1.msra.mxu0 0.0
    %5521 = vmatprep.subr.mxu0 0.0
    %5522 = vmatpush1.msra.mxu0 0.0
    %5523 = vmatprep.subr.mxu0 0.0
    %5524 = vmatpush1.msra.mxu0 0.0
    %5525 = vmatprep.mubr.f32.mxu0 0.0
    %5526 = vmatmul.mubr.f32.gmra.mrb[0].mxu0 %v5450
    %v5527 = vpop.f32.mrb[0].mxu0
    %v5528 = vadd.f32 0.0, %v5527
    %v5529 = vpop.f32.mrb[0].mxu0
    %5530 = vmatprep.mubr.f32.mxu0 0.0
    %5531 = vmatmul.mubr.f32.gmra.mrb[0].mxu0 %v5453
    %v5532 = vpop.f32.mrb[0].mxu0
    %v5533 = vadd.f32 0.0, %v5532
    %v5534 = vpop.f32.mrb[0].mxu0
    %5535 = vmatprep.mubr.f32.mxu0 0.0
    %5536 = vmatmul.mubr.f32.gmra.mrb[0].mxu0 %v5456
    %v5537 = vpop.f32.mrb[0].mxu0
    %v5538 = vadd.f32 0.0, %v5537
    %v5539 = vpop.f32.mrb[0].mxu0
    %5540 = vmatprep.mubr.f32.mxu0 0.0
    %5541 = vmatmul.mubr.f32.gmra.mrb[0].mxu0 %v5459
    %v5542 = vpop.f32.mrb[0].mxu0
    %v5543 = vadd.f32 0.0, %v5542
    %v5544 = vpop.f32.mrb[0].mxu0
    %5545 = vdwg.mxu0
    %v5546 = vld [vmem:[#allocation4 + $0x2c] sm:$0xf]
    %v5547 = vunpack.c.l.bf16 %v5546
    %v5548 = vld [vmem:[#allocation4 + $0x30] sm:$0xf]
    %v5549 = vunpack.c.l.bf16 %v5548
    %v5551 = vsel %vm3264, %v5351, 0
    %v5554 = vsel %vm3264, %v5354, 0
    %v5557 = vsel %vm3264, %v5359, 0
    %v5560 = vsel %vm3264, %v5362, 0
    %5562 = vmatprep.subr.mxu0 0.0
    %5563 = vmatpush1.msra.mxu0 %v5549
    %5564 = vmatprep.subr.mxu0 0.0
    %5565 = vmatpush1.msra.mxu0 0.0
    %5566 = vmatprep.subr.mxu0 0.0
    %5567 = vmatpush1.msra.mxu0 0.0
    %5568 = vmatprep.subr.mxu0 0.0
    %5569 = vmatpush1.msra.mxu0 0.0
    %5570 = vmatprep.subr.mxu0 0.0
    %5571 = vmatpush1.msra.mxu0 0.0
    %5572 = vmatprep.subr.mxu0 0.0
    %5573 = vmatpush1.msra.mxu0 0.0
    %5574 = vmatprep.subr.mxu0 0.0
    %5575 = vmatpush1.msra.mxu0 0.0
    %5576 = vmatprep.subr.mxu0 0.0
    %5577 = vmatpush1.msra.mxu0 0.0
    %5578 = vmatprep.subr.mxu0 0.0
    %5579 = vmatpush1.msra.mxu0 0.0
    %5580 = vmatprep.subr.mxu0 0.0
    %5581 = vmatpush1.msra.mxu0 0.0
    %5582 = vmatprep.subr.mxu0 0.0
    %5583 = vmatpush1.msra.mxu0 0.0
    %5584 = vmatprep.subr.mxu0 0.0
    %5585 = vmatpush1.msra.mxu0 0.0
    %5586 = vmatprep.subr.mxu0 0.0
    %5587 = vmatpush1.msra.mxu0 0.0
    %5588 = vmatprep.subr.mxu0 0.0
    %5589 = vmatpush1.msra.mxu0 0.0
    %5590 = vmatprep.subr.mxu0 0.0
    %5591 = vmatpush1.msra.mxu0 0.0
    %5592 = vmatprep.subr.mxu0 0.0
    %5593 = vmatpush1.msra.mxu0 0.0
    %5594 = vmatprep.subr.mxu0 0.0
    %5595 = vmatpush1.msra.mxu0 0.0
    %5596 = vmatprep.subr.mxu0 0.0
    %5597 = vmatpush1.msra.mxu0 0.0
    %5598 = vmatprep.subr.mxu0 0.0
    %5599 = vmatpush1.msra.mxu0 0.0
    %5600 = vmatprep.subr.mxu0 0.0
    %5601 = vmatpush1.msra.mxu0 0.0
    %5602 = vmatprep.subr.mxu0 0.0
    %5603 = vmatpush1.msra.mxu0 0.0
    %5604 = vmatprep.subr.mxu0 0.0
    %5605 = vmatpush1.msra.mxu0 0.0
    %5606 = vmatprep.subr.mxu0 0.0
    %5607 = vmatpush1.msra.mxu0 0.0
    %5608 = vmatprep.subr.mxu0 0.0
    %5609 = vmatpush1.msra.mxu0 0.0
    %5610 = vmatprep.subr.mxu0 0.0
    %5611 = vmatpush1.msra.mxu0 0.0
    %5612 = vmatprep.subr.mxu0 0.0
    %5613 = vmatpush1.msra.mxu0 0.0
    %5614 = vmatprep.subr.mxu0 0.0
    %5615 = vmatpush1.msra.mxu0 0.0
    %5616 = vmatprep.subr.mxu0 0.0
    %5617 = vmatpush1.msra.mxu0 0.0
    %5618 = vmatprep.subr.mxu0 0.0
    %5619 = vmatpush1.msra.mxu0 0.0
    %5620 = vmatprep.subr.mxu0 0.0
    %5621 = vmatpush1.msra.mxu0 0.0
    %5622 = vmatprep.subr.mxu0 0.0
    %5623 = vmatpush1.msra.mxu0 0.0
    %5624 = vmatprep.subr.mxu0 0.0
    %5625 = vmatpush1.msra.mxu0 0.0
    %5626 = vmatprep.mubr.f32.mxu0 0.0
    %5627 = vmatmul.mubr.f32.gmra.mrb[0].mxu0 %v5551
    %v5628 = vpop.f32.mrb[0].mxu0
    %v5629 = vadd.f32 0.0, %v5628
    %v5630 = vpop.f32.mrb[0].mxu0
    %5631 = vmatprep.mubr.f32.mxu0 0.0
    %5632 = vmatmul.mubr.f32.gmra.mrb[0].mxu0 %v5554
    %v5633 = vpop.f32.mrb[0].mxu0
    %v5634 = vadd.f32 0.0, %v5633
    %v5635 = vpop.f32.mrb[0].mxu0
    %5636 = vmatprep.mubr.f32.mxu0 0.0
    %5637 = vmatmul.mubr.f32.gmra.mrb[0].mxu0 %v5557
    %v5638 = vpop.f32.mrb[0].mxu0
    %v5639 = vadd.f32 0.0, %v5638
    %v5640 = vpop.f32.mrb[0].mxu0
    %5641 = vmatprep.mubr.f32.mxu0 0.0
    %5642 = vmatmul.mubr.f32.gmra.mrb[0].mxu0 %v5560
    %v5643 = vpop.f32.mrb[0].mxu0
    %v5644 = vadd.f32 0.0, %v5643
    %v5645 = vpop.f32.mrb[0].mxu0
    %5646 = vdwg.mxu0
    %v5647 = vld [vmem:[#allocation4 + $0x34] sm:$0xf]
    %v5648 = vunpack.c.l.bf16 %v5647
    %v5649 = vld [vmem:[#allocation4 + $0x38] sm:$0xf]
    %v5650 = vunpack.c.l.bf16 %v5649
    %v5652 = vsel %vm3264, %v5383, 0
    %v5655 = vsel %vm3264, %v5386, 0
    %v5658 = vsel %vm3264, %v5391, 0
    %v5661 = vsel %vm3264, %v5394, 0
    %5663 = vmatprep.subr.mxu0 0.0
    %5664 = vmatpush1.msra.mxu0 %v5650
    %5665 = vmatprep.subr.mxu0 0.0
    %5666 = vmatpush1.msra.mxu0 0.0
    %5667 = vmatprep.subr.mxu0 0.0
    %5668 = vmatpush1.msra.mxu0 0.0
    %5669 = vmatprep.subr.mxu0 0.0
    %5670 = vmatpush1.msra.mxu0 0.0
    %5671 = vmatprep.subr.mxu0 0.0
    %5672 = vmatpush1.msra.mxu0 0.0
    %5673 = vmatprep.subr.mxu0 0.0
    %5674 = vmatpush1.msra.mxu0 0.0
    %5675 = vmatprep.subr.mxu0 0.0
    %5676 = vmatpush1.msra.mxu0 0.0
    %5677 = vmatprep.subr.mxu0 0.0
    %5678 = vmatpush1.msra.mxu0 0.0
    %5679 = vmatprep.subr.mxu0 0.0
    %5680 = vmatpush1.msra.mxu0 0.0
    %5681 = vmatprep.subr.mxu0 0.0
    %5682 = vmatpush1.msra.mxu0 0.0
    %5683 = vmatprep.subr.mxu0 0.0
    %5684 = vmatpush1.msra.mxu0 0.0
    %5685 = vmatprep.subr.mxu0 0.0
    %5686 = vmatpush1.msra.mxu0 0.0
    %5687 = vmatprep.subr.mxu0 0.0
    %5688 = vmatpush1.msra.mxu0 0.0
    %5689 = vmatprep.subr.mxu0 0.0
    %5690 = vmatpush1.msra.mxu0 0.0
    %5691 = vmatprep.subr.mxu0 0.0
    %5692 = vmatpush1.msra.mxu0 0.0
    %5693 = vmatprep.subr.mxu0 0.0
    %5694 = vmatpush1.msra.mxu0 0.0
    %5695 = vmatprep.subr.mxu0 0.0
    %5696 = vmatpush1.msra.mxu0 0.0
    %5697 = vmatprep.subr.mxu0 0.0
    %5698 = vmatpush1.msra.mxu0 0.0
    %5699 = vmatprep.subr.mxu0 0.0
    %5700 = vmatpush1.msra.mxu0 0.0
    %5701 = vmatprep.subr.mxu0 0.0
    %5702 = vmatpush1.msra.mxu0 0.0
    %5703 = vmatprep.subr.mxu0 0.0
    %5704 = vmatpush1.msra.mxu0 0.0
    %5705 = vmatprep.subr.mxu0 0.0
    %5706 = vmatpush1.msra.mxu0 0.0
    %5707 = vmatprep.subr.mxu0 0.0
    %5708 = vmatpush1.msra.mxu0 0.0
    %5709 = vmatprep.subr.mxu0 0.0
    %5710 = vmatpush1.msra.mxu0 0.0
    %5711 = vmatprep.subr.mxu0 0.0
    %5712 = vmatpush1.msra.mxu0 0.0
    %5713 = vmatprep.subr.mxu0 0.0
    %5714 = vmatpush1.msra.mxu0 0.0
    %5715 = vmatprep.subr.mxu0 0.0
    %5716 = vmatpush1.msra.mxu0 0.0
    %5717 = vmatprep.subr.mxu0 0.0
    %5718 = vmatpush1.msra.mxu0 0.0
    %5719 = vmatprep.subr.mxu0 0.0
    %5720 = vmatpush1.msra.mxu0 0.0
    %5721 = vmatprep.subr.mxu0 0.0
    %5722 = vmatpush1.msra.mxu0 0.0
    %5723 = vmatprep.subr.mxu0 0.0
    %5724 = vmatpush1.msra.mxu0 0.0
    %5725 = vmatprep.subr.mxu0 0.0
    %5726 = vmatpush1.msra.mxu0 0.0
    %5727 = vmatprep.mubr.f32.mxu0 0.0
    %5728 = vmatmul.mubr.f32.gmra.mrb[0].mxu0 %v5652
    %v5729 = vpop.f32.mrb[0].mxu0
    %v5730 = vadd.f32 0.0, %v5729
    %v5731 = vpop.f32.mrb[0].mxu0
    %5732 = vmatprep.mubr.f32.mxu0 0.0
    %5733 = vmatmul.mubr.f32.gmra.mrb[0].mxu0 %v5655
    %v5734 = vpop.f32.mrb[0].mxu0
    %v5735 = vadd.f32 0.0, %v5734
    %v5736 = vpop.f32.mrb[0].mxu0
    %5737 = vmatprep.mubr.f32.mxu0 0.0
    %5738 = vmatmul.mubr.f32.gmra.mrb[0].mxu0 %v5658
    %v5739 = vpop.f32.mrb[0].mxu0
    %v5740 = vadd.f32 0.0, %v5739
    %v5741 = vpop.f32.mrb[0].mxu0
    %5742 = vmatprep.mubr.f32.mxu0 0.0
    %5743 = vmatmul.mubr.f32.gmra.mrb[0].mxu0 %v5661
    %v5744 = vpop.f32.mrb[0].mxu0
    %v5745 = vadd.f32 0.0, %v5744
    %v5746 = vpop.f32.mrb[0].mxu0
    %5747 = vdwg.mxu0
    %v5748 = vld [vmem:[#allocation4 + $0x3c] sm:$0xf]
    %v5749 = vunpack.c.l.bf16 %v5748
    %v5750 = vld [vmem:[#allocation4 + $0x40] sm:$0xf]
    %v5751 = vunpack.c.l.bf16 %v5750
    %v5753 = vsel %vm3264, %v5415, 0
    %v5756 = vsel %vm3264, %v5418, 0
    %v5759 = vsel %vm3264, %v5423, 0
    %v5762 = vsel %vm3264, %v5426, 0
    %5764 = vmatprep.subr.mxu0 0.0
    %5765 = vmatpush1.msra.mxu0 %v5751
    %5766 = vmatprep.subr.mxu0 0.0
    %5767 = vmatpush1.msra.mxu0 0.0
    %5768 = vmatprep.subr.mxu0 0.0
    %5769 = vmatpush1.msra.mxu0 0.0
    %5770 = vmatprep.subr.mxu0 0.0
    %5771 = vmatpush1.msra.mxu0 0.0
    %5772 = vmatprep.subr.mxu0 0.0
    %5773 = vmatpush1.msra.mxu0 0.0
    %5774 = vmatprep.subr.mxu0 0.0
    %5775 = vmatpush1.msra.mxu0 0.0
    %5776 = vmatprep.subr.mxu0 0.0
    %5777 = vmatpush1.msra.mxu0 0.0
    %5778 = vmatprep.subr.mxu0 0.0
    %5779 = vmatpush1.msra.mxu0 0.0
    %5780 = vmatprep.subr.mxu0 0.0
    %5781 = vmatpush1.msra.mxu0 0.0
    %5782 = vmatprep.subr.mxu0 0.0
    %5783 = vmatpush1.msra.mxu0 0.0
    %5784 = vmatprep.subr.mxu0 0.0
    %5785 = vmatpush1.msra.mxu0 0.0
    %5786 = vmatprep.subr.mxu0 0.0
    %5787 = vmatpush1.msra.mxu0 0.0
    %5788 = vmatprep.subr.mxu0 0.0
    %5789 = vmatpush1.msra.mxu0 0.0
    %5790 = vmatprep.subr.mxu0 0.0
    %5791 = vmatpush1.msra.mxu0 0.0
    %5792 = vmatprep.subr.mxu0 0.0
    %5793 = vmatpush1.msra.mxu0 0.0
    %5794 = vmatprep.subr.mxu0 0.0
    %5795 = vmatpush1.msra.mxu0 0.0
    %5796 = vmatprep.subr.mxu0 0.0
    %5797 = vmatpush1.msra.mxu0 0.0
    %5798 = vmatprep.subr.mxu0 0.0
    %5799 = vmatpush1.msra.mxu0 0.0
    %5800 = vmatprep.subr.mxu0 0.0
    %5801 = vmatpush1.msra.mxu0 0.0
    %5802 = vmatprep.subr.mxu0 0.0
    %5803 = vmatpush1.msra.mxu0 0.0
    %5804 = vmatprep.subr.mxu0 0.0
    %5805 = vmatpush1.msra.mxu0 0.0
    %5806 = vmatprep.subr.mxu0 0.0
    %5807 = vmatpush1.msra.mxu0 0.0
    %5808 = vmatprep.subr.mxu0 0.0
    %5809 = vmatpush1.msra.mxu0 0.0
    %5810 = vmatprep.subr.mxu0 0.0
    %5811 = vmatpush1.msra.mxu0 0.0
    %5812 = vmatprep.subr.mxu0 0.0
    %5813 = vmatpush1.msra.mxu0 0.0
    %5814 = vmatprep.subr.mxu0 0.0
    %5815 = vmatpush1.msra.mxu0 0.0
    %5816 = vmatprep.subr.mxu0 0.0
    %5817 = vmatpush1.msra.mxu0 0.0
    %5818 = vmatprep.subr.mxu0 0.0
    %5819 = vmatpush1.msra.mxu0 0.0
    %5820 = vmatprep.subr.mxu0 0.0
    %5821 = vmatpush1.msra.mxu0 0.0
    %5822 = vmatprep.subr.mxu0 0.0
    %5823 = vmatpush1.msra.mxu0 0.0
    %5824 = vmatprep.subr.mxu0 0.0
    %5825 = vmatpush1.msra.mxu0 0.0
    %5826 = vmatprep.subr.mxu0 0.0
    %5827 = vmatpush1.msra.mxu0 0.0
    %5828 = vmatprep.mubr.f32.mxu0 0.0
    %5829 = vmatmul.mubr.f32.gmra.mrb[0].mxu0 %v5753
    %v5830 = vpop.f32.mrb[0].mxu0
    %v5831 = vadd.f32 0.0, %v5830
    %v5832 = vpop.f32.mrb[0].mxu0
    %5833 = vmatprep.mubr.f32.mxu0 0.0
    %5834 = vmatmul.mubr.f32.gmra.mrb[0].mxu0 %v5756
    %v5835 = vpop.f32.mrb[0].mxu0
    %v5836 = vadd.f32 0.0, %v5835
    %v5837 = vpop.f32.mrb[0].mxu0
    %5838 = vmatprep.mubr.f32.mxu0 0.0
    %5839 = vmatmul.mubr.f32.gmra.mrb[0].mxu0 %v5759
    %v5840 = vpop.f32.mrb[0].mxu0
    %v5841 = vadd.f32 0.0, %v5840
    %v5842 = vpop.f32.mrb[0].mxu0
    %5843 = vmatprep.mubr.f32.mxu0 0.0
    %5844 = vmatmul.mubr.f32.gmra.mrb[0].mxu0 %v5762
    %v5845 = vpop.f32.mrb[0].mxu0
    %v5846 = vadd.f32 0.0, %v5845
    %v5847 = vpop.f32.mrb[0].mxu0
    %5848 = vdwg.mxu0
    %v5849 = vld [vmem:[#allocation4 + $0x44] sm:$0xf]
    %v5850 = vunpack.c.l.bf16 %v5849
    %v5852 = vsel %vm3264, %v5431, 0
    %v5855 = vsel %vm3264, %v5434, 0
    %v5858 = vsel %vm3264, %v5439, 0
    %v5861 = vsel %vm3264, %v5442, 0
    %5863 = vmatprep.subr.mxu0 0.0
    %5864 = vmatpush1.msra.mxu0 %v5850
    %5865 = vmatprep.subr.mxu0 0.0
    %5866 = vmatpush1.msra.mxu0 0.0
    %5867 = vmatprep.subr.mxu0 0.0
    %5868 = vmatpush1.msra.mxu0 0.0
    %5869 = vmatprep.subr.mxu0 0.0
    %5870 = vmatpush1.msra.mxu0 0.0
    %5871 = vmatprep.subr.mxu0 0.0
    %5872 = vmatpush1.msra.mxu0 0.0
    %5873 = vmatprep.subr.mxu0 0.0
    %5874 = vmatpush1.msra.mxu0 0.0
    %5875 = vmatprep.subr.mxu0 0.0
    %5876 = vmatpush1.msra.mxu0 0.0
    %5877 = vmatprep.subr.mxu0 0.0
    %5878 = vmatpush1.msra.mxu0 0.0
    %5879 = vmatprep.subr.mxu0 0.0
    %5880 = vmatpush1.msra.mxu0 0.0
    %5881 = vmatprep.subr.mxu0 0.0
    %5882 = vmatpush1.msra.mxu0 0.0
    %5883 = vmatprep.subr.mxu0 0.0
    %5884 = vmatpush1.msra.mxu0 0.0
    %5885 = vmatprep.subr.mxu0 0.0
    %5886 = vmatpush1.msra.mxu0 0.0
    %5887 = vmatprep.subr.mxu0 0.0
    %5888 = vmatpush1.msra.mxu0 0.0
    %5889 = vmatprep.subr.mxu0 0.0
    %5890 = vmatpush1.msra.mxu0 0.0
    %5891 = vmatprep.subr.mxu0 0.0
    %5892 = vmatpush1.msra.mxu0 0.0
    %5893 = vmatprep.subr.mxu0 0.0
    %5894 = vmatpush1.msra.mxu0 0.0
    %5895 = vmatprep.subr.mxu0 0.0
    %5896 = vmatpush1.msra.mxu0 0.0
    %5897 = vmatprep.subr.mxu0 0.0
    %5898 = vmatpush1.msra.mxu0 0.0
    %5899 = vmatprep.subr.mxu0 0.0
    %5900 = vmatpush1.msra.mxu0 0.0
    %5901 = vmatprep.subr.mxu0 0.0
    %5902 = vmatpush1.msra.mxu0 0.0
    %5903 = vmatprep.subr.mxu0 0.0
    %5904 = vmatpush1.msra.mxu0 0.0
    %5905 = vmatprep.subr.mxu0 0.0
    %5906 = vmatpush1.msra.mxu0 0.0
    %5907 = vmatprep.subr.mxu0 0.0
    %5908 = vmatpush1.msra.mxu0 0.0
    %5909 = vmatprep.subr.mxu0 0.0
    %5910 = vmatpush1.msra.mxu0 0.0
    %5911 = vmatprep.subr.mxu0 0.0
    %5912 = vmatpush1.msra.mxu0 0.0
    %5913 = vmatprep.subr.mxu0 0.0
    %5914 = vmatpush1.msra.mxu0 0.0
    %5915 = vmatprep.subr.mxu0 0.0
    %5916 = vmatpush1.msra.mxu0 0.0
    %5917 = vmatprep.subr.mxu0 0.0
    %5918 = vmatpush1.msra.mxu0 0.0
    %5919 = vmatprep.subr.mxu0 0.0
    %5920 = vmatpush1.msra.mxu0 0.0
    %5921 = vmatprep.subr.mxu0 0.0
    %5922 = vmatpush1.msra.mxu0 0.0
    %5923 = vmatprep.subr.mxu0 0.0
    %5924 = vmatpush1.msra.mxu0 0.0
    %5925 = vmatprep.subr.mxu0 0.0
    %5926 = vmatpush1.msra.mxu0 0.0
    %5927 = vmatprep.mubr.f32.mxu0 0.0
    %5928 = vmatmul.mubr.f32.gmra.mrb[0].mxu0 %v5852
    %v5929 = vpop.f32.mrb[0].mxu0
    %v5930 = vadd.f32 0.0, %v5929
    %v5931 = vpop.f32.mrb[0].mxu0
    %5932 = vmatprep.mubr.f32.mxu0 0.0
    %5933 = vmatmul.mubr.f32.gmra.mrb[0].mxu0 %v5855
    %v5934 = vpop.f32.mrb[0].mxu0
    %v5935 = vadd.f32 0.0, %v5934
    %v5936 = vpop.f32.mrb[0].mxu0
    %5937 = vmatprep.mubr.f32.mxu0 0.0
    %5938 = vmatmul.mubr.f32.gmra.mrb[0].mxu0 %v5858
    %v5939 = vpop.f32.mrb[0].mxu0
    %v5940 = vadd.f32 0.0, %v5939
    %v5941 = vpop.f32.mrb[0].mxu0
    %5942 = vmatprep.mubr.f32.mxu0 0.0
    %5943 = vmatmul.mubr.f32.gmra.mrb[0].mxu0 %v5861
    %v5944 = vpop.f32.mrb[0].mxu0
    %v5945 = vadd.f32 0.0, %v5944
    %v5946 = vpop.f32.mrb[0].mxu0
    %5947 = vdwg.mxu0
    %v5949 = vsel %vm3264, %v5303, 0
    %v5952 = vsel %vm3264, %v5306, 0
    %v5955 = vsel %vm3264, %v5311, 0
    %v5958 = vsel %vm3264, %v5314, 0
    %5960 = vmatprep.subr.mxu0 0.0
    %5961 = vmatpush1.msra.mxu0 %v5446
    %5962 = vmatprep.subr.mxu0 0.0
    %5963 = vmatpush1.msra.mxu0 0.0
    %5964 = vmatprep.subr.mxu0 0.0
    %5965 = vmatpush1.msra.mxu0 0.0
    %5966 = vmatprep.subr.mxu0 0.0
    %5967 = vmatpush1.msra.mxu0 0.0
    %5968 = vmatprep.subr.mxu0 0.0
    %5969 = vmatpush1.msra.mxu0 0.0
    %5970 = vmatprep.subr.mxu0 0.0
    %5971 = vmatpush1.msra.mxu0 0.0
    %5972 = vmatprep.subr.mxu0 0.0
    %5973 = vmatpush1.msra.mxu0 0.0
    %5974 = vmatprep.subr.mxu0 0.0
    %5975 = vmatpush1.msra.mxu0 0.0
    %5976 = vmatprep.subr.mxu0 0.0
    %5977 = vmatpush1.msra.mxu0 0.0
    %5978 = vmatprep.subr.mxu0 0.0
    %5979 = vmatpush1.msra.mxu0 0.0
    %5980 = vmatprep.subr.mxu0 0.0
    %5981 = vmatpush1.msra.mxu0 0.0
    %5982 = vmatprep.subr.mxu0 0.0
    %5983 = vmatpush1.msra.mxu0 0.0
    %5984 = vmatprep.subr.mxu0 0.0
    %5985 = vmatpush1.msra.mxu0 0.0
    %5986 = vmatprep.subr.mxu0 0.0
    %5987 = vmatpush1.msra.mxu0 0.0
    %5988 = vmatprep.subr.mxu0 0.0
    %5989 = vmatpush1.msra.mxu0 0.0
    %5990 = vmatprep.subr.mxu0 0.0
    %5991 = vmatpush1.msra.mxu0 0.0
    %5992 = vmatprep.subr.mxu0 0.0
    %5993 = vmatpush1.msra.mxu0 0.0
    %5994 = vmatprep.subr.mxu0 0.0
    %5995 = vmatpush1.msra.mxu0 0.0
    %5996 = vmatprep.subr.mxu0 0.0
    %5997 = vmatpush1.msra.mxu0 0.0
    %5998 = vmatprep.subr.mxu0 0.0
    %5999 = vmatpush1.msra.mxu0 0.0
    %6000 = vmatprep.subr.mxu0 0.0
    %6001 = vmatpush1.msra.mxu0 0.0
    %6002 = vmatprep.subr.mxu0 0.0
    %6003 = vmatpush1.msra.mxu0 0.0
    %6004 = vmatprep.subr.mxu0 0.0
    %6005 = vmatpush1.msra.mxu0 0.0
    %6006 = vmatprep.subr.mxu0 0.0
    %6007 = vmatpush1.msra.mxu0 0.0
    %6008 = vmatprep.subr.mxu0 0.0
    %6009 = vmatpush1.msra.mxu0 0.0
    %6010 = vmatprep.subr.mxu0 0.0
    %6011 = vmatpush1.msra.mxu0 0.0
    %6012 = vmatprep.subr.mxu0 0.0
    %6013 = vmatpush1.msra.mxu0 0.0
    %6014 = vmatprep.subr.mxu0 0.0
    %6015 = vmatpush1.msra.mxu0 0.0
    %6016 = vmatprep.subr.mxu0 0.0
    %6017 = vmatpush1.msra.mxu0 0.0
    %6018 = vmatprep.subr.mxu0 0.0
    %6019 = vmatpush1.msra.mxu0 0.0
    %6020 = vmatprep.subr.mxu0 0.0
    %6021 = vmatpush1.msra.mxu0 0.0
    %6022 = vmatprep.subr.mxu0 0.0
    %6023 = vmatpush1.msra.mxu0 0.0
    %6024 = vmatprep.mubr.f32.mxu0 0.0
    %6025 = vmatmul.mubr.f32.gmra.mrb[0].mxu0 %v5949
    %v6026 = vpop.f32.mrb[0].mxu0
    %v6027 = vadd.f32 %v5528, %v6026
    %v6028 = vpop.f32.mrb[0].mxu0
    %6029 = vmatprep.mubr.f32.mxu0 0.0
    %6030 = vmatmul.mubr.f32.gmra.mrb[0].mxu0 %v5952
    %v6031 = vpop.f32.mrb[0].mxu0
    %v6032 = vadd.f32 %v5533, %v6031
    %v6033 = vpop.f32.mrb[0].mxu0
    %6034 = vmatprep.mubr.f32.mxu0 0.0
    %6035 = vmatmul.mubr.f32.gmra.mrb[0].mxu0 %v5955
    %v6036 = vpop.f32.mrb[0].mxu0
    %v6037 = vadd.f32 %v5538, %v6036
    %v6038 = vpop.f32.mrb[0].mxu0
    %6039 = vmatprep.mubr.f32.mxu0 0.0
    %6040 = vmatmul.mubr.f32.gmra.mrb[0].mxu0 %v5958
    %v6041 = vpop.f32.mrb[0].mxu0
    %v6042 = vadd.f32 %v5543, %v6041
    %v6043 = vpop.f32.mrb[0].mxu0
    %6044 = vdwg.mxu0
    %v6046 = vsel %vm3264, %v5335, 0
    %v6049 = vsel %vm3264, %v5338, 0
    %v6052 = vsel %vm3264, %v5343, 0
    %v6055 = vsel %vm3264, %v5346, 0
    %6057 = vmatprep.subr.mxu0 0.0
    %6058 = vmatpush1.msra.mxu0 %v5547
    %6059 = vmatprep.subr.mxu0 0.0
    %6060 = vmatpush1.msra.mxu0 0.0
    %6061 = vmatprep.subr.mxu0 0.0
    %6062 = vmatpush1.msra.mxu0 0.0
    %6063 = vmatprep.subr.mxu0 0.0
    %6064 = vmatpush1.msra.mxu0 0.0
    %6065 = vmatprep.subr.mxu0 0.0
    %6066 = vmatpush1.msra.mxu0 0.0
    %6067 = vmatprep.subr.mxu0 0.0
    %6068 = vmatpush1.msra.mxu0 0.0
    %6069 = vmatprep.subr.mxu0 0.0
    %6070 = vmatpush1.msra.mxu0 0.0
    %6071 = vmatprep.subr.mxu0 0.0
    %6072 = vmatpush1.msra.mxu0 0.0
    %6073 = vmatprep.subr.mxu0 0.0
    %6074 = vmatpush1.msra.mxu0 0.0
    %6075 = vmatprep.subr.mxu0 0.0
    %6076 = vmatpush1.msra.mxu0 0.0
    %6077 = vmatprep.subr.mxu0 0.0
    %6078 = vmatpush1.msra.mxu0 0.0
    %6079 = vmatprep.subr.mxu0 0.0
    %6080 = vmatpush1.msra.mxu0 0.0
    %6081 = vmatprep.subr.mxu0 0.0
    %6082 = vmatpush1.msra.mxu0 0.0
    %6083 = vmatprep.subr.mxu0 0.0
    %6084 = vmatpush1.msra.mxu0 0.0
    %6085 = vmatprep.subr.mxu0 0.0
    %6086 = vmatpush1.msra.mxu0 0.0
    %6087 = vmatprep.subr.mxu0 0.0
    %6088 = vmatpush1.msra.mxu0 0.0
    %6089 = vmatprep.subr.mxu0 0.0
    %6090 = vmatpush1.msra.mxu0 0.0
    %6091 = vmatprep.subr.mxu0 0.0
    %6092 = vmatpush1.msra.mxu0 0.0
    %6093 = vmatprep.subr.mxu0 0.0
    %6094 = vmatpush1.msra.mxu0 0.0
    %6095 = vmatprep.subr.mxu0 0.0
    %6096 = vmatpush1.msra.mxu0 0.0
    %6097 = vmatprep.subr.mxu0 0.0
    %6098 = vmatpush1.msra.mxu0 0.0
    %6099 = vmatprep.subr.mxu0 0.0
    %6100 = vmatpush1.msra.mxu0 0.0
    %6101 = vmatprep.subr.mxu0 0.0
    %6102 = vmatpush1.msra.mxu0 0.0
    %6103 = vmatprep.subr.mxu0 0.0
    %6104 = vmatpush1.msra.mxu0 0.0
    %6105 = vmatprep.subr.mxu0 0.0
    %6106 = vmatpush1.msra.mxu0 0.0
    %6107 = vmatprep.subr.mxu0 0.0
    %6108 = vmatpush1.msra.mxu0 0.0
    %6109 = vmatprep.subr.mxu0 0.0
    %6110 = vmatpush1.msra.mxu0 0.0
    %6111 = vmatprep.subr.mxu0 0.0
    %6112 = vmatpush1.msra.mxu0 0.0
    %6113 = vmatprep.subr.mxu0 0.0
    %6114 = vmatpush1.msra.mxu0 0.0
    %6115 = vmatprep.subr.mxu0 0.0
    %6116 = vmatpush1.msra.mxu0 0.0
    %6117 = vmatprep.subr.mxu0 0.0
    %6118 = vmatpush1.msra.mxu0 0.0
    %6119 = vmatprep.subr.mxu0 0.0
    %6120 = vmatpush1.msra.mxu0 0.0
    %6121 = vmatprep.mubr.f32.mxu0 0.0
    %6122 = vmatmul.mubr.f32.gmra.mrb[0].mxu0 %v6046
    %v6123 = vpop.f32.mrb[0].mxu0
    %v6124 = vadd.f32 %v5629, %v6123
    %v6125 = vpop.f32.mrb[0].mxu0
    %6126 = vmatprep.mubr.f32.mxu0 0.0
    %6127 = vmatmul.mubr.f32.gmra.mrb[0].mxu0 %v6049
    %v6128 = vpop.f32.mrb[0].mxu0
    %v6129 = vadd.f32 %v5634, %v6128
    %v6130 = vpop.f32.mrb[0].mxu0
    %6131 = vmatprep.mubr.f32.mxu0 0.0
    %6132 = vmatmul.mubr.f32.gmra.mrb[0].mxu0 %v6052
    %v6133 = vpop.f32.mrb[0].mxu0
    %v6134 = vadd.f32 %v5639, %v6133
    %v6135 = vpop.f32.mrb[0].mxu0
    %6136 = vmatprep.mubr.f32.mxu0 0.0
    %6137 = vmatmul.mubr.f32.gmra.mrb[0].mxu0 %v6055
    %v6138 = vpop.f32.mrb[0].mxu0
    %v6139 = vadd.f32 %v5644, %v6138
    %v6140 = vpop.f32.mrb[0].mxu0
    %6141 = vdwg.mxu0
    %v6143 = vsel %vm3264, %v5367, 0
    %v6146 = vsel %vm3264, %v5370, 0
    %v6149 = vsel %vm3264, %v5375, 0
    %v6152 = vsel %vm3264, %v5378, 0
    %6154 = vmatprep.subr.mxu0 0.0
    %6155 = vmatpush1.msra.mxu0 %v5648
    %6156 = vmatprep.subr.mxu0 0.0
    %6157 = vmatpush1.msra.mxu0 0.0
    %6158 = vmatprep.subr.mxu0 0.0
    %6159 = vmatpush1.msra.mxu0 0.0
    %6160 = vmatprep.subr.mxu0 0.0
    %6161 = vmatpush1.msra.mxu0 0.0
    %6162 = vmatprep.subr.mxu0 0.0
    %6163 = vmatpush1.msra.mxu0 0.0
    %6164 = vmatprep.subr.mxu0 0.0
    %6165 = vmatpush1.msra.mxu0 0.0
    %6166 = vmatprep.subr.mxu0 0.0
    %6167 = vmatpush1.msra.mxu0 0.0
    %6168 = vmatprep.subr.mxu0 0.0
    %6169 = vmatpush1.msra.mxu0 0.0
    %6170 = vmatprep.subr.mxu0 0.0
    %6171 = vmatpush1.msra.mxu0 0.0
    %6172 = vmatprep.subr.mxu0 0.0
    %6173 = vmatpush1.msra.mxu0 0.0
    %6174 = vmatprep.subr.mxu0 0.0
    %6175 = vmatpush1.msra.mxu0 0.0
    %6176 = vmatprep.subr.mxu0 0.0
    %6177 = vmatpush1.msra.mxu0 0.0
    %6178 = vmatprep.subr.mxu0 0.0
    %6179 = vmatpush1.msra.mxu0 0.0
    %6180 = vmatprep.subr.mxu0 0.0
    %6181 = vmatpush1.msra.mxu0 0.0
    %6182 = vmatprep.subr.mxu0 0.0
    %6183 = vmatpush1.msra.mxu0 0.0
    %6184 = vmatprep.subr.mxu0 0.0
    %6185 = vmatpush1.msra.mxu0 0.0
    %6186 = vmatprep.subr.mxu0 0.0
    %6187 = vmatpush1.msra.mxu0 0.0
    %6188 = vmatprep.subr.mxu0 0.0
    %6189 = vmatpush1.msra.mxu0 0.0
    %6190 = vmatprep.subr.mxu0 0.0
    %6191 = vmatpush1.msra.mxu0 0.0
    %6192 = vmatprep.subr.mxu0 0.0
    %6193 = vmatpush1.msra.mxu0 0.0
    %6194 = vmatprep.subr.mxu0 0.0
    %6195 = vmatpush1.msra.mxu0 0.0
    %6196 = vmatprep.subr.mxu0 0.0
    %6197 = vmatpush1.msra.mxu0 0.0
    %6198 = vmatprep.subr.mxu0 0.0
    %6199 = vmatpush1.msra.mxu0 0.0
    %6200 = vmatprep.subr.mxu0 0.0
    %6201 = vmatpush1.msra.mxu0 0.0
    %6202 = vmatprep.subr.mxu0 0.0
    %6203 = vmatpush1.msra.mxu0 0.0
    %6204 = vmatprep.subr.mxu0 0.0
    %6205 = vmatpush1.msra.mxu0 0.0
    %6206 = vmatprep.subr.mxu0 0.0
    %6207 = vmatpush1.msra.mxu0 0.0
    %6208 = vmatprep.subr.mxu0 0.0
    %6209 = vmatpush1.msra.mxu0 0.0
    %6210 = vmatprep.subr.mxu0 0.0
    %6211 = vmatpush1.msra.mxu0 0.0
    %6212 = vmatprep.subr.mxu0 0.0
    %6213 = vmatpush1.msra.mxu0 0.0
    %6214 = vmatprep.subr.mxu0 0.0
    %6215 = vmatpush1.msra.mxu0 0.0
    %6216 = vmatprep.subr.mxu0 0.0
    %6217 = vmatpush1.msra.mxu0 0.0
    %6218 = vmatprep.mubr.f32.mxu0 0.0
    %6219 = vmatmul.mubr.f32.gmra.mrb[0].mxu0 %v6143
    %v6220 = vpop.f32.mrb[0].mxu0
    %v6221 = vadd.f32 %v5730, %v6220
    %v6222 = vpop.f32.mrb[0].mxu0
    %6223 = vmatprep.mubr.f32.mxu0 0.0
    %6224 = vmatmul.mubr.f32.gmra.mrb[0].mxu0 %v6146
    %v6225 = vpop.f32.mrb[0].mxu0
    %v6226 = vadd.f32 %v5735, %v6225
    %v6227 = vpop.f32.mrb[0].mxu0
    %6228 = vmatprep.mubr.f32.mxu0 0.0
    %6229 = vmatmul.mubr.f32.gmra.mrb[0].mxu0 %v6149
    %v6230 = vpop.f32.mrb[0].mxu0
    %v6231 = vadd.f32 %v5740, %v6230
    %v6232 = vpop.f32.mrb[0].mxu0
    %6233 = vmatprep.mubr.f32.mxu0 0.0
    %6234 = vmatmul.mubr.f32.gmra.mrb[0].mxu0 %v6152
    %v6235 = vpop.f32.mrb[0].mxu0
    %v6236 = vadd.f32 %v5745, %v6235
    %v6237 = vpop.f32.mrb[0].mxu0
    %6238 = vdwg.mxu0
    %v6240 = vsel %vm3264, %v5399, 0
    %v6243 = vsel %vm3264, %v5402, 0
    %v6246 = vsel %vm3264, %v5407, 0
    %v6249 = vsel %vm3264, %v5410, 0
    %6251 = vmatprep.subr.mxu0 0.0
    %6252 = vmatpush1.msra.mxu0 %v5749
    %6253 = vmatprep.subr.mxu0 0.0
    %6254 = vmatpush1.msra.mxu0 0.0
    %6255 = vmatprep.subr.mxu0 0.0
    %6256 = vmatpush1.msra.mxu0 0.0
    %6257 = vmatprep.subr.mxu0 0.0
    %6258 = vmatpush1.msra.mxu0 0.0
    %6259 = vmatprep.subr.mxu0 0.0
    %6260 = vmatpush1.msra.mxu0 0.0
    %6261 = vmatprep.subr.mxu0 0.0
    %6262 = vmatpush1.msra.mxu0 0.0
    %6263 = vmatprep.subr.mxu0 0.0
    %6264 = vmatpush1.msra.mxu0 0.0
    %6265 = vmatprep.subr.mxu0 0.0
    %6266 = vmatpush1.msra.mxu0 0.0
    %6267 = vmatprep.subr.mxu0 0.0
    %6268 = vmatpush1.msra.mxu0 0.0
    %6269 = vmatprep.subr.mxu0 0.0
    %6270 = vmatpush1.msra.mxu0 0.0
    %6271 = vmatprep.subr.mxu0 0.0
    %6272 = vmatpush1.msra.mxu0 0.0
    %6273 = vmatprep.subr.mxu0 0.0
    %6274 = vmatpush1.msra.mxu0 0.0
    %6275 = vmatprep.subr.mxu0 0.0
    %6276 = vmatpush1.msra.mxu0 0.0
    %6277 = vmatprep.subr.mxu0 0.0
    %6278 = vmatpush1.msra.mxu0 0.0
    %6279 = vmatprep.subr.mxu0 0.0
    %6280 = vmatpush1.msra.mxu0 0.0
    %6281 = vmatprep.subr.mxu0 0.0
    %6282 = vmatpush1.msra.mxu0 0.0
    %6283 = vmatprep.subr.mxu0 0.0
    %6284 = vmatpush1.msra.mxu0 0.0
    %6285 = vmatprep.subr.mxu0 0.0
    %6286 = vmatpush1.msra.mxu0 0.0
    %6287 = vmatprep.subr.mxu0 0.0
    %6288 = vmatpush1.msra.mxu0 0.0
    %6289 = vmatprep.subr.mxu0 0.0
    %6290 = vmatpush1.msra.mxu0 0.0
    %6291 = vmatprep.subr.mxu0 0.0
    %6292 = vmatpush1.msra.mxu0 0.0
    %6293 = vmatprep.subr.mxu0 0.0
    %6294 = vmatpush1.msra.mxu0 0.0
    %6295 = vmatprep.subr.mxu0 0.0
    %6296 = vmatpush1.msra.mxu0 0.0
    %6297 = vmatprep.subr.mxu0 0.0
    %6298 = vmatpush1.msra.mxu0 0.0
    %6299 = vmatprep.subr.mxu0 0.0
    %6300 = vmatpush1.msra.mxu0 0.0
    %6301 = vmatprep.subr.mxu0 0.0
    %6302 = vmatpush1.msra.mxu0 0.0
    %6303 = vmatprep.subr.mxu0 0.0
    %6304 = vmatpush1.msra.mxu0 0.0
    %6305 = vmatprep.subr.mxu0 0.0
    %6306 = vmatpush1.msra.mxu0 0.0
    %6307 = vmatprep.subr.mxu0 0.0
    %6308 = vmatpush1.msra.mxu0 0.0
    %6309 = vmatprep.subr.mxu0 0.0
    %6310 = vmatpush1.msra.mxu0 0.0
    %6311 = vmatprep.subr.mxu0 0.0
    %6312 = vmatpush1.msra.mxu0 0.0
    %6313 = vmatprep.subr.mxu0 0.0
    %6314 = vmatpush1.msra.mxu0 0.0
    %6315 = vmatprep.mubr.f32.mxu0 0.0
    %6316 = vmatmul.mubr.f32.gmra.mrb[0].mxu0 %v6240
    %v6317 = vpop.f32.mrb[0].mxu0
    %v6318 = vadd.f32 %v5831, %v6317
    %v6319 = vpop.f32.mrb[0].mxu0
    %6320 = vmatprep.mubr.f32.mxu0 0.0
    %6321 = vmatmul.mubr.f32.gmra.mrb[0].mxu0 %v6243
    %v6322 = vpop.f32.mrb[0].mxu0
    %v6323 = vadd.f32 %v5836, %v6322
    %v6324 = vpop.f32.mrb[0].mxu0
    %6325 = vmatprep.mubr.f32.mxu0 0.0
    %6326 = vmatmul.mubr.f32.gmra.mrb[0].mxu0 %v6246
    %v6327 = vpop.f32.mrb[0].mxu0
    %v6328 = vadd.f32 %v5841, %v6327
    %v6329 = vpop.f32.mrb[0].mxu0
    %6330 = vmatprep.mubr.f32.mxu0 0.0
    %6331 = vmatmul.mubr.f32.gmra.mrb[0].mxu0 %v6249
    %v6332 = vpop.f32.mrb[0].mxu0
    %v6333 = vadd.f32 %v5846, %v6332
    %v6334 = vpop.f32.mrb[0].mxu0
    %6335 = vdwg.mxu0
    %v6336 = vadd.f32 %v6027, %v6124
    %v6337 = vadd.f32 %v6032, %v6129
    %v6338 = vadd.f32 %v6037, %v6134
    %v6339 = vadd.f32 %v6042, %v6139
    %v6340 = vadd.f32 %v6221, %v6318
    %v6341 = vadd.f32 %v6226, %v6323
    %v6342 = vadd.f32 %v6231, %v6328
    %v6343 = vadd.f32 %v6236, %v6333
    %v6344 = vadd.f32 %v6336, %v6340
    %v6345 = vadd.f32 %v6337, %v6341
    %v6346 = vadd.f32 %v6338, %v6342
    %v6347 = vadd.f32 %v6339, %v6343
    %v6348 = vadd.f32 %v6344, %v5930
    %v6349 = vadd.f32 %v6345, %v5935
    %v6350 = vadd.f32 %v6346, %v5940
    %v6351 = vadd.f32 %v6347, %v5945
    %v6352 = vlaneseq
    %v6353 = vshrl.u32 %v6352, 7
    %v6354 = vsub.s32 1, %v6353
    %v6355 = vrot.slane %v57, %v6354
    %v6356 = vadd.f32 %v6348, %v6355
    %v6357 = vadd.f32 %v6349, %v6355
    %v6358 = vadd.f32 %v6350, %v6355
    %v6359 = vadd.f32 %v6351, %v6355
    %v6360 = vmax.f32 %v6356, 0.0
    %v6361 = vmax.f32 %v6357, 0.0
    %v6362 = vmax.f32 %v6358, 0.0
    %v6363 = vmax.f32 %v6359, 0.0
    %v6364 = vld [vmem:[#allocation4 + $0x48] sm:$0xf]
    %v6365 = vunpack.c.l.bf16 %v6364
    %vm6366 = vcmask 261120
    %v6368 = vsel %vm6366, %v6365, 0
    %6370 = vmatprep.subr.mxu0 0.0
    %6371 = vmatpush1.msra.mxu0 %v6360
    %6372 = vmatprep.subr.mxu0 0.0
    %6373 = vmatpush1.msra.mxu0 %v6361
    %6374 = vmatprep.subr.mxu0 0.0
    %6375 = vmatpush1.msra.mxu0 %v6362
    %6376 = vmatprep.subr.mxu0 0.0
    %6377 = vmatpush1.msra.mxu0 %v6363
    %6378 = vmatprep.subr.mxu0 0.0
    %6379 = vmatpush1.msra.mxu0 0.0
    %6380 = vmatprep.subr.mxu0 0.0
    %6381 = vmatpush1.msra.mxu0 0.0
    %6382 = vmatprep.subr.mxu0 0.0
    %6383 = vmatpush1.msra.mxu0 0.0
    %6384 = vmatprep.subr.mxu0 0.0
    %6385 = vmatpush1.msra.mxu0 0.0
    %6386 = vmatprep.subr.mxu0 0.0
    %6387 = vmatpush1.msra.mxu0 0.0
    %6388 = vmatprep.subr.mxu0 0.0
    %6389 = vmatpush1.msra.mxu0 0.0
    %6390 = vmatprep.subr.mxu0 0.0
    %6391 = vmatpush1.msra.mxu0 0.0
    %6392 = vmatprep.subr.mxu0 0.0
    %6393 = vmatpush1.msra.mxu0 0.0
    %6394 = vmatprep.subr.mxu0 0.0
    %6395 = vmatpush1.msra.mxu0 0.0
    %6396 = vmatprep.subr.mxu0 0.0
    %6397 = vmatpush1.msra.mxu0 0.0
    %6398 = vmatprep.subr.mxu0 0.0
    %6399 = vmatpush1.msra.mxu0 0.0
    %6400 = vmatprep.subr.mxu0 0.0
    %6401 = vmatpush1.msra.mxu0 0.0
    %6402 = vmatprep.subr.mxu0 0.0
    %6403 = vmatpush1.msra.mxu0 0.0
    %6404 = vmatprep.subr.mxu0 0.0
    %6405 = vmatpush1.msra.mxu0 0.0
    %6406 = vmatprep.subr.mxu0 0.0
    %6407 = vmatpush1.msra.mxu0 0.0
    %6408 = vmatprep.subr.mxu0 0.0
    %6409 = vmatpush1.msra.mxu0 0.0
    %6410 = vmatprep.subr.mxu0 0.0
    %6411 = vmatpush1.msra.mxu0 0.0
    %6412 = vmatprep.subr.mxu0 0.0
    %6413 = vmatpush1.msra.mxu0 0.0
    %6414 = vmatprep.subr.mxu0 0.0
    %6415 = vmatpush1.msra.mxu0 0.0
    %6416 = vmatprep.subr.mxu0 0.0
    %6417 = vmatpush1.msra.mxu0 0.0
    %6418 = vmatprep.subr.mxu0 0.0
    %6419 = vmatpush1.msra.mxu0 0.0
    %6420 = vmatprep.subr.mxu0 0.0
    %6421 = vmatpush1.msra.mxu0 0.0
    %6422 = vmatprep.subr.mxu0 0.0
    %6423 = vmatpush1.msra.mxu0 0.0
    %6424 = vmatprep.subr.mxu0 0.0
    %6425 = vmatpush1.msra.mxu0 0.0
    %6426 = vmatprep.subr.mxu0 0.0
    %6427 = vmatpush1.msra.mxu0 0.0
    %6428 = vmatprep.subr.mxu0 0.0
    %6429 = vmatpush1.msra.mxu0 0.0
    %6430 = vmatprep.subr.mxu0 0.0
    %6431 = vmatpush1.msra.mxu0 0.0
    %6432 = vmatprep.subr.mxu0 0.0
    %6433 = vmatpush1.msra.mxu0 0.0
    %6434 = vmatprep.mubr.f32.mxu0 0.0
    %6435 = vmatmul.mubr.f32.gmra.mrb[0].mxu0 %v6368
    %v6436 = vpop.f32.mrb[0].mxu0
    %v6437 = vadd.f32 0.0, %v6436
    %v6438 = vpop.f32.mrb[0].mxu0
    %6439 = vdwg.mxu0
    %v6440 = vld [vmem:[#allocation4 + $0x4c] sm:$0xf]
    %v6441 = vld [vmem:[#allocation4 + $0x50] sm:$0xf]
    %v6442 = vunpack.c.l.bf16 %v6440
    %v6443 = vunpack.c.l.bf16 %v6441
    %v6444 = vlaneseq
    %v6445 = vshrl.u32 %v6444, 7
    %v6446 = vsub.s32 2, %v6445
    %v6447 = vrot.slane %v57, %v6446
    %vm6448 = vcmask 130048
    %v6450 = vsel %vm6448, %v6437, 0
    %6452 = vmatprep.subr.mxu0 0.0
    %6453 = vmatpush1.msra.mxu0 %v6442
    %6454 = vmatprep.subr.mxu0 0.0
    %6455 = vmatpush1.msra.mxu0 %v6443
    %6456 = vmatprep.subr.mxu0 0.0
    %6457 = vmatpush1.msra.mxu0 0.0
    %6458 = vmatprep.subr.mxu0 0.0
    %6459 = vmatpush1.msra.mxu0 0.0
    %6460 = vmatprep.subr.mxu0 0.0
    %6461 = vmatpush1.msra.mxu0 0.0
    %6462 = vmatprep.subr.mxu0 0.0
    %6463 = vmatpush1.msra.mxu0 0.0
    %6464 = vmatprep.subr.mxu0 0.0
    %6465 = vmatpush1.msra.mxu0 0.0
    %6466 = vmatprep.subr.mxu0 0.0
    %6467 = vmatpush1.msra.mxu0 0.0
    %6468 = vmatprep.subr.mxu0 0.0
    %6469 = vmatpush1.msra.mxu0 0.0
    %6470 = vmatprep.subr.mxu0 0.0
    %6471 = vmatpush1.msra.mxu0 0.0
    %6472 = vmatprep.subr.mxu0 0.0
    %6473 = vmatpush1.msra.mxu0 0.0
    %6474 = vmatprep.subr.mxu0 0.0
    %6475 = vmatpush1.msra.mxu0 0.0
    %6476 = vmatprep.subr.mxu0 0.0
    %6477 = vmatpush1.msra.mxu0 0.0
    %6478 = vmatprep.subr.mxu0 0.0
    %6479 = vmatpush1.msra.mxu0 0.0
    %6480 = vmatprep.subr.mxu0 0.0
    %6481 = vmatpush1.msra.mxu0 0.0
    %6482 = vmatprep.subr.mxu0 0.0
    %6483 = vmatpush1.msra.mxu0 0.0
    %6484 = vmatprep.subr.mxu0 0.0
    %6485 = vmatpush1.msra.mxu0 0.0
    %6486 = vmatprep.subr.mxu0 0.0
    %6487 = vmatpush1.msra.mxu0 0.0
    %6488 = vmatprep.subr.mxu0 0.0
    %6489 = vmatpush1.msra.mxu0 0.0
    %6490 = vmatprep.subr.mxu0 0.0
    %6491 = vmatpush1.msra.mxu0 0.0
    %6492 = vmatprep.subr.mxu0 0.0
    %6493 = vmatpush1.msra.mxu0 0.0
    %6494 = vmatprep.subr.mxu0 0.0
    %6495 = vmatpush1.msra.mxu0 0.0
    %6496 = vmatprep.subr.mxu0 0.0
    %6497 = vmatpush1.msra.mxu0 0.0
    %6498 = vmatprep.subr.mxu0 0.0
    %6499 = vmatpush1.msra.mxu0 0.0
    %6500 = vmatprep.subr.mxu0 0.0
    %6501 = vmatpush1.msra.mxu0 0.0
    %6502 = vmatprep.subr.mxu0 0.0
    %6503 = vmatpush1.msra.mxu0 0.0
    %6504 = vmatprep.subr.mxu0 0.0
    %6505 = vmatpush1.msra.mxu0 0.0
    %6506 = vmatprep.subr.mxu0 0.0
    %6507 = vmatpush1.msra.mxu0 0.0
    %6508 = vmatprep.subr.mxu0 0.0
    %6509 = vmatpush1.msra.mxu0 0.0
    %6510 = vmatprep.subr.mxu0 0.0
    %6511 = vmatpush1.msra.mxu0 0.0
    %6512 = vmatprep.subr.mxu0 0.0
    %6513 = vmatpush1.msra.mxu0 0.0
    %6514 = vmatprep.subr.mxu0 0.0
    %6515 = vmatpush1.msra.mxu0 0.0
    %6516 = vmatprep.mubr.f32.mxu0 0.0
    %6517 = vmatmul.mubr.f32.gmra.mrb[0].mxu0 %v6450
    %v6518 = vpop.f32.mrb[0].mxu0
    %v6519 = vadd.f32 %v6447, %v6518
    %v6520 = vpop.f32.mrb[0].mxu0
    %6521 = vdwg.mxu0
    %v6522 = vmax.f32 %v6519, 0.0
    %v6523 = vld [vmem:[#allocation4 + $0x54] sm:$0xf]
    %v6524 = vld [vmem:[#allocation4 + $0x58] sm:$0xf]
    %v6525 = vld [vmem:[#allocation4 + $0x5c] sm:$0xf]
    %v6526 = vld [vmem:[#allocation4 + $0x60] sm:$0xf]
    %v6527 = vld [vmem:[#allocation4 + $0x64] sm:$0xf]
    %v6528 = vld [vmem:[#allocation4 + $0x68] sm:$0xf]
    %v6529 = vld [vmem:[#allocation4 + $0x6c] sm:$0xf]
    %v6530 = vld [vmem:[#allocation4 + $0x70] sm:$0xf]
    %v6531 = vunpack.c.l.bf16 %v6523
    %v6532 = vunpack.c.l.bf16 %v6524
    %v6533 = vunpack.c.l.bf16 %v6525
    %v6534 = vunpack.c.l.bf16 %v6526
    %v6535 = vunpack.c.l.bf16 %v6527
    %v6536 = vunpack.c.l.bf16 %v6528
    %v6537 = vunpack.c.l.bf16 %v6529
    %v6538 = vunpack.c.l.bf16 %v6530
    %v6539 = vlaneseq
    %v6540 = vshrl.u32 %v6539, 7
    %v6541 = vsub.s32 3, %v6540
    %v6542 = vrot.slane %v57, %v6541
    %vm6543 = vcmask 523264
    %v6545 = vsel %vm6543, %v6522, 0
    %6547 = vmatprep.subr.mxu0 0.0
    %6548 = vmatpush1.msra.mxu0 %v6531
    %6549 = vmatprep.subr.mxu0 0.0
    %6550 = vmatpush1.msra.mxu0 %v6532
    %6551 = vmatprep.subr.mxu0 0.0
    %6552 = vmatpush1.msra.mxu0 %v6533
    %6553 = vmatprep.subr.mxu0 0.0
    %6554 = vmatpush1.msra.mxu0 %v6534
    %6555 = vmatprep.subr.mxu0 0.0
    %6556 = vmatpush1.msra.mxu0 %v6535
    %6557 = vmatprep.subr.mxu0 0.0
    %6558 = vmatpush1.msra.mxu0 %v6536
    %6559 = vmatprep.subr.mxu0 0.0
    %6560 = vmatpush1.msra.mxu0 %v6537
    %6561 = vmatprep.subr.mxu0 0.0
    %6562 = vmatpush1.msra.mxu0 %v6538
    %6563 = vmatprep.subr.mxu0 0.0
    %6564 = vmatpush1.msra.mxu0 0.0
    %6565 = vmatprep.subr.mxu0 0.0
    %6566 = vmatpush1.msra.mxu0 0.0
    %6567 = vmatprep.subr.mxu0 0.0
    %6568 = vmatpush1.msra.mxu0 0.0
    %6569 = vmatprep.subr.mxu0 0.0
    %6570 = vmatpush1.msra.mxu0 0.0
    %6571 = vmatprep.subr.mxu0 0.0
    %6572 = vmatpush1.msra.mxu0 0.0
    %6573 = vmatprep.subr.mxu0 0.0
    %6574 = vmatpush1.msra.mxu0 0.0
    %6575 = vmatprep.subr.mxu0 0.0
    %6576 = vmatpush1.msra.mxu0 0.0
    %6577 = vmatprep.subr.mxu0 0.0
    %6578 = vmatpush1.msra.mxu0 0.0
    %6579 = vmatprep.subr.mxu0 0.0
    %6580 = vmatpush1.msra.mxu0 0.0
    %6581 = vmatprep.subr.mxu0 0.0
    %6582 = vmatpush1.msra.mxu0 0.0
    %6583 = vmatprep.subr.mxu0 0.0
    %6584 = vmatpush1.msra.mxu0 0.0
    %6585 = vmatprep.subr.mxu0 0.0
    %6586 = vmatpush1.msra.mxu0 0.0
    %6587 = vmatprep.subr.mxu0 0.0
    %6588 = vmatpush1.msra.mxu0 0.0
    %6589 = vmatprep.subr.mxu0 0.0
    %6590 = vmatpush1.msra.mxu0 0.0
    %6591 = vmatprep.subr.mxu0 0.0
    %6592 = vmatpush1.msra.mxu0 0.0
    %6593 = vmatprep.subr.mxu0 0.0
    %6594 = vmatpush1.msra.mxu0 0.0
    %6595 = vmatprep.subr.mxu0 0.0
    %6596 = vmatpush1.msra.mxu0 0.0
    %6597 = vmatprep.subr.mxu0 0.0
    %6598 = vmatpush1.msra.mxu0 0.0
    %6599 = vmatprep.subr.mxu0 0.0
    %6600 = vmatpush1.msra.mxu0 0.0
    %6601 = vmatprep.subr.mxu0 0.0
    %6602 = vmatpush1.msra.mxu0 0.0
    %6603 = vmatprep.subr.mxu0 0.0
    %6604 = vmatpush1.msra.mxu0 0.0
    %6605 = vmatprep.subr.mxu0 0.0
    %6606 = vmatpush1.msra.mxu0 0.0
    %6607 = vmatprep.subr.mxu0 0.0
    %6608 = vmatpush1.msra.mxu0 0.0
    %6609 = vmatprep.subr.mxu0 0.0
    %6610 = vmatpush1.msra.mxu0 0.0
    %6611 = vmatprep.mubr.f32.mxu0 0.0
    %6612 = vmatmul.mubr.f32.gmra.mrb[0].mxu0 %v6545
    %v6613 = vpop.f32.mrb[0].mxu0
    %v6614 = vadd.f32 %v6542, %v6613
    %v6615 = vpop.f32.mrb[0].mxu0
    %6616 = vdwg.mxu0
    %v6617 = vmax.f32 %v6614, 0.0
    %v6618 = vld [vmem:[#allocation4 + $0x74] sm:$0xf]
    %v6619 = vld [vmem:[#allocation4 + $0x78] sm:$0xf]
    %v6620 = vld [vmem:[#allocation4 + $0x7c] sm:$0xf]
    %v6621 = vld [vmem:[#allocation4 + $0x80] sm:$0xf]
    %v6622 = vunpack.c.l.bf16 %v6618
    %v6623 = vunpack.c.l.bf16 %v6619
    %v6624 = vunpack.c.l.bf16 %v6620
    %v6625 = vunpack.c.l.bf16 %v6621
    %v6626 = vlaneseq
    %v6627 = vshrl.u32 %v6626, 7
    %v6628 = vsub.s32 4, %v6627
    %v6629 = vrot.slane %v57, %v6628
    %v6631 = vsel %vm6366, %v6617, 0
    %6633 = vmatprep.subr.mxu0 0.0
    %6634 = vmatpush1.msra.mxu0 %v6622
    %6635 = vmatprep.subr.mxu0 0.0
    %6636 = vmatpush1.msra.mxu0 %v6623
    %6637 = vmatprep.subr.mxu0 0.0
    %6638 = vmatpush1.msra.mxu0 %v6624
    %6639 = vmatprep.subr.mxu0 0.0
    %6640 = vmatpush1.msra.mxu0 %v6625
    %6641 = vmatprep.subr.mxu0 0.0
    %6642 = vmatpush1.msra.mxu0 0.0
    %6643 = vmatprep.subr.mxu0 0.0
    %6644 = vmatpush1.msra.mxu0 0.0
    %6645 = vmatprep.subr.mxu0 0.0
    %6646 = vmatpush1.msra.mxu0 0.0
    %6647 = vmatprep.subr.mxu0 0.0
    %6648 = vmatpush1.msra.mxu0 0.0
    %6649 = vmatprep.subr.mxu0 0.0
    %6650 = vmatpush1.msra.mxu0 0.0
    %6651 = vmatprep.subr.mxu0 0.0
    %6652 = vmatpush1.msra.mxu0 0.0
    %6653 = vmatprep.subr.mxu0 0.0
    %6654 = vmatpush1.msra.mxu0 0.0
    %6655 = vmatprep.subr.mxu0 0.0
    %6656 = vmatpush1.msra.mxu0 0.0
    %6657 = vmatprep.subr.mxu0 0.0
    %6658 = vmatpush1.msra.mxu0 0.0
    %6659 = vmatprep.subr.mxu0 0.0
    %6660 = vmatpush1.msra.mxu0 0.0
    %6661 = vmatprep.subr.mxu0 0.0
    %6662 = vmatpush1.msra.mxu0 0.0
    %6663 = vmatprep.subr.mxu0 0.0
    %6664 = vmatpush1.msra.mxu0 0.0
    %6665 = vmatprep.subr.mxu0 0.0
    %6666 = vmatpush1.msra.mxu0 0.0
    %6667 = vmatprep.subr.mxu0 0.0
    %6668 = vmatpush1.msra.mxu0 0.0
    %6669 = vmatprep.subr.mxu0 0.0
    %6670 = vmatpush1.msra.mxu0 0.0
    %6671 = vmatprep.subr.mxu0 0.0
    %6672 = vmatpush1.msra.mxu0 0.0
    %6673 = vmatprep.subr.mxu0 0.0
    %6674 = vmatpush1.msra.mxu0 0.0
    %6675 = vmatprep.subr.mxu0 0.0
    %6676 = vmatpush1.msra.mxu0 0.0
    %6677 = vmatprep.subr.mxu0 0.0
    %6678 = vmatpush1.msra.mxu0 0.0
    %6679 = vmatprep.subr.mxu0 0.0
    %6680 = vmatpush1.msra.mxu0 0.0
    %6681 = vmatprep.subr.mxu0 0.0
    %6682 = vmatpush1.msra.mxu0 0.0
    %6683 = vmatprep.subr.mxu0 0.0
    %6684 = vmatpush1.msra.mxu0 0.0
    %6685 = vmatprep.subr.mxu0 0.0
    %6686 = vmatpush1.msra.mxu0 0.0
    %6687 = vmatprep.subr.mxu0 0.0
    %6688 = vmatpush1.msra.mxu0 0.0
    %6689 = vmatprep.subr.mxu0 0.0
    %6690 = vmatpush1.msra.mxu0 0.0
    %6691 = vmatprep.subr.mxu0 0.0
    %6692 = vmatpush1.msra.mxu0 0.0
    %6693 = vmatprep.subr.mxu0 0.0
    %6694 = vmatpush1.msra.mxu0 0.0
    %6695 = vmatprep.subr.mxu0 0.0
    %6696 = vmatpush1.msra.mxu0 0.0
    %6697 = vmatprep.mubr.f32.mxu0 0.0
    %6698 = vmatmul.mubr.f32.gmra.mrb[0].mxu0 %v6631
    %v6699 = vpop.f32.mrb[0].mxu0
    %v6700 = vadd.f32 %v6629, %v6699
    %v6701 = vpop.f32.mrb[0].mxu0
    %6702 = vdwg.mxu0
    %v6703 = vld [vmem:[#allocation4 + $0x84] sm:$0xf]
    %v6704 = vld [vmem:[#allocation4 + $0x88] sm:$0xf]
    %v6705 = vld [vmem:[#allocation4 + $0x8c] sm:$0xf]
    %v6706 = vld [vmem:[#allocation4 + $0x90] sm:$0xf]
    %v6707 = vunpack.c.l.bf16 %v6703
    %v6708 = vunpack.c.l.bf16 %v6704
    %v6709 = vunpack.c.l.bf16 %v6705
    %v6710 = vunpack.c.l.bf16 %v6706
    %v6711 = vlaneseq
    %v6712 = vshrl.u32 %v6711, 7
    %v6713 = vsub.s32 5, %v6712
    %v6714 = vrot.slane %v57, %v6713
    %v6716 = vsel %vm6366, %v6700, 0
    %6718 = vmatprep.subr.mxu0 0.0
    %6719 = vmatpush1.msra.mxu0 %v6707
    %6720 = vmatprep.subr.mxu0 0.0
    %6721 = vmatpush1.msra.mxu0 %v6708
    %6722 = vmatprep.subr.mxu0 0.0
    %6723 = vmatpush1.msra.mxu0 %v6709
    %6724 = vmatprep.subr.mxu0 0.0
    %6725 = vmatpush1.msra.mxu0 %v6710
    %6726 = vmatprep.subr.mxu0 0.0
    %6727 = vmatpush1.msra.mxu0 0.0
    %6728 = vmatprep.subr.mxu0 0.0
    %6729 = vmatpush1.msra.mxu0 0.0
    %6730 = vmatprep.subr.mxu0 0.0
    %6731 = vmatpush1.msra.mxu0 0.0
    %6732 = vmatprep.subr.mxu0 0.0
    %6733 = vmatpush1.msra.mxu0 0.0
    %6734 = vmatprep.subr.mxu0 0.0
    %6735 = vmatpush1.msra.mxu0 0.0
    %6736 = vmatprep.subr.mxu0 0.0
    %6737 = vmatpush1.msra.mxu0 0.0
    %6738 = vmatprep.subr.mxu0 0.0
    %6739 = vmatpush1.msra.mxu0 0.0
    %6740 = vmatprep.subr.mxu0 0.0
    %6741 = vmatpush1.msra.mxu0 0.0
    %6742 = vmatprep.subr.mxu0 0.0
    %6743 = vmatpush1.msra.mxu0 0.0
    %6744 = vmatprep.subr.mxu0 0.0
    %6745 = vmatpush1.msra.mxu0 0.0
    %6746 = vmatprep.subr.mxu0 0.0
    %6747 = vmatpush1.msra.mxu0 0.0
    %6748 = vmatprep.subr.mxu0 0.0
    %6749 = vmatpush1.msra.mxu0 0.0
    %6750 = vmatprep.subr.mxu0 0.0
    %6751 = vmatpush1.msra.mxu0 0.0
    %6752 = vmatprep.subr.mxu0 0.0
    %6753 = vmatpush1.msra.mxu0 0.0
    %6754 = vmatprep.subr.mxu0 0.0
    %6755 = vmatpush1.msra.mxu0 0.0
    %6756 = vmatprep.subr.mxu0 0.0
    %6757 = vmatpush1.msra.mxu0 0.0
    %6758 = vmatprep.subr.mxu0 0.0
    %6759 = vmatpush1.msra.mxu0 0.0
    %6760 = vmatprep.subr.mxu0 0.0
    %6761 = vmatpush1.msra.mxu0 0.0
    %6762 = vmatprep.subr.mxu0 0.0
    %6763 = vmatpush1.msra.mxu0 0.0
    %6764 = vmatprep.subr.mxu0 0.0
    %6765 = vmatpush1.msra.mxu0 0.0
    %6766 = vmatprep.subr.mxu0 0.0
    %6767 = vmatpush1.msra.mxu0 0.0
    %6768 = vmatprep.subr.mxu0 0.0
    %6769 = vmatpush1.msra.mxu0 0.0
    %6770 = vmatprep.subr.mxu0 0.0
    %6771 = vmatpush1.msra.mxu0 0.0
    %6772 = vmatprep.subr.mxu0 0.0
    %6773 = vmatpush1.msra.mxu0 0.0
    %6774 = vmatprep.subr.mxu0 0.0
    %6775 = vmatpush1.msra.mxu0 0.0
    %6776 = vmatprep.subr.mxu0 0.0
    %6777 = vmatpush1.msra.mxu0 0.0
    %6778 = vmatprep.subr.mxu0 0.0
    %6779 = vmatpush1.msra.mxu0 0.0
    %6780 = vmatprep.subr.mxu0 0.0
    %6781 = vmatpush1.msra.mxu0 0.0
    %6782 = vmatprep.mubr.f32.mxu0 0.0
    %6783 = vmatmul.mubr.f32.gmra.mrb[0].mxu0 %v6716
    %v6784 = vpop.f32.mrb[0].mxu0
    %v6785 = vadd.f32 %v6714, %v6784
    %v6786 = vpop.f32.mrb[0].mxu0
    %6787 = vdwg.mxu0
    %6788 = vst [vmem:[%s4] sm:$0xff] %v6785
    // Predicated region
    $region30: #{forward.1} parent=1 // pred_check
      _
    $region31: #{forward.1} parent=1 // pred_check_branch
      %6790 = sbr.rel (0) target = $region33
    $region32: #{forward.1} parent=1 // pred_region
      _
    $region33: #{forward.1} parent=1 // pred_fallthru
      _
    // Predicated region
    $region34: #{forward.1} parent=1 // pred_check
      _
    $region35: #{forward.1} parent=1 // pred_check_branch
      %6792 = sbr.rel (0) target = $region37
    $region36: #{forward.1} parent=1 // pred_region
      _
    $region37: #{forward.1} parent=1 // pred_fallthru
      _
    %6793 = vsyncpa [#allocation3], 1
    %6794 = vsyncpa [#allocation5], 1

</llo_original>
